<compile_context>
chip_gen: v5e
topology: v5e:2x2
jax: 0.10.0
libtpu: 0.0.40
codegen_flags: <defaults>
</compile_context>

<pallas_src>
import functools

import jax
import jax.numpy as jnp
from jax.experimental import pallas as pl
from jax.experimental.pallas import tpu as pltpu


def _superfeatures_kernel(src_ref, lbl_ref, out_ref, acc_ref, *,
                          H, W, TH, MC, M_pad, unroll):
    # src_ref: [1, CC, TH, W] f32    lbl_ref: [1, 1, TH, W] int32
    # out_ref: [1, CC, M_pad] f32    acc_ref: [CC, M_pad, W] f32 (VMEM scratch)
    r = pl.program_id(2)
    neg_inf = jnp.float32(-jnp.inf)

    @pl.when(r == 0)
    def _init():
        acc_ref[...] = jnp.full(acc_ref.shape, neg_inf, dtype=acc_ref.dtype)

    src = src_ref[0]            # [CC, TH, W]
    lbl = lbl_ref[0, 0]         # [TH, W]
    CC = src.shape[0]

    # Interior crop ([1:-1, 1:-1]) folded into the kernel: boundary pixels get
    # label -1, which never matches any segment id.
    rows = jax.lax.broadcasted_iota(jnp.int32, (TH, W), 0) + r * TH
    cols = jax.lax.broadcasted_iota(jnp.int32, (TH, W), 1)
    valid = (rows >= 1) & (rows <= H - 2) & (cols >= 1) & (cols <= W - 2)
    lbl_eff = jnp.where(valid, lbl, jnp.int32(-1))

    # Loop-invariant broadcasts hoisted out of the M-chunk loop
    # (JAX does not CSE broadcast_in_dim).
    seg_base = jax.lax.broadcasted_iota(jnp.int32, (MC, TH, W), 0)
    lbl_b = jnp.broadcast_to(lbl_eff[None], (MC, TH, W))
    src_b = jnp.broadcast_to(src[:, None], (CC, MC, TH, W))

    n_chunks = M_pad // MC

    def chunk_body(mc, carry):
        m0 = pl.multiple_of(mc * MC, MC)
        match = lbl_b == (seg_base + m0)                     # [MC, TH, W]
        masked = jnp.where(match[None], src_b, neg_inf)      # [CC, MC, TH, W]
        part = jnp.max(masked, axis=2)                       # [CC, MC, W] (sublane reduce only)
        cur = acc_ref[:, pl.ds(m0, MC), :]
        acc_ref[:, pl.ds(m0, MC), :] = jnp.maximum(cur, part)  # VPU running max
        return carry

    jax.lax.fori_loop(0, n_chunks, chunk_body, 0, unroll=unroll)

    @pl.when(r == pl.num_programs(2) - 1)
    def _finalize():
        # Single lane (XLU) reduce per (channel, segment) for the whole image.
        res = jnp.max(acc_ref[...], axis=-1)                 # [CC, M_pad]
        # torch_scatter.scatter_max: empty segments -> 0
        res = jnp.where(res == neg_inf, jnp.float32(0.0), res)
        out_ref[0] = res.astype(out_ref.dtype)               # lane-dense (M_pad % 128 == 0)


def _pick_channel_block(C):
    for cand in (64, 32, 16, 8):
        if C % cand == 0:
            return cand
    return C   # small / odd C: single block covering the full channel dim


@functools.partial(jax.jit, static_argnames=("num_segments",))
def superfeatures(input_features, label_mask, num_segments):
    """Pallas equivalent of Superfeatures.forward.

    input_features: [B, C, H, W] float
    label_mask:     [B, 1, H, W] int
    returns:        [B, C, num_segments] float32
    """
    B, C, H, W = input_features.shape
    src = input_features.astype(jnp.float32)
    lbl = label_mask.astype(jnp.int32)

    M = num_segments
    M_pad = ((M + 127) // 128) * 128        # lane-dense output slab
    TH = 8 if H % 8 == 0 else H             # row tile along the reduction axis
    nR = H // TH
    CC = _pick_channel_block(C)             # "parallel" channel blocks (feeds 2 TCs on v7x)
    nC = C // CC
    MC = 8                                  # segments per inner chunk (vreg pressure)
    unroll = (M_pad // MC) <= 16

    kernel = functools.partial(_superfeatures_kernel, H=H, W=W, TH=TH,
                               MC=MC, M_pad=M_pad, unroll=unroll)

    out = pl.pallas_call(
        kernel,
        out_shape=jax.ShapeDtypeStruct((B, C, M_pad), jnp.float32),
        grid=(B, nC, nR),
        in_specs=[
            pl.BlockSpec((1, CC, TH, W), lambda b, c, r: (b, c, r, 0)),
            pl.BlockSpec((1, 1, TH, W), lambda b, c, r: (b, 0, r, 0)),
        ],
        out_specs=pl.BlockSpec((1, CC, M_pad), lambda b, c, r: (b, c, 0)),
        scratch_shapes=[pltpu.VMEM((CC, M_pad, W), jnp.float32)],
        compiler_params=pltpu.CompilerParams(
            dimension_semantics=("parallel", "parallel", "arbitrary"),
            vmem_limit_bytes=32 * 1024 * 1024,
        ),
    )(src, lbl)
    return out[:, :, :M]


def _reference(input_features, label_mask, num_segments):
    """Pure-JAX reference (mirrors torch_scatter.scatter_max fill-with-0)."""
    B, C, H, W = input_features.shape
    src = input_features[:, :, 1:-1, 1:-1].reshape(B, C, -1).astype(jnp.float32)
    lbl = label_mask[:, :, 1:-1, 1:-1].reshape(B, 1, -1).astype(jnp.int32)
    seg = jnp.arange(num_segments)[None, None, :, None]            # [1,1,M,1]
    match = lbl[:, :, None, :] == seg                              # [B,1,M,N]
    masked = jnp.where(match, src[:, :, None, :], -jnp.inf)        # [B,C,M,N]
    mx = masked.max(axis=-1)                                       # [B,C,M]
    return jnp.where(jnp.isneginf(mx), 0.0, mx)


if __name__ == "__main__":
    key = jax.random.PRNGKey(0)
    k_feat, k_lbl = jax.random.split(key)

    B, C, H, W = 2, 4, 16, 16
    NUM_SEGMENTS = 8   # M = label_mask.max() + 1 (static for the kernel)

    input_features = jax.random.normal(k_feat, (B, C, H, W), dtype=jnp.float32)
    label_mask = jax.random.randint(k_lbl, (B, 1, H, W), 0, NUM_SEGMENTS, dtype=jnp.int32)

    out = superfeatures(input_features, label_mask, NUM_SEGMENTS)
    out = jax.block_until_ready(out)

    ref = _reference(input_features, label_mask, NUM_SEGMENTS)
    assert out.shape == (B, C, NUM_SEGMENTS)
    assert jnp.allclose(out, ref, atol=1e-6), "mismatch vs reference"

    print("KERNEL_OK")
</pallas_src>

<mosaic_0001>
module attributes {stable_mosaic.version = 11 : i64} {
  func.func @_superfeatures_kernel(%arg0: i32, %arg1: i32, %arg2: i32, %arg3: memref<1x4x8x16xf32, #tpu.memory_space<vmem>>, %arg4: memref<1x1x8x16xi32, #tpu.memory_space<vmem>>, %arg5: memref<1x4x128xf32, #tpu.memory_space<vmem>>, %arg6: memref<4x128x16xf32, #tpu.memory_space<vmem>>) attributes {dimension_semantics = [#tpu.dimension_semantics<parallel>, #tpu.dimension_semantics<parallel>, #tpu.dimension_semantics<arbitrary>], iteration_bounds = array<i64: 2, 1, 2>, scalar_prefetch = 0 : i64, scratch_operands = 1 : i64, tpu.core_type = #tpu.core_type<tc>, window_params = [{transform_indices = @transform_0, window_bounds = array<i64: 1, 4, 8, 16>}, {transform_indices = @transform_1, window_bounds = array<i64: 1, 1, 8, 16>}, {transform_indices = @transform_2, window_bounds = array<i64: 1, 4, 128>}]} {
    %c0_i32 = arith.constant 0 : i32
    %0 = arith.cmpi eq, %arg2, %c0_i32 : i32
    %1 = arith.extui %0 : i1 to i32
    %cst = arith.constant 0xFF800000 : f32
    %c0_i32_0 = arith.constant 0 : i32
    %2 = arith.cmpi ne, %1, %c0_i32_0 : i32
    scf.if %2 {
      %291 = vector.broadcast %cst : f32 to vector<4x128x16xf32>
      %c0_114 = arith.constant 0 : index
      %c0_115 = arith.constant 0 : index
      %c0_116 = arith.constant 0 : index
      %292 = vector.load %arg6[%c0_114, %c0_115, %c0_116] : memref<4x128x16xf32, #tpu.memory_space<vmem>>, vector<4x128x16xf32>
      tpu.vector_store %arg6[%c0_114, %c0_115, %c0_116], %291 {strides = array<i32>} : memref<4x128x16xf32, #tpu.memory_space<vmem>>, vector<4x128x16xf32>,
    } else {
    }
    %c0 = arith.constant 0 : index
    %c0_1 = arith.constant 0 : index
    %c0_2 = arith.constant 0 : index
    %c0_3 = arith.constant 0 : index
    %3 = vector.load %arg3[%c0, %c0_1, %c0_2, %c0_3] : memref<1x4x8x16xf32, #tpu.memory_space<vmem>>, vector<1x4x8x16xf32>
    %4 = vector.shape_cast %3 : vector<1x4x8x16xf32> to vector<4x8x16xf32>
    %c0_4 = arith.constant 0 : index
    %c0_5 = arith.constant 0 : index
    %c0_6 = arith.constant 0 : index
    %c0_7 = arith.constant 0 : index
    %5 = vector.load %arg4[%c0_4, %c0_5, %c0_6, %c0_7] : memref<1x1x8x16xi32, #tpu.memory_space<vmem>>, vector<1x1x8x16xi32>
    %6 = vector.shape_cast %5 : vector<1x1x8x16xi32> to vector<8x16xi32>
    %7 = tpu.iota {dimensions = array<i32: 0>} : vector<8x16xi32>
    %c8_i32 = arith.constant 8 : i32
    %8 = arith.muli %arg2, %c8_i32 : i32
    %9 = vector.broadcast %8 : i32 to vector<8x16xi32>
    %10 = arith.addi %7, %9 : vector<8x16xi32>
    %11 = tpu.iota {dimensions = array<i32: 1>} : vector<8x16xi32>
    %c1_i32 = arith.constant 1 : i32
    %12 = vector.broadcast %c1_i32 : i32 to vector<8x16xi32>
    %13 = arith.cmpi sge, %10, %12 : vector<8x16xi32>
    %c14_i32 = arith.constant 14 : i32
    %14 = vector.broadcast %c14_i32 : i32 to vector<8x16xi32>
    %15 = arith.cmpi sle, %10, %14 : vector<8x16xi32>
    %16 = arith.andi %13, %15 : vector<8x16xi1>
    %c1_i32_8 = arith.constant 1 : i32
    %17 = vector.broadcast %c1_i32_8 : i32 to vector<8x16xi32>
    %18 = arith.cmpi sge, %11, %17 : vector<8x16xi32>
    %19 = arith.andi %16, %18 : vector<8x16xi1>
    %c14_i32_9 = arith.constant 14 : i32
    %20 = vector.broadcast %c14_i32_9 : i32 to vector<8x16xi32>
    %21 = arith.cmpi sle, %11, %20 : vector<8x16xi32>
    %22 = arith.andi %19, %21 : vector<8x16xi1>
    %c-1_i32 = arith.constant -1 : i32
    %23 = vector.broadcast %c-1_i32 : i32 to vector<8x16xi32>
    %24 = arith.select %22, %6, %23 : vector<8x16xi1>, vector<8x16xi32>
    %25 = tpu.iota {dimensions = array<i32: 0>} : vector<8x8x16xi32>
    %26 = vector.shape_cast %24 : vector<8x16xi32> to vector<1x8x16xi32>
    %27 = vector.shape_cast %26 : vector<1x8x16xi32> to vector<1x8x16xi32>
    %28 = vector.broadcast %27 : vector<1x8x16xi32> to vector<8x8x16xi32>
    %29 = vector.shape_cast %4 : vector<4x8x16xf32> to vector<4x1x8x16xf32>
    %30 = vector.shape_cast %29 : vector<4x1x8x16xf32> to vector<4x1x8x16xf32>
    %31 = vector.broadcast %30 : vector<4x1x8x16xf32> to vector<4x8x8x16xf32>
    %cst_10 = arith.constant 0xFF800000 : f32
    %c0_i32_11 = arith.constant 0 : i32
    %c8_i32_12 = arith.constant 8 : i32
    %32 = arith.muli %c0_i32_11, %c8_i32_12 : i32
    %33 = tpu.assume_multiple %32, 8 : i32
    %34 = vector.broadcast %33 : i32 to vector<8x8x16xi32>
    %35 = arith.addi %25, %34 : vector<8x8x16xi32>
    %36 = arith.cmpi eq, %28, %35 : vector<8x8x16xi32>
    %37 = vector.shape_cast %36 : vector<8x8x16xi1> to vector<1x8x8x16xi1>
    %38 = vector.shape_cast %37 : vector<1x8x8x16xi1> to vector<1x8x8x16xi1>
    %39 = vector.broadcast %38 : vector<1x8x8x16xi1> to vector<4x8x8x16xi1>
    %40 = vector.broadcast %cst_10 : f32 to vector<4x8x8x16xf32>
    %41 = arith.select %39, %31, %40 : vector<4x8x8x16xi1>, vector<4x8x8x16xf32>
    %cst_13 = arith.constant dense<0xFF800000> : vector<4x8x16xf32>
    %42 = vector.multi_reduction <maximumf>, %41, %cst_13 [2] : vector<4x8x8x16xf32> to vector<4x8x16xf32>
    %c0_14 = arith.constant 0 : index
    %43 = arith.index_cast %33 : i32 to index
    %c0_15 = arith.constant 0 : index
    %44 = vector.load %arg6[%c0_14, %43, %c0_15] : memref<4x128x16xf32, #tpu.memory_space<vmem>>, vector<4x8x16xf32>
    %45 = arith.maximumf %44, %42 : vector<4x8x16xf32>
    %c0_16 = arith.constant 0 : index
    %46 = arith.index_cast %33 : i32 to index
    %c0_17 = arith.constant 0 : index
    %47 = vector.load %arg6[%c0_16, %46, %c0_17] : memref<4x128x16xf32, #tpu.memory_space<vmem>>, vector<4x8x16xf32>
    tpu.vector_store %arg6[%c0_16, %46, %c0_17], %45 {strides = array<i32>} : memref<4x128x16xf32, #tpu.memory_space<vmem>>, vector<4x8x16xf32>,
    %c1_i32_18 = arith.constant 1 : i32
    %c8_i32_19 = arith.constant 8 : i32
    %48 = arith.muli %c1_i32_18, %c8_i32_19 : i32
    %49 = tpu.assume_multiple %48, 8 : i32
    %50 = vector.broadcast %49 : i32 to vector<8x8x16xi32>
    %51 = arith.addi %25, %50 : vector<8x8x16xi32>
    %52 = arith.cmpi eq, %28, %51 : vector<8x8x16xi32>
    %53 = vector.shape_cast %52 : vector<8x8x16xi1> to vector<1x8x8x16xi1>
    %54 = vector.shape_cast %53 : vector<1x8x8x16xi1> to vector<1x8x8x16xi1>
    %55 = vector.broadcast %54 : vector<1x8x8x16xi1> to vector<4x8x8x16xi1>
    %56 = vector.broadcast %cst_10 : f32 to vector<4x8x8x16xf32>
    %57 = arith.select %55, %31, %56 : vector<4x8x8x16xi1>, vector<4x8x8x16xf32>
    %cst_20 = arith.constant dense<0xFF800000> : vector<4x8x16xf32>
    %58 = vector.multi_reduction <maximumf>, %57, %cst_20 [2] : vector<4x8x8x16xf32> to vector<4x8x16xf32>
    %c0_21 = arith.constant 0 : index
    %59 = arith.index_cast %49 : i32 to index
    %c0_22 = arith.constant 0 : index
    %60 = vector.load %arg6[%c0_21, %59, %c0_22] : memref<4x128x16xf32, #tpu.memory_space<vmem>>, vector<4x8x16xf32>
    %61 = arith.maximumf %60, %58 : vector<4x8x16xf32>
    %c0_23 = arith.constant 0 : index
    %62 = arith.index_cast %49 : i32 to index
    %c0_24 = arith.constant 0 : index
    %63 = vector.load %arg6[%c0_23, %62, %c0_24] : memref<4x128x16xf32, #tpu.memory_space<vmem>>, vector<4x8x16xf32>
    tpu.vector_store %arg6[%c0_23, %62, %c0_24], %61 {strides = array<i32>} : memref<4x128x16xf32, #tpu.memory_space<vmem>>, vector<4x8x16xf32>,
    %c2_i32 = arith.constant 2 : i32
    %c8_i32_25 = arith.constant 8 : i32
    %64 = arith.muli %c2_i32, %c8_i32_25 : i32
    %65 = tpu.assume_multiple %64, 8 : i32
    %66 = vector.broadcast %65 : i32 to vector<8x8x16xi32>
    %67 = arith.addi %25, %66 : vector<8x8x16xi32>
    %68 = arith.cmpi eq, %28, %67 : vector<8x8x16xi32>
    %69 = vector.shape_cast %68 : vector<8x8x16xi1> to vector<1x8x8x16xi1>
    %70 = vector.shape_cast %69 : vector<1x8x8x16xi1> to vector<1x8x8x16xi1>
    %71 = vector.broadcast %70 : vector<1x8x8x16xi1> to vector<4x8x8x16xi1>
    %72 = vector.broadcast %cst_10 : f32 to vector<4x8x8x16xf32>
    %73 = arith.select %71, %31, %72 : vector<4x8x8x16xi1>, vector<4x8x8x16xf32>
    %cst_26 = arith.constant dense<0xFF800000> : vector<4x8x16xf32>
    %74 = vector.multi_reduction <maximumf>, %73, %cst_26 [2] : vector<4x8x8x16xf32> to vector<4x8x16xf32>
    %c0_27 = arith.constant 0 : index
    %75 = arith.index_cast %65 : i32 to index
    %c0_28 = arith.constant 0 : index
    %76 = vector.load %arg6[%c0_27, %75, %c0_28] : memref<4x128x16xf32, #tpu.memory_space<vmem>>, vector<4x8x16xf32>
    %77 = arith.maximumf %76, %74 : vector<4x8x16xf32>
    %c0_29 = arith.constant 0 : index
    %78 = arith.index_cast %65 : i32 to index
    %c0_30 = arith.constant 0 : index
    %79 = vector.load %arg6[%c0_29, %78, %c0_30] : memref<4x128x16xf32, #tpu.memory_space<vmem>>, vector<4x8x16xf32>
    tpu.vector_store %arg6[%c0_29, %78, %c0_30], %77 {strides = array<i32>} : memref<4x128x16xf32, #tpu.memory_space<vmem>>, vector<4x8x16xf32>,
    %c3_i32 = arith.constant 3 : i32
    %c8_i32_31 = arith.constant 8 : i32
    %80 = arith.muli %c3_i32, %c8_i32_31 : i32
    %81 = tpu.assume_multiple %80, 8 : i32
    %82 = vector.broadcast %81 : i32 to vector<8x8x16xi32>
    %83 = arith.addi %25, %82 : vector<8x8x16xi32>
    %84 = arith.cmpi eq, %28, %83 : vector<8x8x16xi32>
    %85 = vector.shape_cast %84 : vector<8x8x16xi1> to vector<1x8x8x16xi1>
    %86 = vector.shape_cast %85 : vector<1x8x8x16xi1> to vector<1x8x8x16xi1>
    %87 = vector.broadcast %86 : vector<1x8x8x16xi1> to vector<4x8x8x16xi1>
    %88 = vector.broadcast %cst_10 : f32 to vector<4x8x8x16xf32>
    %89 = arith.select %87, %31, %88 : vector<4x8x8x16xi1>, vector<4x8x8x16xf32>
    %cst_32 = arith.constant dense<0xFF800000> : vector<4x8x16xf32>
    %90 = vector.multi_reduction <maximumf>, %89, %cst_32 [2] : vector<4x8x8x16xf32> to vector<4x8x16xf32>
    %c0_33 = arith.constant 0 : index
    %91 = arith.index_cast %81 : i32 to index
    %c0_34 = arith.constant 0 : index
    %92 = vector.load %arg6[%c0_33, %91, %c0_34] : memref<4x128x16xf32, #tpu.memory_space<vmem>>, vector<4x8x16xf32>
    %93 = arith.maximumf %92, %90 : vector<4x8x16xf32>
    %c0_35 = arith.constant 0 : index
    %94 = arith.index_cast %81 : i32 to index
    %c0_36 = arith.constant 0 : index
    %95 = vector.load %arg6[%c0_35, %94, %c0_36] : memref<4x128x16xf32, #tpu.memory_space<vmem>>, vector<4x8x16xf32>
    tpu.vector_store %arg6[%c0_35, %94, %c0_36], %93 {strides = array<i32>} : memref<4x128x16xf32, #tpu.memory_space<vmem>>, vector<4x8x16xf32>,
    %c4_i32 = arith.constant 4 : i32
    %c8_i32_37 = arith.constant 8 : i32
    %96 = arith.muli %c4_i32, %c8_i32_37 : i32
    %97 = tpu.assume_multiple %96, 8 : i32
    %98 = vector.broadcast %97 : i32 to vector<8x8x16xi32>
    %99 = arith.addi %25, %98 : vector<8x8x16xi32>
    %100 = arith.cmpi eq, %28, %99 : vector<8x8x16xi32>
    %101 = vector.shape_cast %100 : vector<8x8x16xi1> to vector<1x8x8x16xi1>
    %102 = vector.shape_cast %101 : vector<1x8x8x16xi1> to vector<1x8x8x16xi1>
    %103 = vector.broadcast %102 : vector<1x8x8x16xi1> to vector<4x8x8x16xi1>
    %104 = vector.broadcast %cst_10 : f32 to vector<4x8x8x16xf32>
    %105 = arith.select %103, %31, %104 : vector<4x8x8x16xi1>, vector<4x8x8x16xf32>
    %cst_38 = arith.constant dense<0xFF800000> : vector<4x8x16xf32>
    %106 = vector.multi_reduction <maximumf>, %105, %cst_38 [2] : vector<4x8x8x16xf32> to vector<4x8x16xf32>
    %c0_39 = arith.constant 0 : index
    %107 = arith.index_cast %97 : i32 to index
    %c0_40 = arith.constant 0 : index
    %108 = vector.load %arg6[%c0_39, %107, %c0_40] : memref<4x128x16xf32, #tpu.memory_space<vmem>>, vector<4x8x16xf32>
    %109 = arith.maximumf %108, %106 : vector<4x8x16xf32>
    %c0_41 = arith.constant 0 : index
    %110 = arith.index_cast %97 : i32 to index
    %c0_42 = arith.constant 0 : index
    %111 = vector.load %arg6[%c0_41, %110, %c0_42] : memref<4x128x16xf32, #tpu.memory_space<vmem>>, vector<4x8x16xf32>
    tpu.vector_store %arg6[%c0_41, %110, %c0_42], %109 {strides = array<i32>} : memref<4x128x16xf32, #tpu.memory_space<vmem>>, vector<4x8x16xf32>,
    %c5_i32 = arith.constant 5 : i32
    %c8_i32_43 = arith.constant 8 : i32
    %112 = arith.muli %c5_i32, %c8_i32_43 : i32
    %113 = tpu.assume_multiple %112, 8 : i32
    %114 = vector.broadcast %113 : i32 to vector<8x8x16xi32>
    %115 = arith.addi %25, %114 : vector<8x8x16xi32>
    %116 = arith.cmpi eq, %28, %115 : vector<8x8x16xi32>
    %117 = vector.shape_cast %116 : vector<8x8x16xi1> to vector<1x8x8x16xi1>
    %118 = vector.shape_cast %117 : vector<1x8x8x16xi1> to vector<1x8x8x16xi1>
    %119 = vector.broadcast %118 : vector<1x8x8x16xi1> to vector<4x8x8x16xi1>
    %120 = vector.broadcast %cst_10 : f32 to vector<4x8x8x16xf32>
    %121 = arith.select %119, %31, %120 : vector<4x8x8x16xi1>, vector<4x8x8x16xf32>
    %cst_44 = arith.constant dense<0xFF800000> : vector<4x8x16xf32>
    %122 = vector.multi_reduction <maximumf>, %121, %cst_44 [2] : vector<4x8x8x16xf32> to vector<4x8x16xf32>
    %c0_45 = arith.constant 0 : index
    %123 = arith.index_cast %113 : i32 to index
    %c0_46 = arith.constant 0 : index
    %124 = vector.load %arg6[%c0_45, %123, %c0_46] : memref<4x128x16xf32, #tpu.memory_space<vmem>>, vector<4x8x16xf32>
    %125 = arith.maximumf %124, %122 : vector<4x8x16xf32>
    %c0_47 = arith.constant 0 : index
    %126 = arith.index_cast %113 : i32 to index
    %c0_48 = arith.constant 0 : index
    %127 = vector.load %arg6[%c0_47, %126, %c0_48] : memref<4x128x16xf32, #tpu.memory_space<vmem>>, vector<4x8x16xf32>
    tpu.vector_store %arg6[%c0_47, %126, %c0_48], %125 {strides = array<i32>} : memref<4x128x16xf32, #tpu.memory_space<vmem>>, vector<4x8x16xf32>,
    %c6_i32 = arith.constant 6 : i32
    %c8_i32_49 = arith.constant 8 : i32
    %128 = arith.muli %c6_i32, %c8_i32_49 : i32
    %129 = tpu.assume_multiple %128, 8 : i32
    %130 = vector.broadcast %129 : i32 to vector<8x8x16xi32>
    %131 = arith.addi %25, %130 : vector<8x8x16xi32>
    %132 = arith.cmpi eq, %28, %131 : vector<8x8x16xi32>
    %133 = vector.shape_cast %132 : vector<8x8x16xi1> to vector<1x8x8x16xi1>
    %134 = vector.shape_cast %133 : vector<1x8x8x16xi1> to vector<1x8x8x16xi1>
    %135 = vector.broadcast %134 : vector<1x8x8x16xi1> to vector<4x8x8x16xi1>
    %136 = vector.broadcast %cst_10 : f32 to vector<4x8x8x16xf32>
    %137 = arith.select %135, %31, %136 : vector<4x8x8x16xi1>, vector<4x8x8x16xf32>
    %cst_50 = arith.constant dense<0xFF800000> : vector<4x8x16xf32>
    %138 = vector.multi_reduction <maximumf>, %137, %cst_50 [2] : vector<4x8x8x16xf32> to vector<4x8x16xf32>
    %c0_51 = arith.constant 0 : index
    %139 = arith.index_cast %129 : i32 to index
    %c0_52 = arith.constant 0 : index
    %140 = vector.load %arg6[%c0_51, %139, %c0_52] : memref<4x128x16xf32, #tpu.memory_space<vmem>>, vector<4x8x16xf32>
    %141 = arith.maximumf %140, %138 : vector<4x8x16xf32>
    %c0_53 = arith.constant 0 : index
    %142 = arith.index_cast %129 : i32 to index
    %c0_54 = arith.constant 0 : index
    %143 = vector.load %arg6[%c0_53, %142, %c0_54] : memref<4x128x16xf32, #tpu.memory_space<vmem>>, vector<4x8x16xf32>
    tpu.vector_store %arg6[%c0_53, %142, %c0_54], %141 {strides = array<i32>} : memref<4x128x16xf32, #tpu.memory_space<vmem>>, vector<4x8x16xf32>,
    %c7_i32 = arith.constant 7 : i32
    %c8_i32_55 = arith.constant 8 : i32
    %144 = arith.muli %c7_i32, %c8_i32_55 : i32
    %145 = tpu.assume_multiple %144, 8 : i32
    %146 = vector.broadcast %145 : i32 to vector<8x8x16xi32>
    %147 = arith.addi %25, %146 : vector<8x8x16xi32>
    %148 = arith.cmpi eq, %28, %147 : vector<8x8x16xi32>
    %149 = vector.shape_cast %148 : vector<8x8x16xi1> to vector<1x8x8x16xi1>
    %150 = vector.shape_cast %149 : vector<1x8x8x16xi1> to vector<1x8x8x16xi1>
    %151 = vector.broadcast %150 : vector<1x8x8x16xi1> to vector<4x8x8x16xi1>
    %152 = vector.broadcast %cst_10 : f32 to vector<4x8x8x16xf32>
    %153 = arith.select %151, %31, %152 : vector<4x8x8x16xi1>, vector<4x8x8x16xf32>
    %cst_56 = arith.constant dense<0xFF800000> : vector<4x8x16xf32>
    %154 = vector.multi_reduction <maximumf>, %153, %cst_56 [2] : vector<4x8x8x16xf32> to vector<4x8x16xf32>
    %c0_57 = arith.constant 0 : index
    %155 = arith.index_cast %145 : i32 to index
    %c0_58 = arith.constant 0 : index
    %156 = vector.load %arg6[%c0_57, %155, %c0_58] : memref<4x128x16xf32, #tpu.memory_space<vmem>>, vector<4x8x16xf32>
    %157 = arith.maximumf %156, %154 : vector<4x8x16xf32>
    %c0_59 = arith.constant 0 : index
    %158 = arith.index_cast %145 : i32 to index
    %c0_60 = arith.constant 0 : index
    %159 = vector.load %arg6[%c0_59, %158, %c0_60] : memref<4x128x16xf32, #tpu.memory_space<vmem>>, vector<4x8x16xf32>
    tpu.vector_store %arg6[%c0_59, %158, %c0_60], %157 {strides = array<i32>} : memref<4x128x16xf32, #tpu.memory_space<vmem>>, vector<4x8x16xf32>,
    %c8_i32_61 = arith.constant 8 : i32
    %c8_i32_62 = arith.constant 8 : i32
    %160 = arith.muli %c8_i32_61, %c8_i32_62 : i32
    %161 = tpu.assume_multiple %160, 8 : i32
    %162 = vector.broadcast %161 : i32 to vector<8x8x16xi32>
    %163 = arith.addi %25, %162 : vector<8x8x16xi32>
    %164 = arith.cmpi eq, %28, %163 : vector<8x8x16xi32>
    %165 = vector.shape_cast %164 : vector<8x8x16xi1> to vector<1x8x8x16xi1>
    %166 = vector.shape_cast %165 : vector<1x8x8x16xi1> to vector<1x8x8x16xi1>
    %167 = vector.broadcast %166 : vector<1x8x8x16xi1> to vector<4x8x8x16xi1>
    %168 = vector.broadcast %cst_10 : f32 to vector<4x8x8x16xf32>
    %169 = arith.select %167, %31, %168 : vector<4x8x8x16xi1>, vector<4x8x8x16xf32>
    %cst_63 = arith.constant dense<0xFF800000> : vector<4x8x16xf32>
    %170 = vector.multi_reduction <maximumf>, %169, %cst_63 [2] : vector<4x8x8x16xf32> to vector<4x8x16xf32>
    %c0_64 = arith.constant 0 : index
    %171 = arith.index_cast %161 : i32 to index
    %c0_65 = arith.constant 0 : index
    %172 = vector.load %arg6[%c0_64, %171, %c0_65] : memref<4x128x16xf32, #tpu.memory_space<vmem>>, vector<4x8x16xf32>
    %173 = arith.maximumf %172, %170 : vector<4x8x16xf32>
    %c0_66 = arith.constant 0 : index
    %174 = arith.index_cast %161 : i32 to index
    %c0_67 = arith.constant 0 : index
    %175 = vector.load %arg6[%c0_66, %174, %c0_67] : memref<4x128x16xf32, #tpu.memory_space<vmem>>, vector<4x8x16xf32>
    tpu.vector_store %arg6[%c0_66, %174, %c0_67], %173 {strides = array<i32>} : memref<4x128x16xf32, #tpu.memory_space<vmem>>, vector<4x8x16xf32>,
    %c9_i32 = arith.constant 9 : i32
    %c8_i32_68 = arith.constant 8 : i32
    %176 = arith.muli %c9_i32, %c8_i32_68 : i32
    %177 = tpu.assume_multiple %176, 8 : i32
    %178 = vector.broadcast %177 : i32 to vector<8x8x16xi32>
    %179 = arith.addi %25, %178 : vector<8x8x16xi32>
    %180 = arith.cmpi eq, %28, %179 : vector<8x8x16xi32>
    %181 = vector.shape_cast %180 : vector<8x8x16xi1> to vector<1x8x8x16xi1>
    %182 = vector.shape_cast %181 : vector<1x8x8x16xi1> to vector<1x8x8x16xi1>
    %183 = vector.broadcast %182 : vector<1x8x8x16xi1> to vector<4x8x8x16xi1>
    %184 = vector.broadcast %cst_10 : f32 to vector<4x8x8x16xf32>
    %185 = arith.select %183, %31, %184 : vector<4x8x8x16xi1>, vector<4x8x8x16xf32>
    %cst_69 = arith.constant dense<0xFF800000> : vector<4x8x16xf32>
    %186 = vector.multi_reduction <maximumf>, %185, %cst_69 [2] : vector<4x8x8x16xf32> to vector<4x8x16xf32>
    %c0_70 = arith.constant 0 : index
    %187 = arith.index_cast %177 : i32 to index
    %c0_71 = arith.constant 0 : index
    %188 = vector.load %arg6[%c0_70, %187, %c0_71] : memref<4x128x16xf32, #tpu.memory_space<vmem>>, vector<4x8x16xf32>
    %189 = arith.maximumf %188, %186 : vector<4x8x16xf32>
    %c0_72 = arith.constant 0 : index
    %190 = arith.index_cast %177 : i32 to index
    %c0_73 = arith.constant 0 : index
    %191 = vector.load %arg6[%c0_72, %190, %c0_73] : memref<4x128x16xf32, #tpu.memory_space<vmem>>, vector<4x8x16xf32>
    tpu.vector_store %arg6[%c0_72, %190, %c0_73], %189 {strides = array<i32>} : memref<4x128x16xf32, #tpu.memory_space<vmem>>, vector<4x8x16xf32>,
    %c10_i32 = arith.constant 10 : i32
    %c8_i32_74 = arith.constant 8 : i32
    %192 = arith.muli %c10_i32, %c8_i32_74 : i32
    %193 = tpu.assume_multiple %192, 8 : i32
    %194 = vector.broadcast %193 : i32 to vector<8x8x16xi32>
    %195 = arith.addi %25, %194 : vector<8x8x16xi32>
    %196 = arith.cmpi eq, %28, %195 : vector<8x8x16xi32>
    %197 = vector.shape_cast %196 : vector<8x8x16xi1> to vector<1x8x8x16xi1>
    %198 = vector.shape_cast %197 : vector<1x8x8x16xi1> to vector<1x8x8x16xi1>
    %199 = vector.broadcast %198 : vector<1x8x8x16xi1> to vector<4x8x8x16xi1>
    %200 = vector.broadcast %cst_10 : f32 to vector<4x8x8x16xf32>
    %201 = arith.select %199, %31, %200 : vector<4x8x8x16xi1>, vector<4x8x8x16xf32>
    %cst_75 = arith.constant dense<0xFF800000> : vector<4x8x16xf32>
    %202 = vector.multi_reduction <maximumf>, %201, %cst_75 [2] : vector<4x8x8x16xf32> to vector<4x8x16xf32>
    %c0_76 = arith.constant 0 : index
    %203 = arith.index_cast %193 : i32 to index
    %c0_77 = arith.constant 0 : index
    %204 = vector.load %arg6[%c0_76, %203, %c0_77] : memref<4x128x16xf32, #tpu.memory_space<vmem>>, vector<4x8x16xf32>
    %205 = arith.maximumf %204, %202 : vector<4x8x16xf32>
    %c0_78 = arith.constant 0 : index
    %206 = arith.index_cast %193 : i32 to index
    %c0_79 = arith.constant 0 : index
    %207 = vector.load %arg6[%c0_78, %206, %c0_79] : memref<4x128x16xf32, #tpu.memory_space<vmem>>, vector<4x8x16xf32>
    tpu.vector_store %arg6[%c0_78, %206, %c0_79], %205 {strides = array<i32>} : memref<4x128x16xf32, #tpu.memory_space<vmem>>, vector<4x8x16xf32>,
    %c11_i32 = arith.constant 11 : i32
    %c8_i32_80 = arith.constant 8 : i32
    %208 = arith.muli %c11_i32, %c8_i32_80 : i32
    %209 = tpu.assume_multiple %208, 8 : i32
    %210 = vector.broadcast %209 : i32 to vector<8x8x16xi32>
    %211 = arith.addi %25, %210 : vector<8x8x16xi32>
    %212 = arith.cmpi eq, %28, %211 : vector<8x8x16xi32>
    %213 = vector.shape_cast %212 : vector<8x8x16xi1> to vector<1x8x8x16xi1>
    %214 = vector.shape_cast %213 : vector<1x8x8x16xi1> to vector<1x8x8x16xi1>
    %215 = vector.broadcast %214 : vector<1x8x8x16xi1> to vector<4x8x8x16xi1>
    %216 = vector.broadcast %cst_10 : f32 to vector<4x8x8x16xf32>
    %217 = arith.select %215, %31, %216 : vector<4x8x8x16xi1>, vector<4x8x8x16xf32>
    %cst_81 = arith.constant dense<0xFF800000> : vector<4x8x16xf32>
    %218 = vector.multi_reduction <maximumf>, %217, %cst_81 [2] : vector<4x8x8x16xf32> to vector<4x8x16xf32>
    %c0_82 = arith.constant 0 : index
    %219 = arith.index_cast %209 : i32 to index
    %c0_83 = arith.constant 0 : index
    %220 = vector.load %arg6[%c0_82, %219, %c0_83] : memref<4x128x16xf32, #tpu.memory_space<vmem>>, vector<4x8x16xf32>
    %221 = arith.maximumf %220, %218 : vector<4x8x16xf32>
    %c0_84 = arith.constant 0 : index
    %222 = arith.index_cast %209 : i32 to index
    %c0_85 = arith.constant 0 : index
    %223 = vector.load %arg6[%c0_84, %222, %c0_85] : memref<4x128x16xf32, #tpu.memory_space<vmem>>, vector<4x8x16xf32>
    tpu.vector_store %arg6[%c0_84, %222, %c0_85], %221 {strides = array<i32>} : memref<4x128x16xf32, #tpu.memory_space<vmem>>, vector<4x8x16xf32>,
    %c12_i32 = arith.constant 12 : i32
    %c8_i32_86 = arith.constant 8 : i32
    %224 = arith.muli %c12_i32, %c8_i32_86 : i32
    %225 = tpu.assume_multiple %224, 8 : i32
    %226 = vector.broadcast %225 : i32 to vector<8x8x16xi32>
    %227 = arith.addi %25, %226 : vector<8x8x16xi32>
    %228 = arith.cmpi eq, %28, %227 : vector<8x8x16xi32>
    %229 = vector.shape_cast %228 : vector<8x8x16xi1> to vector<1x8x8x16xi1>
    %230 = vector.shape_cast %229 : vector<1x8x8x16xi1> to vector<1x8x8x16xi1>
    %231 = vector.broadcast %230 : vector<1x8x8x16xi1> to vector<4x8x8x16xi1>
    %232 = vector.broadcast %cst_10 : f32 to vector<4x8x8x16xf32>
    %233 = arith.select %231, %31, %232 : vector<4x8x8x16xi1>, vector<4x8x8x16xf32>
    %cst_87 = arith.constant dense<0xFF800000> : vector<4x8x16xf32>
    %234 = vector.multi_reduction <maximumf>, %233, %cst_87 [2] : vector<4x8x8x16xf32> to vector<4x8x16xf32>
    %c0_88 = arith.constant 0 : index
    %235 = arith.index_cast %225 : i32 to index
    %c0_89 = arith.constant 0 : index
    %236 = vector.load %arg6[%c0_88, %235, %c0_89] : memref<4x128x16xf32, #tpu.memory_space<vmem>>, vector<4x8x16xf32>
    %237 = arith.maximumf %236, %234 : vector<4x8x16xf32>
    %c0_90 = arith.constant 0 : index
    %238 = arith.index_cast %225 : i32 to index
    %c0_91 = arith.constant 0 : index
    %239 = vector.load %arg6[%c0_90, %238, %c0_91] : memref<4x128x16xf32, #tpu.memory_space<vmem>>, vector<4x8x16xf32>
    tpu.vector_store %arg6[%c0_90, %238, %c0_91], %237 {strides = array<i32>} : memref<4x128x16xf32, #tpu.memory_space<vmem>>, vector<4x8x16xf32>,
    %c13_i32 = arith.constant 13 : i32
    %c8_i32_92 = arith.constant 8 : i32
    %240 = arith.muli %c13_i32, %c8_i32_92 : i32
    %241 = tpu.assume_multiple %240, 8 : i32
    %242 = vector.broadcast %241 : i32 to vector<8x8x16xi32>
    %243 = arith.addi %25, %242 : vector<8x8x16xi32>
    %244 = arith.cmpi eq, %28, %243 : vector<8x8x16xi32>
    %245 = vector.shape_cast %244 : vector<8x8x16xi1> to vector<1x8x8x16xi1>
    %246 = vector.shape_cast %245 : vector<1x8x8x16xi1> to vector<1x8x8x16xi1>
    %247 = vector.broadcast %246 : vector<1x8x8x16xi1> to vector<4x8x8x16xi1>
    %248 = vector.broadcast %cst_10 : f32 to vector<4x8x8x16xf32>
    %249 = arith.select %247, %31, %248 : vector<4x8x8x16xi1>, vector<4x8x8x16xf32>
    %cst_93 = arith.constant dense<0xFF800000> : vector<4x8x16xf32>
    %250 = vector.multi_reduction <maximumf>, %249, %cst_93 [2] : vector<4x8x8x16xf32> to vector<4x8x16xf32>
    %c0_94 = arith.constant 0 : index
    %251 = arith.index_cast %241 : i32 to index
    %c0_95 = arith.constant 0 : index
    %252 = vector.load %arg6[%c0_94, %251, %c0_95] : memref<4x128x16xf32, #tpu.memory_space<vmem>>, vector<4x8x16xf32>
    %253 = arith.maximumf %252, %250 : vector<4x8x16xf32>
    %c0_96 = arith.constant 0 : index
    %254 = arith.index_cast %241 : i32 to index
    %c0_97 = arith.constant 0 : index
    %255 = vector.load %arg6[%c0_96, %254, %c0_97] : memref<4x128x16xf32, #tpu.memory_space<vmem>>, vector<4x8x16xf32>
    tpu.vector_store %arg6[%c0_96, %254, %c0_97], %253 {strides = array<i32>} : memref<4x128x16xf32, #tpu.memory_space<vmem>>, vector<4x8x16xf32>,
    %c14_i32_98 = arith.constant 14 : i32
    %c8_i32_99 = arith.constant 8 : i32
    %256 = arith.muli %c14_i32_98, %c8_i32_99 : i32
    %257 = tpu.assume_multiple %256, 8 : i32
    %258 = vector.broadcast %257 : i32 to vector<8x8x16xi32>
    %259 = arith.addi %25, %258 : vector<8x8x16xi32>
    %260 = arith.cmpi eq, %28, %259 : vector<8x8x16xi32>
    %261 = vector.shape_cast %260 : vector<8x8x16xi1> to vector<1x8x8x16xi1>
    %262 = vector.shape_cast %261 : vector<1x8x8x16xi1> to vector<1x8x8x16xi1>
    %263 = vector.broadcast %262 : vector<1x8x8x16xi1> to vector<4x8x8x16xi1>
    %264 = vector.broadcast %cst_10 : f32 to vector<4x8x8x16xf32>
    %265 = arith.select %263, %31, %264 : vector<4x8x8x16xi1>, vector<4x8x8x16xf32>
    %cst_100 = arith.constant dense<0xFF800000> : vector<4x8x16xf32>
    %266 = vector.multi_reduction <maximumf>, %265, %cst_100 [2] : vector<4x8x8x16xf32> to vector<4x8x16xf32>
    %c0_101 = arith.constant 0 : index
    %267 = arith.index_cast %257 : i32 to index
    %c0_102 = arith.constant 0 : index
    %268 = vector.load %arg6[%c0_101, %267, %c0_102] : memref<4x128x16xf32, #tpu.memory_space<vmem>>, vector<4x8x16xf32>
    %269 = arith.maximumf %268, %266 : vector<4x8x16xf32>
    %c0_103 = arith.constant 0 : index
    %270 = arith.index_cast %257 : i32 to index
    %c0_104 = arith.constant 0 : index
    %271 = vector.load %arg6[%c0_103, %270, %c0_104] : memref<4x128x16xf32, #tpu.memory_space<vmem>>, vector<4x8x16xf32>
    tpu.vector_store %arg6[%c0_103, %270, %c0_104], %269 {strides = array<i32>} : memref<4x128x16xf32, #tpu.memory_space<vmem>>, vector<4x8x16xf32>,
    %c15_i32 = arith.constant 15 : i32
    %c8_i32_105 = arith.constant 8 : i32
    %272 = arith.muli %c15_i32, %c8_i32_105 : i32
    %273 = tpu.assume_multiple %272, 8 : i32
    %274 = vector.broadcast %273 : i32 to vector<8x8x16xi32>
    %275 = arith.addi %25, %274 : vector<8x8x16xi32>
    %276 = arith.cmpi eq, %28, %275 : vector<8x8x16xi32>
    %277 = vector.shape_cast %276 : vector<8x8x16xi1> to vector<1x8x8x16xi1>
    %278 = vector.shape_cast %277 : vector<1x8x8x16xi1> to vector<1x8x8x16xi1>
    %279 = vector.broadcast %278 : vector<1x8x8x16xi1> to vector<4x8x8x16xi1>
    %280 = vector.broadcast %cst_10 : f32 to vector<4x8x8x16xf32>
    %281 = arith.select %279, %31, %280 : vector<4x8x8x16xi1>, vector<4x8x8x16xf32>
    %cst_106 = arith.constant dense<0xFF800000> : vector<4x8x16xf32>
    %282 = vector.multi_reduction <maximumf>, %281, %cst_106 [2] : vector<4x8x8x16xf32> to vector<4x8x16xf32>
    %c0_107 = arith.constant 0 : index
    %283 = arith.index_cast %273 : i32 to index
    %c0_108 = arith.constant 0 : index
    %284 = vector.load %arg6[%c0_107, %283, %c0_108] : memref<4x128x16xf32, #tpu.memory_space<vmem>>, vector<4x8x16xf32>
    %285 = arith.maximumf %284, %282 : vector<4x8x16xf32>
    %c0_109 = arith.constant 0 : index
    %286 = arith.index_cast %273 : i32 to index
    %c0_110 = arith.constant 0 : index
    %287 = vector.load %arg6[%c0_109, %286, %c0_110] : memref<4x128x16xf32, #tpu.memory_space<vmem>>, vector<4x8x16xf32>
    tpu.vector_store %arg6[%c0_109, %286, %c0_110], %285 {strides = array<i32>} : memref<4x128x16xf32, #tpu.memory_space<vmem>>, vector<4x8x16xf32>,
    %c16_i32 = arith.constant 16 : i32
    %c1_i32_111 = arith.constant 1 : i32
    %288 = arith.cmpi eq, %arg2, %c1_i32_111 : i32
    %289 = arith.extui %288 : i1 to i32
    %cst_112 = arith.constant 0xFF800000 : f32
    %c0_i32_113 = arith.constant 0 : i32
    %290 = arith.cmpi ne, %289, %c0_i32_113 : i32
    scf.if %290 {
      %c0_114 = arith.constant 0 : index
      %c0_115 = arith.constant 0 : index
      %c0_116 = arith.constant 0 : index
      %291 = vector.load %arg6[%c0_114, %c0_115, %c0_116] : memref<4x128x16xf32, #tpu.memory_space<vmem>>, vector<4x128x16xf32>
      %cst_117 = arith.constant dense<0xFF800000> : vector<4x128xf32>
      %292 = vector.multi_reduction <maximumf>, %291, %cst_117 [2] : vector<4x128x16xf32> to vector<4x128xf32>
      %293 = vector.broadcast %cst_112 : f32 to vector<4x128xf32>
      %294 = arith.cmpf oeq, %292, %293 : vector<4x128xf32>
      %cst_118 = arith.constant 0.000000e+00 : f32
      %295 = vector.broadcast %cst_118 : f32 to vector<4x128xf32>
      %296 = arith.select %294, %295, %292 : vector<4x128xi1>, vector<4x128xf32>
      %c0_119 = arith.constant 0 : index
      %c0_120 = arith.constant 0 : index
      %c0_121 = arith.constant 0 : index
      %297 = vector.load %arg5[%c0_119, %c0_120, %c0_121] : memref<1x4x128xf32, #tpu.memory_space<vmem>>, vector<1x4x128xf32>
      %298 = vector.shape_cast %297 : vector<1x4x128xf32> to vector<4x128xf32>
      %299 = vector.shape_cast %296 : vector<4x128xf32> to vector<1x4x128xf32>
      tpu.vector_store %arg5[%c0_119, %c0_120, %c0_121], %299 {strides = array<i32>} : memref<1x4x128xf32, #tpu.memory_space<vmem>>, vector<1x4x128xf32>,
    } else {
    }
    return
  }
  func.func @transform_0(%arg0: i32, %arg1: i32, %arg2: i32) -> (i32, i32, i32, i32) {
    %c0_i32 = arith.constant 0 : i32
    %c0_i32_0 = arith.constant 0 : i32
    return %arg0, %arg1, %arg2, %c0_i32 : i32, i32, i32, i32
  }
  func.func @transform_1(%arg0: i32, %arg1: i32, %arg2: i32) -> (i32, i32, i32, i32) {
    %c0_i32 = arith.constant 0 : i32
    %c0_i32_0 = arith.constant 0 : i32
    %c0_i32_1 = arith.constant 0 : i32
    return %arg0, %c0_i32, %arg2, %c0_i32_0 : i32, i32, i32, i32
  }
  func.func @transform_2(%arg0: i32, %arg1: i32, %arg2: i32) -> (i32, i32, i32) {
    %c0_i32 = arith.constant 0 : i32
    %c0_i32_0 = arith.constant 0 : i32
    return %arg0, %arg1, %c0_i32 : i32, i32, i32
  }
}

</mosaic_0001>

<llo_original>
// kernel: superfeatures.1
$region0: #{superfeatures.1}
  #allocation0 [shape = 'u32[]', space=smem, size = 0x4, offset = 0x4, fixed_abs, tag = 'smem constant byte address 0x4 - core index']
  #allocation1 [shape = 'u32[72,128]{1,0:T(1,128)}', space=vmem, size = 0x9000, scoped, tag = 'internal scratch']
  #allocation2 [shape = 'f32[4,128,16]{2,1,0:T(8,128)}', space=vmem, size = 0x40000, scoped, tag = 'scratch operand']
  %s0 = inlined_call_operand.hbm [shape: f32[2,4,16,16], index: 0, kind: input, shape index: {}]
  %s1 = inlined_call_operand.hbm [shape: s32[2,1,16,16], index: 1, kind: input, shape index: {}]
  %s2 = inlined_call_operand.hbm [shape: f32[2,4,128], index: 2, kind: output, shape index: {}]
  %s3 = sld [smem:[#allocation0]]
  $region57: #{superfeatures.1} parent=0
    _
  %s5 = ssub.s32 1, %s3
  %s6 = scalar_select 0, %s5, %s3
  $region1: #{superfeatures.1} parent=0
    #allocation3 [shape = 'u8[32768]{0}', space=vmem, size = 0x8000, scoped, tag = 'input window, operand 0']
    #allocation4 [shape = 's32[2]{0}', space=sflag, size = 0x8, scoped, tag = 'scoped memory for superfeatures.1']
    #allocation5 [shape = 's32[2]{0}', space=sflag, size = 0x8, scoped, tag = 'scoped memory for superfeatures.1']
    #allocation6 [shape = 'u8[8192]{0}', space=vmem, size = 0x2000, scoped, tag = 'input window, operand 1']
    #allocation7 [shape = 's32[2]{0}', space=sflag, size = 0x8, scoped, tag = 'scoped memory for superfeatures.1']
    #allocation8 [shape = 'u8[4096]{0}', space=vmem, size = 0x1000, scoped, tag = 'output window, operand 0']
    %7 = vsyncpa [#allocation4], 0
    %s8 = scalar_lea.sflag [#allocation4], 1
    %9 = vsyncpa %s8, 0
    %10 = vsyncpa [#allocation7], 0
    %s11 = scalar_lea.sflag [#allocation7], 1
    %12 = vsyncpa %s11, 0
    %13 = vsyncpa [#allocation5], 0
    %s14 = scalar_lea.sflag [#allocation5], 1
    %15 = vsyncpa %s14, 0
    loop: start=0, step=1, limit=6
    $region2: #{superfeatures.1} parent=1 // loop_pre_header
      _
    $region3: #{superfeatures.1} parent=1 // loop_header
      %s17 = sphi 0, %s21
      %p18 = scmp.ge.s32.totalorder %s17, 6
      %s24 = sphi 0, %s43
      %s25 = sphi 0, %s39
      %s26 = sphi 0, %s35
      %s27 = sphi 0, %s24
      %s28 = sphi 0, %s25
      %s29 = sphi 0, %s26
      %s30 = sphi 0, %s27
      %s31 = sphi 0, %s28
      %s32 = sphi 0, %s29
      %s50 = sphi 0, %s52
      %s53 = sphi 0, %s50
      %s54 = sphi 0, %s53
      %s70 = sphi 0, %s54
      %s78 = sphi 0, %s80
      %s81 = sphi 0, %s78
      %s82 = sphi 0, %s81
      %s98 = sphi 0, %s82
      %s106 = sphi 0, %s108
      %s109 = sphi 0, %s106
      %s110 = sphi 0, %s109
      %s126 = sphi 0, %s110
    $region4: #{superfeatures.1} parent=1 // loop_header_branch
      %20 = sbr.rel (%p18) target = $region8
    $region5: #{superfeatures.1} parent=1 // loop_body
      %s22 = ssub.s32 %s17, 1
      %s23 = ssub.s32 %s17, 2
      %s33 = sadd.s32 1, %s26
      %p34 = scmp.ge.s32.totalorder %s33, 2
      %s35 = scalar_select %p34, 0, %s33
      %s36 = sadd.s32 1, %s25
      %s37 = scalar_select %p34, %s36, %s25
      %p38 = scmp.ge.s32.totalorder %s37, 1
      %s39 = scalar_select %p38, 0, %s37
      %s40 = sadd.s32 1, %s24
      %s41 = scalar_select %p38, %s40, %s24
      %p42 = scmp.ge.s32.totalorder %s41, 2
      %s43 = scalar_select %p42, 0, %s41
      %s44 = ssub.s32 %s24, %s43
      %s45 = ssub.s32 %s25, %s39
      %s46 = sor.u32 %s44, %s45
      %s47 = ssub.s32 %s26, %s35
      %s48 = sor.u32 %s46, %s47
      %p49 = scmp.eq.s32.totalorder %s48, 0
      %s51 = sadd.s32 %s50, 1
      %s52 = scalar_select %p49, %s50, %s51
      %p55 = pneg %p49
      %p56 = scmp.eq.s32.totalorder %s17, 3
      %p57 = por %p55, %p56
      %p58 = scmp.ne.s32.totalorder %s50, %s53
      %p59 = scmp.eq.s32.totalorder %s17, 0
      %p60 = por %p58, %p59
      %p61 = scmp.ne.s32.totalorder %s50, %s53
      %p62 = scmp.eq.s32.totalorder %s22, 3
      %p63 = por %p61, %p62
      %p64 = scmp.ne.s32.totalorder %s53, %s54
      %p65 = scmp.eq.s32.totalorder %s22, 0
      %p66 = por %p64, %p65
      %p67 = scmp.ne.s32.totalorder %s53, %s54
      %p68 = scmp.eq.s32.totalorder %s23, 3
      %p69 = por %p67, %p68
      %p71 = scmp.ne.s32.totalorder %s54, %s70
      %p72 = scmp.eq.s32.totalorder %s23, 0
      %p73 = por %p71, %p72
      %s74 = ssub.s32 %s24, %s43
      %s75 = ssub.s32 %s26, %s35
      %s76 = sor.u32 %s74, %s75
      %p77 = scmp.eq.s32.totalorder %s76, 0
      %s79 = sadd.s32 %s78, 1
      %s80 = scalar_select %p77, %s78, %s79
      %p83 = pneg %p77
      %p84 = scmp.eq.s32.totalorder %s17, 3
      %p85 = por %p83, %p84
      %p86 = scmp.ne.s32.totalorder %s78, %s81
      %p87 = scmp.eq.s32.totalorder %s17, 0
      %p88 = por %p86, %p87
      %p89 = scmp.ne.s32.totalorder %s78, %s81
      %p90 = scmp.eq.s32.totalorder %s22, 3
      %p91 = por %p89, %p90
      %p92 = scmp.ne.s32.totalorder %s81, %s82
      %p93 = scmp.eq.s32.totalorder %s22, 0
      %p94 = por %p92, %p93
      %p95 = scmp.ne.s32.totalorder %s81, %s82
      %p96 = scmp.eq.s32.totalorder %s23, 3
      %p97 = por %p95, %p96
      %p99 = scmp.ne.s32.totalorder %s82, %s98
      %p100 = scmp.eq.s32.totalorder %s23, 0
      %p101 = por %p99, %p100
      %s102 = ssub.s32 %s24, %s43
      %s103 = ssub.s32 %s25, %s39
      %s104 = sor.u32 %s102, %s103
      %p105 = scmp.eq.s32.totalorder %s104, 0
      %s107 = sadd.s32 %s106, 1
      %s108 = scalar_select %p105, %s106, %s107
      %p111 = pneg %p105
      %p112 = scmp.eq.s32.totalorder %s17, 3
      %p113 = por %p111, %p112
      %p114 = scmp.ne.s32.totalorder %s106, %s109
      %p115 = scmp.eq.s32.totalorder %s17, 0
      %p116 = por %p114, %p115
      %p117 = scmp.ne.s32.totalorder %s106, %s109
      %p118 = scmp.eq.s32.totalorder %s22, 3
      %p119 = por %p117, %p118
      %p120 = scmp.ne.s32.totalorder %s109, %s110
      %p121 = scmp.eq.s32.totalorder %s22, 0
      %p122 = por %p120, %p121
      %p123 = scmp.ne.s32.totalorder %s109, %s110
      %p124 = scmp.eq.s32.totalorder %s23, 3
      %p125 = por %p123, %p124
      %p127 = scmp.ne.s32.totalorder %s110, %s126
      %p128 = scmp.eq.s32.totalorder %s23, 0
      %p129 = por %p127, %p128
      %p130 = scmp.le.s32.totalorder 1, %s17
      %p131 = scmp.lt.s32.totalorder %s17, 5
      %p132 = pnand %p130, %p131
      %p133 = pneg %p132
      // Predicated region
      $region9: #{superfeatures.1} parent=5 // pred_check
        _
      $region10: #{superfeatures.1} parent=5 // pred_check_branch
        %135 = sbr.rel (%p132) target = $region12
      $region11: #{superfeatures.1} parent=5 // pred_region
        %s136 = ssub.s32 %s17, 1
      $region12: #{superfeatures.1} parent=5 // pred_fallthru
        _
      %p137 = scmp.lt.s32.totalorder %s17, 4
      // Predicated region
      $region13: #{superfeatures.1} parent=5 // pred_check
        %p138 = pneg %p137
      $region14: #{superfeatures.1} parent=5 // pred_check_branch
        %140 = sbr.rel (%p138) target = $region16
      $region15: #{superfeatures.1} parent=5 // pred_region
        // Predicated region
        $region17: #{superfeatures.1} parent=15 // pred_check
          %p141 = pneg %p60
        $region18: #{superfeatures.1} parent=15 // pred_check_branch
          %143 = sbr.rel (%p141) target = $region20
        $region19: #{superfeatures.1} parent=15 // pred_region
          %s144 = sand.u32 %s50, 1
          %s145 = scalar_lea.sflag [#allocation4], %s144
          %s146 = sand.u32 %s50, 1
          %s147 = smul.addr %s146, 32
          %s148 = scalar_lea.vmem [#allocation3], %s147
          %s149 = smul.u32 4, %s25
          %151 = vsyncadd %s145, 0
          %s152 = smul.addr %s149, 2
          %s153 = sadd.s32 %s26, %s152
          %s154 = smul.addr %s24, 8
          %s155 = sadd.s32 %s153, %s154
          %s156 = smul.addr %s155, 8
          %s157 = scalar_lea.hbm %s0, %s156
          %s158 = sshll.u32 %s157, 4
          %s159 = int_to_ptr.hbm [resolvable:$true] %s158
          %s160 = sshll.u32 %s148, 4
          %s161 = int_to_ptr.vmem [resolvable:$true] %s160
          %166 = dma.hbm_to_vmem [thread:$0]  %s159, 512, %s161, %s145, 256, 128, 8
        $region20: #{superfeatures.1} parent=15 // pred_fallthru
          _
        // Predicated region
        $region21: #{superfeatures.1} parent=15 // pred_check
          %p167 = pneg %p88
        $region22: #{superfeatures.1} parent=15 // pred_check_branch
          %169 = sbr.rel (%p167) target = $region24
        $region23: #{superfeatures.1} parent=15 // pred_region
          %s170 = sand.u32 %s78, 1
          %s171 = scalar_lea.sflag [#allocation7], %s170
          %s172 = sand.u32 %s78, 1
          %s173 = smul.addr %s172, 8
          %s174 = scalar_lea.vmem [#allocation6], %s173
          %176 = vsyncadd %s171, 0
          %s177 = smul.addr %s24, 2
          %s178 = sadd.s32 %s26, %s177
          %s179 = smul.addr %s178, 8
          %s180 = scalar_lea.hbm %s1, %s179
          %s182 = sshll.u32 %s180, 4
          %s183 = int_to_ptr.hbm [resolvable:$true] %s182
          %s184 = sshll.u32 %s174, 4
          %s185 = int_to_ptr.vmem [resolvable:$true] %s184
          %187 = dma.hbm_to_vmem [thread:$0]  %s183, 128, %s185, %s171
        $region24: #{superfeatures.1} parent=15 // pred_fallthru
          _
      $region16: #{superfeatures.1} parent=5 // pred_fallthru
        _
      %p188 = scmp.le.s32.totalorder 1, %s17
      %p189 = scmp.lt.s32.totalorder %s17, 5
      %p190 = pnand %p188, %p189
      %p191 = pneg %p190
      // Predicated region
      $region25: #{superfeatures.1} parent=5 // pred_check
        _
      $region26: #{superfeatures.1} parent=5 // pred_check_branch
        %193 = sbr.rel (%p190) target = $region28
      $region27: #{superfeatures.1} parent=5 // pred_region
        %s194 = ssub.s32 %s17, 1
        %s195 = sand.u32 %s53, 1
        %s196 = scalar_lea.sflag [#allocation4], %s195
        %s197 = sand.u32 %s53, 1
        %s198 = smul.addr %s197, 32
        %s199 = scalar_lea.vmem [#allocation3], %s198
        // Predicated region
        $region29: #{superfeatures.1} parent=27 // pred_check
          %p200 = pneg %p66
        $region30: #{superfeatures.1} parent=27 // pred_check_branch
          %202 = sbr.rel (%p200) target = $region32
        $region31: #{superfeatures.1} parent=27 // pred_region
          %204 = dma.done %s196, 512
        $region32: #{superfeatures.1} parent=27 // pred_fallthru
          _
        %s205 = sand.u32 %s81, 1
        %s206 = scalar_lea.sflag [#allocation7], %s205
        %s207 = sand.u32 %s81, 1
        %s208 = smul.addr %s207, 8
        %s209 = scalar_lea.vmem [#allocation6], %s208
        // Predicated region
        $region33: #{superfeatures.1} parent=27 // pred_check
          %p210 = pneg %p94
        $region34: #{superfeatures.1} parent=27 // pred_check_branch
          %212 = sbr.rel (%p210) target = $region36
        $region35: #{superfeatures.1} parent=27 // pred_region
          %214 = dma.done %s206, 128
        $region36: #{superfeatures.1} parent=27 // pred_fallthru
          _
        %s215 = sand.u32 %s53, 1
        %s216 = scalar_lea.sflag [#allocation4], %s215
        %s217 = sand.u32 %s53, 1
        %s218 = smul.addr %s217, 32
        %s219 = scalar_lea.vmem [#allocation3], %s218
        %p220 = pneg %p66
        %p221 = pneg %p63
        %s222 = sand.u32 %s81, 1
        %s223 = scalar_lea.sflag [#allocation7], %s222
        %s224 = sand.u32 %s81, 1
        %s225 = smul.addr %s224, 8
        %s226 = scalar_lea.vmem [#allocation6], %s225
        %p227 = pneg %p94
        %p228 = pneg %p91
        %p229 = pneg %p122
        %p230 = pneg %p119
        %s231 = sand.u32 %s109, 1
        %s232 = scalar_lea.sflag [#allocation5], %s231
        %s233 = sand.u32 %s109, 1
        %s234 = smul.addr %s233, 4
        %s235 = scalar_lea.vmem [#allocation8], %s234
        %s236 = smul.u32 4, %s28
        %p237 = scmp.eq.s32.totalorder %s29, 0
        // Predicated region
        $region37: #{superfeatures.1} parent=27 // pred_check
          %p238 = pneg %p237
        $region38: #{superfeatures.1} parent=27 // pred_check_branch
          %240 = sbr.rel (%p238) target = $region40
        $region39: #{superfeatures.1} parent=27 // pred_region
          %vm241 = vcmask 130048
          %242 = vst.msk [vmem:[#allocation2] sm:$0xff] %vm241, -inf
          %243 = vst.msk [vmem:[#allocation2 + $0x8] sm:$0xff] %vm241, -inf
          %244 = vst.msk [vmem:[#allocation2 + $0x10] sm:$0xff] %vm241, -inf
          %245 = vst.msk [vmem:[#allocation2 + $0x18] sm:$0xff] %vm241, -inf
          %246 = vst.msk [vmem:[#allocation2 + $0x20] sm:$0xff] %vm241, -inf
          %247 = vst.msk [vmem:[#allocation2 + $0x28] sm:$0xff] %vm241, -inf
          %248 = vst.msk [vmem:[#allocation2 + $0x30] sm:$0xff] %vm241, -inf
          %249 = vst.msk [vmem:[#allocation2 + $0x38] sm:$0xff] %vm241, -inf
          %250 = vst.msk [vmem:[#allocation2 + $0x40] sm:$0xff] %vm241, -inf
          %251 = vst.msk [vmem:[#allocation2 + $0x48] sm:$0xff] %vm241, -inf
          %252 = vst.msk [vmem:[#allocation2 + $0x50] sm:$0xff] %vm241, -inf
          %253 = vst.msk [vmem:[#allocation2 + $0x58] sm:$0xff] %vm241, -inf
          %254 = vst.msk [vmem:[#allocation2 + $0x60] sm:$0xff] %vm241, -inf
          %255 = vst.msk [vmem:[#allocation2 + $0x68] sm:$0xff] %vm241, -inf
          %256 = vst.msk [vmem:[#allocation2 + $0x70] sm:$0xff] %vm241, -inf
          %257 = vst.msk [vmem:[#allocation2 + $0x78] sm:$0xff] %vm241, -inf
          %258 = vst.msk [vmem:[#allocation2 + $0x80] sm:$0xff] %vm241, -inf
          %259 = vst.msk [vmem:[#allocation2 + $0x88] sm:$0xff] %vm241, -inf
          %260 = vst.msk [vmem:[#allocation2 + $0x90] sm:$0xff] %vm241, -inf
          %261 = vst.msk [vmem:[#allocation2 + $0x98] sm:$0xff] %vm241, -inf
          %262 = vst.msk [vmem:[#allocation2 + $0xa0] sm:$0xff] %vm241, -inf
          %263 = vst.msk [vmem:[#allocation2 + $0xa8] sm:$0xff] %vm241, -inf
          %264 = vst.msk [vmem:[#allocation2 + $0xb0] sm:$0xff] %vm241, -inf
          %265 = vst.msk [vmem:[#allocation2 + $0xb8] sm:$0xff] %vm241, -inf
          %266 = vst.msk [vmem:[#allocation2 + $0xc0] sm:$0xff] %vm241, -inf
          %267 = vst.msk [vmem:[#allocation2 + $0xc8] sm:$0xff] %vm241, -inf
          %268 = vst.msk [vmem:[#allocation2 + $0xd0] sm:$0xff] %vm241, -inf
          %269 = vst.msk [vmem:[#allocation2 + $0xd8] sm:$0xff] %vm241, -inf
          %270 = vst.msk [vmem:[#allocation2 + $0xe0] sm:$0xff] %vm241, -inf
          %271 = vst.msk [vmem:[#allocation2 + $0xe8] sm:$0xff] %vm241, -inf
          %272 = vst.msk [vmem:[#allocation2 + $0xf0] sm:$0xff] %vm241, -inf
          %273 = vst.msk [vmem:[#allocation2 + $0xf8] sm:$0xff] %vm241, -inf
          %274 = vst.msk [vmem:[#allocation2 + $0x100] sm:$0xff] %vm241, -inf
          %275 = vst.msk [vmem:[#allocation2 + $0x108] sm:$0xff] %vm241, -inf
          %276 = vst.msk [vmem:[#allocation2 + $0x110] sm:$0xff] %vm241, -inf
          %277 = vst.msk [vmem:[#allocation2 + $0x118] sm:$0xff] %vm241, -inf
          %278 = vst.msk [vmem:[#allocation2 + $0x120] sm:$0xff] %vm241, -inf
          %279 = vst.msk [vmem:[#allocation2 + $0x128] sm:$0xff] %vm241, -inf
          %280 = vst.msk [vmem:[#allocation2 + $0x130] sm:$0xff] %vm241, -inf
          %281 = vst.msk [vmem:[#allocation2 + $0x138] sm:$0xff] %vm241, -inf
          %282 = vst.msk [vmem:[#allocation2 + $0x140] sm:$0xff] %vm241, -inf
          %283 = vst.msk [vmem:[#allocation2 + $0x148] sm:$0xff] %vm241, -inf
          %284 = vst.msk [vmem:[#allocation2 + $0x150] sm:$0xff] %vm241, -inf
          %285 = vst.msk [vmem:[#allocation2 + $0x158] sm:$0xff] %vm241, -inf
          %286 = vst.msk [vmem:[#allocation2 + $0x160] sm:$0xff] %vm241, -inf
          %287 = vst.msk [vmem:[#allocation2 + $0x168] sm:$0xff] %vm241, -inf
          %288 = vst.msk [vmem:[#allocation2 + $0x170] sm:$0xff] %vm241, -inf
          %289 = vst.msk [vmem:[#allocation2 + $0x178] sm:$0xff] %vm241, -inf
          %290 = vst.msk [vmem:[#allocation2 + $0x180] sm:$0xff] %vm241, -inf
          %291 = vst.msk [vmem:[#allocation2 + $0x188] sm:$0xff] %vm241, -inf
          %292 = vst.msk [vmem:[#allocation2 + $0x190] sm:$0xff] %vm241, -inf
          %293 = vst.msk [vmem:[#allocation2 + $0x198] sm:$0xff] %vm241, -inf
          %294 = vst.msk [vmem:[#allocation2 + $0x1a0] sm:$0xff] %vm241, -inf
          %295 = vst.msk [vmem:[#allocation2 + $0x1a8] sm:$0xff] %vm241, -inf
          %296 = vst.msk [vmem:[#allocation2 + $0x1b0] sm:$0xff] %vm241, -inf
          %297 = vst.msk [vmem:[#allocation2 + $0x1b8] sm:$0xff] %vm241, -inf
          %298 = vst.msk [vmem:[#allocation2 + $0x1c0] sm:$0xff] %vm241, -inf
          %299 = vst.msk [vmem:[#allocation2 + $0x1c8] sm:$0xff] %vm241, -inf
          %300 = vst.msk [vmem:[#allocation2 + $0x1d0] sm:$0xff] %vm241, -inf
          %301 = vst.msk [vmem:[#allocation2 + $0x1d8] sm:$0xff] %vm241, -inf
          %302 = vst.msk [vmem:[#allocation2 + $0x1e0] sm:$0xff] %vm241, -inf
          %303 = vst.msk [vmem:[#allocation2 + $0x1e8] sm:$0xff] %vm241, -inf
          %304 = vst.msk [vmem:[#allocation2 + $0x1f0] sm:$0xff] %vm241, -inf
          %305 = vst.msk [vmem:[#allocation2 + $0x1f8] sm:$0xff] %vm241, -inf
        $region40: #{superfeatures.1} parent=27 // pred_fallthru
          _
        %v306 = vld [vmem:[%s199] sm:$0xff]
        %v307 = vld [vmem:[%s199 + $0x8] sm:$0xff]
        %v308 = vld [vmem:[%s199 + $0x10] sm:$0xff]
        %v309 = vld [vmem:[%s199 + $0x18] sm:$0xff]
        %v310 = vld [vmem:[%s209] sm:$0xff]
        %v311 = vlaneseq
        %v312 = vshrl.u32 %v311, 7
        %s313 = smul.u32 %s29, 8
        %v314 = vstv %s313
        %v315 = vadd.s32 %v312, %v314
        %v316 = vlaneseq
        %v317 = vand.u32 %v316, 127
        %vm318 = vcmp.ge.s32.totalorder %v315, 1
        %vm319 = vcmp.le.s32.totalorder %v315, 14
        %vm320 = vmand %vm318, %vm319
        %vm321 = vcmp.ge.s32.totalorder %v317, 1
        %vm322 = vmand %vm320, %vm321
        %vm323 = vcmp.le.s32.totalorder %v317, 14
        %vm324 = vmand %vm322, %vm323
        %v325 = vsel %vm324, %v310, 4294967295
        %v326 = vstv 0
        %v327 = vadd.s32 %v326, 1
        %v328 = vadd.s32 %v326, 2
        %v329 = vadd.s32 %v326, 3
        %v330 = vadd.s32 %v326, 4
        %v331 = vadd.s32 %v326, 5
        %v332 = vadd.s32 %v326, 6
        %v333 = vadd.s32 %v326, 7
        %vm334 = vcmp.eq.s32.totalorder %v325, %v326
        %vm335 = vcmp.eq.s32.totalorder %v325, %v327
        %vm336 = vcmp.eq.s32.totalorder %v325, %v328
        %vm337 = vcmp.eq.s32.totalorder %v325, %v329
        %vm338 = vcmp.eq.s32.totalorder %v325, %v330
        %vm339 = vcmp.eq.s32.totalorder %v325, %v331
        %vm340 = vcmp.eq.s32.totalorder %v325, %v332
        %vm341 = vcmp.eq.s32.totalorder %v325, %v333
        %v342 = vsel %vm334, 1, 0
        %v343 = vsel %vm335, 1, 0
        %v344 = vsel %vm336, 1, 0
        %v345 = vsel %vm337, 1, 0
        %v346 = vsel %vm338, 1, 0
        %v347 = vsel %vm339, 1, 0
        %v348 = vsel %vm340, 1, 0
        %v349 = vsel %vm341, 1, 0
        %vm350 = vcmp.eq.s32.totalorder %v342, 1
        %vm351 = vcmp.eq.s32.totalorder %v343, 1
        %vm352 = vcmp.eq.s32.totalorder %v344, 1
        %vm353 = vcmp.eq.s32.totalorder %v345, 1
        %vm354 = vcmp.eq.s32.totalorder %v346, 1
        %vm355 = vcmp.eq.s32.totalorder %v347, 1
        %vm356 = vcmp.eq.s32.totalorder %v348, 1
        %vm357 = vcmp.eq.s32.totalorder %v349, 1
        %v358 = vsel %vm350, %v306, -inf
        %v359 = vsel %vm351, %v306, -inf
        %v360 = vsel %vm352, %v306, -inf
        %v361 = vsel %vm353, %v306, -inf
        %v362 = vsel %vm354, %v306, -inf
        %v363 = vsel %vm355, %v306, -inf
        %v364 = vsel %vm356, %v306, -inf
        %v365 = vsel %vm357, %v306, -inf
        %v366 = vsel %vm350, %v307, -inf
        %v367 = vsel %vm351, %v307, -inf
        %v368 = vsel %vm352, %v307, -inf
        %v369 = vsel %vm353, %v307, -inf
        %v370 = vsel %vm354, %v307, -inf
        %v371 = vsel %vm355, %v307, -inf
        %v372 = vsel %vm356, %v307, -inf
        %v373 = vsel %vm357, %v307, -inf
        %v374 = vsel %vm350, %v308, -inf
        %v375 = vsel %vm351, %v308, -inf
        %v376 = vsel %vm352, %v308, -inf
        %v377 = vsel %vm353, %v308, -inf
        %v378 = vsel %vm354, %v308, -inf
        %v379 = vsel %vm355, %v308, -inf
        %v380 = vsel %vm356, %v308, -inf
        %v381 = vsel %vm357, %v308, -inf
        %v382 = vsel %vm350, %v309, -inf
        %v383 = vsel %vm351, %v309, -inf
        %v384 = vsel %vm352, %v309, -inf
        %v385 = vsel %vm353, %v309, -inf
        %v386 = vsel %vm354, %v309, -inf
        %v387 = vsel %vm355, %v309, -inf
        %v388 = vsel %vm356, %v309, -inf
        %v389 = vsel %vm357, %v309, -inf
        %vm390 = vcmask 130048
        %v391 = vsel %vm390, %v358, -inf
        %v392 = vrot.slane %v391, 4
        %v393 = vmax.f32 %v391, %v392
        %v394 = vrot.slane %v393, 2
        %v395 = vmax.f32 %v393, %v394
        %v396 = vrot.slane %v395, 1
        %v397 = vmax.f32 %v395, %v396
        %v398 = vsel %vm390, %v359, -inf
        %v399 = vrot.slane %v398, 4
        %v400 = vmax.f32 %v398, %v399
        %v401 = vrot.slane %v400, 2
        %v402 = vmax.f32 %v400, %v401
        %v403 = vrot.slane %v402, 1
        %v404 = vmax.f32 %v402, %v403
        %v405 = vsel %vm390, %v360, -inf
        %v406 = vrot.slane %v405, 4
        %v407 = vmax.f32 %v405, %v406
        %v408 = vrot.slane %v407, 2
        %v409 = vmax.f32 %v407, %v408
        %v410 = vrot.slane %v409, 1
        %v411 = vmax.f32 %v409, %v410
        %v412 = vsel %vm390, %v361, -inf
        %v413 = vrot.slane %v412, 4
        %v414 = vmax.f32 %v412, %v413
        %v415 = vrot.slane %v414, 2
        %v416 = vmax.f32 %v414, %v415
        %v417 = vrot.slane %v416, 1
        %v418 = vmax.f32 %v416, %v417
        %v419 = vsel %vm390, %v362, -inf
        %v420 = vrot.slane %v419, 4
        %v421 = vmax.f32 %v419, %v420
        %v422 = vrot.slane %v421, 2
        %v423 = vmax.f32 %v421, %v422
        %v424 = vrot.slane %v423, 1
        %v425 = vmax.f32 %v423, %v424
        %v426 = vsel %vm390, %v363, -inf
        %v427 = vrot.slane %v426, 4
        %v428 = vmax.f32 %v426, %v427
        %v429 = vrot.slane %v428, 2
        %v430 = vmax.f32 %v428, %v429
        %v431 = vrot.slane %v430, 1
        %v432 = vmax.f32 %v430, %v431
        %v433 = vsel %vm390, %v364, -inf
        %v434 = vrot.slane %v433, 4
        %v435 = vmax.f32 %v433, %v434
        %v436 = vrot.slane %v435, 2
        %v437 = vmax.f32 %v435, %v436
        %v438 = vrot.slane %v437, 1
        %v439 = vmax.f32 %v437, %v438
        %v440 = vsel %vm390, %v365, -inf
        %v441 = vrot.slane %v440, 4
        %v442 = vmax.f32 %v440, %v441
        %v443 = vrot.slane %v442, 2
        %v444 = vmax.f32 %v442, %v443
        %v445 = vrot.slane %v444, 1
        %v446 = vmax.f32 %v444, %v445
        %v447 = vsel %vm390, %v366, -inf
        %v448 = vrot.slane %v447, 4
        %v449 = vmax.f32 %v447, %v448
        %v450 = vrot.slane %v449, 2
        %v451 = vmax.f32 %v449, %v450
        %v452 = vrot.slane %v451, 1
        %v453 = vmax.f32 %v451, %v452
        %v454 = vsel %vm390, %v367, -inf
        %v455 = vrot.slane %v454, 4
        %v456 = vmax.f32 %v454, %v455
        %v457 = vrot.slane %v456, 2
        %v458 = vmax.f32 %v456, %v457
        %v459 = vrot.slane %v458, 1
        %v460 = vmax.f32 %v458, %v459
        %v461 = vsel %vm390, %v368, -inf
        %v462 = vrot.slane %v461, 4
        %v463 = vmax.f32 %v461, %v462
        %v464 = vrot.slane %v463, 2
        %v465 = vmax.f32 %v463, %v464
        %v466 = vrot.slane %v465, 1
        %v467 = vmax.f32 %v465, %v466
        %v468 = vsel %vm390, %v369, -inf
        %v469 = vrot.slane %v468, 4
        %v470 = vmax.f32 %v468, %v469
        %v471 = vrot.slane %v470, 2
        %v472 = vmax.f32 %v470, %v471
        %v473 = vrot.slane %v472, 1
        %v474 = vmax.f32 %v472, %v473
        %v475 = vsel %vm390, %v370, -inf
        %v476 = vrot.slane %v475, 4
        %v477 = vmax.f32 %v475, %v476
        %v478 = vrot.slane %v477, 2
        %v479 = vmax.f32 %v477, %v478
        %v480 = vrot.slane %v479, 1
        %v481 = vmax.f32 %v479, %v480
        %v482 = vsel %vm390, %v371, -inf
        %v483 = vrot.slane %v482, 4
        %v484 = vmax.f32 %v482, %v483
        %v485 = vrot.slane %v484, 2
        %v486 = vmax.f32 %v484, %v485
        %v487 = vrot.slane %v486, 1
        %v488 = vmax.f32 %v486, %v487
        %v489 = vsel %vm390, %v372, -inf
        %v490 = vrot.slane %v489, 4
        %v491 = vmax.f32 %v489, %v490
        %v492 = vrot.slane %v491, 2
        %v493 = vmax.f32 %v491, %v492
        %v494 = vrot.slane %v493, 1
        %v495 = vmax.f32 %v493, %v494
        %v496 = vsel %vm390, %v373, -inf
        %v497 = vrot.slane %v496, 4
        %v498 = vmax.f32 %v496, %v497
        %v499 = vrot.slane %v498, 2
        %v500 = vmax.f32 %v498, %v499
        %v501 = vrot.slane %v500, 1
        %v502 = vmax.f32 %v500, %v501
        %v503 = vsel %vm390, %v374, -inf
        %v504 = vrot.slane %v503, 4
        %v505 = vmax.f32 %v503, %v504
        %v506 = vrot.slane %v505, 2
        %v507 = vmax.f32 %v505, %v506
        %v508 = vrot.slane %v507, 1
        %v509 = vmax.f32 %v507, %v508
        %v510 = vsel %vm390, %v375, -inf
        %v511 = vrot.slane %v510, 4
        %v512 = vmax.f32 %v510, %v511
        %v513 = vrot.slane %v512, 2
        %v514 = vmax.f32 %v512, %v513
        %v515 = vrot.slane %v514, 1
        %v516 = vmax.f32 %v514, %v515
        %v517 = vsel %vm390, %v376, -inf
        %v518 = vrot.slane %v517, 4
        %v519 = vmax.f32 %v517, %v518
        %v520 = vrot.slane %v519, 2
        %v521 = vmax.f32 %v519, %v520
        %v522 = vrot.slane %v521, 1
        %v523 = vmax.f32 %v521, %v522
        %v524 = vsel %vm390, %v377, -inf
        %v525 = vrot.slane %v524, 4
        %v526 = vmax.f32 %v524, %v525
        %v527 = vrot.slane %v526, 2
        %v528 = vmax.f32 %v526, %v527
        %v529 = vrot.slane %v528, 1
        %v530 = vmax.f32 %v528, %v529
        %v531 = vsel %vm390, %v378, -inf
        %v532 = vrot.slane %v531, 4
        %v533 = vmax.f32 %v531, %v532
        %v534 = vrot.slane %v533, 2
        %v535 = vmax.f32 %v533, %v534
        %v536 = vrot.slane %v535, 1
        %v537 = vmax.f32 %v535, %v536
        %v538 = vsel %vm390, %v379, -inf
        %v539 = vrot.slane %v538, 4
        %v540 = vmax.f32 %v538, %v539
        %v541 = vrot.slane %v540, 2
        %v542 = vmax.f32 %v540, %v541
        %v543 = vrot.slane %v542, 1
        %v544 = vmax.f32 %v542, %v543
        %v545 = vsel %vm390, %v380, -inf
        %v546 = vrot.slane %v545, 4
        %v547 = vmax.f32 %v545, %v546
        %v548 = vrot.slane %v547, 2
        %v549 = vmax.f32 %v547, %v548
        %v550 = vrot.slane %v549, 1
        %v551 = vmax.f32 %v549, %v550
        %v552 = vsel %vm390, %v381, -inf
        %v553 = vrot.slane %v552, 4
        %v554 = vmax.f32 %v552, %v553
        %v555 = vrot.slane %v554, 2
        %v556 = vmax.f32 %v554, %v555
        %v557 = vrot.slane %v556, 1
        %v558 = vmax.f32 %v556, %v557
        %v559 = vsel %vm390, %v382, -inf
        %v560 = vrot.slane %v559, 4
        %v561 = vmax.f32 %v559, %v560
        %v562 = vrot.slane %v561, 2
        %v563 = vmax.f32 %v561, %v562
        %v564 = vrot.slane %v563, 1
        %v565 = vmax.f32 %v563, %v564
        %v566 = vsel %vm390, %v383, -inf
        %v567 = vrot.slane %v566, 4
        %v568 = vmax.f32 %v566, %v567
        %v569 = vrot.slane %v568, 2
        %v570 = vmax.f32 %v568, %v569
        %v571 = vrot.slane %v570, 1
        %v572 = vmax.f32 %v570, %v571
        %v573 = vsel %vm390, %v384, -inf
        %v574 = vrot.slane %v573, 4
        %v575 = vmax.f32 %v573, %v574
        %v576 = vrot.slane %v575, 2
        %v577 = vmax.f32 %v575, %v576
        %v578 = vrot.slane %v577, 1
        %v579 = vmax.f32 %v577, %v578
        %v580 = vsel %vm390, %v385, -inf
        %v581 = vrot.slane %v580, 4
        %v582 = vmax.f32 %v580, %v581
        %v583 = vrot.slane %v582, 2
        %v584 = vmax.f32 %v582, %v583
        %v585 = vrot.slane %v584, 1
        %v586 = vmax.f32 %v584, %v585
        %v587 = vsel %vm390, %v386, -inf
        %v588 = vrot.slane %v587, 4
        %v589 = vmax.f32 %v587, %v588
        %v590 = vrot.slane %v589, 2
        %v591 = vmax.f32 %v589, %v590
        %v592 = vrot.slane %v591, 1
        %v593 = vmax.f32 %v591, %v592
        %v594 = vsel %vm390, %v387, -inf
        %v595 = vrot.slane %v594, 4
        %v596 = vmax.f32 %v594, %v595
        %v597 = vrot.slane %v596, 2
        %v598 = vmax.f32 %v596, %v597
        %v599 = vrot.slane %v598, 1
        %v600 = vmax.f32 %v598, %v599
        %v601 = vsel %vm390, %v388, -inf
        %v602 = vrot.slane %v601, 4
        %v603 = vmax.f32 %v601, %v602
        %v604 = vrot.slane %v603, 2
        %v605 = vmax.f32 %v603, %v604
        %v606 = vrot.slane %v605, 1
        %v607 = vmax.f32 %v605, %v606
        %v608 = vsel %vm390, %v389, -inf
        %v609 = vrot.slane %v608, 4
        %v610 = vmax.f32 %v608, %v609
        %v611 = vrot.slane %v610, 2
        %v612 = vmax.f32 %v610, %v611
        %v613 = vrot.slane %v612, 1
        %v614 = vmax.f32 %v612, %v613
        %v615 = vld [vmem:[#allocation2] sm:$0xff]
        %v616 = vld [vmem:[#allocation2 + $0x80] sm:$0xff]
        %v617 = vld [vmem:[#allocation2 + $0x100] sm:$0xff]
        %v618 = vld [vmem:[#allocation2 + $0x180] sm:$0xff]
        %vm651 = vcmask 1041409
        %v652 = vsel %vm651, %v404, %v397
        %vm653 = vcmask 1042434
        %v654 = vsel %vm653, %v411, %v652
        %vm655 = vcmask 1043459
        %v656 = vsel %vm655, %v418, %v654
        %vm657 = vcmask 1044484
        %v658 = vsel %vm657, %v425, %v656
        %vm659 = vcmask 1045509
        %v660 = vsel %vm659, %v432, %v658
        %vm661 = vcmask 1046534
        %v662 = vsel %vm661, %v439, %v660
        %vm663 = vcmask 1047559
        %v664 = vsel %vm663, %v446, %v662
        %v665 = vsel %vm651, %v460, %v453
        %v666 = vsel %vm653, %v467, %v665
        %v667 = vsel %vm655, %v474, %v666
        %v668 = vsel %vm657, %v481, %v667
        %v669 = vsel %vm659, %v488, %v668
        %v670 = vsel %vm661, %v495, %v669
        %v671 = vsel %vm663, %v502, %v670
        %v672 = vsel %vm651, %v516, %v509
        %v673 = vsel %vm653, %v523, %v672
        %v674 = vsel %vm655, %v530, %v673
        %v675 = vsel %vm657, %v537, %v674
        %v676 = vsel %vm659, %v544, %v675
        %v677 = vsel %vm661, %v551, %v676
        %v678 = vsel %vm663, %v558, %v677
        %v679 = vsel %vm651, %v572, %v565
        %v680 = vsel %vm653, %v579, %v679
        %v681 = vsel %vm655, %v586, %v680
        %v682 = vsel %vm657, %v593, %v681
        %v683 = vsel %vm659, %v600, %v682
        %v684 = vsel %vm661, %v607, %v683
        %v685 = vsel %vm663, %v614, %v684
        %v690 = vmax.f32 %v615, %v664
        %v691 = vmax.f32 %v616, %v671
        %v692 = vmax.f32 %v617, %v678
        %v693 = vmax.f32 %v618, %v685
        %694 = vst.msk [vmem:[#allocation2] sm:$0xff] %vm390, %v690
        %695 = vst.msk [vmem:[#allocation2 + $0x80] sm:$0xff] %vm390, %v691
        %696 = vst.msk [vmem:[#allocation2 + $0x100] sm:$0xff] %vm390, %v692
        %697 = vst.msk [vmem:[#allocation2 + $0x180] sm:$0xff] %vm390, %v693
        %v698 = vstv 8
        %v699 = vadd.s32 %v698, 1
        %v700 = vadd.s32 %v698, 2
        %v701 = vadd.s32 %v698, 3
        %v702 = vadd.s32 %v698, 4
        %v703 = vadd.s32 %v698, 5
        %v704 = vadd.s32 %v698, 6
        %v705 = vadd.s32 %v698, 7
        %vm706 = vcmp.eq.s32.totalorder %v325, %v698
        %vm707 = vcmp.eq.s32.totalorder %v325, %v699
        %vm708 = vcmp.eq.s32.totalorder %v325, %v700
        %vm709 = vcmp.eq.s32.totalorder %v325, %v701
        %vm710 = vcmp.eq.s32.totalorder %v325, %v702
        %vm711 = vcmp.eq.s32.totalorder %v325, %v703
        %vm712 = vcmp.eq.s32.totalorder %v325, %v704
        %vm713 = vcmp.eq.s32.totalorder %v325, %v705
        %v714 = vsel %vm706, 1, 0
        %v715 = vsel %vm707, 1, 0
        %v716 = vsel %vm708, 1, 0
        %v717 = vsel %vm709, 1, 0
        %v718 = vsel %vm710, 1, 0
        %v719 = vsel %vm711, 1, 0
        %v720 = vsel %vm712, 1, 0
        %v721 = vsel %vm713, 1, 0
        %vm722 = vcmp.eq.s32.totalorder %v714, 1
        %vm723 = vcmp.eq.s32.totalorder %v715, 1
        %vm724 = vcmp.eq.s32.totalorder %v716, 1
        %vm725 = vcmp.eq.s32.totalorder %v717, 1
        %vm726 = vcmp.eq.s32.totalorder %v718, 1
        %vm727 = vcmp.eq.s32.totalorder %v719, 1
        %vm728 = vcmp.eq.s32.totalorder %v720, 1
        %vm729 = vcmp.eq.s32.totalorder %v721, 1
        %v730 = vsel %vm722, %v306, -inf
        %v731 = vsel %vm723, %v306, -inf
        %v732 = vsel %vm724, %v306, -inf
        %v733 = vsel %vm725, %v306, -inf
        %v734 = vsel %vm726, %v306, -inf
        %v735 = vsel %vm727, %v306, -inf
        %v736 = vsel %vm728, %v306, -inf
        %v737 = vsel %vm729, %v306, -inf
        %v738 = vsel %vm722, %v307, -inf
        %v739 = vsel %vm723, %v307, -inf
        %v740 = vsel %vm724, %v307, -inf
        %v741 = vsel %vm725, %v307, -inf
        %v742 = vsel %vm726, %v307, -inf
        %v743 = vsel %vm727, %v307, -inf
        %v744 = vsel %vm728, %v307, -inf
        %v745 = vsel %vm729, %v307, -inf
        %v746 = vsel %vm722, %v308, -inf
        %v747 = vsel %vm723, %v308, -inf
        %v748 = vsel %vm724, %v308, -inf
        %v749 = vsel %vm725, %v308, -inf
        %v750 = vsel %vm726, %v308, -inf
        %v751 = vsel %vm727, %v308, -inf
        %v752 = vsel %vm728, %v308, -inf
        %v753 = vsel %vm729, %v308, -inf
        %v754 = vsel %vm722, %v309, -inf
        %v755 = vsel %vm723, %v309, -inf
        %v756 = vsel %vm724, %v309, -inf
        %v757 = vsel %vm725, %v309, -inf
        %v758 = vsel %vm726, %v309, -inf
        %v759 = vsel %vm727, %v309, -inf
        %v760 = vsel %vm728, %v309, -inf
        %v761 = vsel %vm729, %v309, -inf
        %v762 = vsel %vm390, %v730, -inf
        %v763 = vrot.slane %v762, 4
        %v764 = vmax.f32 %v762, %v763
        %v765 = vrot.slane %v764, 2
        %v766 = vmax.f32 %v764, %v765
        %v767 = vrot.slane %v766, 1
        %v768 = vmax.f32 %v766, %v767
        %v769 = vsel %vm390, %v731, -inf
        %v770 = vrot.slane %v769, 4
        %v771 = vmax.f32 %v769, %v770
        %v772 = vrot.slane %v771, 2
        %v773 = vmax.f32 %v771, %v772
        %v774 = vrot.slane %v773, 1
        %v775 = vmax.f32 %v773, %v774
        %v776 = vsel %vm390, %v732, -inf
        %v777 = vrot.slane %v776, 4
        %v778 = vmax.f32 %v776, %v777
        %v779 = vrot.slane %v778, 2
        %v780 = vmax.f32 %v778, %v779
        %v781 = vrot.slane %v780, 1
        %v782 = vmax.f32 %v780, %v781
        %v783 = vsel %vm390, %v733, -inf
        %v784 = vrot.slane %v783, 4
        %v785 = vmax.f32 %v783, %v784
        %v786 = vrot.slane %v785, 2
        %v787 = vmax.f32 %v785, %v786
        %v788 = vrot.slane %v787, 1
        %v789 = vmax.f32 %v787, %v788
        %v790 = vsel %vm390, %v734, -inf
        %v791 = vrot.slane %v790, 4
        %v792 = vmax.f32 %v790, %v791
        %v793 = vrot.slane %v792, 2
        %v794 = vmax.f32 %v792, %v793
        %v795 = vrot.slane %v794, 1
        %v796 = vmax.f32 %v794, %v795
        %v797 = vsel %vm390, %v735, -inf
        %v798 = vrot.slane %v797, 4
        %v799 = vmax.f32 %v797, %v798
        %v800 = vrot.slane %v799, 2
        %v801 = vmax.f32 %v799, %v800
        %v802 = vrot.slane %v801, 1
        %v803 = vmax.f32 %v801, %v802
        %v804 = vsel %vm390, %v736, -inf
        %v805 = vrot.slane %v804, 4
        %v806 = vmax.f32 %v804, %v805
        %v807 = vrot.slane %v806, 2
        %v808 = vmax.f32 %v806, %v807
        %v809 = vrot.slane %v808, 1
        %v810 = vmax.f32 %v808, %v809
        %v811 = vsel %vm390, %v737, -inf
        %v812 = vrot.slane %v811, 4
        %v813 = vmax.f32 %v811, %v812
        %v814 = vrot.slane %v813, 2
        %v815 = vmax.f32 %v813, %v814
        %v816 = vrot.slane %v815, 1
        %v817 = vmax.f32 %v815, %v816
        %v818 = vsel %vm390, %v738, -inf
        %v819 = vrot.slane %v818, 4
        %v820 = vmax.f32 %v818, %v819
        %v821 = vrot.slane %v820, 2
        %v822 = vmax.f32 %v820, %v821
        %v823 = vrot.slane %v822, 1
        %v824 = vmax.f32 %v822, %v823
        %v825 = vsel %vm390, %v739, -inf
        %v826 = vrot.slane %v825, 4
        %v827 = vmax.f32 %v825, %v826
        %v828 = vrot.slane %v827, 2
        %v829 = vmax.f32 %v827, %v828
        %v830 = vrot.slane %v829, 1
        %v831 = vmax.f32 %v829, %v830
        %v832 = vsel %vm390, %v740, -inf
        %v833 = vrot.slane %v832, 4
        %v834 = vmax.f32 %v832, %v833
        %v835 = vrot.slane %v834, 2
        %v836 = vmax.f32 %v834, %v835
        %v837 = vrot.slane %v836, 1
        %v838 = vmax.f32 %v836, %v837
        %v839 = vsel %vm390, %v741, -inf
        %v840 = vrot.slane %v839, 4
        %v841 = vmax.f32 %v839, %v840
        %v842 = vrot.slane %v841, 2
        %v843 = vmax.f32 %v841, %v842
        %v844 = vrot.slane %v843, 1
        %v845 = vmax.f32 %v843, %v844
        %v846 = vsel %vm390, %v742, -inf
        %v847 = vrot.slane %v846, 4
        %v848 = vmax.f32 %v846, %v847
        %v849 = vrot.slane %v848, 2
        %v850 = vmax.f32 %v848, %v849
        %v851 = vrot.slane %v850, 1
        %v852 = vmax.f32 %v850, %v851
        %v853 = vsel %vm390, %v743, -inf
        %v854 = vrot.slane %v853, 4
        %v855 = vmax.f32 %v853, %v854
        %v856 = vrot.slane %v855, 2
        %v857 = vmax.f32 %v855, %v856
        %v858 = vrot.slane %v857, 1
        %v859 = vmax.f32 %v857, %v858
        %v860 = vsel %vm390, %v744, -inf
        %v861 = vrot.slane %v860, 4
        %v862 = vmax.f32 %v860, %v861
        %v863 = vrot.slane %v862, 2
        %v864 = vmax.f32 %v862, %v863
        %v865 = vrot.slane %v864, 1
        %v866 = vmax.f32 %v864, %v865
        %v867 = vsel %vm390, %v745, -inf
        %v868 = vrot.slane %v867, 4
        %v869 = vmax.f32 %v867, %v868
        %v870 = vrot.slane %v869, 2
        %v871 = vmax.f32 %v869, %v870
        %v872 = vrot.slane %v871, 1
        %v873 = vmax.f32 %v871, %v872
        %v874 = vsel %vm390, %v746, -inf
        %v875 = vrot.slane %v874, 4
        %v876 = vmax.f32 %v874, %v875
        %v877 = vrot.slane %v876, 2
        %v878 = vmax.f32 %v876, %v877
        %v879 = vrot.slane %v878, 1
        %v880 = vmax.f32 %v878, %v879
        %v881 = vsel %vm390, %v747, -inf
        %v882 = vrot.slane %v881, 4
        %v883 = vmax.f32 %v881, %v882
        %v884 = vrot.slane %v883, 2
        %v885 = vmax.f32 %v883, %v884
        %v886 = vrot.slane %v885, 1
        %v887 = vmax.f32 %v885, %v886
        %v888 = vsel %vm390, %v748, -inf
        %v889 = vrot.slane %v888, 4
        %v890 = vmax.f32 %v888, %v889
        %v891 = vrot.slane %v890, 2
        %v892 = vmax.f32 %v890, %v891
        %v893 = vrot.slane %v892, 1
        %v894 = vmax.f32 %v892, %v893
        %v895 = vsel %vm390, %v749, -inf
        %v896 = vrot.slane %v895, 4
        %v897 = vmax.f32 %v895, %v896
        %v898 = vrot.slane %v897, 2
        %v899 = vmax.f32 %v897, %v898
        %v900 = vrot.slane %v899, 1
        %v901 = vmax.f32 %v899, %v900
        %v902 = vsel %vm390, %v750, -inf
        %v903 = vrot.slane %v902, 4
        %v904 = vmax.f32 %v902, %v903
        %v905 = vrot.slane %v904, 2
        %v906 = vmax.f32 %v904, %v905
        %v907 = vrot.slane %v906, 1
        %v908 = vmax.f32 %v906, %v907
        %v909 = vsel %vm390, %v751, -inf
        %v910 = vrot.slane %v909, 4
        %v911 = vmax.f32 %v909, %v910
        %v912 = vrot.slane %v911, 2
        %v913 = vmax.f32 %v911, %v912
        %v914 = vrot.slane %v913, 1
        %v915 = vmax.f32 %v913, %v914
        %v916 = vsel %vm390, %v752, -inf
        %v917 = vrot.slane %v916, 4
        %v918 = vmax.f32 %v916, %v917
        %v919 = vrot.slane %v918, 2
        %v920 = vmax.f32 %v918, %v919
        %v921 = vrot.slane %v920, 1
        %v922 = vmax.f32 %v920, %v921
        %v923 = vsel %vm390, %v753, -inf
        %v924 = vrot.slane %v923, 4
        %v925 = vmax.f32 %v923, %v924
        %v926 = vrot.slane %v925, 2
        %v927 = vmax.f32 %v925, %v926
        %v928 = vrot.slane %v927, 1
        %v929 = vmax.f32 %v927, %v928
        %v930 = vsel %vm390, %v754, -inf
        %v931 = vrot.slane %v930, 4
        %v932 = vmax.f32 %v930, %v931
        %v933 = vrot.slane %v932, 2
        %v934 = vmax.f32 %v932, %v933
        %v935 = vrot.slane %v934, 1
        %v936 = vmax.f32 %v934, %v935
        %v937 = vsel %vm390, %v755, -inf
        %v938 = vrot.slane %v937, 4
        %v939 = vmax.f32 %v937, %v938
        %v940 = vrot.slane %v939, 2
        %v941 = vmax.f32 %v939, %v940
        %v942 = vrot.slane %v941, 1
        %v943 = vmax.f32 %v941, %v942
        %v944 = vsel %vm390, %v756, -inf
        %v945 = vrot.slane %v944, 4
        %v946 = vmax.f32 %v944, %v945
        %v947 = vrot.slane %v946, 2
        %v948 = vmax.f32 %v946, %v947
        %v949 = vrot.slane %v948, 1
        %v950 = vmax.f32 %v948, %v949
        %v951 = vsel %vm390, %v757, -inf
        %v952 = vrot.slane %v951, 4
        %v953 = vmax.f32 %v951, %v952
        %v954 = vrot.slane %v953, 2
        %v955 = vmax.f32 %v953, %v954
        %v956 = vrot.slane %v955, 1
        %v957 = vmax.f32 %v955, %v956
        %v958 = vsel %vm390, %v758, -inf
        %v959 = vrot.slane %v958, 4
        %v960 = vmax.f32 %v958, %v959
        %v961 = vrot.slane %v960, 2
        %v962 = vmax.f32 %v960, %v961
        %v963 = vrot.slane %v962, 1
        %v964 = vmax.f32 %v962, %v963
        %v965 = vsel %vm390, %v759, -inf
        %v966 = vrot.slane %v965, 4
        %v967 = vmax.f32 %v965, %v966
        %v968 = vrot.slane %v967, 2
        %v969 = vmax.f32 %v967, %v968
        %v970 = vrot.slane %v969, 1
        %v971 = vmax.f32 %v969, %v970
        %v972 = vsel %vm390, %v760, -inf
        %v973 = vrot.slane %v972, 4
        %v974 = vmax.f32 %v972, %v973
        %v975 = vrot.slane %v974, 2
        %v976 = vmax.f32 %v974, %v975
        %v977 = vrot.slane %v976, 1
        %v978 = vmax.f32 %v976, %v977
        %v979 = vsel %vm390, %v761, -inf
        %v980 = vrot.slane %v979, 4
        %v981 = vmax.f32 %v979, %v980
        %v982 = vrot.slane %v981, 2
        %v983 = vmax.f32 %v981, %v982
        %v984 = vrot.slane %v983, 1
        %v985 = vmax.f32 %v983, %v984
        %s986 = scalar_lea.vmem [#allocation2], 8
        %v987 = vld [vmem:[%s986] sm:$0xff]
        %v988 = vld [vmem:[%s986 + $0x80] sm:$0xff]
        %v989 = vld [vmem:[%s986 + $0x100] sm:$0xff]
        %v990 = vld [vmem:[%s986 + $0x180] sm:$0xff]
        %v1023 = vsel %vm651, %v775, %v768
        %v1024 = vsel %vm653, %v782, %v1023
        %v1025 = vsel %vm655, %v789, %v1024
        %v1026 = vsel %vm657, %v796, %v1025
        %v1027 = vsel %vm659, %v803, %v1026
        %v1028 = vsel %vm661, %v810, %v1027
        %v1029 = vsel %vm663, %v817, %v1028
        %v1030 = vsel %vm651, %v831, %v824
        %v1031 = vsel %vm653, %v838, %v1030
        %v1032 = vsel %vm655, %v845, %v1031
        %v1033 = vsel %vm657, %v852, %v1032
        %v1034 = vsel %vm659, %v859, %v1033
        %v1035 = vsel %vm661, %v866, %v1034
        %v1036 = vsel %vm663, %v873, %v1035
        %v1037 = vsel %vm651, %v887, %v880
        %v1038 = vsel %vm653, %v894, %v1037
        %v1039 = vsel %vm655, %v901, %v1038
        %v1040 = vsel %vm657, %v908, %v1039
        %v1041 = vsel %vm659, %v915, %v1040
        %v1042 = vsel %vm661, %v922, %v1041
        %v1043 = vsel %vm663, %v929, %v1042
        %v1044 = vsel %vm651, %v943, %v936
        %v1045 = vsel %vm653, %v950, %v1044
        %v1046 = vsel %vm655, %v957, %v1045
        %v1047 = vsel %vm657, %v964, %v1046
        %v1048 = vsel %vm659, %v971, %v1047
        %v1049 = vsel %vm661, %v978, %v1048
        %v1050 = vsel %vm663, %v985, %v1049
        %v1055 = vmax.f32 %v987, %v1029
        %v1056 = vmax.f32 %v988, %v1036
        %v1057 = vmax.f32 %v989, %v1043
        %v1058 = vmax.f32 %v990, %v1050
        %1059 = vst.msk [vmem:[%s986] sm:$0xff] %vm390, %v1055
        %1060 = vst.msk [vmem:[%s986 + $0x80] sm:$0xff] %vm390, %v1056
        %1061 = vst.msk [vmem:[%s986 + $0x100] sm:$0xff] %vm390, %v1057
        %1062 = vst.msk [vmem:[%s986 + $0x180] sm:$0xff] %vm390, %v1058
        %v1063 = vstv 16
        %v1064 = vadd.s32 %v1063, 1
        %v1065 = vadd.s32 %v1063, 2
        %v1066 = vadd.s32 %v1063, 3
        %v1067 = vadd.s32 %v1063, 4
        %v1068 = vadd.s32 %v1063, 5
        %v1069 = vadd.s32 %v1063, 6
        %v1070 = vadd.s32 %v1063, 7
        %vm1071 = vcmp.eq.s32.totalorder %v325, %v1063
        %vm1072 = vcmp.eq.s32.totalorder %v325, %v1064
        %vm1073 = vcmp.eq.s32.totalorder %v325, %v1065
        %vm1074 = vcmp.eq.s32.totalorder %v325, %v1066
        %vm1075 = vcmp.eq.s32.totalorder %v325, %v1067
        %vm1076 = vcmp.eq.s32.totalorder %v325, %v1068
        %vm1077 = vcmp.eq.s32.totalorder %v325, %v1069
        %vm1078 = vcmp.eq.s32.totalorder %v325, %v1070
        %v1079 = vsel %vm1071, 1, 0
        %v1080 = vsel %vm1072, 1, 0
        %v1081 = vsel %vm1073, 1, 0
        %v1082 = vsel %vm1074, 1, 0
        %v1083 = vsel %vm1075, 1, 0
        %v1084 = vsel %vm1076, 1, 0
        %v1085 = vsel %vm1077, 1, 0
        %v1086 = vsel %vm1078, 1, 0
        %vm1087 = vcmp.eq.s32.totalorder %v1079, 1
        %vm1088 = vcmp.eq.s32.totalorder %v1080, 1
        %vm1089 = vcmp.eq.s32.totalorder %v1081, 1
        %vm1090 = vcmp.eq.s32.totalorder %v1082, 1
        %vm1091 = vcmp.eq.s32.totalorder %v1083, 1
        %vm1092 = vcmp.eq.s32.totalorder %v1084, 1
        %vm1093 = vcmp.eq.s32.totalorder %v1085, 1
        %vm1094 = vcmp.eq.s32.totalorder %v1086, 1
        %v1095 = vsel %vm1087, %v306, -inf
        %v1096 = vsel %vm1088, %v306, -inf
        %v1097 = vsel %vm1089, %v306, -inf
        %v1098 = vsel %vm1090, %v306, -inf
        %v1099 = vsel %vm1091, %v306, -inf
        %v1100 = vsel %vm1092, %v306, -inf
        %v1101 = vsel %vm1093, %v306, -inf
        %v1102 = vsel %vm1094, %v306, -inf
        %v1103 = vsel %vm1087, %v307, -inf
        %v1104 = vsel %vm1088, %v307, -inf
        %v1105 = vsel %vm1089, %v307, -inf
        %v1106 = vsel %vm1090, %v307, -inf
        %v1107 = vsel %vm1091, %v307, -inf
        %v1108 = vsel %vm1092, %v307, -inf
        %v1109 = vsel %vm1093, %v307, -inf
        %v1110 = vsel %vm1094, %v307, -inf
        %v1111 = vsel %vm1087, %v308, -inf
        %v1112 = vsel %vm1088, %v308, -inf
        %v1113 = vsel %vm1089, %v308, -inf
        %v1114 = vsel %vm1090, %v308, -inf
        %v1115 = vsel %vm1091, %v308, -inf
        %v1116 = vsel %vm1092, %v308, -inf
        %v1117 = vsel %vm1093, %v308, -inf
        %v1118 = vsel %vm1094, %v308, -inf
        %v1119 = vsel %vm1087, %v309, -inf
        %v1120 = vsel %vm1088, %v309, -inf
        %v1121 = vsel %vm1089, %v309, -inf
        %v1122 = vsel %vm1090, %v309, -inf
        %v1123 = vsel %vm1091, %v309, -inf
        %v1124 = vsel %vm1092, %v309, -inf
        %v1125 = vsel %vm1093, %v309, -inf
        %v1126 = vsel %vm1094, %v309, -inf
        %v1127 = vsel %vm390, %v1095, -inf
        %v1128 = vrot.slane %v1127, 4
        %v1129 = vmax.f32 %v1127, %v1128
        %v1130 = vrot.slane %v1129, 2
        %v1131 = vmax.f32 %v1129, %v1130
        %v1132 = vrot.slane %v1131, 1
        %v1133 = vmax.f32 %v1131, %v1132
        %v1134 = vsel %vm390, %v1096, -inf
        %v1135 = vrot.slane %v1134, 4
        %v1136 = vmax.f32 %v1134, %v1135
        %v1137 = vrot.slane %v1136, 2
        %v1138 = vmax.f32 %v1136, %v1137
        %v1139 = vrot.slane %v1138, 1
        %v1140 = vmax.f32 %v1138, %v1139
        %v1141 = vsel %vm390, %v1097, -inf
        %v1142 = vrot.slane %v1141, 4
        %v1143 = vmax.f32 %v1141, %v1142
        %v1144 = vrot.slane %v1143, 2
        %v1145 = vmax.f32 %v1143, %v1144
        %v1146 = vrot.slane %v1145, 1
        %v1147 = vmax.f32 %v1145, %v1146
        %v1148 = vsel %vm390, %v1098, -inf
        %v1149 = vrot.slane %v1148, 4
        %v1150 = vmax.f32 %v1148, %v1149
        %v1151 = vrot.slane %v1150, 2
        %v1152 = vmax.f32 %v1150, %v1151
        %v1153 = vrot.slane %v1152, 1
        %v1154 = vmax.f32 %v1152, %v1153
        %v1155 = vsel %vm390, %v1099, -inf
        %v1156 = vrot.slane %v1155, 4
        %v1157 = vmax.f32 %v1155, %v1156
        %v1158 = vrot.slane %v1157, 2
        %v1159 = vmax.f32 %v1157, %v1158
        %v1160 = vrot.slane %v1159, 1
        %v1161 = vmax.f32 %v1159, %v1160
        %v1162 = vsel %vm390, %v1100, -inf
        %v1163 = vrot.slane %v1162, 4
        %v1164 = vmax.f32 %v1162, %v1163
        %v1165 = vrot.slane %v1164, 2
        %v1166 = vmax.f32 %v1164, %v1165
        %v1167 = vrot.slane %v1166, 1
        %v1168 = vmax.f32 %v1166, %v1167
        %v1169 = vsel %vm390, %v1101, -inf
        %v1170 = vrot.slane %v1169, 4
        %v1171 = vmax.f32 %v1169, %v1170
        %v1172 = vrot.slane %v1171, 2
        %v1173 = vmax.f32 %v1171, %v1172
        %v1174 = vrot.slane %v1173, 1
        %v1175 = vmax.f32 %v1173, %v1174
        %v1176 = vsel %vm390, %v1102, -inf
        %v1177 = vrot.slane %v1176, 4
        %v1178 = vmax.f32 %v1176, %v1177
        %v1179 = vrot.slane %v1178, 2
        %v1180 = vmax.f32 %v1178, %v1179
        %v1181 = vrot.slane %v1180, 1
        %v1182 = vmax.f32 %v1180, %v1181
        %v1183 = vsel %vm390, %v1103, -inf
        %v1184 = vrot.slane %v1183, 4
        %v1185 = vmax.f32 %v1183, %v1184
        %v1186 = vrot.slane %v1185, 2
        %v1187 = vmax.f32 %v1185, %v1186
        %v1188 = vrot.slane %v1187, 1
        %v1189 = vmax.f32 %v1187, %v1188
        %v1190 = vsel %vm390, %v1104, -inf
        %v1191 = vrot.slane %v1190, 4
        %v1192 = vmax.f32 %v1190, %v1191
        %v1193 = vrot.slane %v1192, 2
        %v1194 = vmax.f32 %v1192, %v1193
        %v1195 = vrot.slane %v1194, 1
        %v1196 = vmax.f32 %v1194, %v1195
        %v1197 = vsel %vm390, %v1105, -inf
        %v1198 = vrot.slane %v1197, 4
        %v1199 = vmax.f32 %v1197, %v1198
        %v1200 = vrot.slane %v1199, 2
        %v1201 = vmax.f32 %v1199, %v1200
        %v1202 = vrot.slane %v1201, 1
        %v1203 = vmax.f32 %v1201, %v1202
        %v1204 = vsel %vm390, %v1106, -inf
        %v1205 = vrot.slane %v1204, 4
        %v1206 = vmax.f32 %v1204, %v1205
        %v1207 = vrot.slane %v1206, 2
        %v1208 = vmax.f32 %v1206, %v1207
        %v1209 = vrot.slane %v1208, 1
        %v1210 = vmax.f32 %v1208, %v1209
        %v1211 = vsel %vm390, %v1107, -inf
        %v1212 = vrot.slane %v1211, 4
        %v1213 = vmax.f32 %v1211, %v1212
        %v1214 = vrot.slane %v1213, 2
        %v1215 = vmax.f32 %v1213, %v1214
        %v1216 = vrot.slane %v1215, 1
        %v1217 = vmax.f32 %v1215, %v1216
        %v1218 = vsel %vm390, %v1108, -inf
        %v1219 = vrot.slane %v1218, 4
        %v1220 = vmax.f32 %v1218, %v1219
        %v1221 = vrot.slane %v1220, 2
        %v1222 = vmax.f32 %v1220, %v1221
        %v1223 = vrot.slane %v1222, 1
        %v1224 = vmax.f32 %v1222, %v1223
        %v1225 = vsel %vm390, %v1109, -inf
        %v1226 = vrot.slane %v1225, 4
        %v1227 = vmax.f32 %v1225, %v1226
        %v1228 = vrot.slane %v1227, 2
        %v1229 = vmax.f32 %v1227, %v1228
        %v1230 = vrot.slane %v1229, 1
        %v1231 = vmax.f32 %v1229, %v1230
        %v1232 = vsel %vm390, %v1110, -inf
        %v1233 = vrot.slane %v1232, 4
        %v1234 = vmax.f32 %v1232, %v1233
        %v1235 = vrot.slane %v1234, 2
        %v1236 = vmax.f32 %v1234, %v1235
        %v1237 = vrot.slane %v1236, 1
        %v1238 = vmax.f32 %v1236, %v1237
        %v1239 = vsel %vm390, %v1111, -inf
        %v1240 = vrot.slane %v1239, 4
        %v1241 = vmax.f32 %v1239, %v1240
        %v1242 = vrot.slane %v1241, 2
        %v1243 = vmax.f32 %v1241, %v1242
        %v1244 = vrot.slane %v1243, 1
        %v1245 = vmax.f32 %v1243, %v1244
        %v1246 = vsel %vm390, %v1112, -inf
        %v1247 = vrot.slane %v1246, 4
        %v1248 = vmax.f32 %v1246, %v1247
        %v1249 = vrot.slane %v1248, 2
        %v1250 = vmax.f32 %v1248, %v1249
        %v1251 = vrot.slane %v1250, 1
        %v1252 = vmax.f32 %v1250, %v1251
        %v1253 = vsel %vm390, %v1113, -inf
        %v1254 = vrot.slane %v1253, 4
        %v1255 = vmax.f32 %v1253, %v1254
        %v1256 = vrot.slane %v1255, 2
        %v1257 = vmax.f32 %v1255, %v1256
        %v1258 = vrot.slane %v1257, 1
        %v1259 = vmax.f32 %v1257, %v1258
        %v1260 = vsel %vm390, %v1114, -inf
        %v1261 = vrot.slane %v1260, 4
        %v1262 = vmax.f32 %v1260, %v1261
        %v1263 = vrot.slane %v1262, 2
        %v1264 = vmax.f32 %v1262, %v1263
        %v1265 = vrot.slane %v1264, 1
        %v1266 = vmax.f32 %v1264, %v1265
        %v1267 = vsel %vm390, %v1115, -inf
        %v1268 = vrot.slane %v1267, 4
        %v1269 = vmax.f32 %v1267, %v1268
        %v1270 = vrot.slane %v1269, 2
        %v1271 = vmax.f32 %v1269, %v1270
        %v1272 = vrot.slane %v1271, 1
        %v1273 = vmax.f32 %v1271, %v1272
        %v1274 = vsel %vm390, %v1116, -inf
        %v1275 = vrot.slane %v1274, 4
        %v1276 = vmax.f32 %v1274, %v1275
        %v1277 = vrot.slane %v1276, 2
        %v1278 = vmax.f32 %v1276, %v1277
        %v1279 = vrot.slane %v1278, 1
        %v1280 = vmax.f32 %v1278, %v1279
        %v1281 = vsel %vm390, %v1117, -inf
        %v1282 = vrot.slane %v1281, 4
        %v1283 = vmax.f32 %v1281, %v1282
        %v1284 = vrot.slane %v1283, 2
        %v1285 = vmax.f32 %v1283, %v1284
        %v1286 = vrot.slane %v1285, 1
        %v1287 = vmax.f32 %v1285, %v1286
        %v1288 = vsel %vm390, %v1118, -inf
        %v1289 = vrot.slane %v1288, 4
        %v1290 = vmax.f32 %v1288, %v1289
        %v1291 = vrot.slane %v1290, 2
        %v1292 = vmax.f32 %v1290, %v1291
        %v1293 = vrot.slane %v1292, 1
        %v1294 = vmax.f32 %v1292, %v1293
        %v1295 = vsel %vm390, %v1119, -inf
        %v1296 = vrot.slane %v1295, 4
        %v1297 = vmax.f32 %v1295, %v1296
        %v1298 = vrot.slane %v1297, 2
        %v1299 = vmax.f32 %v1297, %v1298
        %v1300 = vrot.slane %v1299, 1
        %v1301 = vmax.f32 %v1299, %v1300
        %v1302 = vsel %vm390, %v1120, -inf
        %v1303 = vrot.slane %v1302, 4
        %v1304 = vmax.f32 %v1302, %v1303
        %v1305 = vrot.slane %v1304, 2
        %v1306 = vmax.f32 %v1304, %v1305
        %v1307 = vrot.slane %v1306, 1
        %v1308 = vmax.f32 %v1306, %v1307
        %v1309 = vsel %vm390, %v1121, -inf
        %v1310 = vrot.slane %v1309, 4
        %v1311 = vmax.f32 %v1309, %v1310
        %v1312 = vrot.slane %v1311, 2
        %v1313 = vmax.f32 %v1311, %v1312
        %v1314 = vrot.slane %v1313, 1
        %v1315 = vmax.f32 %v1313, %v1314
        %v1316 = vsel %vm390, %v1122, -inf
        %v1317 = vrot.slane %v1316, 4
        %v1318 = vmax.f32 %v1316, %v1317
        %v1319 = vrot.slane %v1318, 2
        %v1320 = vmax.f32 %v1318, %v1319
        %v1321 = vrot.slane %v1320, 1
        %v1322 = vmax.f32 %v1320, %v1321
        %v1323 = vsel %vm390, %v1123, -inf
        %v1324 = vrot.slane %v1323, 4
        %v1325 = vmax.f32 %v1323, %v1324
        %v1326 = vrot.slane %v1325, 2
        %v1327 = vmax.f32 %v1325, %v1326
        %v1328 = vrot.slane %v1327, 1
        %v1329 = vmax.f32 %v1327, %v1328
        %v1330 = vsel %vm390, %v1124, -inf
        %v1331 = vrot.slane %v1330, 4
        %v1332 = vmax.f32 %v1330, %v1331
        %v1333 = vrot.slane %v1332, 2
        %v1334 = vmax.f32 %v1332, %v1333
        %v1335 = vrot.slane %v1334, 1
        %v1336 = vmax.f32 %v1334, %v1335
        %v1337 = vsel %vm390, %v1125, -inf
        %v1338 = vrot.slane %v1337, 4
        %v1339 = vmax.f32 %v1337, %v1338
        %v1340 = vrot.slane %v1339, 2
        %v1341 = vmax.f32 %v1339, %v1340
        %v1342 = vrot.slane %v1341, 1
        %v1343 = vmax.f32 %v1341, %v1342
        %v1344 = vsel %vm390, %v1126, -inf
        %v1345 = vrot.slane %v1344, 4
        %v1346 = vmax.f32 %v1344, %v1345
        %v1347 = vrot.slane %v1346, 2
        %v1348 = vmax.f32 %v1346, %v1347
        %v1349 = vrot.slane %v1348, 1
        %v1350 = vmax.f32 %v1348, %v1349
        %s1351 = scalar_lea.vmem [#allocation2], 16
        %v1352 = vld [vmem:[%s1351] sm:$0xff]
        %v1353 = vld [vmem:[%s1351 + $0x80] sm:$0xff]
        %v1354 = vld [vmem:[%s1351 + $0x100] sm:$0xff]
        %v1355 = vld [vmem:[%s1351 + $0x180] sm:$0xff]
        %v1388 = vsel %vm651, %v1140, %v1133
        %v1389 = vsel %vm653, %v1147, %v1388
        %v1390 = vsel %vm655, %v1154, %v1389
        %v1391 = vsel %vm657, %v1161, %v1390
        %v1392 = vsel %vm659, %v1168, %v1391
        %v1393 = vsel %vm661, %v1175, %v1392
        %v1394 = vsel %vm663, %v1182, %v1393
        %v1395 = vsel %vm651, %v1196, %v1189
        %v1396 = vsel %vm653, %v1203, %v1395
        %v1397 = vsel %vm655, %v1210, %v1396
        %v1398 = vsel %vm657, %v1217, %v1397
        %v1399 = vsel %vm659, %v1224, %v1398
        %v1400 = vsel %vm661, %v1231, %v1399
        %v1401 = vsel %vm663, %v1238, %v1400
        %v1402 = vsel %vm651, %v1252, %v1245
        %v1403 = vsel %vm653, %v1259, %v1402
        %v1404 = vsel %vm655, %v1266, %v1403
        %v1405 = vsel %vm657, %v1273, %v1404
        %v1406 = vsel %vm659, %v1280, %v1405
        %v1407 = vsel %vm661, %v1287, %v1406
        %v1408 = vsel %vm663, %v1294, %v1407
        %v1409 = vsel %vm651, %v1308, %v1301
        %v1410 = vsel %vm653, %v1315, %v1409
        %v1411 = vsel %vm655, %v1322, %v1410
        %v1412 = vsel %vm657, %v1329, %v1411
        %v1413 = vsel %vm659, %v1336, %v1412
        %v1414 = vsel %vm661, %v1343, %v1413
        %v1415 = vsel %vm663, %v1350, %v1414
        %v1420 = vmax.f32 %v1352, %v1394
        %v1421 = vmax.f32 %v1353, %v1401
        %v1422 = vmax.f32 %v1354, %v1408
        %v1423 = vmax.f32 %v1355, %v1415
        %1424 = vst.msk [vmem:[%s1351] sm:$0xff] %vm390, %v1420
        %1425 = vst.msk [vmem:[%s1351 + $0x80] sm:$0xff] %vm390, %v1421
        %1426 = vst.msk [vmem:[%s1351 + $0x100] sm:$0xff] %vm390, %v1422
        %1427 = vst.msk [vmem:[%s1351 + $0x180] sm:$0xff] %vm390, %v1423
        %v1428 = vstv 24
        %v1429 = vadd.s32 %v1428, 1
        %v1430 = vadd.s32 %v1428, 2
        %v1431 = vadd.s32 %v1428, 3
        %v1432 = vadd.s32 %v1428, 4
        %v1433 = vadd.s32 %v1428, 5
        %v1434 = vadd.s32 %v1428, 6
        %v1435 = vadd.s32 %v1428, 7
        %vm1436 = vcmp.eq.s32.totalorder %v325, %v1428
        %vm1437 = vcmp.eq.s32.totalorder %v325, %v1429
        %vm1438 = vcmp.eq.s32.totalorder %v325, %v1430
        %vm1439 = vcmp.eq.s32.totalorder %v325, %v1431
        %vm1440 = vcmp.eq.s32.totalorder %v325, %v1432
        %vm1441 = vcmp.eq.s32.totalorder %v325, %v1433
        %vm1442 = vcmp.eq.s32.totalorder %v325, %v1434
        %vm1443 = vcmp.eq.s32.totalorder %v325, %v1435
        %v1444 = vsel %vm1436, 1, 0
        %v1445 = vsel %vm1437, 1, 0
        %v1446 = vsel %vm1438, 1, 0
        %v1447 = vsel %vm1439, 1, 0
        %v1448 = vsel %vm1440, 1, 0
        %v1449 = vsel %vm1441, 1, 0
        %v1450 = vsel %vm1442, 1, 0
        %v1451 = vsel %vm1443, 1, 0
        %vm1452 = vcmp.eq.s32.totalorder %v1444, 1
        %vm1453 = vcmp.eq.s32.totalorder %v1445, 1
        %vm1454 = vcmp.eq.s32.totalorder %v1446, 1
        %vm1455 = vcmp.eq.s32.totalorder %v1447, 1
        %vm1456 = vcmp.eq.s32.totalorder %v1448, 1
        %vm1457 = vcmp.eq.s32.totalorder %v1449, 1
        %vm1458 = vcmp.eq.s32.totalorder %v1450, 1
        %vm1459 = vcmp.eq.s32.totalorder %v1451, 1
        %v1460 = vsel %vm1452, %v306, -inf
        %v1461 = vsel %vm1453, %v306, -inf
        %v1462 = vsel %vm1454, %v306, -inf
        %v1463 = vsel %vm1455, %v306, -inf
        %v1464 = vsel %vm1456, %v306, -inf
        %v1465 = vsel %vm1457, %v306, -inf
        %v1466 = vsel %vm1458, %v306, -inf
        %v1467 = vsel %vm1459, %v306, -inf
        %v1468 = vsel %vm1452, %v307, -inf
        %v1469 = vsel %vm1453, %v307, -inf
        %v1470 = vsel %vm1454, %v307, -inf
        %v1471 = vsel %vm1455, %v307, -inf
        %v1472 = vsel %vm1456, %v307, -inf
        %v1473 = vsel %vm1457, %v307, -inf
        %v1474 = vsel %vm1458, %v307, -inf
        %v1475 = vsel %vm1459, %v307, -inf
        %v1476 = vsel %vm1452, %v308, -inf
        %v1477 = vsel %vm1453, %v308, -inf
        %v1478 = vsel %vm1454, %v308, -inf
        %v1479 = vsel %vm1455, %v308, -inf
        %v1480 = vsel %vm1456, %v308, -inf
        %v1481 = vsel %vm1457, %v308, -inf
        %v1482 = vsel %vm1458, %v308, -inf
        %v1483 = vsel %vm1459, %v308, -inf
        %v1484 = vsel %vm1452, %v309, -inf
        %v1485 = vsel %vm1453, %v309, -inf
        %v1486 = vsel %vm1454, %v309, -inf
        %v1487 = vsel %vm1455, %v309, -inf
        %v1488 = vsel %vm1456, %v309, -inf
        %v1489 = vsel %vm1457, %v309, -inf
        %v1490 = vsel %vm1458, %v309, -inf
        %v1491 = vsel %vm1459, %v309, -inf
        %v1492 = vsel %vm390, %v1460, -inf
        %v1493 = vrot.slane %v1492, 4
        %v1494 = vmax.f32 %v1492, %v1493
        %v1495 = vrot.slane %v1494, 2
        %v1496 = vmax.f32 %v1494, %v1495
        %v1497 = vrot.slane %v1496, 1
        %v1498 = vmax.f32 %v1496, %v1497
        %v1499 = vsel %vm390, %v1461, -inf
        %v1500 = vrot.slane %v1499, 4
        %v1501 = vmax.f32 %v1499, %v1500
        %v1502 = vrot.slane %v1501, 2
        %v1503 = vmax.f32 %v1501, %v1502
        %v1504 = vrot.slane %v1503, 1
        %v1505 = vmax.f32 %v1503, %v1504
        %v1506 = vsel %vm390, %v1462, -inf
        %v1507 = vrot.slane %v1506, 4
        %v1508 = vmax.f32 %v1506, %v1507
        %v1509 = vrot.slane %v1508, 2
        %v1510 = vmax.f32 %v1508, %v1509
        %v1511 = vrot.slane %v1510, 1
        %v1512 = vmax.f32 %v1510, %v1511
        %v1513 = vsel %vm390, %v1463, -inf
        %v1514 = vrot.slane %v1513, 4
        %v1515 = vmax.f32 %v1513, %v1514
        %v1516 = vrot.slane %v1515, 2
        %v1517 = vmax.f32 %v1515, %v1516
        %v1518 = vrot.slane %v1517, 1
        %v1519 = vmax.f32 %v1517, %v1518
        %v1520 = vsel %vm390, %v1464, -inf
        %v1521 = vrot.slane %v1520, 4
        %v1522 = vmax.f32 %v1520, %v1521
        %v1523 = vrot.slane %v1522, 2
        %v1524 = vmax.f32 %v1522, %v1523
        %v1525 = vrot.slane %v1524, 1
        %v1526 = vmax.f32 %v1524, %v1525
        %v1527 = vsel %vm390, %v1465, -inf
        %v1528 = vrot.slane %v1527, 4
        %v1529 = vmax.f32 %v1527, %v1528
        %v1530 = vrot.slane %v1529, 2
        %v1531 = vmax.f32 %v1529, %v1530
        %v1532 = vrot.slane %v1531, 1
        %v1533 = vmax.f32 %v1531, %v1532
        %v1534 = vsel %vm390, %v1466, -inf
        %v1535 = vrot.slane %v1534, 4
        %v1536 = vmax.f32 %v1534, %v1535
        %v1537 = vrot.slane %v1536, 2
        %v1538 = vmax.f32 %v1536, %v1537
        %v1539 = vrot.slane %v1538, 1
        %v1540 = vmax.f32 %v1538, %v1539
        %v1541 = vsel %vm390, %v1467, -inf
        %v1542 = vrot.slane %v1541, 4
        %v1543 = vmax.f32 %v1541, %v1542
        %v1544 = vrot.slane %v1543, 2
        %v1545 = vmax.f32 %v1543, %v1544
        %v1546 = vrot.slane %v1545, 1
        %v1547 = vmax.f32 %v1545, %v1546
        %v1548 = vsel %vm390, %v1468, -inf
        %v1549 = vrot.slane %v1548, 4
        %v1550 = vmax.f32 %v1548, %v1549
        %v1551 = vrot.slane %v1550, 2
        %v1552 = vmax.f32 %v1550, %v1551
        %v1553 = vrot.slane %v1552, 1
        %v1554 = vmax.f32 %v1552, %v1553
        %v1555 = vsel %vm390, %v1469, -inf
        %v1556 = vrot.slane %v1555, 4
        %v1557 = vmax.f32 %v1555, %v1556
        %v1558 = vrot.slane %v1557, 2
        %v1559 = vmax.f32 %v1557, %v1558
        %v1560 = vrot.slane %v1559, 1
        %v1561 = vmax.f32 %v1559, %v1560
        %v1562 = vsel %vm390, %v1470, -inf
        %v1563 = vrot.slane %v1562, 4
        %v1564 = vmax.f32 %v1562, %v1563
        %v1565 = vrot.slane %v1564, 2
        %v1566 = vmax.f32 %v1564, %v1565
        %v1567 = vrot.slane %v1566, 1
        %v1568 = vmax.f32 %v1566, %v1567
        %v1569 = vsel %vm390, %v1471, -inf
        %v1570 = vrot.slane %v1569, 4
        %v1571 = vmax.f32 %v1569, %v1570
        %v1572 = vrot.slane %v1571, 2
        %v1573 = vmax.f32 %v1571, %v1572
        %v1574 = vrot.slane %v1573, 1
        %v1575 = vmax.f32 %v1573, %v1574
        %v1576 = vsel %vm390, %v1472, -inf
        %v1577 = vrot.slane %v1576, 4
        %v1578 = vmax.f32 %v1576, %v1577
        %v1579 = vrot.slane %v1578, 2
        %v1580 = vmax.f32 %v1578, %v1579
        %v1581 = vrot.slane %v1580, 1
        %v1582 = vmax.f32 %v1580, %v1581
        %v1583 = vsel %vm390, %v1473, -inf
        %v1584 = vrot.slane %v1583, 4
        %v1585 = vmax.f32 %v1583, %v1584
        %v1586 = vrot.slane %v1585, 2
        %v1587 = vmax.f32 %v1585, %v1586
        %v1588 = vrot.slane %v1587, 1
        %v1589 = vmax.f32 %v1587, %v1588
        %v1590 = vsel %vm390, %v1474, -inf
        %v1591 = vrot.slane %v1590, 4
        %v1592 = vmax.f32 %v1590, %v1591
        %v1593 = vrot.slane %v1592, 2
        %v1594 = vmax.f32 %v1592, %v1593
        %v1595 = vrot.slane %v1594, 1
        %v1596 = vmax.f32 %v1594, %v1595
        %v1597 = vsel %vm390, %v1475, -inf
        %v1598 = vrot.slane %v1597, 4
        %v1599 = vmax.f32 %v1597, %v1598
        %v1600 = vrot.slane %v1599, 2
        %v1601 = vmax.f32 %v1599, %v1600
        %v1602 = vrot.slane %v1601, 1
        %v1603 = vmax.f32 %v1601, %v1602
        %v1604 = vsel %vm390, %v1476, -inf
        %v1605 = vrot.slane %v1604, 4
        %v1606 = vmax.f32 %v1604, %v1605
        %v1607 = vrot.slane %v1606, 2
        %v1608 = vmax.f32 %v1606, %v1607
        %v1609 = vrot.slane %v1608, 1
        %v1610 = vmax.f32 %v1608, %v1609
        %v1611 = vsel %vm390, %v1477, -inf
        %v1612 = vrot.slane %v1611, 4
        %v1613 = vmax.f32 %v1611, %v1612
        %v1614 = vrot.slane %v1613, 2
        %v1615 = vmax.f32 %v1613, %v1614
        %v1616 = vrot.slane %v1615, 1
        %v1617 = vmax.f32 %v1615, %v1616
        %v1618 = vsel %vm390, %v1478, -inf
        %v1619 = vrot.slane %v1618, 4
        %v1620 = vmax.f32 %v1618, %v1619
        %v1621 = vrot.slane %v1620, 2
        %v1622 = vmax.f32 %v1620, %v1621
        %v1623 = vrot.slane %v1622, 1
        %v1624 = vmax.f32 %v1622, %v1623
        %v1625 = vsel %vm390, %v1479, -inf
        %v1626 = vrot.slane %v1625, 4
        %v1627 = vmax.f32 %v1625, %v1626
        %v1628 = vrot.slane %v1627, 2
        %v1629 = vmax.f32 %v1627, %v1628
        %v1630 = vrot.slane %v1629, 1
        %v1631 = vmax.f32 %v1629, %v1630
        %v1632 = vsel %vm390, %v1480, -inf
        %v1633 = vrot.slane %v1632, 4
        %v1634 = vmax.f32 %v1632, %v1633
        %v1635 = vrot.slane %v1634, 2
        %v1636 = vmax.f32 %v1634, %v1635
        %v1637 = vrot.slane %v1636, 1
        %v1638 = vmax.f32 %v1636, %v1637
        %v1639 = vsel %vm390, %v1481, -inf
        %v1640 = vrot.slane %v1639, 4
        %v1641 = vmax.f32 %v1639, %v1640
        %v1642 = vrot.slane %v1641, 2
        %v1643 = vmax.f32 %v1641, %v1642
        %v1644 = vrot.slane %v1643, 1
        %v1645 = vmax.f32 %v1643, %v1644
        %v1646 = vsel %vm390, %v1482, -inf
        %v1647 = vrot.slane %v1646, 4
        %v1648 = vmax.f32 %v1646, %v1647
        %v1649 = vrot.slane %v1648, 2
        %v1650 = vmax.f32 %v1648, %v1649
        %v1651 = vrot.slane %v1650, 1
        %v1652 = vmax.f32 %v1650, %v1651
        %v1653 = vsel %vm390, %v1483, -inf
        %v1654 = vrot.slane %v1653, 4
        %v1655 = vmax.f32 %v1653, %v1654
        %v1656 = vrot.slane %v1655, 2
        %v1657 = vmax.f32 %v1655, %v1656
        %v1658 = vrot.slane %v1657, 1
        %v1659 = vmax.f32 %v1657, %v1658
        %v1660 = vsel %vm390, %v1484, -inf
        %v1661 = vrot.slane %v1660, 4
        %v1662 = vmax.f32 %v1660, %v1661
        %v1663 = vrot.slane %v1662, 2
        %v1664 = vmax.f32 %v1662, %v1663
        %v1665 = vrot.slane %v1664, 1
        %v1666 = vmax.f32 %v1664, %v1665
        %v1667 = vsel %vm390, %v1485, -inf
        %v1668 = vrot.slane %v1667, 4
        %v1669 = vmax.f32 %v1667, %v1668
        %v1670 = vrot.slane %v1669, 2
        %v1671 = vmax.f32 %v1669, %v1670
        %v1672 = vrot.slane %v1671, 1
        %v1673 = vmax.f32 %v1671, %v1672
        %v1674 = vsel %vm390, %v1486, -inf
        %v1675 = vrot.slane %v1674, 4
        %v1676 = vmax.f32 %v1674, %v1675
        %v1677 = vrot.slane %v1676, 2
        %v1678 = vmax.f32 %v1676, %v1677
        %v1679 = vrot.slane %v1678, 1
        %v1680 = vmax.f32 %v1678, %v1679
        %v1681 = vsel %vm390, %v1487, -inf
        %v1682 = vrot.slane %v1681, 4
        %v1683 = vmax.f32 %v1681, %v1682
        %v1684 = vrot.slane %v1683, 2
        %v1685 = vmax.f32 %v1683, %v1684
        %v1686 = vrot.slane %v1685, 1
        %v1687 = vmax.f32 %v1685, %v1686
        %v1688 = vsel %vm390, %v1488, -inf
        %v1689 = vrot.slane %v1688, 4
        %v1690 = vmax.f32 %v1688, %v1689
        %v1691 = vrot.slane %v1690, 2
        %v1692 = vmax.f32 %v1690, %v1691
        %v1693 = vrot.slane %v1692, 1
        %v1694 = vmax.f32 %v1692, %v1693
        %v1695 = vsel %vm390, %v1489, -inf
        %v1696 = vrot.slane %v1695, 4
        %v1697 = vmax.f32 %v1695, %v1696
        %v1698 = vrot.slane %v1697, 2
        %v1699 = vmax.f32 %v1697, %v1698
        %v1700 = vrot.slane %v1699, 1
        %v1701 = vmax.f32 %v1699, %v1700
        %v1702 = vsel %vm390, %v1490, -inf
        %v1703 = vrot.slane %v1702, 4
        %v1704 = vmax.f32 %v1702, %v1703
        %v1705 = vrot.slane %v1704, 2
        %v1706 = vmax.f32 %v1704, %v1705
        %v1707 = vrot.slane %v1706, 1
        %v1708 = vmax.f32 %v1706, %v1707
        %v1709 = vsel %vm390, %v1491, -inf
        %v1710 = vrot.slane %v1709, 4
        %v1711 = vmax.f32 %v1709, %v1710
        %v1712 = vrot.slane %v1711, 2
        %v1713 = vmax.f32 %v1711, %v1712
        %v1714 = vrot.slane %v1713, 1
        %v1715 = vmax.f32 %v1713, %v1714
        %s1716 = scalar_lea.vmem [#allocation2], 24
        %v1717 = vld [vmem:[%s1716] sm:$0xff]
        %v1718 = vld [vmem:[%s1716 + $0x80] sm:$0xff]
        %v1719 = vld [vmem:[%s1716 + $0x100] sm:$0xff]
        %v1720 = vld [vmem:[%s1716 + $0x180] sm:$0xff]
        %v1753 = vsel %vm651, %v1505, %v1498
        %v1754 = vsel %vm653, %v1512, %v1753
        %v1755 = vsel %vm655, %v1519, %v1754
        %v1756 = vsel %vm657, %v1526, %v1755
        %v1757 = vsel %vm659, %v1533, %v1756
        %v1758 = vsel %vm661, %v1540, %v1757
        %v1759 = vsel %vm663, %v1547, %v1758
        %v1760 = vsel %vm651, %v1561, %v1554
        %v1761 = vsel %vm653, %v1568, %v1760
        %v1762 = vsel %vm655, %v1575, %v1761
        %v1763 = vsel %vm657, %v1582, %v1762
        %v1764 = vsel %vm659, %v1589, %v1763
        %v1765 = vsel %vm661, %v1596, %v1764
        %v1766 = vsel %vm663, %v1603, %v1765
        %v1767 = vsel %vm651, %v1617, %v1610
        %v1768 = vsel %vm653, %v1624, %v1767
        %v1769 = vsel %vm655, %v1631, %v1768
        %v1770 = vsel %vm657, %v1638, %v1769
        %v1771 = vsel %vm659, %v1645, %v1770
        %v1772 = vsel %vm661, %v1652, %v1771
        %v1773 = vsel %vm663, %v1659, %v1772
        %v1774 = vsel %vm651, %v1673, %v1666
        %v1775 = vsel %vm653, %v1680, %v1774
        %v1776 = vsel %vm655, %v1687, %v1775
        %v1777 = vsel %vm657, %v1694, %v1776
        %v1778 = vsel %vm659, %v1701, %v1777
        %v1779 = vsel %vm661, %v1708, %v1778
        %v1780 = vsel %vm663, %v1715, %v1779
        %v1785 = vmax.f32 %v1717, %v1759
        %v1786 = vmax.f32 %v1718, %v1766
        %v1787 = vmax.f32 %v1719, %v1773
        %v1788 = vmax.f32 %v1720, %v1780
        %1789 = vst.msk [vmem:[%s1716] sm:$0xff] %vm390, %v1785
        %1790 = vst.msk [vmem:[%s1716 + $0x80] sm:$0xff] %vm390, %v1786
        %1791 = vst.msk [vmem:[%s1716 + $0x100] sm:$0xff] %vm390, %v1787
        %1792 = vst.msk [vmem:[%s1716 + $0x180] sm:$0xff] %vm390, %v1788
        %v1793 = vstv 32
        %v1794 = vadd.s32 %v1793, 1
        %v1795 = vadd.s32 %v1793, 2
        %v1796 = vadd.s32 %v1793, 3
        %v1797 = vadd.s32 %v1793, 4
        %v1798 = vadd.s32 %v1793, 5
        %v1799 = vadd.s32 %v1793, 6
        %v1800 = vadd.s32 %v1793, 7
        %vm1801 = vcmp.eq.s32.totalorder %v325, %v1793
        %vm1802 = vcmp.eq.s32.totalorder %v325, %v1794
        %vm1803 = vcmp.eq.s32.totalorder %v325, %v1795
        %vm1804 = vcmp.eq.s32.totalorder %v325, %v1796
        %vm1805 = vcmp.eq.s32.totalorder %v325, %v1797
        %vm1806 = vcmp.eq.s32.totalorder %v325, %v1798
        %vm1807 = vcmp.eq.s32.totalorder %v325, %v1799
        %vm1808 = vcmp.eq.s32.totalorder %v325, %v1800
        %v1809 = vsel %vm1801, 1, 0
        %v1810 = vsel %vm1802, 1, 0
        %v1811 = vsel %vm1803, 1, 0
        %v1812 = vsel %vm1804, 1, 0
        %v1813 = vsel %vm1805, 1, 0
        %v1814 = vsel %vm1806, 1, 0
        %v1815 = vsel %vm1807, 1, 0
        %v1816 = vsel %vm1808, 1, 0
        %vm1817 = vcmp.eq.s32.totalorder %v1809, 1
        %vm1818 = vcmp.eq.s32.totalorder %v1810, 1
        %vm1819 = vcmp.eq.s32.totalorder %v1811, 1
        %vm1820 = vcmp.eq.s32.totalorder %v1812, 1
        %vm1821 = vcmp.eq.s32.totalorder %v1813, 1
        %vm1822 = vcmp.eq.s32.totalorder %v1814, 1
        %vm1823 = vcmp.eq.s32.totalorder %v1815, 1
        %vm1824 = vcmp.eq.s32.totalorder %v1816, 1
        %v1825 = vsel %vm1817, %v306, -inf
        %v1826 = vsel %vm1818, %v306, -inf
        %v1827 = vsel %vm1819, %v306, -inf
        %v1828 = vsel %vm1820, %v306, -inf
        %v1829 = vsel %vm1821, %v306, -inf
        %v1830 = vsel %vm1822, %v306, -inf
        %v1831 = vsel %vm1823, %v306, -inf
        %v1832 = vsel %vm1824, %v306, -inf
        %v1833 = vsel %vm1817, %v307, -inf
        %v1834 = vsel %vm1818, %v307, -inf
        %v1835 = vsel %vm1819, %v307, -inf
        %v1836 = vsel %vm1820, %v307, -inf
        %v1837 = vsel %vm1821, %v307, -inf
        %v1838 = vsel %vm1822, %v307, -inf
        %v1839 = vsel %vm1823, %v307, -inf
        %v1840 = vsel %vm1824, %v307, -inf
        %v1841 = vsel %vm1817, %v308, -inf
        %v1842 = vsel %vm1818, %v308, -inf
        %v1843 = vsel %vm1819, %v308, -inf
        %v1844 = vsel %vm1820, %v308, -inf
        %v1845 = vsel %vm1821, %v308, -inf
        %v1846 = vsel %vm1822, %v308, -inf
        %v1847 = vsel %vm1823, %v308, -inf
        %v1848 = vsel %vm1824, %v308, -inf
        %v1849 = vsel %vm1817, %v309, -inf
        %v1850 = vsel %vm1818, %v309, -inf
        %v1851 = vsel %vm1819, %v309, -inf
        %v1852 = vsel %vm1820, %v309, -inf
        %v1853 = vsel %vm1821, %v309, -inf
        %v1854 = vsel %vm1822, %v309, -inf
        %v1855 = vsel %vm1823, %v309, -inf
        %v1856 = vsel %vm1824, %v309, -inf
        %v1857 = vsel %vm390, %v1825, -inf
        %v1858 = vrot.slane %v1857, 4
        %v1859 = vmax.f32 %v1857, %v1858
        %v1860 = vrot.slane %v1859, 2
        %v1861 = vmax.f32 %v1859, %v1860
        %v1862 = vrot.slane %v1861, 1
        %v1863 = vmax.f32 %v1861, %v1862
        %v1864 = vsel %vm390, %v1826, -inf
        %v1865 = vrot.slane %v1864, 4
        %v1866 = vmax.f32 %v1864, %v1865
        %v1867 = vrot.slane %v1866, 2
        %v1868 = vmax.f32 %v1866, %v1867
        %v1869 = vrot.slane %v1868, 1
        %v1870 = vmax.f32 %v1868, %v1869
        %v1871 = vsel %vm390, %v1827, -inf
        %v1872 = vrot.slane %v1871, 4
        %v1873 = vmax.f32 %v1871, %v1872
        %v1874 = vrot.slane %v1873, 2
        %v1875 = vmax.f32 %v1873, %v1874
        %v1876 = vrot.slane %v1875, 1
        %v1877 = vmax.f32 %v1875, %v1876
        %v1878 = vsel %vm390, %v1828, -inf
        %v1879 = vrot.slane %v1878, 4
        %v1880 = vmax.f32 %v1878, %v1879
        %v1881 = vrot.slane %v1880, 2
        %v1882 = vmax.f32 %v1880, %v1881
        %v1883 = vrot.slane %v1882, 1
        %v1884 = vmax.f32 %v1882, %v1883
        %v1885 = vsel %vm390, %v1829, -inf
        %v1886 = vrot.slane %v1885, 4
        %v1887 = vmax.f32 %v1885, %v1886
        %v1888 = vrot.slane %v1887, 2
        %v1889 = vmax.f32 %v1887, %v1888
        %v1890 = vrot.slane %v1889, 1
        %v1891 = vmax.f32 %v1889, %v1890
        %v1892 = vsel %vm390, %v1830, -inf
        %v1893 = vrot.slane %v1892, 4
        %v1894 = vmax.f32 %v1892, %v1893
        %v1895 = vrot.slane %v1894, 2
        %v1896 = vmax.f32 %v1894, %v1895
        %v1897 = vrot.slane %v1896, 1
        %v1898 = vmax.f32 %v1896, %v1897
        %v1899 = vsel %vm390, %v1831, -inf
        %v1900 = vrot.slane %v1899, 4
        %v1901 = vmax.f32 %v1899, %v1900
        %v1902 = vrot.slane %v1901, 2
        %v1903 = vmax.f32 %v1901, %v1902
        %v1904 = vrot.slane %v1903, 1
        %v1905 = vmax.f32 %v1903, %v1904
        %v1906 = vsel %vm390, %v1832, -inf
        %v1907 = vrot.slane %v1906, 4
        %v1908 = vmax.f32 %v1906, %v1907
        %v1909 = vrot.slane %v1908, 2
        %v1910 = vmax.f32 %v1908, %v1909
        %v1911 = vrot.slane %v1910, 1
        %v1912 = vmax.f32 %v1910, %v1911
        %v1913 = vsel %vm390, %v1833, -inf
        %v1914 = vrot.slane %v1913, 4
        %v1915 = vmax.f32 %v1913, %v1914
        %v1916 = vrot.slane %v1915, 2
        %v1917 = vmax.f32 %v1915, %v1916
        %v1918 = vrot.slane %v1917, 1
        %v1919 = vmax.f32 %v1917, %v1918
        %v1920 = vsel %vm390, %v1834, -inf
        %v1921 = vrot.slane %v1920, 4
        %v1922 = vmax.f32 %v1920, %v1921
        %v1923 = vrot.slane %v1922, 2
        %v1924 = vmax.f32 %v1922, %v1923
        %v1925 = vrot.slane %v1924, 1
        %v1926 = vmax.f32 %v1924, %v1925
        %v1927 = vsel %vm390, %v1835, -inf
        %v1928 = vrot.slane %v1927, 4
        %v1929 = vmax.f32 %v1927, %v1928
        %v1930 = vrot.slane %v1929, 2
        %v1931 = vmax.f32 %v1929, %v1930
        %v1932 = vrot.slane %v1931, 1
        %v1933 = vmax.f32 %v1931, %v1932
        %v1934 = vsel %vm390, %v1836, -inf
        %v1935 = vrot.slane %v1934, 4
        %v1936 = vmax.f32 %v1934, %v1935
        %v1937 = vrot.slane %v1936, 2
        %v1938 = vmax.f32 %v1936, %v1937
        %v1939 = vrot.slane %v1938, 1
        %v1940 = vmax.f32 %v1938, %v1939
        %v1941 = vsel %vm390, %v1837, -inf
        %v1942 = vrot.slane %v1941, 4
        %v1943 = vmax.f32 %v1941, %v1942
        %v1944 = vrot.slane %v1943, 2
        %v1945 = vmax.f32 %v1943, %v1944
        %v1946 = vrot.slane %v1945, 1
        %v1947 = vmax.f32 %v1945, %v1946
        %v1948 = vsel %vm390, %v1838, -inf
        %v1949 = vrot.slane %v1948, 4
        %v1950 = vmax.f32 %v1948, %v1949
        %v1951 = vrot.slane %v1950, 2
        %v1952 = vmax.f32 %v1950, %v1951
        %v1953 = vrot.slane %v1952, 1
        %v1954 = vmax.f32 %v1952, %v1953
        %v1955 = vsel %vm390, %v1839, -inf
        %v1956 = vrot.slane %v1955, 4
        %v1957 = vmax.f32 %v1955, %v1956
        %v1958 = vrot.slane %v1957, 2
        %v1959 = vmax.f32 %v1957, %v1958
        %v1960 = vrot.slane %v1959, 1
        %v1961 = vmax.f32 %v1959, %v1960
        %v1962 = vsel %vm390, %v1840, -inf
        %v1963 = vrot.slane %v1962, 4
        %v1964 = vmax.f32 %v1962, %v1963
        %v1965 = vrot.slane %v1964, 2
        %v1966 = vmax.f32 %v1964, %v1965
        %v1967 = vrot.slane %v1966, 1
        %v1968 = vmax.f32 %v1966, %v1967
        %v1969 = vsel %vm390, %v1841, -inf
        %v1970 = vrot.slane %v1969, 4
        %v1971 = vmax.f32 %v1969, %v1970
        %v1972 = vrot.slane %v1971, 2
        %v1973 = vmax.f32 %v1971, %v1972
        %v1974 = vrot.slane %v1973, 1
        %v1975 = vmax.f32 %v1973, %v1974
        %v1976 = vsel %vm390, %v1842, -inf
        %v1977 = vrot.slane %v1976, 4
        %v1978 = vmax.f32 %v1976, %v1977
        %v1979 = vrot.slane %v1978, 2
        %v1980 = vmax.f32 %v1978, %v1979
        %v1981 = vrot.slane %v1980, 1
        %v1982 = vmax.f32 %v1980, %v1981
        %v1983 = vsel %vm390, %v1843, -inf
        %v1984 = vrot.slane %v1983, 4
        %v1985 = vmax.f32 %v1983, %v1984
        %v1986 = vrot.slane %v1985, 2
        %v1987 = vmax.f32 %v1985, %v1986
        %v1988 = vrot.slane %v1987, 1
        %v1989 = vmax.f32 %v1987, %v1988
        %v1990 = vsel %vm390, %v1844, -inf
        %v1991 = vrot.slane %v1990, 4
        %v1992 = vmax.f32 %v1990, %v1991
        %v1993 = vrot.slane %v1992, 2
        %v1994 = vmax.f32 %v1992, %v1993
        %v1995 = vrot.slane %v1994, 1
        %v1996 = vmax.f32 %v1994, %v1995
        %v1997 = vsel %vm390, %v1845, -inf
        %v1998 = vrot.slane %v1997, 4
        %v1999 = vmax.f32 %v1997, %v1998
        %v2000 = vrot.slane %v1999, 2
        %v2001 = vmax.f32 %v1999, %v2000
        %v2002 = vrot.slane %v2001, 1
        %v2003 = vmax.f32 %v2001, %v2002
        %v2004 = vsel %vm390, %v1846, -inf
        %v2005 = vrot.slane %v2004, 4
        %v2006 = vmax.f32 %v2004, %v2005
        %v2007 = vrot.slane %v2006, 2
        %v2008 = vmax.f32 %v2006, %v2007
        %v2009 = vrot.slane %v2008, 1
        %v2010 = vmax.f32 %v2008, %v2009
        %v2011 = vsel %vm390, %v1847, -inf
        %v2012 = vrot.slane %v2011, 4
        %v2013 = vmax.f32 %v2011, %v2012
        %v2014 = vrot.slane %v2013, 2
        %v2015 = vmax.f32 %v2013, %v2014
        %v2016 = vrot.slane %v2015, 1
        %v2017 = vmax.f32 %v2015, %v2016
        %v2018 = vsel %vm390, %v1848, -inf
        %v2019 = vrot.slane %v2018, 4
        %v2020 = vmax.f32 %v2018, %v2019
        %v2021 = vrot.slane %v2020, 2
        %v2022 = vmax.f32 %v2020, %v2021
        %v2023 = vrot.slane %v2022, 1
        %v2024 = vmax.f32 %v2022, %v2023
        %v2025 = vsel %vm390, %v1849, -inf
        %v2026 = vrot.slane %v2025, 4
        %v2027 = vmax.f32 %v2025, %v2026
        %v2028 = vrot.slane %v2027, 2
        %v2029 = vmax.f32 %v2027, %v2028
        %v2030 = vrot.slane %v2029, 1
        %v2031 = vmax.f32 %v2029, %v2030
        %v2032 = vsel %vm390, %v1850, -inf
        %v2033 = vrot.slane %v2032, 4
        %v2034 = vmax.f32 %v2032, %v2033
        %v2035 = vrot.slane %v2034, 2
        %v2036 = vmax.f32 %v2034, %v2035
        %v2037 = vrot.slane %v2036, 1
        %v2038 = vmax.f32 %v2036, %v2037
        %v2039 = vsel %vm390, %v1851, -inf
        %v2040 = vrot.slane %v2039, 4
        %v2041 = vmax.f32 %v2039, %v2040
        %v2042 = vrot.slane %v2041, 2
        %v2043 = vmax.f32 %v2041, %v2042
        %v2044 = vrot.slane %v2043, 1
        %v2045 = vmax.f32 %v2043, %v2044
        %v2046 = vsel %vm390, %v1852, -inf
        %v2047 = vrot.slane %v2046, 4
        %v2048 = vmax.f32 %v2046, %v2047
        %v2049 = vrot.slane %v2048, 2
        %v2050 = vmax.f32 %v2048, %v2049
        %v2051 = vrot.slane %v2050, 1
        %v2052 = vmax.f32 %v2050, %v2051
        %v2053 = vsel %vm390, %v1853, -inf
        %v2054 = vrot.slane %v2053, 4
        %v2055 = vmax.f32 %v2053, %v2054
        %v2056 = vrot.slane %v2055, 2
        %v2057 = vmax.f32 %v2055, %v2056
        %v2058 = vrot.slane %v2057, 1
        %v2059 = vmax.f32 %v2057, %v2058
        %v2060 = vsel %vm390, %v1854, -inf
        %v2061 = vrot.slane %v2060, 4
        %v2062 = vmax.f32 %v2060, %v2061
        %v2063 = vrot.slane %v2062, 2
        %v2064 = vmax.f32 %v2062, %v2063
        %v2065 = vrot.slane %v2064, 1
        %v2066 = vmax.f32 %v2064, %v2065
        %v2067 = vsel %vm390, %v1855, -inf
        %v2068 = vrot.slane %v2067, 4
        %v2069 = vmax.f32 %v2067, %v2068
        %v2070 = vrot.slane %v2069, 2
        %v2071 = vmax.f32 %v2069, %v2070
        %v2072 = vrot.slane %v2071, 1
        %v2073 = vmax.f32 %v2071, %v2072
        %v2074 = vsel %vm390, %v1856, -inf
        %v2075 = vrot.slane %v2074, 4
        %v2076 = vmax.f32 %v2074, %v2075
        %v2077 = vrot.slane %v2076, 2
        %v2078 = vmax.f32 %v2076, %v2077
        %v2079 = vrot.slane %v2078, 1
        %v2080 = vmax.f32 %v2078, %v2079
        %s2081 = scalar_lea.vmem [#allocation2], 32
        %v2082 = vld [vmem:[%s2081] sm:$0xff]
        %v2083 = vld [vmem:[%s2081 + $0x80] sm:$0xff]
        %v2084 = vld [vmem:[%s2081 + $0x100] sm:$0xff]
        %v2085 = vld [vmem:[%s2081 + $0x180] sm:$0xff]
        %v2118 = vsel %vm651, %v1870, %v1863
        %v2119 = vsel %vm653, %v1877, %v2118
        %v2120 = vsel %vm655, %v1884, %v2119
        %v2121 = vsel %vm657, %v1891, %v2120
        %v2122 = vsel %vm659, %v1898, %v2121
        %v2123 = vsel %vm661, %v1905, %v2122
        %v2124 = vsel %vm663, %v1912, %v2123
        %v2125 = vsel %vm651, %v1926, %v1919
        %v2126 = vsel %vm653, %v1933, %v2125
        %v2127 = vsel %vm655, %v1940, %v2126
        %v2128 = vsel %vm657, %v1947, %v2127
        %v2129 = vsel %vm659, %v1954, %v2128
        %v2130 = vsel %vm661, %v1961, %v2129
        %v2131 = vsel %vm663, %v1968, %v2130
        %v2132 = vsel %vm651, %v1982, %v1975
        %v2133 = vsel %vm653, %v1989, %v2132
        %v2134 = vsel %vm655, %v1996, %v2133
        %v2135 = vsel %vm657, %v2003, %v2134
        %v2136 = vsel %vm659, %v2010, %v2135
        %v2137 = vsel %vm661, %v2017, %v2136
        %v2138 = vsel %vm663, %v2024, %v2137
        %v2139 = vsel %vm651, %v2038, %v2031
        %v2140 = vsel %vm653, %v2045, %v2139
        %v2141 = vsel %vm655, %v2052, %v2140
        %v2142 = vsel %vm657, %v2059, %v2141
        %v2143 = vsel %vm659, %v2066, %v2142
        %v2144 = vsel %vm661, %v2073, %v2143
        %v2145 = vsel %vm663, %v2080, %v2144
        %v2150 = vmax.f32 %v2082, %v2124
        %v2151 = vmax.f32 %v2083, %v2131
        %v2152 = vmax.f32 %v2084, %v2138
        %v2153 = vmax.f32 %v2085, %v2145
        %2154 = vst.msk [vmem:[%s2081] sm:$0xff] %vm390, %v2150
        %2155 = vst.msk [vmem:[%s2081 + $0x80] sm:$0xff] %vm390, %v2151
        %2156 = vst.msk [vmem:[%s2081 + $0x100] sm:$0xff] %vm390, %v2152
        %2157 = vst.msk [vmem:[%s2081 + $0x180] sm:$0xff] %vm390, %v2153
        %v2158 = vstv 40
        %v2159 = vadd.s32 %v2158, 1
        %v2160 = vadd.s32 %v2158, 2
        %v2161 = vadd.s32 %v2158, 3
        %v2162 = vadd.s32 %v2158, 4
        %v2163 = vadd.s32 %v2158, 5
        %v2164 = vadd.s32 %v2158, 6
        %v2165 = vadd.s32 %v2158, 7
        %vm2166 = vcmp.eq.s32.totalorder %v325, %v2158
        %vm2167 = vcmp.eq.s32.totalorder %v325, %v2159
        %vm2168 = vcmp.eq.s32.totalorder %v325, %v2160
        %vm2169 = vcmp.eq.s32.totalorder %v325, %v2161
        %vm2170 = vcmp.eq.s32.totalorder %v325, %v2162
        %vm2171 = vcmp.eq.s32.totalorder %v325, %v2163
        %vm2172 = vcmp.eq.s32.totalorder %v325, %v2164
        %vm2173 = vcmp.eq.s32.totalorder %v325, %v2165
        %v2174 = vsel %vm2166, 1, 0
        %v2175 = vsel %vm2167, 1, 0
        %v2176 = vsel %vm2168, 1, 0
        %v2177 = vsel %vm2169, 1, 0
        %v2178 = vsel %vm2170, 1, 0
        %v2179 = vsel %vm2171, 1, 0
        %v2180 = vsel %vm2172, 1, 0
        %v2181 = vsel %vm2173, 1, 0
        %vm2182 = vcmp.eq.s32.totalorder %v2174, 1
        %vm2183 = vcmp.eq.s32.totalorder %v2175, 1
        %vm2184 = vcmp.eq.s32.totalorder %v2176, 1
        %vm2185 = vcmp.eq.s32.totalorder %v2177, 1
        %vm2186 = vcmp.eq.s32.totalorder %v2178, 1
        %vm2187 = vcmp.eq.s32.totalorder %v2179, 1
        %vm2188 = vcmp.eq.s32.totalorder %v2180, 1
        %vm2189 = vcmp.eq.s32.totalorder %v2181, 1
        %v2190 = vsel %vm2182, %v306, -inf
        %v2191 = vsel %vm2183, %v306, -inf
        %v2192 = vsel %vm2184, %v306, -inf
        %v2193 = vsel %vm2185, %v306, -inf
        %v2194 = vsel %vm2186, %v306, -inf
        %v2195 = vsel %vm2187, %v306, -inf
        %v2196 = vsel %vm2188, %v306, -inf
        %v2197 = vsel %vm2189, %v306, -inf
        %v2198 = vsel %vm2182, %v307, -inf
        %v2199 = vsel %vm2183, %v307, -inf
        %v2200 = vsel %vm2184, %v307, -inf
        %v2201 = vsel %vm2185, %v307, -inf
        %v2202 = vsel %vm2186, %v307, -inf
        %v2203 = vsel %vm2187, %v307, -inf
        %v2204 = vsel %vm2188, %v307, -inf
        %v2205 = vsel %vm2189, %v307, -inf
        %v2206 = vsel %vm2182, %v308, -inf
        %v2207 = vsel %vm2183, %v308, -inf
        %v2208 = vsel %vm2184, %v308, -inf
        %v2209 = vsel %vm2185, %v308, -inf
        %v2210 = vsel %vm2186, %v308, -inf
        %v2211 = vsel %vm2187, %v308, -inf
        %v2212 = vsel %vm2188, %v308, -inf
        %v2213 = vsel %vm2189, %v308, -inf
        %v2214 = vsel %vm2182, %v309, -inf
        %v2215 = vsel %vm2183, %v309, -inf
        %v2216 = vsel %vm2184, %v309, -inf
        %v2217 = vsel %vm2185, %v309, -inf
        %v2218 = vsel %vm2186, %v309, -inf
        %v2219 = vsel %vm2187, %v309, -inf
        %v2220 = vsel %vm2188, %v309, -inf
        %v2221 = vsel %vm2189, %v309, -inf
        %v2222 = vsel %vm390, %v2190, -inf
        %v2223 = vrot.slane %v2222, 4
        %v2224 = vmax.f32 %v2222, %v2223
        %v2225 = vrot.slane %v2224, 2
        %v2226 = vmax.f32 %v2224, %v2225
        %v2227 = vrot.slane %v2226, 1
        %v2228 = vmax.f32 %v2226, %v2227
        %v2229 = vsel %vm390, %v2191, -inf
        %v2230 = vrot.slane %v2229, 4
        %v2231 = vmax.f32 %v2229, %v2230
        %v2232 = vrot.slane %v2231, 2
        %v2233 = vmax.f32 %v2231, %v2232
        %v2234 = vrot.slane %v2233, 1
        %v2235 = vmax.f32 %v2233, %v2234
        %v2236 = vsel %vm390, %v2192, -inf
        %v2237 = vrot.slane %v2236, 4
        %v2238 = vmax.f32 %v2236, %v2237
        %v2239 = vrot.slane %v2238, 2
        %v2240 = vmax.f32 %v2238, %v2239
        %v2241 = vrot.slane %v2240, 1
        %v2242 = vmax.f32 %v2240, %v2241
        %v2243 = vsel %vm390, %v2193, -inf
        %v2244 = vrot.slane %v2243, 4
        %v2245 = vmax.f32 %v2243, %v2244
        %v2246 = vrot.slane %v2245, 2
        %v2247 = vmax.f32 %v2245, %v2246
        %v2248 = vrot.slane %v2247, 1
        %v2249 = vmax.f32 %v2247, %v2248
        %v2250 = vsel %vm390, %v2194, -inf
        %v2251 = vrot.slane %v2250, 4
        %v2252 = vmax.f32 %v2250, %v2251
        %v2253 = vrot.slane %v2252, 2
        %v2254 = vmax.f32 %v2252, %v2253
        %v2255 = vrot.slane %v2254, 1
        %v2256 = vmax.f32 %v2254, %v2255
        %v2257 = vsel %vm390, %v2195, -inf
        %v2258 = vrot.slane %v2257, 4
        %v2259 = vmax.f32 %v2257, %v2258
        %v2260 = vrot.slane %v2259, 2
        %v2261 = vmax.f32 %v2259, %v2260
        %v2262 = vrot.slane %v2261, 1
        %v2263 = vmax.f32 %v2261, %v2262
        %v2264 = vsel %vm390, %v2196, -inf
        %v2265 = vrot.slane %v2264, 4
        %v2266 = vmax.f32 %v2264, %v2265
        %v2267 = vrot.slane %v2266, 2
        %v2268 = vmax.f32 %v2266, %v2267
        %v2269 = vrot.slane %v2268, 1
        %v2270 = vmax.f32 %v2268, %v2269
        %v2271 = vsel %vm390, %v2197, -inf
        %v2272 = vrot.slane %v2271, 4
        %v2273 = vmax.f32 %v2271, %v2272
        %v2274 = vrot.slane %v2273, 2
        %v2275 = vmax.f32 %v2273, %v2274
        %v2276 = vrot.slane %v2275, 1
        %v2277 = vmax.f32 %v2275, %v2276
        %v2278 = vsel %vm390, %v2198, -inf
        %v2279 = vrot.slane %v2278, 4
        %v2280 = vmax.f32 %v2278, %v2279
        %v2281 = vrot.slane %v2280, 2
        %v2282 = vmax.f32 %v2280, %v2281
        %v2283 = vrot.slane %v2282, 1
        %v2284 = vmax.f32 %v2282, %v2283
        %v2285 = vsel %vm390, %v2199, -inf
        %v2286 = vrot.slane %v2285, 4
        %v2287 = vmax.f32 %v2285, %v2286
        %v2288 = vrot.slane %v2287, 2
        %v2289 = vmax.f32 %v2287, %v2288
        %v2290 = vrot.slane %v2289, 1
        %v2291 = vmax.f32 %v2289, %v2290
        %v2292 = vsel %vm390, %v2200, -inf
        %v2293 = vrot.slane %v2292, 4
        %v2294 = vmax.f32 %v2292, %v2293
        %v2295 = vrot.slane %v2294, 2
        %v2296 = vmax.f32 %v2294, %v2295
        %v2297 = vrot.slane %v2296, 1
        %v2298 = vmax.f32 %v2296, %v2297
        %v2299 = vsel %vm390, %v2201, -inf
        %v2300 = vrot.slane %v2299, 4
        %v2301 = vmax.f32 %v2299, %v2300
        %v2302 = vrot.slane %v2301, 2
        %v2303 = vmax.f32 %v2301, %v2302
        %v2304 = vrot.slane %v2303, 1
        %v2305 = vmax.f32 %v2303, %v2304
        %v2306 = vsel %vm390, %v2202, -inf
        %v2307 = vrot.slane %v2306, 4
        %v2308 = vmax.f32 %v2306, %v2307
        %v2309 = vrot.slane %v2308, 2
        %v2310 = vmax.f32 %v2308, %v2309
        %v2311 = vrot.slane %v2310, 1
        %v2312 = vmax.f32 %v2310, %v2311
        %v2313 = vsel %vm390, %v2203, -inf
        %v2314 = vrot.slane %v2313, 4
        %v2315 = vmax.f32 %v2313, %v2314
        %v2316 = vrot.slane %v2315, 2
        %v2317 = vmax.f32 %v2315, %v2316
        %v2318 = vrot.slane %v2317, 1
        %v2319 = vmax.f32 %v2317, %v2318
        %v2320 = vsel %vm390, %v2204, -inf
        %v2321 = vrot.slane %v2320, 4
        %v2322 = vmax.f32 %v2320, %v2321
        %v2323 = vrot.slane %v2322, 2
        %v2324 = vmax.f32 %v2322, %v2323
        %v2325 = vrot.slane %v2324, 1
        %v2326 = vmax.f32 %v2324, %v2325
        %v2327 = vsel %vm390, %v2205, -inf
        %v2328 = vrot.slane %v2327, 4
        %v2329 = vmax.f32 %v2327, %v2328
        %v2330 = vrot.slane %v2329, 2
        %v2331 = vmax.f32 %v2329, %v2330
        %v2332 = vrot.slane %v2331, 1
        %v2333 = vmax.f32 %v2331, %v2332
        %v2334 = vsel %vm390, %v2206, -inf
        %v2335 = vrot.slane %v2334, 4
        %v2336 = vmax.f32 %v2334, %v2335
        %v2337 = vrot.slane %v2336, 2
        %v2338 = vmax.f32 %v2336, %v2337
        %v2339 = vrot.slane %v2338, 1
        %v2340 = vmax.f32 %v2338, %v2339
        %v2341 = vsel %vm390, %v2207, -inf
        %v2342 = vrot.slane %v2341, 4
        %v2343 = vmax.f32 %v2341, %v2342
        %v2344 = vrot.slane %v2343, 2
        %v2345 = vmax.f32 %v2343, %v2344
        %v2346 = vrot.slane %v2345, 1
        %v2347 = vmax.f32 %v2345, %v2346
        %v2348 = vsel %vm390, %v2208, -inf
        %v2349 = vrot.slane %v2348, 4
        %v2350 = vmax.f32 %v2348, %v2349
        %v2351 = vrot.slane %v2350, 2
        %v2352 = vmax.f32 %v2350, %v2351
        %v2353 = vrot.slane %v2352, 1
        %v2354 = vmax.f32 %v2352, %v2353
        %v2355 = vsel %vm390, %v2209, -inf
        %v2356 = vrot.slane %v2355, 4
        %v2357 = vmax.f32 %v2355, %v2356
        %v2358 = vrot.slane %v2357, 2
        %v2359 = vmax.f32 %v2357, %v2358
        %v2360 = vrot.slane %v2359, 1
        %v2361 = vmax.f32 %v2359, %v2360
        %v2362 = vsel %vm390, %v2210, -inf
        %v2363 = vrot.slane %v2362, 4
        %v2364 = vmax.f32 %v2362, %v2363
        %v2365 = vrot.slane %v2364, 2
        %v2366 = vmax.f32 %v2364, %v2365
        %v2367 = vrot.slane %v2366, 1
        %v2368 = vmax.f32 %v2366, %v2367
        %v2369 = vsel %vm390, %v2211, -inf
        %v2370 = vrot.slane %v2369, 4
        %v2371 = vmax.f32 %v2369, %v2370
        %v2372 = vrot.slane %v2371, 2
        %v2373 = vmax.f32 %v2371, %v2372
        %v2374 = vrot.slane %v2373, 1
        %v2375 = vmax.f32 %v2373, %v2374
        %v2376 = vsel %vm390, %v2212, -inf
        %v2377 = vrot.slane %v2376, 4
        %v2378 = vmax.f32 %v2376, %v2377
        %v2379 = vrot.slane %v2378, 2
        %v2380 = vmax.f32 %v2378, %v2379
        %v2381 = vrot.slane %v2380, 1
        %v2382 = vmax.f32 %v2380, %v2381
        %v2383 = vsel %vm390, %v2213, -inf
        %v2384 = vrot.slane %v2383, 4
        %v2385 = vmax.f32 %v2383, %v2384
        %v2386 = vrot.slane %v2385, 2
        %v2387 = vmax.f32 %v2385, %v2386
        %v2388 = vrot.slane %v2387, 1
        %v2389 = vmax.f32 %v2387, %v2388
        %v2390 = vsel %vm390, %v2214, -inf
        %v2391 = vrot.slane %v2390, 4
        %v2392 = vmax.f32 %v2390, %v2391
        %v2393 = vrot.slane %v2392, 2
        %v2394 = vmax.f32 %v2392, %v2393
        %v2395 = vrot.slane %v2394, 1
        %v2396 = vmax.f32 %v2394, %v2395
        %v2397 = vsel %vm390, %v2215, -inf
        %v2398 = vrot.slane %v2397, 4
        %v2399 = vmax.f32 %v2397, %v2398
        %v2400 = vrot.slane %v2399, 2
        %v2401 = vmax.f32 %v2399, %v2400
        %v2402 = vrot.slane %v2401, 1
        %v2403 = vmax.f32 %v2401, %v2402
        %v2404 = vsel %vm390, %v2216, -inf
        %v2405 = vrot.slane %v2404, 4
        %v2406 = vmax.f32 %v2404, %v2405
        %v2407 = vrot.slane %v2406, 2
        %v2408 = vmax.f32 %v2406, %v2407
        %v2409 = vrot.slane %v2408, 1
        %v2410 = vmax.f32 %v2408, %v2409
        %v2411 = vsel %vm390, %v2217, -inf
        %v2412 = vrot.slane %v2411, 4
        %v2413 = vmax.f32 %v2411, %v2412
        %v2414 = vrot.slane %v2413, 2
        %v2415 = vmax.f32 %v2413, %v2414
        %v2416 = vrot.slane %v2415, 1
        %v2417 = vmax.f32 %v2415, %v2416
        %v2418 = vsel %vm390, %v2218, -inf
        %v2419 = vrot.slane %v2418, 4
        %v2420 = vmax.f32 %v2418, %v2419
        %v2421 = vrot.slane %v2420, 2
        %v2422 = vmax.f32 %v2420, %v2421
        %v2423 = vrot.slane %v2422, 1
        %v2424 = vmax.f32 %v2422, %v2423
        %v2425 = vsel %vm390, %v2219, -inf
        %v2426 = vrot.slane %v2425, 4
        %v2427 = vmax.f32 %v2425, %v2426
        %v2428 = vrot.slane %v2427, 2
        %v2429 = vmax.f32 %v2427, %v2428
        %v2430 = vrot.slane %v2429, 1
        %v2431 = vmax.f32 %v2429, %v2430
        %v2432 = vsel %vm390, %v2220, -inf
        %v2433 = vrot.slane %v2432, 4
        %v2434 = vmax.f32 %v2432, %v2433
        %v2435 = vrot.slane %v2434, 2
        %v2436 = vmax.f32 %v2434, %v2435
        %v2437 = vrot.slane %v2436, 1
        %v2438 = vmax.f32 %v2436, %v2437
        %v2439 = vsel %vm390, %v2221, -inf
        %v2440 = vrot.slane %v2439, 4
        %v2441 = vmax.f32 %v2439, %v2440
        %v2442 = vrot.slane %v2441, 2
        %v2443 = vmax.f32 %v2441, %v2442
        %v2444 = vrot.slane %v2443, 1
        %v2445 = vmax.f32 %v2443, %v2444
        %s2446 = scalar_lea.vmem [#allocation2], 40
        %v2447 = vld [vmem:[%s2446] sm:$0xff]
        %v2448 = vld [vmem:[%s2446 + $0x80] sm:$0xff]
        %v2449 = vld [vmem:[%s2446 + $0x100] sm:$0xff]
        %v2450 = vld [vmem:[%s2446 + $0x180] sm:$0xff]
        %v2483 = vsel %vm651, %v2235, %v2228
        %v2484 = vsel %vm653, %v2242, %v2483
        %v2485 = vsel %vm655, %v2249, %v2484
        %v2486 = vsel %vm657, %v2256, %v2485
        %v2487 = vsel %vm659, %v2263, %v2486
        %v2488 = vsel %vm661, %v2270, %v2487
        %v2489 = vsel %vm663, %v2277, %v2488
        %v2490 = vsel %vm651, %v2291, %v2284
        %v2491 = vsel %vm653, %v2298, %v2490
        %v2492 = vsel %vm655, %v2305, %v2491
        %v2493 = vsel %vm657, %v2312, %v2492
        %v2494 = vsel %vm659, %v2319, %v2493
        %v2495 = vsel %vm661, %v2326, %v2494
        %v2496 = vsel %vm663, %v2333, %v2495
        %v2497 = vsel %vm651, %v2347, %v2340
        %v2498 = vsel %vm653, %v2354, %v2497
        %v2499 = vsel %vm655, %v2361, %v2498
        %v2500 = vsel %vm657, %v2368, %v2499
        %v2501 = vsel %vm659, %v2375, %v2500
        %v2502 = vsel %vm661, %v2382, %v2501
        %v2503 = vsel %vm663, %v2389, %v2502
        %v2504 = vsel %vm651, %v2403, %v2396
        %v2505 = vsel %vm653, %v2410, %v2504
        %v2506 = vsel %vm655, %v2417, %v2505
        %v2507 = vsel %vm657, %v2424, %v2506
        %v2508 = vsel %vm659, %v2431, %v2507
        %v2509 = vsel %vm661, %v2438, %v2508
        %v2510 = vsel %vm663, %v2445, %v2509
        %v2515 = vmax.f32 %v2447, %v2489
        %v2516 = vmax.f32 %v2448, %v2496
        %v2517 = vmax.f32 %v2449, %v2503
        %v2518 = vmax.f32 %v2450, %v2510
        %2519 = vst.msk [vmem:[%s2446] sm:$0xff] %vm390, %v2515
        %2520 = vst.msk [vmem:[%s2446 + $0x80] sm:$0xff] %vm390, %v2516
        %2521 = vst.msk [vmem:[%s2446 + $0x100] sm:$0xff] %vm390, %v2517
        %2522 = vst.msk [vmem:[%s2446 + $0x180] sm:$0xff] %vm390, %v2518
        %v2523 = vstv 48
        %v2524 = vadd.s32 %v2523, 1
        %v2525 = vadd.s32 %v2523, 2
        %v2526 = vadd.s32 %v2523, 3
        %v2527 = vadd.s32 %v2523, 4
        %v2528 = vadd.s32 %v2523, 5
        %v2529 = vadd.s32 %v2523, 6
        %v2530 = vadd.s32 %v2523, 7
        %vm2531 = vcmp.eq.s32.totalorder %v325, %v2523
        %vm2532 = vcmp.eq.s32.totalorder %v325, %v2524
        %vm2533 = vcmp.eq.s32.totalorder %v325, %v2525
        %vm2534 = vcmp.eq.s32.totalorder %v325, %v2526
        %vm2535 = vcmp.eq.s32.totalorder %v325, %v2527
        %vm2536 = vcmp.eq.s32.totalorder %v325, %v2528
        %vm2537 = vcmp.eq.s32.totalorder %v325, %v2529
        %vm2538 = vcmp.eq.s32.totalorder %v325, %v2530
        %v2539 = vsel %vm2531, 1, 0
        %v2540 = vsel %vm2532, 1, 0
        %v2541 = vsel %vm2533, 1, 0
        %v2542 = vsel %vm2534, 1, 0
        %v2543 = vsel %vm2535, 1, 0
        %v2544 = vsel %vm2536, 1, 0
        %v2545 = vsel %vm2537, 1, 0
        %v2546 = vsel %vm2538, 1, 0
        %vm2547 = vcmp.eq.s32.totalorder %v2539, 1
        %vm2548 = vcmp.eq.s32.totalorder %v2540, 1
        %vm2549 = vcmp.eq.s32.totalorder %v2541, 1
        %vm2550 = vcmp.eq.s32.totalorder %v2542, 1
        %vm2551 = vcmp.eq.s32.totalorder %v2543, 1
        %vm2552 = vcmp.eq.s32.totalorder %v2544, 1
        %vm2553 = vcmp.eq.s32.totalorder %v2545, 1
        %vm2554 = vcmp.eq.s32.totalorder %v2546, 1
        %v2555 = vsel %vm2547, %v306, -inf
        %v2556 = vsel %vm2548, %v306, -inf
        %v2557 = vsel %vm2549, %v306, -inf
        %v2558 = vsel %vm2550, %v306, -inf
        %v2559 = vsel %vm2551, %v306, -inf
        %v2560 = vsel %vm2552, %v306, -inf
        %v2561 = vsel %vm2553, %v306, -inf
        %v2562 = vsel %vm2554, %v306, -inf
        %v2563 = vsel %vm2547, %v307, -inf
        %v2564 = vsel %vm2548, %v307, -inf
        %v2565 = vsel %vm2549, %v307, -inf
        %v2566 = vsel %vm2550, %v307, -inf
        %v2567 = vsel %vm2551, %v307, -inf
        %v2568 = vsel %vm2552, %v307, -inf
        %v2569 = vsel %vm2553, %v307, -inf
        %v2570 = vsel %vm2554, %v307, -inf
        %v2571 = vsel %vm2547, %v308, -inf
        %v2572 = vsel %vm2548, %v308, -inf
        %v2573 = vsel %vm2549, %v308, -inf
        %v2574 = vsel %vm2550, %v308, -inf
        %v2575 = vsel %vm2551, %v308, -inf
        %v2576 = vsel %vm2552, %v308, -inf
        %v2577 = vsel %vm2553, %v308, -inf
        %v2578 = vsel %vm2554, %v308, -inf
        %v2579 = vsel %vm2547, %v309, -inf
        %v2580 = vsel %vm2548, %v309, -inf
        %v2581 = vsel %vm2549, %v309, -inf
        %v2582 = vsel %vm2550, %v309, -inf
        %v2583 = vsel %vm2551, %v309, -inf
        %v2584 = vsel %vm2552, %v309, -inf
        %v2585 = vsel %vm2553, %v309, -inf
        %v2586 = vsel %vm2554, %v309, -inf
        %v2587 = vsel %vm390, %v2555, -inf
        %v2588 = vrot.slane %v2587, 4
        %v2589 = vmax.f32 %v2587, %v2588
        %v2590 = vrot.slane %v2589, 2
        %v2591 = vmax.f32 %v2589, %v2590
        %v2592 = vrot.slane %v2591, 1
        %v2593 = vmax.f32 %v2591, %v2592
        %v2594 = vsel %vm390, %v2556, -inf
        %v2595 = vrot.slane %v2594, 4
        %v2596 = vmax.f32 %v2594, %v2595
        %v2597 = vrot.slane %v2596, 2
        %v2598 = vmax.f32 %v2596, %v2597
        %v2599 = vrot.slane %v2598, 1
        %v2600 = vmax.f32 %v2598, %v2599
        %v2601 = vsel %vm390, %v2557, -inf
        %v2602 = vrot.slane %v2601, 4
        %v2603 = vmax.f32 %v2601, %v2602
        %v2604 = vrot.slane %v2603, 2
        %v2605 = vmax.f32 %v2603, %v2604
        %v2606 = vrot.slane %v2605, 1
        %v2607 = vmax.f32 %v2605, %v2606
        %v2608 = vsel %vm390, %v2558, -inf
        %v2609 = vrot.slane %v2608, 4
        %v2610 = vmax.f32 %v2608, %v2609
        %v2611 = vrot.slane %v2610, 2
        %v2612 = vmax.f32 %v2610, %v2611
        %v2613 = vrot.slane %v2612, 1
        %v2614 = vmax.f32 %v2612, %v2613
        %v2615 = vsel %vm390, %v2559, -inf
        %v2616 = vrot.slane %v2615, 4
        %v2617 = vmax.f32 %v2615, %v2616
        %v2618 = vrot.slane %v2617, 2
        %v2619 = vmax.f32 %v2617, %v2618
        %v2620 = vrot.slane %v2619, 1
        %v2621 = vmax.f32 %v2619, %v2620
        %v2622 = vsel %vm390, %v2560, -inf
        %v2623 = vrot.slane %v2622, 4
        %v2624 = vmax.f32 %v2622, %v2623
        %v2625 = vrot.slane %v2624, 2
        %v2626 = vmax.f32 %v2624, %v2625
        %v2627 = vrot.slane %v2626, 1
        %v2628 = vmax.f32 %v2626, %v2627
        %v2629 = vsel %vm390, %v2561, -inf
        %v2630 = vrot.slane %v2629, 4
        %v2631 = vmax.f32 %v2629, %v2630
        %v2632 = vrot.slane %v2631, 2
        %v2633 = vmax.f32 %v2631, %v2632
        %v2634 = vrot.slane %v2633, 1
        %v2635 = vmax.f32 %v2633, %v2634
        %v2636 = vsel %vm390, %v2562, -inf
        %v2637 = vrot.slane %v2636, 4
        %v2638 = vmax.f32 %v2636, %v2637
        %v2639 = vrot.slane %v2638, 2
        %v2640 = vmax.f32 %v2638, %v2639
        %v2641 = vrot.slane %v2640, 1
        %v2642 = vmax.f32 %v2640, %v2641
        %v2643 = vsel %vm390, %v2563, -inf
        %v2644 = vrot.slane %v2643, 4
        %v2645 = vmax.f32 %v2643, %v2644
        %v2646 = vrot.slane %v2645, 2
        %v2647 = vmax.f32 %v2645, %v2646
        %v2648 = vrot.slane %v2647, 1
        %v2649 = vmax.f32 %v2647, %v2648
        %v2650 = vsel %vm390, %v2564, -inf
        %v2651 = vrot.slane %v2650, 4
        %v2652 = vmax.f32 %v2650, %v2651
        %v2653 = vrot.slane %v2652, 2
        %v2654 = vmax.f32 %v2652, %v2653
        %v2655 = vrot.slane %v2654, 1
        %v2656 = vmax.f32 %v2654, %v2655
        %v2657 = vsel %vm390, %v2565, -inf
        %v2658 = vrot.slane %v2657, 4
        %v2659 = vmax.f32 %v2657, %v2658
        %v2660 = vrot.slane %v2659, 2
        %v2661 = vmax.f32 %v2659, %v2660
        %v2662 = vrot.slane %v2661, 1
        %v2663 = vmax.f32 %v2661, %v2662
        %v2664 = vsel %vm390, %v2566, -inf
        %v2665 = vrot.slane %v2664, 4
        %v2666 = vmax.f32 %v2664, %v2665
        %v2667 = vrot.slane %v2666, 2
        %v2668 = vmax.f32 %v2666, %v2667
        %v2669 = vrot.slane %v2668, 1
        %v2670 = vmax.f32 %v2668, %v2669
        %v2671 = vsel %vm390, %v2567, -inf
        %v2672 = vrot.slane %v2671, 4
        %v2673 = vmax.f32 %v2671, %v2672
        %v2674 = vrot.slane %v2673, 2
        %v2675 = vmax.f32 %v2673, %v2674
        %v2676 = vrot.slane %v2675, 1
        %v2677 = vmax.f32 %v2675, %v2676
        %v2678 = vsel %vm390, %v2568, -inf
        %v2679 = vrot.slane %v2678, 4
        %v2680 = vmax.f32 %v2678, %v2679
        %v2681 = vrot.slane %v2680, 2
        %v2682 = vmax.f32 %v2680, %v2681
        %v2683 = vrot.slane %v2682, 1
        %v2684 = vmax.f32 %v2682, %v2683
        %v2685 = vsel %vm390, %v2569, -inf
        %v2686 = vrot.slane %v2685, 4
        %v2687 = vmax.f32 %v2685, %v2686
        %v2688 = vrot.slane %v2687, 2
        %v2689 = vmax.f32 %v2687, %v2688
        %v2690 = vrot.slane %v2689, 1
        %v2691 = vmax.f32 %v2689, %v2690
        %v2692 = vsel %vm390, %v2570, -inf
        %v2693 = vrot.slane %v2692, 4
        %v2694 = vmax.f32 %v2692, %v2693
        %v2695 = vrot.slane %v2694, 2
        %v2696 = vmax.f32 %v2694, %v2695
        %v2697 = vrot.slane %v2696, 1
        %v2698 = vmax.f32 %v2696, %v2697
        %v2699 = vsel %vm390, %v2571, -inf
        %v2700 = vrot.slane %v2699, 4
        %v2701 = vmax.f32 %v2699, %v2700
        %v2702 = vrot.slane %v2701, 2
        %v2703 = vmax.f32 %v2701, %v2702
        %v2704 = vrot.slane %v2703, 1
        %v2705 = vmax.f32 %v2703, %v2704
        %v2706 = vsel %vm390, %v2572, -inf
        %v2707 = vrot.slane %v2706, 4
        %v2708 = vmax.f32 %v2706, %v2707
        %v2709 = vrot.slane %v2708, 2
        %v2710 = vmax.f32 %v2708, %v2709
        %v2711 = vrot.slane %v2710, 1
        %v2712 = vmax.f32 %v2710, %v2711
        %v2713 = vsel %vm390, %v2573, -inf
        %v2714 = vrot.slane %v2713, 4
        %v2715 = vmax.f32 %v2713, %v2714
        %v2716 = vrot.slane %v2715, 2
        %v2717 = vmax.f32 %v2715, %v2716
        %v2718 = vrot.slane %v2717, 1
        %v2719 = vmax.f32 %v2717, %v2718
        %v2720 = vsel %vm390, %v2574, -inf
        %v2721 = vrot.slane %v2720, 4
        %v2722 = vmax.f32 %v2720, %v2721
        %v2723 = vrot.slane %v2722, 2
        %v2724 = vmax.f32 %v2722, %v2723
        %v2725 = vrot.slane %v2724, 1
        %v2726 = vmax.f32 %v2724, %v2725
        %v2727 = vsel %vm390, %v2575, -inf
        %v2728 = vrot.slane %v2727, 4
        %v2729 = vmax.f32 %v2727, %v2728
        %v2730 = vrot.slane %v2729, 2
        %v2731 = vmax.f32 %v2729, %v2730
        %v2732 = vrot.slane %v2731, 1
        %v2733 = vmax.f32 %v2731, %v2732
        %v2734 = vsel %vm390, %v2576, -inf
        %v2735 = vrot.slane %v2734, 4
        %v2736 = vmax.f32 %v2734, %v2735
        %v2737 = vrot.slane %v2736, 2
        %v2738 = vmax.f32 %v2736, %v2737
        %v2739 = vrot.slane %v2738, 1
        %v2740 = vmax.f32 %v2738, %v2739
        %v2741 = vsel %vm390, %v2577, -inf
        %v2742 = vrot.slane %v2741, 4
        %v2743 = vmax.f32 %v2741, %v2742
        %v2744 = vrot.slane %v2743, 2
        %v2745 = vmax.f32 %v2743, %v2744
        %v2746 = vrot.slane %v2745, 1
        %v2747 = vmax.f32 %v2745, %v2746
        %v2748 = vsel %vm390, %v2578, -inf
        %v2749 = vrot.slane %v2748, 4
        %v2750 = vmax.f32 %v2748, %v2749
        %v2751 = vrot.slane %v2750, 2
        %v2752 = vmax.f32 %v2750, %v2751
        %v2753 = vrot.slane %v2752, 1
        %v2754 = vmax.f32 %v2752, %v2753
        %v2755 = vsel %vm390, %v2579, -inf
        %v2756 = vrot.slane %v2755, 4
        %v2757 = vmax.f32 %v2755, %v2756
        %v2758 = vrot.slane %v2757, 2
        %v2759 = vmax.f32 %v2757, %v2758
        %v2760 = vrot.slane %v2759, 1
        %v2761 = vmax.f32 %v2759, %v2760
        %v2762 = vsel %vm390, %v2580, -inf
        %v2763 = vrot.slane %v2762, 4
        %v2764 = vmax.f32 %v2762, %v2763
        %v2765 = vrot.slane %v2764, 2
        %v2766 = vmax.f32 %v2764, %v2765
        %v2767 = vrot.slane %v2766, 1
        %v2768 = vmax.f32 %v2766, %v2767
        %v2769 = vsel %vm390, %v2581, -inf
        %v2770 = vrot.slane %v2769, 4
        %v2771 = vmax.f32 %v2769, %v2770
        %v2772 = vrot.slane %v2771, 2
        %v2773 = vmax.f32 %v2771, %v2772
        %v2774 = vrot.slane %v2773, 1
        %v2775 = vmax.f32 %v2773, %v2774
        %v2776 = vsel %vm390, %v2582, -inf
        %v2777 = vrot.slane %v2776, 4
        %v2778 = vmax.f32 %v2776, %v2777
        %v2779 = vrot.slane %v2778, 2
        %v2780 = vmax.f32 %v2778, %v2779
        %v2781 = vrot.slane %v2780, 1
        %v2782 = vmax.f32 %v2780, %v2781
        %v2783 = vsel %vm390, %v2583, -inf
        %v2784 = vrot.slane %v2783, 4
        %v2785 = vmax.f32 %v2783, %v2784
        %v2786 = vrot.slane %v2785, 2
        %v2787 = vmax.f32 %v2785, %v2786
        %v2788 = vrot.slane %v2787, 1
        %v2789 = vmax.f32 %v2787, %v2788
        %v2790 = vsel %vm390, %v2584, -inf
        %v2791 = vrot.slane %v2790, 4
        %v2792 = vmax.f32 %v2790, %v2791
        %v2793 = vrot.slane %v2792, 2
        %v2794 = vmax.f32 %v2792, %v2793
        %v2795 = vrot.slane %v2794, 1
        %v2796 = vmax.f32 %v2794, %v2795
        %v2797 = vsel %vm390, %v2585, -inf
        %v2798 = vrot.slane %v2797, 4
        %v2799 = vmax.f32 %v2797, %v2798
        %v2800 = vrot.slane %v2799, 2
        %v2801 = vmax.f32 %v2799, %v2800
        %v2802 = vrot.slane %v2801, 1
        %v2803 = vmax.f32 %v2801, %v2802
        %v2804 = vsel %vm390, %v2586, -inf
        %v2805 = vrot.slane %v2804, 4
        %v2806 = vmax.f32 %v2804, %v2805
        %v2807 = vrot.slane %v2806, 2
        %v2808 = vmax.f32 %v2806, %v2807
        %v2809 = vrot.slane %v2808, 1
        %v2810 = vmax.f32 %v2808, %v2809
        %s2811 = scalar_lea.vmem [#allocation2], 48
        %v2812 = vld [vmem:[%s2811] sm:$0xff]
        %v2813 = vld [vmem:[%s2811 + $0x80] sm:$0xff]
        %v2814 = vld [vmem:[%s2811 + $0x100] sm:$0xff]
        %v2815 = vld [vmem:[%s2811 + $0x180] sm:$0xff]
        %v2848 = vsel %vm651, %v2600, %v2593
        %v2849 = vsel %vm653, %v2607, %v2848
        %v2850 = vsel %vm655, %v2614, %v2849
        %v2851 = vsel %vm657, %v2621, %v2850
        %v2852 = vsel %vm659, %v2628, %v2851
        %v2853 = vsel %vm661, %v2635, %v2852
        %v2854 = vsel %vm663, %v2642, %v2853
        %v2855 = vsel %vm651, %v2656, %v2649
        %v2856 = vsel %vm653, %v2663, %v2855
        %v2857 = vsel %vm655, %v2670, %v2856
        %v2858 = vsel %vm657, %v2677, %v2857
        %v2859 = vsel %vm659, %v2684, %v2858
        %v2860 = vsel %vm661, %v2691, %v2859
        %v2861 = vsel %vm663, %v2698, %v2860
        %v2862 = vsel %vm651, %v2712, %v2705
        %v2863 = vsel %vm653, %v2719, %v2862
        %v2864 = vsel %vm655, %v2726, %v2863
        %v2865 = vsel %vm657, %v2733, %v2864
        %v2866 = vsel %vm659, %v2740, %v2865
        %v2867 = vsel %vm661, %v2747, %v2866
        %v2868 = vsel %vm663, %v2754, %v2867
        %v2869 = vsel %vm651, %v2768, %v2761
        %v2870 = vsel %vm653, %v2775, %v2869
        %v2871 = vsel %vm655, %v2782, %v2870
        %v2872 = vsel %vm657, %v2789, %v2871
        %v2873 = vsel %vm659, %v2796, %v2872
        %v2874 = vsel %vm661, %v2803, %v2873
        %v2875 = vsel %vm663, %v2810, %v2874
        %v2880 = vmax.f32 %v2812, %v2854
        %v2881 = vmax.f32 %v2813, %v2861
        %v2882 = vmax.f32 %v2814, %v2868
        %v2883 = vmax.f32 %v2815, %v2875
        %2884 = vst.msk [vmem:[%s2811] sm:$0xff] %vm390, %v2880
        %2885 = vst.msk [vmem:[%s2811 + $0x80] sm:$0xff] %vm390, %v2881
        %2886 = vst.msk [vmem:[%s2811 + $0x100] sm:$0xff] %vm390, %v2882
        %2887 = vst.msk [vmem:[%s2811 + $0x180] sm:$0xff] %vm390, %v2883
        %v2888 = vstv 56
        %v2889 = vadd.s32 %v2888, 1
        %v2890 = vadd.s32 %v2888, 2
        %v2891 = vadd.s32 %v2888, 3
        %v2892 = vadd.s32 %v2888, 4
        %v2893 = vadd.s32 %v2888, 5
        %v2894 = vadd.s32 %v2888, 6
        %v2895 = vadd.s32 %v2888, 7
        %vm2896 = vcmp.eq.s32.totalorder %v325, %v2888
        %vm2897 = vcmp.eq.s32.totalorder %v325, %v2889
        %vm2898 = vcmp.eq.s32.totalorder %v325, %v2890
        %vm2899 = vcmp.eq.s32.totalorder %v325, %v2891
        %vm2900 = vcmp.eq.s32.totalorder %v325, %v2892
        %vm2901 = vcmp.eq.s32.totalorder %v325, %v2893
        %vm2902 = vcmp.eq.s32.totalorder %v325, %v2894
        %vm2903 = vcmp.eq.s32.totalorder %v325, %v2895
        %v2904 = vsel %vm2896, 1, 0
        %v2905 = vsel %vm2897, 1, 0
        %v2906 = vsel %vm2898, 1, 0
        %v2907 = vsel %vm2899, 1, 0
        %v2908 = vsel %vm2900, 1, 0
        %v2909 = vsel %vm2901, 1, 0
        %v2910 = vsel %vm2902, 1, 0
        %v2911 = vsel %vm2903, 1, 0
        %vm2912 = vcmp.eq.s32.totalorder %v2904, 1
        %vm2913 = vcmp.eq.s32.totalorder %v2905, 1
        %vm2914 = vcmp.eq.s32.totalorder %v2906, 1
        %vm2915 = vcmp.eq.s32.totalorder %v2907, 1
        %vm2916 = vcmp.eq.s32.totalorder %v2908, 1
        %vm2917 = vcmp.eq.s32.totalorder %v2909, 1
        %vm2918 = vcmp.eq.s32.totalorder %v2910, 1
        %vm2919 = vcmp.eq.s32.totalorder %v2911, 1
        %v2920 = vsel %vm2912, %v306, -inf
        %v2921 = vsel %vm2913, %v306, -inf
        %v2922 = vsel %vm2914, %v306, -inf
        %v2923 = vsel %vm2915, %v306, -inf
        %v2924 = vsel %vm2916, %v306, -inf
        %v2925 = vsel %vm2917, %v306, -inf
        %v2926 = vsel %vm2918, %v306, -inf
        %v2927 = vsel %vm2919, %v306, -inf
        %v2928 = vsel %vm2912, %v307, -inf
        %v2929 = vsel %vm2913, %v307, -inf
        %v2930 = vsel %vm2914, %v307, -inf
        %v2931 = vsel %vm2915, %v307, -inf
        %v2932 = vsel %vm2916, %v307, -inf
        %v2933 = vsel %vm2917, %v307, -inf
        %v2934 = vsel %vm2918, %v307, -inf
        %v2935 = vsel %vm2919, %v307, -inf
        %v2936 = vsel %vm2912, %v308, -inf
        %v2937 = vsel %vm2913, %v308, -inf
        %v2938 = vsel %vm2914, %v308, -inf
        %v2939 = vsel %vm2915, %v308, -inf
        %v2940 = vsel %vm2916, %v308, -inf
        %v2941 = vsel %vm2917, %v308, -inf
        %v2942 = vsel %vm2918, %v308, -inf
        %v2943 = vsel %vm2919, %v308, -inf
        %v2944 = vsel %vm2912, %v309, -inf
        %v2945 = vsel %vm2913, %v309, -inf
        %v2946 = vsel %vm2914, %v309, -inf
        %v2947 = vsel %vm2915, %v309, -inf
        %v2948 = vsel %vm2916, %v309, -inf
        %v2949 = vsel %vm2917, %v309, -inf
        %v2950 = vsel %vm2918, %v309, -inf
        %v2951 = vsel %vm2919, %v309, -inf
        %v2952 = vsel %vm390, %v2920, -inf
        %v2953 = vrot.slane %v2952, 4
        %v2954 = vmax.f32 %v2952, %v2953
        %v2955 = vrot.slane %v2954, 2
        %v2956 = vmax.f32 %v2954, %v2955
        %v2957 = vrot.slane %v2956, 1
        %v2958 = vmax.f32 %v2956, %v2957
        %v2959 = vsel %vm390, %v2921, -inf
        %v2960 = vrot.slane %v2959, 4
        %v2961 = vmax.f32 %v2959, %v2960
        %v2962 = vrot.slane %v2961, 2
        %v2963 = vmax.f32 %v2961, %v2962
        %v2964 = vrot.slane %v2963, 1
        %v2965 = vmax.f32 %v2963, %v2964
        %v2966 = vsel %vm390, %v2922, -inf
        %v2967 = vrot.slane %v2966, 4
        %v2968 = vmax.f32 %v2966, %v2967
        %v2969 = vrot.slane %v2968, 2
        %v2970 = vmax.f32 %v2968, %v2969
        %v2971 = vrot.slane %v2970, 1
        %v2972 = vmax.f32 %v2970, %v2971
        %v2973 = vsel %vm390, %v2923, -inf
        %v2974 = vrot.slane %v2973, 4
        %v2975 = vmax.f32 %v2973, %v2974
        %v2976 = vrot.slane %v2975, 2
        %v2977 = vmax.f32 %v2975, %v2976
        %v2978 = vrot.slane %v2977, 1
        %v2979 = vmax.f32 %v2977, %v2978
        %v2980 = vsel %vm390, %v2924, -inf
        %v2981 = vrot.slane %v2980, 4
        %v2982 = vmax.f32 %v2980, %v2981
        %v2983 = vrot.slane %v2982, 2
        %v2984 = vmax.f32 %v2982, %v2983
        %v2985 = vrot.slane %v2984, 1
        %v2986 = vmax.f32 %v2984, %v2985
        %v2987 = vsel %vm390, %v2925, -inf
        %v2988 = vrot.slane %v2987, 4
        %v2989 = vmax.f32 %v2987, %v2988
        %v2990 = vrot.slane %v2989, 2
        %v2991 = vmax.f32 %v2989, %v2990
        %v2992 = vrot.slane %v2991, 1
        %v2993 = vmax.f32 %v2991, %v2992
        %v2994 = vsel %vm390, %v2926, -inf
        %v2995 = vrot.slane %v2994, 4
        %v2996 = vmax.f32 %v2994, %v2995
        %v2997 = vrot.slane %v2996, 2
        %v2998 = vmax.f32 %v2996, %v2997
        %v2999 = vrot.slane %v2998, 1
        %v3000 = vmax.f32 %v2998, %v2999
        %v3001 = vsel %vm390, %v2927, -inf
        %v3002 = vrot.slane %v3001, 4
        %v3003 = vmax.f32 %v3001, %v3002
        %v3004 = vrot.slane %v3003, 2
        %v3005 = vmax.f32 %v3003, %v3004
        %v3006 = vrot.slane %v3005, 1
        %v3007 = vmax.f32 %v3005, %v3006
        %v3008 = vsel %vm390, %v2928, -inf
        %v3009 = vrot.slane %v3008, 4
        %v3010 = vmax.f32 %v3008, %v3009
        %v3011 = vrot.slane %v3010, 2
        %v3012 = vmax.f32 %v3010, %v3011
        %v3013 = vrot.slane %v3012, 1
        %v3014 = vmax.f32 %v3012, %v3013
        %v3015 = vsel %vm390, %v2929, -inf
        %v3016 = vrot.slane %v3015, 4
        %v3017 = vmax.f32 %v3015, %v3016
        %v3018 = vrot.slane %v3017, 2
        %v3019 = vmax.f32 %v3017, %v3018
        %v3020 = vrot.slane %v3019, 1
        %v3021 = vmax.f32 %v3019, %v3020
        %v3022 = vsel %vm390, %v2930, -inf
        %v3023 = vrot.slane %v3022, 4
        %v3024 = vmax.f32 %v3022, %v3023
        %v3025 = vrot.slane %v3024, 2
        %v3026 = vmax.f32 %v3024, %v3025
        %v3027 = vrot.slane %v3026, 1
        %v3028 = vmax.f32 %v3026, %v3027
        %v3029 = vsel %vm390, %v2931, -inf
        %v3030 = vrot.slane %v3029, 4
        %v3031 = vmax.f32 %v3029, %v3030
        %v3032 = vrot.slane %v3031, 2
        %v3033 = vmax.f32 %v3031, %v3032
        %v3034 = vrot.slane %v3033, 1
        %v3035 = vmax.f32 %v3033, %v3034
        %v3036 = vsel %vm390, %v2932, -inf
        %v3037 = vrot.slane %v3036, 4
        %v3038 = vmax.f32 %v3036, %v3037
        %v3039 = vrot.slane %v3038, 2
        %v3040 = vmax.f32 %v3038, %v3039
        %v3041 = vrot.slane %v3040, 1
        %v3042 = vmax.f32 %v3040, %v3041
        %v3043 = vsel %vm390, %v2933, -inf
        %v3044 = vrot.slane %v3043, 4
        %v3045 = vmax.f32 %v3043, %v3044
        %v3046 = vrot.slane %v3045, 2
        %v3047 = vmax.f32 %v3045, %v3046
        %v3048 = vrot.slane %v3047, 1
        %v3049 = vmax.f32 %v3047, %v3048
        %v3050 = vsel %vm390, %v2934, -inf
        %v3051 = vrot.slane %v3050, 4
        %v3052 = vmax.f32 %v3050, %v3051
        %v3053 = vrot.slane %v3052, 2
        %v3054 = vmax.f32 %v3052, %v3053
        %v3055 = vrot.slane %v3054, 1
        %v3056 = vmax.f32 %v3054, %v3055
        %v3057 = vsel %vm390, %v2935, -inf
        %v3058 = vrot.slane %v3057, 4
        %v3059 = vmax.f32 %v3057, %v3058
        %v3060 = vrot.slane %v3059, 2
        %v3061 = vmax.f32 %v3059, %v3060
        %v3062 = vrot.slane %v3061, 1
        %v3063 = vmax.f32 %v3061, %v3062
        %v3064 = vsel %vm390, %v2936, -inf
        %v3065 = vrot.slane %v3064, 4
        %v3066 = vmax.f32 %v3064, %v3065
        %v3067 = vrot.slane %v3066, 2
        %v3068 = vmax.f32 %v3066, %v3067
        %v3069 = vrot.slane %v3068, 1
        %v3070 = vmax.f32 %v3068, %v3069
        %v3071 = vsel %vm390, %v2937, -inf
        %v3072 = vrot.slane %v3071, 4
        %v3073 = vmax.f32 %v3071, %v3072
        %v3074 = vrot.slane %v3073, 2
        %v3075 = vmax.f32 %v3073, %v3074
        %v3076 = vrot.slane %v3075, 1
        %v3077 = vmax.f32 %v3075, %v3076
        %v3078 = vsel %vm390, %v2938, -inf
        %v3079 = vrot.slane %v3078, 4
        %v3080 = vmax.f32 %v3078, %v3079
        %v3081 = vrot.slane %v3080, 2
        %v3082 = vmax.f32 %v3080, %v3081
        %v3083 = vrot.slane %v3082, 1
        %v3084 = vmax.f32 %v3082, %v3083
        %v3085 = vsel %vm390, %v2939, -inf
        %v3086 = vrot.slane %v3085, 4
        %v3087 = vmax.f32 %v3085, %v3086
        %v3088 = vrot.slane %v3087, 2
        %v3089 = vmax.f32 %v3087, %v3088
        %v3090 = vrot.slane %v3089, 1
        %v3091 = vmax.f32 %v3089, %v3090
        %v3092 = vsel %vm390, %v2940, -inf
        %v3093 = vrot.slane %v3092, 4
        %v3094 = vmax.f32 %v3092, %v3093
        %v3095 = vrot.slane %v3094, 2
        %v3096 = vmax.f32 %v3094, %v3095
        %v3097 = vrot.slane %v3096, 1
        %v3098 = vmax.f32 %v3096, %v3097
        %v3099 = vsel %vm390, %v2941, -inf
        %v3100 = vrot.slane %v3099, 4
        %v3101 = vmax.f32 %v3099, %v3100
        %v3102 = vrot.slane %v3101, 2
        %v3103 = vmax.f32 %v3101, %v3102
        %v3104 = vrot.slane %v3103, 1
        %v3105 = vmax.f32 %v3103, %v3104
        %v3106 = vsel %vm390, %v2942, -inf
        %v3107 = vrot.slane %v3106, 4
        %v3108 = vmax.f32 %v3106, %v3107
        %v3109 = vrot.slane %v3108, 2
        %v3110 = vmax.f32 %v3108, %v3109
        %v3111 = vrot.slane %v3110, 1
        %v3112 = vmax.f32 %v3110, %v3111
        %v3113 = vsel %vm390, %v2943, -inf
        %v3114 = vrot.slane %v3113, 4
        %v3115 = vmax.f32 %v3113, %v3114
        %v3116 = vrot.slane %v3115, 2
        %v3117 = vmax.f32 %v3115, %v3116
        %v3118 = vrot.slane %v3117, 1
        %v3119 = vmax.f32 %v3117, %v3118
        %v3120 = vsel %vm390, %v2944, -inf
        %v3121 = vrot.slane %v3120, 4
        %v3122 = vmax.f32 %v3120, %v3121
        %v3123 = vrot.slane %v3122, 2
        %v3124 = vmax.f32 %v3122, %v3123
        %v3125 = vrot.slane %v3124, 1
        %v3126 = vmax.f32 %v3124, %v3125
        %v3127 = vsel %vm390, %v2945, -inf
        %v3128 = vrot.slane %v3127, 4
        %v3129 = vmax.f32 %v3127, %v3128
        %v3130 = vrot.slane %v3129, 2
        %v3131 = vmax.f32 %v3129, %v3130
        %v3132 = vrot.slane %v3131, 1
        %v3133 = vmax.f32 %v3131, %v3132
        %v3134 = vsel %vm390, %v2946, -inf
        %v3135 = vrot.slane %v3134, 4
        %v3136 = vmax.f32 %v3134, %v3135
        %v3137 = vrot.slane %v3136, 2
        %v3138 = vmax.f32 %v3136, %v3137
        %v3139 = vrot.slane %v3138, 1
        %v3140 = vmax.f32 %v3138, %v3139
        %v3141 = vsel %vm390, %v2947, -inf
        %v3142 = vrot.slane %v3141, 4
        %v3143 = vmax.f32 %v3141, %v3142
        %v3144 = vrot.slane %v3143, 2
        %v3145 = vmax.f32 %v3143, %v3144
        %v3146 = vrot.slane %v3145, 1
        %v3147 = vmax.f32 %v3145, %v3146
        %v3148 = vsel %vm390, %v2948, -inf
        %v3149 = vrot.slane %v3148, 4
        %v3150 = vmax.f32 %v3148, %v3149
        %v3151 = vrot.slane %v3150, 2
        %v3152 = vmax.f32 %v3150, %v3151
        %v3153 = vrot.slane %v3152, 1
        %v3154 = vmax.f32 %v3152, %v3153
        %v3155 = vsel %vm390, %v2949, -inf
        %v3156 = vrot.slane %v3155, 4
        %v3157 = vmax.f32 %v3155, %v3156
        %v3158 = vrot.slane %v3157, 2
        %v3159 = vmax.f32 %v3157, %v3158
        %v3160 = vrot.slane %v3159, 1
        %v3161 = vmax.f32 %v3159, %v3160
        %v3162 = vsel %vm390, %v2950, -inf
        %v3163 = vrot.slane %v3162, 4
        %v3164 = vmax.f32 %v3162, %v3163
        %v3165 = vrot.slane %v3164, 2
        %v3166 = vmax.f32 %v3164, %v3165
        %v3167 = vrot.slane %v3166, 1
        %v3168 = vmax.f32 %v3166, %v3167
        %v3169 = vsel %vm390, %v2951, -inf
        %v3170 = vrot.slane %v3169, 4
        %v3171 = vmax.f32 %v3169, %v3170
        %v3172 = vrot.slane %v3171, 2
        %v3173 = vmax.f32 %v3171, %v3172
        %v3174 = vrot.slane %v3173, 1
        %v3175 = vmax.f32 %v3173, %v3174
        %s3176 = scalar_lea.vmem [#allocation2], 56
        %v3177 = vld [vmem:[%s3176] sm:$0xff]
        %v3178 = vld [vmem:[%s3176 + $0x80] sm:$0xff]
        %v3179 = vld [vmem:[%s3176 + $0x100] sm:$0xff]
        %v3180 = vld [vmem:[%s3176 + $0x180] sm:$0xff]
        %v3213 = vsel %vm651, %v2965, %v2958
        %v3214 = vsel %vm653, %v2972, %v3213
        %v3215 = vsel %vm655, %v2979, %v3214
        %v3216 = vsel %vm657, %v2986, %v3215
        %v3217 = vsel %vm659, %v2993, %v3216
        %v3218 = vsel %vm661, %v3000, %v3217
        %v3219 = vsel %vm663, %v3007, %v3218
        %v3220 = vsel %vm651, %v3021, %v3014
        %v3221 = vsel %vm653, %v3028, %v3220
        %v3222 = vsel %vm655, %v3035, %v3221
        %v3223 = vsel %vm657, %v3042, %v3222
        %v3224 = vsel %vm659, %v3049, %v3223
        %v3225 = vsel %vm661, %v3056, %v3224
        %v3226 = vsel %vm663, %v3063, %v3225
        %v3227 = vsel %vm651, %v3077, %v3070
        %v3228 = vsel %vm653, %v3084, %v3227
        %v3229 = vsel %vm655, %v3091, %v3228
        %v3230 = vsel %vm657, %v3098, %v3229
        %v3231 = vsel %vm659, %v3105, %v3230
        %v3232 = vsel %vm661, %v3112, %v3231
        %v3233 = vsel %vm663, %v3119, %v3232
        %v3234 = vsel %vm651, %v3133, %v3126
        %v3235 = vsel %vm653, %v3140, %v3234
        %v3236 = vsel %vm655, %v3147, %v3235
        %v3237 = vsel %vm657, %v3154, %v3236
        %v3238 = vsel %vm659, %v3161, %v3237
        %v3239 = vsel %vm661, %v3168, %v3238
        %v3240 = vsel %vm663, %v3175, %v3239
        %v3245 = vmax.f32 %v3177, %v3219
        %v3246 = vmax.f32 %v3178, %v3226
        %v3247 = vmax.f32 %v3179, %v3233
        %v3248 = vmax.f32 %v3180, %v3240
        %3249 = vst.msk [vmem:[%s3176] sm:$0xff] %vm390, %v3245
        %3250 = vst.msk [vmem:[%s3176 + $0x80] sm:$0xff] %vm390, %v3246
        %3251 = vst.msk [vmem:[%s3176 + $0x100] sm:$0xff] %vm390, %v3247
        %3252 = vst.msk [vmem:[%s3176 + $0x180] sm:$0xff] %vm390, %v3248
        %v3253 = vstv 64
        %v3254 = vadd.s32 %v3253, 1
        %v3255 = vadd.s32 %v3253, 2
        %v3256 = vadd.s32 %v3253, 3
        %v3257 = vadd.s32 %v3253, 4
        %v3258 = vadd.s32 %v3253, 5
        %v3259 = vadd.s32 %v3253, 6
        %v3260 = vadd.s32 %v3253, 7
        %vm3261 = vcmp.eq.s32.totalorder %v325, %v3253
        %vm3262 = vcmp.eq.s32.totalorder %v325, %v3254
        %vm3263 = vcmp.eq.s32.totalorder %v325, %v3255
        %vm3264 = vcmp.eq.s32.totalorder %v325, %v3256
        %vm3265 = vcmp.eq.s32.totalorder %v325, %v3257
        %vm3266 = vcmp.eq.s32.totalorder %v325, %v3258
        %vm3267 = vcmp.eq.s32.totalorder %v325, %v3259
        %vm3268 = vcmp.eq.s32.totalorder %v325, %v3260
        %v3269 = vsel %vm3261, 1, 0
        %v3270 = vsel %vm3262, 1, 0
        %v3271 = vsel %vm3263, 1, 0
        %v3272 = vsel %vm3264, 1, 0
        %v3273 = vsel %vm3265, 1, 0
        %v3274 = vsel %vm3266, 1, 0
        %v3275 = vsel %vm3267, 1, 0
        %v3276 = vsel %vm3268, 1, 0
        %vm3277 = vcmp.eq.s32.totalorder %v3269, 1
        %vm3278 = vcmp.eq.s32.totalorder %v3270, 1
        %vm3279 = vcmp.eq.s32.totalorder %v3271, 1
        %vm3280 = vcmp.eq.s32.totalorder %v3272, 1
        %vm3281 = vcmp.eq.s32.totalorder %v3273, 1
        %vm3282 = vcmp.eq.s32.totalorder %v3274, 1
        %vm3283 = vcmp.eq.s32.totalorder %v3275, 1
        %vm3284 = vcmp.eq.s32.totalorder %v3276, 1
        %v3285 = vsel %vm3277, %v306, -inf
        %v3286 = vsel %vm3278, %v306, -inf
        %v3287 = vsel %vm3279, %v306, -inf
        %v3288 = vsel %vm3280, %v306, -inf
        %v3289 = vsel %vm3281, %v306, -inf
        %v3290 = vsel %vm3282, %v306, -inf
        %v3291 = vsel %vm3283, %v306, -inf
        %v3292 = vsel %vm3284, %v306, -inf
        %v3293 = vsel %vm3277, %v307, -inf
        %v3294 = vsel %vm3278, %v307, -inf
        %v3295 = vsel %vm3279, %v307, -inf
        %v3296 = vsel %vm3280, %v307, -inf
        %v3297 = vsel %vm3281, %v307, -inf
        %v3298 = vsel %vm3282, %v307, -inf
        %v3299 = vsel %vm3283, %v307, -inf
        %v3300 = vsel %vm3284, %v307, -inf
        %v3301 = vsel %vm3277, %v308, -inf
        %v3302 = vsel %vm3278, %v308, -inf
        %v3303 = vsel %vm3279, %v308, -inf
        %v3304 = vsel %vm3280, %v308, -inf
        %v3305 = vsel %vm3281, %v308, -inf
        %v3306 = vsel %vm3282, %v308, -inf
        %v3307 = vsel %vm3283, %v308, -inf
        %v3308 = vsel %vm3284, %v308, -inf
        %v3309 = vsel %vm3277, %v309, -inf
        %v3310 = vsel %vm3278, %v309, -inf
        %v3311 = vsel %vm3279, %v309, -inf
        %v3312 = vsel %vm3280, %v309, -inf
        %v3313 = vsel %vm3281, %v309, -inf
        %v3314 = vsel %vm3282, %v309, -inf
        %v3315 = vsel %vm3283, %v309, -inf
        %v3316 = vsel %vm3284, %v309, -inf
        %v3317 = vsel %vm390, %v3285, -inf
        %v3318 = vrot.slane %v3317, 4
        %v3319 = vmax.f32 %v3317, %v3318
        %v3320 = vrot.slane %v3319, 2
        %v3321 = vmax.f32 %v3319, %v3320
        %v3322 = vrot.slane %v3321, 1
        %v3323 = vmax.f32 %v3321, %v3322
        %v3324 = vsel %vm390, %v3286, -inf
        %v3325 = vrot.slane %v3324, 4
        %v3326 = vmax.f32 %v3324, %v3325
        %v3327 = vrot.slane %v3326, 2
        %v3328 = vmax.f32 %v3326, %v3327
        %v3329 = vrot.slane %v3328, 1
        %v3330 = vmax.f32 %v3328, %v3329
        %v3331 = vsel %vm390, %v3287, -inf
        %v3332 = vrot.slane %v3331, 4
        %v3333 = vmax.f32 %v3331, %v3332
        %v3334 = vrot.slane %v3333, 2
        %v3335 = vmax.f32 %v3333, %v3334
        %v3336 = vrot.slane %v3335, 1
        %v3337 = vmax.f32 %v3335, %v3336
        %v3338 = vsel %vm390, %v3288, -inf
        %v3339 = vrot.slane %v3338, 4
        %v3340 = vmax.f32 %v3338, %v3339
        %v3341 = vrot.slane %v3340, 2
        %v3342 = vmax.f32 %v3340, %v3341
        %v3343 = vrot.slane %v3342, 1
        %v3344 = vmax.f32 %v3342, %v3343
        %v3345 = vsel %vm390, %v3289, -inf
        %v3346 = vrot.slane %v3345, 4
        %v3347 = vmax.f32 %v3345, %v3346
        %v3348 = vrot.slane %v3347, 2
        %v3349 = vmax.f32 %v3347, %v3348
        %v3350 = vrot.slane %v3349, 1
        %v3351 = vmax.f32 %v3349, %v3350
        %v3352 = vsel %vm390, %v3290, -inf
        %v3353 = vrot.slane %v3352, 4
        %v3354 = vmax.f32 %v3352, %v3353
        %v3355 = vrot.slane %v3354, 2
        %v3356 = vmax.f32 %v3354, %v3355
        %v3357 = vrot.slane %v3356, 1
        %v3358 = vmax.f32 %v3356, %v3357
        %v3359 = vsel %vm390, %v3291, -inf
        %v3360 = vrot.slane %v3359, 4
        %v3361 = vmax.f32 %v3359, %v3360
        %v3362 = vrot.slane %v3361, 2
        %v3363 = vmax.f32 %v3361, %v3362
        %v3364 = vrot.slane %v3363, 1
        %v3365 = vmax.f32 %v3363, %v3364
        %v3366 = vsel %vm390, %v3292, -inf
        %v3367 = vrot.slane %v3366, 4
        %v3368 = vmax.f32 %v3366, %v3367
        %v3369 = vrot.slane %v3368, 2
        %v3370 = vmax.f32 %v3368, %v3369
        %v3371 = vrot.slane %v3370, 1
        %v3372 = vmax.f32 %v3370, %v3371
        %v3373 = vsel %vm390, %v3293, -inf
        %v3374 = vrot.slane %v3373, 4
        %v3375 = vmax.f32 %v3373, %v3374
        %v3376 = vrot.slane %v3375, 2
        %v3377 = vmax.f32 %v3375, %v3376
        %v3378 = vrot.slane %v3377, 1
        %v3379 = vmax.f32 %v3377, %v3378
        %v3380 = vsel %vm390, %v3294, -inf
        %v3381 = vrot.slane %v3380, 4
        %v3382 = vmax.f32 %v3380, %v3381
        %v3383 = vrot.slane %v3382, 2
        %v3384 = vmax.f32 %v3382, %v3383
        %v3385 = vrot.slane %v3384, 1
        %v3386 = vmax.f32 %v3384, %v3385
        %v3387 = vsel %vm390, %v3295, -inf
        %v3388 = vrot.slane %v3387, 4
        %v3389 = vmax.f32 %v3387, %v3388
        %v3390 = vrot.slane %v3389, 2
        %v3391 = vmax.f32 %v3389, %v3390
        %v3392 = vrot.slane %v3391, 1
        %v3393 = vmax.f32 %v3391, %v3392
        %v3394 = vsel %vm390, %v3296, -inf
        %v3395 = vrot.slane %v3394, 4
        %v3396 = vmax.f32 %v3394, %v3395
        %v3397 = vrot.slane %v3396, 2
        %v3398 = vmax.f32 %v3396, %v3397
        %v3399 = vrot.slane %v3398, 1
        %v3400 = vmax.f32 %v3398, %v3399
        %v3401 = vsel %vm390, %v3297, -inf
        %v3402 = vrot.slane %v3401, 4
        %v3403 = vmax.f32 %v3401, %v3402
        %v3404 = vrot.slane %v3403, 2
        %v3405 = vmax.f32 %v3403, %v3404
        %v3406 = vrot.slane %v3405, 1
        %v3407 = vmax.f32 %v3405, %v3406
        %v3408 = vsel %vm390, %v3298, -inf
        %v3409 = vrot.slane %v3408, 4
        %v3410 = vmax.f32 %v3408, %v3409
        %v3411 = vrot.slane %v3410, 2
        %v3412 = vmax.f32 %v3410, %v3411
        %v3413 = vrot.slane %v3412, 1
        %v3414 = vmax.f32 %v3412, %v3413
        %v3415 = vsel %vm390, %v3299, -inf
        %v3416 = vrot.slane %v3415, 4
        %v3417 = vmax.f32 %v3415, %v3416
        %v3418 = vrot.slane %v3417, 2
        %v3419 = vmax.f32 %v3417, %v3418
        %v3420 = vrot.slane %v3419, 1
        %v3421 = vmax.f32 %v3419, %v3420
        %v3422 = vsel %vm390, %v3300, -inf
        %v3423 = vrot.slane %v3422, 4
        %v3424 = vmax.f32 %v3422, %v3423
        %v3425 = vrot.slane %v3424, 2
        %v3426 = vmax.f32 %v3424, %v3425
        %v3427 = vrot.slane %v3426, 1
        %v3428 = vmax.f32 %v3426, %v3427
        %v3429 = vsel %vm390, %v3301, -inf
        %v3430 = vrot.slane %v3429, 4
        %v3431 = vmax.f32 %v3429, %v3430
        %v3432 = vrot.slane %v3431, 2
        %v3433 = vmax.f32 %v3431, %v3432
        %v3434 = vrot.slane %v3433, 1
        %v3435 = vmax.f32 %v3433, %v3434
        %v3436 = vsel %vm390, %v3302, -inf
        %v3437 = vrot.slane %v3436, 4
        %v3438 = vmax.f32 %v3436, %v3437
        %v3439 = vrot.slane %v3438, 2
        %v3440 = vmax.f32 %v3438, %v3439
        %v3441 = vrot.slane %v3440, 1
        %v3442 = vmax.f32 %v3440, %v3441
        %v3443 = vsel %vm390, %v3303, -inf
        %v3444 = vrot.slane %v3443, 4
        %v3445 = vmax.f32 %v3443, %v3444
        %v3446 = vrot.slane %v3445, 2
        %v3447 = vmax.f32 %v3445, %v3446
        %v3448 = vrot.slane %v3447, 1
        %v3449 = vmax.f32 %v3447, %v3448
        %v3450 = vsel %vm390, %v3304, -inf
        %v3451 = vrot.slane %v3450, 4
        %v3452 = vmax.f32 %v3450, %v3451
        %v3453 = vrot.slane %v3452, 2
        %v3454 = vmax.f32 %v3452, %v3453
        %v3455 = vrot.slane %v3454, 1
        %v3456 = vmax.f32 %v3454, %v3455
        %v3457 = vsel %vm390, %v3305, -inf
        %v3458 = vrot.slane %v3457, 4
        %v3459 = vmax.f32 %v3457, %v3458
        %v3460 = vrot.slane %v3459, 2
        %v3461 = vmax.f32 %v3459, %v3460
        %v3462 = vrot.slane %v3461, 1
        %v3463 = vmax.f32 %v3461, %v3462
        %v3464 = vsel %vm390, %v3306, -inf
        %v3465 = vrot.slane %v3464, 4
        %v3466 = vmax.f32 %v3464, %v3465
        %v3467 = vrot.slane %v3466, 2
        %v3468 = vmax.f32 %v3466, %v3467
        %v3469 = vrot.slane %v3468, 1
        %v3470 = vmax.f32 %v3468, %v3469
        %v3471 = vsel %vm390, %v3307, -inf
        %v3472 = vrot.slane %v3471, 4
        %v3473 = vmax.f32 %v3471, %v3472
        %v3474 = vrot.slane %v3473, 2
        %v3475 = vmax.f32 %v3473, %v3474
        %v3476 = vrot.slane %v3475, 1
        %v3477 = vmax.f32 %v3475, %v3476
        %v3478 = vsel %vm390, %v3308, -inf
        %v3479 = vrot.slane %v3478, 4
        %v3480 = vmax.f32 %v3478, %v3479
        %v3481 = vrot.slane %v3480, 2
        %v3482 = vmax.f32 %v3480, %v3481
        %v3483 = vrot.slane %v3482, 1
        %v3484 = vmax.f32 %v3482, %v3483
        %v3485 = vsel %vm390, %v3309, -inf
        %v3486 = vrot.slane %v3485, 4
        %v3487 = vmax.f32 %v3485, %v3486
        %v3488 = vrot.slane %v3487, 2
        %v3489 = vmax.f32 %v3487, %v3488
        %v3490 = vrot.slane %v3489, 1
        %v3491 = vmax.f32 %v3489, %v3490
        %v3492 = vsel %vm390, %v3310, -inf
        %v3493 = vrot.slane %v3492, 4
        %v3494 = vmax.f32 %v3492, %v3493
        %v3495 = vrot.slane %v3494, 2
        %v3496 = vmax.f32 %v3494, %v3495
        %v3497 = vrot.slane %v3496, 1
        %v3498 = vmax.f32 %v3496, %v3497
        %v3499 = vsel %vm390, %v3311, -inf
        %v3500 = vrot.slane %v3499, 4
        %v3501 = vmax.f32 %v3499, %v3500
        %v3502 = vrot.slane %v3501, 2
        %v3503 = vmax.f32 %v3501, %v3502
        %v3504 = vrot.slane %v3503, 1
        %v3505 = vmax.f32 %v3503, %v3504
        %v3506 = vsel %vm390, %v3312, -inf
        %v3507 = vrot.slane %v3506, 4
        %v3508 = vmax.f32 %v3506, %v3507
        %v3509 = vrot.slane %v3508, 2
        %v3510 = vmax.f32 %v3508, %v3509
        %v3511 = vrot.slane %v3510, 1
        %v3512 = vmax.f32 %v3510, %v3511
        %v3513 = vsel %vm390, %v3313, -inf
        %v3514 = vrot.slane %v3513, 4
        %v3515 = vmax.f32 %v3513, %v3514
        %v3516 = vrot.slane %v3515, 2
        %v3517 = vmax.f32 %v3515, %v3516
        %v3518 = vrot.slane %v3517, 1
        %v3519 = vmax.f32 %v3517, %v3518
        %v3520 = vsel %vm390, %v3314, -inf
        %v3521 = vrot.slane %v3520, 4
        %v3522 = vmax.f32 %v3520, %v3521
        %v3523 = vrot.slane %v3522, 2
        %v3524 = vmax.f32 %v3522, %v3523
        %v3525 = vrot.slane %v3524, 1
        %v3526 = vmax.f32 %v3524, %v3525
        %v3527 = vsel %vm390, %v3315, -inf
        %v3528 = vrot.slane %v3527, 4
        %v3529 = vmax.f32 %v3527, %v3528
        %v3530 = vrot.slane %v3529, 2
        %v3531 = vmax.f32 %v3529, %v3530
        %v3532 = vrot.slane %v3531, 1
        %v3533 = vmax.f32 %v3531, %v3532
        %v3534 = vsel %vm390, %v3316, -inf
        %v3535 = vrot.slane %v3534, 4
        %v3536 = vmax.f32 %v3534, %v3535
        %v3537 = vrot.slane %v3536, 2
        %v3538 = vmax.f32 %v3536, %v3537
        %v3539 = vrot.slane %v3538, 1
        %v3540 = vmax.f32 %v3538, %v3539
        %s3541 = scalar_lea.vmem [#allocation2], 64
        %v3542 = vld [vmem:[%s3541] sm:$0xff]
        %v3543 = vld [vmem:[%s3541 + $0x80] sm:$0xff]
        %v3544 = vld [vmem:[%s3541 + $0x100] sm:$0xff]
        %v3545 = vld [vmem:[%s3541 + $0x180] sm:$0xff]
        %v3578 = vsel %vm651, %v3330, %v3323
        %v3579 = vsel %vm653, %v3337, %v3578
        %v3580 = vsel %vm655, %v3344, %v3579
        %v3581 = vsel %vm657, %v3351, %v3580
        %v3582 = vsel %vm659, %v3358, %v3581
        %v3583 = vsel %vm661, %v3365, %v3582
        %v3584 = vsel %vm663, %v3372, %v3583
        %v3585 = vsel %vm651, %v3386, %v3379
        %v3586 = vsel %vm653, %v3393, %v3585
        %v3587 = vsel %vm655, %v3400, %v3586
        %v3588 = vsel %vm657, %v3407, %v3587
        %v3589 = vsel %vm659, %v3414, %v3588
        %v3590 = vsel %vm661, %v3421, %v3589
        %v3591 = vsel %vm663, %v3428, %v3590
        %v3592 = vsel %vm651, %v3442, %v3435
        %v3593 = vsel %vm653, %v3449, %v3592
        %v3594 = vsel %vm655, %v3456, %v3593
        %v3595 = vsel %vm657, %v3463, %v3594
        %v3596 = vsel %vm659, %v3470, %v3595
        %v3597 = vsel %vm661, %v3477, %v3596
        %v3598 = vsel %vm663, %v3484, %v3597
        %v3599 = vsel %vm651, %v3498, %v3491
        %v3600 = vsel %vm653, %v3505, %v3599
        %v3601 = vsel %vm655, %v3512, %v3600
        %v3602 = vsel %vm657, %v3519, %v3601
        %v3603 = vsel %vm659, %v3526, %v3602
        %v3604 = vsel %vm661, %v3533, %v3603
        %v3605 = vsel %vm663, %v3540, %v3604
        %v3610 = vmax.f32 %v3542, %v3584
        %v3611 = vmax.f32 %v3543, %v3591
        %v3612 = vmax.f32 %v3544, %v3598
        %v3613 = vmax.f32 %v3545, %v3605
        %3614 = vst.msk [vmem:[%s3541] sm:$0xff] %vm390, %v3610
        %3615 = vst.msk [vmem:[%s3541 + $0x80] sm:$0xff] %vm390, %v3611
        %3616 = vst.msk [vmem:[%s3541 + $0x100] sm:$0xff] %vm390, %v3612
        %3617 = vst.msk [vmem:[%s3541 + $0x180] sm:$0xff] %vm390, %v3613
        %v3618 = vstv 72
        %v3619 = vadd.s32 %v3618, 1
        %v3620 = vadd.s32 %v3618, 2
        %v3621 = vadd.s32 %v3618, 3
        %v3622 = vadd.s32 %v3618, 4
        %v3623 = vadd.s32 %v3618, 5
        %v3624 = vadd.s32 %v3618, 6
        %v3625 = vadd.s32 %v3618, 7
        %vm3626 = vcmp.eq.s32.totalorder %v325, %v3618
        %vm3627 = vcmp.eq.s32.totalorder %v325, %v3619
        %vm3628 = vcmp.eq.s32.totalorder %v325, %v3620
        %vm3629 = vcmp.eq.s32.totalorder %v325, %v3621
        %vm3630 = vcmp.eq.s32.totalorder %v325, %v3622
        %vm3631 = vcmp.eq.s32.totalorder %v325, %v3623
        %vm3632 = vcmp.eq.s32.totalorder %v325, %v3624
        %vm3633 = vcmp.eq.s32.totalorder %v325, %v3625
        %v3634 = vsel %vm3626, 1, 0
        %v3635 = vsel %vm3627, 1, 0
        %v3636 = vsel %vm3628, 1, 0
        %v3637 = vsel %vm3629, 1, 0
        %v3638 = vsel %vm3630, 1, 0
        %v3639 = vsel %vm3631, 1, 0
        %v3640 = vsel %vm3632, 1, 0
        %v3641 = vsel %vm3633, 1, 0
        %vm3642 = vcmp.eq.s32.totalorder %v3634, 1
        %vm3643 = vcmp.eq.s32.totalorder %v3635, 1
        %vm3644 = vcmp.eq.s32.totalorder %v3636, 1
        %vm3645 = vcmp.eq.s32.totalorder %v3637, 1
        %vm3646 = vcmp.eq.s32.totalorder %v3638, 1
        %vm3647 = vcmp.eq.s32.totalorder %v3639, 1
        %vm3648 = vcmp.eq.s32.totalorder %v3640, 1
        %vm3649 = vcmp.eq.s32.totalorder %v3641, 1
        %v3650 = vsel %vm3642, %v306, -inf
        %v3651 = vsel %vm3643, %v306, -inf
        %v3652 = vsel %vm3644, %v306, -inf
        %v3653 = vsel %vm3645, %v306, -inf
        %v3654 = vsel %vm3646, %v306, -inf
        %v3655 = vsel %vm3647, %v306, -inf
        %v3656 = vsel %vm3648, %v306, -inf
        %v3657 = vsel %vm3649, %v306, -inf
        %v3658 = vsel %vm3642, %v307, -inf
        %v3659 = vsel %vm3643, %v307, -inf
        %v3660 = vsel %vm3644, %v307, -inf
        %v3661 = vsel %vm3645, %v307, -inf
        %v3662 = vsel %vm3646, %v307, -inf
        %v3663 = vsel %vm3647, %v307, -inf
        %v3664 = vsel %vm3648, %v307, -inf
        %v3665 = vsel %vm3649, %v307, -inf
        %v3666 = vsel %vm3642, %v308, -inf
        %v3667 = vsel %vm3643, %v308, -inf
        %v3668 = vsel %vm3644, %v308, -inf
        %v3669 = vsel %vm3645, %v308, -inf
        %v3670 = vsel %vm3646, %v308, -inf
        %v3671 = vsel %vm3647, %v308, -inf
        %v3672 = vsel %vm3648, %v308, -inf
        %v3673 = vsel %vm3649, %v308, -inf
        %v3674 = vsel %vm3642, %v309, -inf
        %v3675 = vsel %vm3643, %v309, -inf
        %v3676 = vsel %vm3644, %v309, -inf
        %v3677 = vsel %vm3645, %v309, -inf
        %v3678 = vsel %vm3646, %v309, -inf
        %v3679 = vsel %vm3647, %v309, -inf
        %v3680 = vsel %vm3648, %v309, -inf
        %v3681 = vsel %vm3649, %v309, -inf
        %v3682 = vsel %vm390, %v3650, -inf
        %v3683 = vrot.slane %v3682, 4
        %v3684 = vmax.f32 %v3682, %v3683
        %v3685 = vrot.slane %v3684, 2
        %v3686 = vmax.f32 %v3684, %v3685
        %v3687 = vrot.slane %v3686, 1
        %v3688 = vmax.f32 %v3686, %v3687
        %v3689 = vsel %vm390, %v3651, -inf
        %v3690 = vrot.slane %v3689, 4
        %v3691 = vmax.f32 %v3689, %v3690
        %v3692 = vrot.slane %v3691, 2
        %v3693 = vmax.f32 %v3691, %v3692
        %v3694 = vrot.slane %v3693, 1
        %v3695 = vmax.f32 %v3693, %v3694
        %v3696 = vsel %vm390, %v3652, -inf
        %v3697 = vrot.slane %v3696, 4
        %v3698 = vmax.f32 %v3696, %v3697
        %v3699 = vrot.slane %v3698, 2
        %v3700 = vmax.f32 %v3698, %v3699
        %v3701 = vrot.slane %v3700, 1
        %v3702 = vmax.f32 %v3700, %v3701
        %v3703 = vsel %vm390, %v3653, -inf
        %v3704 = vrot.slane %v3703, 4
        %v3705 = vmax.f32 %v3703, %v3704
        %v3706 = vrot.slane %v3705, 2
        %v3707 = vmax.f32 %v3705, %v3706
        %v3708 = vrot.slane %v3707, 1
        %v3709 = vmax.f32 %v3707, %v3708
        %v3710 = vsel %vm390, %v3654, -inf
        %v3711 = vrot.slane %v3710, 4
        %v3712 = vmax.f32 %v3710, %v3711
        %v3713 = vrot.slane %v3712, 2
        %v3714 = vmax.f32 %v3712, %v3713
        %v3715 = vrot.slane %v3714, 1
        %v3716 = vmax.f32 %v3714, %v3715
        %v3717 = vsel %vm390, %v3655, -inf
        %v3718 = vrot.slane %v3717, 4
        %v3719 = vmax.f32 %v3717, %v3718
        %v3720 = vrot.slane %v3719, 2
        %v3721 = vmax.f32 %v3719, %v3720
        %v3722 = vrot.slane %v3721, 1
        %v3723 = vmax.f32 %v3721, %v3722
        %v3724 = vsel %vm390, %v3656, -inf
        %v3725 = vrot.slane %v3724, 4
        %v3726 = vmax.f32 %v3724, %v3725
        %v3727 = vrot.slane %v3726, 2
        %v3728 = vmax.f32 %v3726, %v3727
        %v3729 = vrot.slane %v3728, 1
        %v3730 = vmax.f32 %v3728, %v3729
        %v3731 = vsel %vm390, %v3657, -inf
        %v3732 = vrot.slane %v3731, 4
        %v3733 = vmax.f32 %v3731, %v3732
        %v3734 = vrot.slane %v3733, 2
        %v3735 = vmax.f32 %v3733, %v3734
        %v3736 = vrot.slane %v3735, 1
        %v3737 = vmax.f32 %v3735, %v3736
        %v3738 = vsel %vm390, %v3658, -inf
        %v3739 = vrot.slane %v3738, 4
        %v3740 = vmax.f32 %v3738, %v3739
        %v3741 = vrot.slane %v3740, 2
        %v3742 = vmax.f32 %v3740, %v3741
        %v3743 = vrot.slane %v3742, 1
        %v3744 = vmax.f32 %v3742, %v3743
        %v3745 = vsel %vm390, %v3659, -inf
        %v3746 = vrot.slane %v3745, 4
        %v3747 = vmax.f32 %v3745, %v3746
        %v3748 = vrot.slane %v3747, 2
        %v3749 = vmax.f32 %v3747, %v3748
        %v3750 = vrot.slane %v3749, 1
        %v3751 = vmax.f32 %v3749, %v3750
        %v3752 = vsel %vm390, %v3660, -inf
        %v3753 = vrot.slane %v3752, 4
        %v3754 = vmax.f32 %v3752, %v3753
        %v3755 = vrot.slane %v3754, 2
        %v3756 = vmax.f32 %v3754, %v3755
        %v3757 = vrot.slane %v3756, 1
        %v3758 = vmax.f32 %v3756, %v3757
        %v3759 = vsel %vm390, %v3661, -inf
        %v3760 = vrot.slane %v3759, 4
        %v3761 = vmax.f32 %v3759, %v3760
        %v3762 = vrot.slane %v3761, 2
        %v3763 = vmax.f32 %v3761, %v3762
        %v3764 = vrot.slane %v3763, 1
        %v3765 = vmax.f32 %v3763, %v3764
        %v3766 = vsel %vm390, %v3662, -inf
        %v3767 = vrot.slane %v3766, 4
        %v3768 = vmax.f32 %v3766, %v3767
        %v3769 = vrot.slane %v3768, 2
        %v3770 = vmax.f32 %v3768, %v3769
        %v3771 = vrot.slane %v3770, 1
        %v3772 = vmax.f32 %v3770, %v3771
        %v3773 = vsel %vm390, %v3663, -inf
        %v3774 = vrot.slane %v3773, 4
        %v3775 = vmax.f32 %v3773, %v3774
        %v3776 = vrot.slane %v3775, 2
        %v3777 = vmax.f32 %v3775, %v3776
        %v3778 = vrot.slane %v3777, 1
        %v3779 = vmax.f32 %v3777, %v3778
        %v3780 = vsel %vm390, %v3664, -inf
        %v3781 = vrot.slane %v3780, 4
        %v3782 = vmax.f32 %v3780, %v3781
        %v3783 = vrot.slane %v3782, 2
        %v3784 = vmax.f32 %v3782, %v3783
        %v3785 = vrot.slane %v3784, 1
        %v3786 = vmax.f32 %v3784, %v3785
        %v3787 = vsel %vm390, %v3665, -inf
        %v3788 = vrot.slane %v3787, 4
        %v3789 = vmax.f32 %v3787, %v3788
        %v3790 = vrot.slane %v3789, 2
        %v3791 = vmax.f32 %v3789, %v3790
        %v3792 = vrot.slane %v3791, 1
        %v3793 = vmax.f32 %v3791, %v3792
        %v3794 = vsel %vm390, %v3666, -inf
        %v3795 = vrot.slane %v3794, 4
        %v3796 = vmax.f32 %v3794, %v3795
        %v3797 = vrot.slane %v3796, 2
        %v3798 = vmax.f32 %v3796, %v3797
        %v3799 = vrot.slane %v3798, 1
        %v3800 = vmax.f32 %v3798, %v3799
        %v3801 = vsel %vm390, %v3667, -inf
        %v3802 = vrot.slane %v3801, 4
        %v3803 = vmax.f32 %v3801, %v3802
        %v3804 = vrot.slane %v3803, 2
        %v3805 = vmax.f32 %v3803, %v3804
        %v3806 = vrot.slane %v3805, 1
        %v3807 = vmax.f32 %v3805, %v3806
        %v3808 = vsel %vm390, %v3668, -inf
        %v3809 = vrot.slane %v3808, 4
        %v3810 = vmax.f32 %v3808, %v3809
        %v3811 = vrot.slane %v3810, 2
        %v3812 = vmax.f32 %v3810, %v3811
        %v3813 = vrot.slane %v3812, 1
        %v3814 = vmax.f32 %v3812, %v3813
        %v3815 = vsel %vm390, %v3669, -inf
        %v3816 = vrot.slane %v3815, 4
        %v3817 = vmax.f32 %v3815, %v3816
        %v3818 = vrot.slane %v3817, 2
        %v3819 = vmax.f32 %v3817, %v3818
        %v3820 = vrot.slane %v3819, 1
        %v3821 = vmax.f32 %v3819, %v3820
        %v3822 = vsel %vm390, %v3670, -inf
        %v3823 = vrot.slane %v3822, 4
        %v3824 = vmax.f32 %v3822, %v3823
        %v3825 = vrot.slane %v3824, 2
        %v3826 = vmax.f32 %v3824, %v3825
        %v3827 = vrot.slane %v3826, 1
        %v3828 = vmax.f32 %v3826, %v3827
        %v3829 = vsel %vm390, %v3671, -inf
        %v3830 = vrot.slane %v3829, 4
        %v3831 = vmax.f32 %v3829, %v3830
        %v3832 = vrot.slane %v3831, 2
        %v3833 = vmax.f32 %v3831, %v3832
        %v3834 = vrot.slane %v3833, 1
        %v3835 = vmax.f32 %v3833, %v3834
        %v3836 = vsel %vm390, %v3672, -inf
        %v3837 = vrot.slane %v3836, 4
        %v3838 = vmax.f32 %v3836, %v3837
        %v3839 = vrot.slane %v3838, 2
        %v3840 = vmax.f32 %v3838, %v3839
        %v3841 = vrot.slane %v3840, 1
        %v3842 = vmax.f32 %v3840, %v3841
        %v3843 = vsel %vm390, %v3673, -inf
        %v3844 = vrot.slane %v3843, 4
        %v3845 = vmax.f32 %v3843, %v3844
        %v3846 = vrot.slane %v3845, 2
        %v3847 = vmax.f32 %v3845, %v3846
        %v3848 = vrot.slane %v3847, 1
        %v3849 = vmax.f32 %v3847, %v3848
        %v3850 = vsel %vm390, %v3674, -inf
        %v3851 = vrot.slane %v3850, 4
        %v3852 = vmax.f32 %v3850, %v3851
        %v3853 = vrot.slane %v3852, 2
        %v3854 = vmax.f32 %v3852, %v3853
        %v3855 = vrot.slane %v3854, 1
        %v3856 = vmax.f32 %v3854, %v3855
        %v3857 = vsel %vm390, %v3675, -inf
        %v3858 = vrot.slane %v3857, 4
        %v3859 = vmax.f32 %v3857, %v3858
        %v3860 = vrot.slane %v3859, 2
        %v3861 = vmax.f32 %v3859, %v3860
        %v3862 = vrot.slane %v3861, 1
        %v3863 = vmax.f32 %v3861, %v3862
        %v3864 = vsel %vm390, %v3676, -inf
        %v3865 = vrot.slane %v3864, 4
        %v3866 = vmax.f32 %v3864, %v3865
        %v3867 = vrot.slane %v3866, 2
        %v3868 = vmax.f32 %v3866, %v3867
        %v3869 = vrot.slane %v3868, 1
        %v3870 = vmax.f32 %v3868, %v3869
        %v3871 = vsel %vm390, %v3677, -inf
        %v3872 = vrot.slane %v3871, 4
        %v3873 = vmax.f32 %v3871, %v3872
        %v3874 = vrot.slane %v3873, 2
        %v3875 = vmax.f32 %v3873, %v3874
        %v3876 = vrot.slane %v3875, 1
        %v3877 = vmax.f32 %v3875, %v3876
        %v3878 = vsel %vm390, %v3678, -inf
        %v3879 = vrot.slane %v3878, 4
        %v3880 = vmax.f32 %v3878, %v3879
        %v3881 = vrot.slane %v3880, 2
        %v3882 = vmax.f32 %v3880, %v3881
        %v3883 = vrot.slane %v3882, 1
        %v3884 = vmax.f32 %v3882, %v3883
        %v3885 = vsel %vm390, %v3679, -inf
        %v3886 = vrot.slane %v3885, 4
        %v3887 = vmax.f32 %v3885, %v3886
        %v3888 = vrot.slane %v3887, 2
        %v3889 = vmax.f32 %v3887, %v3888
        %v3890 = vrot.slane %v3889, 1
        %v3891 = vmax.f32 %v3889, %v3890
        %v3892 = vsel %vm390, %v3680, -inf
        %v3893 = vrot.slane %v3892, 4
        %v3894 = vmax.f32 %v3892, %v3893
        %v3895 = vrot.slane %v3894, 2
        %v3896 = vmax.f32 %v3894, %v3895
        %v3897 = vrot.slane %v3896, 1
        %v3898 = vmax.f32 %v3896, %v3897
        %v3899 = vsel %vm390, %v3681, -inf
        %v3900 = vrot.slane %v3899, 4
        %v3901 = vmax.f32 %v3899, %v3900
        %v3902 = vrot.slane %v3901, 2
        %v3903 = vmax.f32 %v3901, %v3902
        %v3904 = vrot.slane %v3903, 1
        %v3905 = vmax.f32 %v3903, %v3904
        %s3906 = scalar_lea.vmem [#allocation2], 72
        %v3907 = vld [vmem:[%s3906] sm:$0xff]
        %v3908 = vld [vmem:[%s3906 + $0x80] sm:$0xff]
        %v3909 = vld [vmem:[%s3906 + $0x100] sm:$0xff]
        %v3910 = vld [vmem:[%s3906 + $0x180] sm:$0xff]
        %v3943 = vsel %vm651, %v3695, %v3688
        %v3944 = vsel %vm653, %v3702, %v3943
        %v3945 = vsel %vm655, %v3709, %v3944
        %v3946 = vsel %vm657, %v3716, %v3945
        %v3947 = vsel %vm659, %v3723, %v3946
        %v3948 = vsel %vm661, %v3730, %v3947
        %v3949 = vsel %vm663, %v3737, %v3948
        %v3950 = vsel %vm651, %v3751, %v3744
        %v3951 = vsel %vm653, %v3758, %v3950
        %v3952 = vsel %vm655, %v3765, %v3951
        %v3953 = vsel %vm657, %v3772, %v3952
        %v3954 = vsel %vm659, %v3779, %v3953
        %v3955 = vsel %vm661, %v3786, %v3954
        %v3956 = vsel %vm663, %v3793, %v3955
        %v3957 = vsel %vm651, %v3807, %v3800
        %v3958 = vsel %vm653, %v3814, %v3957
        %v3959 = vsel %vm655, %v3821, %v3958
        %v3960 = vsel %vm657, %v3828, %v3959
        %v3961 = vsel %vm659, %v3835, %v3960
        %v3962 = vsel %vm661, %v3842, %v3961
        %v3963 = vsel %vm663, %v3849, %v3962
        %v3964 = vsel %vm651, %v3863, %v3856
        %v3965 = vsel %vm653, %v3870, %v3964
        %v3966 = vsel %vm655, %v3877, %v3965
        %v3967 = vsel %vm657, %v3884, %v3966
        %v3968 = vsel %vm659, %v3891, %v3967
        %v3969 = vsel %vm661, %v3898, %v3968
        %v3970 = vsel %vm663, %v3905, %v3969
        %v3975 = vmax.f32 %v3907, %v3949
        %v3976 = vmax.f32 %v3908, %v3956
        %v3977 = vmax.f32 %v3909, %v3963
        %v3978 = vmax.f32 %v3910, %v3970
        %3979 = vst.msk [vmem:[%s3906] sm:$0xff] %vm390, %v3975
        %3980 = vst.msk [vmem:[%s3906 + $0x80] sm:$0xff] %vm390, %v3976
        %3981 = vst.msk [vmem:[%s3906 + $0x100] sm:$0xff] %vm390, %v3977
        %3982 = vst.msk [vmem:[%s3906 + $0x180] sm:$0xff] %vm390, %v3978
        %v3983 = vstv 80
        %v3984 = vadd.s32 %v3983, 1
        %v3985 = vadd.s32 %v3983, 2
        %v3986 = vadd.s32 %v3983, 3
        %v3987 = vadd.s32 %v3983, 4
        %v3988 = vadd.s32 %v3983, 5
        %v3989 = vadd.s32 %v3983, 6
        %v3990 = vadd.s32 %v3983, 7
        %vm3991 = vcmp.eq.s32.totalorder %v325, %v3983
        %vm3992 = vcmp.eq.s32.totalorder %v325, %v3984
        %vm3993 = vcmp.eq.s32.totalorder %v325, %v3985
        %vm3994 = vcmp.eq.s32.totalorder %v325, %v3986
        %vm3995 = vcmp.eq.s32.totalorder %v325, %v3987
        %vm3996 = vcmp.eq.s32.totalorder %v325, %v3988
        %vm3997 = vcmp.eq.s32.totalorder %v325, %v3989
        %vm3998 = vcmp.eq.s32.totalorder %v325, %v3990
        %v3999 = vsel %vm3991, 1, 0
        %v4000 = vsel %vm3992, 1, 0
        %v4001 = vsel %vm3993, 1, 0
        %v4002 = vsel %vm3994, 1, 0
        %v4003 = vsel %vm3995, 1, 0
        %v4004 = vsel %vm3996, 1, 0
        %v4005 = vsel %vm3997, 1, 0
        %v4006 = vsel %vm3998, 1, 0
        %vm4007 = vcmp.eq.s32.totalorder %v3999, 1
        %vm4008 = vcmp.eq.s32.totalorder %v4000, 1
        %vm4009 = vcmp.eq.s32.totalorder %v4001, 1
        %vm4010 = vcmp.eq.s32.totalorder %v4002, 1
        %vm4011 = vcmp.eq.s32.totalorder %v4003, 1
        %vm4012 = vcmp.eq.s32.totalorder %v4004, 1
        %vm4013 = vcmp.eq.s32.totalorder %v4005, 1
        %vm4014 = vcmp.eq.s32.totalorder %v4006, 1
        %v4015 = vsel %vm4007, %v306, -inf
        %v4016 = vsel %vm4008, %v306, -inf
        %v4017 = vsel %vm4009, %v306, -inf
        %v4018 = vsel %vm4010, %v306, -inf
        %v4019 = vsel %vm4011, %v306, -inf
        %v4020 = vsel %vm4012, %v306, -inf
        %v4021 = vsel %vm4013, %v306, -inf
        %v4022 = vsel %vm4014, %v306, -inf
        %v4023 = vsel %vm4007, %v307, -inf
        %v4024 = vsel %vm4008, %v307, -inf
        %v4025 = vsel %vm4009, %v307, -inf
        %v4026 = vsel %vm4010, %v307, -inf
        %v4027 = vsel %vm4011, %v307, -inf
        %v4028 = vsel %vm4012, %v307, -inf
        %v4029 = vsel %vm4013, %v307, -inf
        %v4030 = vsel %vm4014, %v307, -inf
        %v4031 = vsel %vm4007, %v308, -inf
        %v4032 = vsel %vm4008, %v308, -inf
        %v4033 = vsel %vm4009, %v308, -inf
        %v4034 = vsel %vm4010, %v308, -inf
        %v4035 = vsel %vm4011, %v308, -inf
        %v4036 = vsel %vm4012, %v308, -inf
        %v4037 = vsel %vm4013, %v308, -inf
        %v4038 = vsel %vm4014, %v308, -inf
        %v4039 = vsel %vm4007, %v309, -inf
        %v4040 = vsel %vm4008, %v309, -inf
        %v4041 = vsel %vm4009, %v309, -inf
        %v4042 = vsel %vm4010, %v309, -inf
        %v4043 = vsel %vm4011, %v309, -inf
        %v4044 = vsel %vm4012, %v309, -inf
        %v4045 = vsel %vm4013, %v309, -inf
        %v4046 = vsel %vm4014, %v309, -inf
        %v4047 = vsel %vm390, %v4015, -inf
        %v4048 = vrot.slane %v4047, 4
        %v4049 = vmax.f32 %v4047, %v4048
        %v4050 = vrot.slane %v4049, 2
        %v4051 = vmax.f32 %v4049, %v4050
        %v4052 = vrot.slane %v4051, 1
        %v4053 = vmax.f32 %v4051, %v4052
        %v4054 = vsel %vm390, %v4016, -inf
        %v4055 = vrot.slane %v4054, 4
        %v4056 = vmax.f32 %v4054, %v4055
        %v4057 = vrot.slane %v4056, 2
        %v4058 = vmax.f32 %v4056, %v4057
        %v4059 = vrot.slane %v4058, 1
        %v4060 = vmax.f32 %v4058, %v4059
        %v4061 = vsel %vm390, %v4017, -inf
        %v4062 = vrot.slane %v4061, 4
        %v4063 = vmax.f32 %v4061, %v4062
        %v4064 = vrot.slane %v4063, 2
        %v4065 = vmax.f32 %v4063, %v4064
        %v4066 = vrot.slane %v4065, 1
        %v4067 = vmax.f32 %v4065, %v4066
        %v4068 = vsel %vm390, %v4018, -inf
        %v4069 = vrot.slane %v4068, 4
        %v4070 = vmax.f32 %v4068, %v4069
        %v4071 = vrot.slane %v4070, 2
        %v4072 = vmax.f32 %v4070, %v4071
        %v4073 = vrot.slane %v4072, 1
        %v4074 = vmax.f32 %v4072, %v4073
        %v4075 = vsel %vm390, %v4019, -inf
        %v4076 = vrot.slane %v4075, 4
        %v4077 = vmax.f32 %v4075, %v4076
        %v4078 = vrot.slane %v4077, 2
        %v4079 = vmax.f32 %v4077, %v4078
        %v4080 = vrot.slane %v4079, 1
        %v4081 = vmax.f32 %v4079, %v4080
        %v4082 = vsel %vm390, %v4020, -inf
        %v4083 = vrot.slane %v4082, 4
        %v4084 = vmax.f32 %v4082, %v4083
        %v4085 = vrot.slane %v4084, 2
        %v4086 = vmax.f32 %v4084, %v4085
        %v4087 = vrot.slane %v4086, 1
        %v4088 = vmax.f32 %v4086, %v4087
        %v4089 = vsel %vm390, %v4021, -inf
        %v4090 = vrot.slane %v4089, 4
        %v4091 = vmax.f32 %v4089, %v4090
        %v4092 = vrot.slane %v4091, 2
        %v4093 = vmax.f32 %v4091, %v4092
        %v4094 = vrot.slane %v4093, 1
        %v4095 = vmax.f32 %v4093, %v4094
        %v4096 = vsel %vm390, %v4022, -inf
        %v4097 = vrot.slane %v4096, 4
        %v4098 = vmax.f32 %v4096, %v4097
        %v4099 = vrot.slane %v4098, 2
        %v4100 = vmax.f32 %v4098, %v4099
        %v4101 = vrot.slane %v4100, 1
        %v4102 = vmax.f32 %v4100, %v4101
        %v4103 = vsel %vm390, %v4023, -inf
        %v4104 = vrot.slane %v4103, 4
        %v4105 = vmax.f32 %v4103, %v4104
        %v4106 = vrot.slane %v4105, 2
        %v4107 = vmax.f32 %v4105, %v4106
        %v4108 = vrot.slane %v4107, 1
        %v4109 = vmax.f32 %v4107, %v4108
        %v4110 = vsel %vm390, %v4024, -inf
        %v4111 = vrot.slane %v4110, 4
        %v4112 = vmax.f32 %v4110, %v4111
        %v4113 = vrot.slane %v4112, 2
        %v4114 = vmax.f32 %v4112, %v4113
        %v4115 = vrot.slane %v4114, 1
        %v4116 = vmax.f32 %v4114, %v4115
        %v4117 = vsel %vm390, %v4025, -inf
        %v4118 = vrot.slane %v4117, 4
        %v4119 = vmax.f32 %v4117, %v4118
        %v4120 = vrot.slane %v4119, 2
        %v4121 = vmax.f32 %v4119, %v4120
        %v4122 = vrot.slane %v4121, 1
        %v4123 = vmax.f32 %v4121, %v4122
        %v4124 = vsel %vm390, %v4026, -inf
        %v4125 = vrot.slane %v4124, 4
        %v4126 = vmax.f32 %v4124, %v4125
        %v4127 = vrot.slane %v4126, 2
        %v4128 = vmax.f32 %v4126, %v4127
        %v4129 = vrot.slane %v4128, 1
        %v4130 = vmax.f32 %v4128, %v4129
        %v4131 = vsel %vm390, %v4027, -inf
        %v4132 = vrot.slane %v4131, 4
        %v4133 = vmax.f32 %v4131, %v4132
        %v4134 = vrot.slane %v4133, 2
        %v4135 = vmax.f32 %v4133, %v4134
        %v4136 = vrot.slane %v4135, 1
        %v4137 = vmax.f32 %v4135, %v4136
        %v4138 = vsel %vm390, %v4028, -inf
        %v4139 = vrot.slane %v4138, 4
        %v4140 = vmax.f32 %v4138, %v4139
        %v4141 = vrot.slane %v4140, 2
        %v4142 = vmax.f32 %v4140, %v4141
        %v4143 = vrot.slane %v4142, 1
        %v4144 = vmax.f32 %v4142, %v4143
        %v4145 = vsel %vm390, %v4029, -inf
        %v4146 = vrot.slane %v4145, 4
        %v4147 = vmax.f32 %v4145, %v4146
        %v4148 = vrot.slane %v4147, 2
        %v4149 = vmax.f32 %v4147, %v4148
        %v4150 = vrot.slane %v4149, 1
        %v4151 = vmax.f32 %v4149, %v4150
        %v4152 = vsel %vm390, %v4030, -inf
        %v4153 = vrot.slane %v4152, 4
        %v4154 = vmax.f32 %v4152, %v4153
        %v4155 = vrot.slane %v4154, 2
        %v4156 = vmax.f32 %v4154, %v4155
        %v4157 = vrot.slane %v4156, 1
        %v4158 = vmax.f32 %v4156, %v4157
        %v4159 = vsel %vm390, %v4031, -inf
        %v4160 = vrot.slane %v4159, 4
        %v4161 = vmax.f32 %v4159, %v4160
        %v4162 = vrot.slane %v4161, 2
        %v4163 = vmax.f32 %v4161, %v4162
        %v4164 = vrot.slane %v4163, 1
        %v4165 = vmax.f32 %v4163, %v4164
        %v4166 = vsel %vm390, %v4032, -inf
        %v4167 = vrot.slane %v4166, 4
        %v4168 = vmax.f32 %v4166, %v4167
        %v4169 = vrot.slane %v4168, 2
        %v4170 = vmax.f32 %v4168, %v4169
        %v4171 = vrot.slane %v4170, 1
        %v4172 = vmax.f32 %v4170, %v4171
        %v4173 = vsel %vm390, %v4033, -inf
        %v4174 = vrot.slane %v4173, 4
        %v4175 = vmax.f32 %v4173, %v4174
        %v4176 = vrot.slane %v4175, 2
        %v4177 = vmax.f32 %v4175, %v4176
        %v4178 = vrot.slane %v4177, 1
        %v4179 = vmax.f32 %v4177, %v4178
        %v4180 = vsel %vm390, %v4034, -inf
        %v4181 = vrot.slane %v4180, 4
        %v4182 = vmax.f32 %v4180, %v4181
        %v4183 = vrot.slane %v4182, 2
        %v4184 = vmax.f32 %v4182, %v4183
        %v4185 = vrot.slane %v4184, 1
        %v4186 = vmax.f32 %v4184, %v4185
        %v4187 = vsel %vm390, %v4035, -inf
        %v4188 = vrot.slane %v4187, 4
        %v4189 = vmax.f32 %v4187, %v4188
        %v4190 = vrot.slane %v4189, 2
        %v4191 = vmax.f32 %v4189, %v4190
        %v4192 = vrot.slane %v4191, 1
        %v4193 = vmax.f32 %v4191, %v4192
        %v4194 = vsel %vm390, %v4036, -inf
        %v4195 = vrot.slane %v4194, 4
        %v4196 = vmax.f32 %v4194, %v4195
        %v4197 = vrot.slane %v4196, 2
        %v4198 = vmax.f32 %v4196, %v4197
        %v4199 = vrot.slane %v4198, 1
        %v4200 = vmax.f32 %v4198, %v4199
        %v4201 = vsel %vm390, %v4037, -inf
        %v4202 = vrot.slane %v4201, 4
        %v4203 = vmax.f32 %v4201, %v4202
        %v4204 = vrot.slane %v4203, 2
        %v4205 = vmax.f32 %v4203, %v4204
        %v4206 = vrot.slane %v4205, 1
        %v4207 = vmax.f32 %v4205, %v4206
        %v4208 = vsel %vm390, %v4038, -inf
        %v4209 = vrot.slane %v4208, 4
        %v4210 = vmax.f32 %v4208, %v4209
        %v4211 = vrot.slane %v4210, 2
        %v4212 = vmax.f32 %v4210, %v4211
        %v4213 = vrot.slane %v4212, 1
        %v4214 = vmax.f32 %v4212, %v4213
        %v4215 = vsel %vm390, %v4039, -inf
        %v4216 = vrot.slane %v4215, 4
        %v4217 = vmax.f32 %v4215, %v4216
        %v4218 = vrot.slane %v4217, 2
        %v4219 = vmax.f32 %v4217, %v4218
        %v4220 = vrot.slane %v4219, 1
        %v4221 = vmax.f32 %v4219, %v4220
        %v4222 = vsel %vm390, %v4040, -inf
        %v4223 = vrot.slane %v4222, 4
        %v4224 = vmax.f32 %v4222, %v4223
        %v4225 = vrot.slane %v4224, 2
        %v4226 = vmax.f32 %v4224, %v4225
        %v4227 = vrot.slane %v4226, 1
        %v4228 = vmax.f32 %v4226, %v4227
        %v4229 = vsel %vm390, %v4041, -inf
        %v4230 = vrot.slane %v4229, 4
        %v4231 = vmax.f32 %v4229, %v4230
        %v4232 = vrot.slane %v4231, 2
        %v4233 = vmax.f32 %v4231, %v4232
        %v4234 = vrot.slane %v4233, 1
        %v4235 = vmax.f32 %v4233, %v4234
        %v4236 = vsel %vm390, %v4042, -inf
        %v4237 = vrot.slane %v4236, 4
        %v4238 = vmax.f32 %v4236, %v4237
        %v4239 = vrot.slane %v4238, 2
        %v4240 = vmax.f32 %v4238, %v4239
        %v4241 = vrot.slane %v4240, 1
        %v4242 = vmax.f32 %v4240, %v4241
        %v4243 = vsel %vm390, %v4043, -inf
        %v4244 = vrot.slane %v4243, 4
        %v4245 = vmax.f32 %v4243, %v4244
        %v4246 = vrot.slane %v4245, 2
        %v4247 = vmax.f32 %v4245, %v4246
        %v4248 = vrot.slane %v4247, 1
        %v4249 = vmax.f32 %v4247, %v4248
        %v4250 = vsel %vm390, %v4044, -inf
        %v4251 = vrot.slane %v4250, 4
        %v4252 = vmax.f32 %v4250, %v4251
        %v4253 = vrot.slane %v4252, 2
        %v4254 = vmax.f32 %v4252, %v4253
        %v4255 = vrot.slane %v4254, 1
        %v4256 = vmax.f32 %v4254, %v4255
        %v4257 = vsel %vm390, %v4045, -inf
        %v4258 = vrot.slane %v4257, 4
        %v4259 = vmax.f32 %v4257, %v4258
        %v4260 = vrot.slane %v4259, 2
        %v4261 = vmax.f32 %v4259, %v4260
        %v4262 = vrot.slane %v4261, 1
        %v4263 = vmax.f32 %v4261, %v4262
        %v4264 = vsel %vm390, %v4046, -inf
        %v4265 = vrot.slane %v4264, 4
        %v4266 = vmax.f32 %v4264, %v4265
        %v4267 = vrot.slane %v4266, 2
        %v4268 = vmax.f32 %v4266, %v4267
        %v4269 = vrot.slane %v4268, 1
        %v4270 = vmax.f32 %v4268, %v4269
        %s4271 = scalar_lea.vmem [#allocation2], 80
        %v4272 = vld [vmem:[%s4271] sm:$0xff]
        %v4273 = vld [vmem:[%s4271 + $0x80] sm:$0xff]
        %v4274 = vld [vmem:[%s4271 + $0x100] sm:$0xff]
        %v4275 = vld [vmem:[%s4271 + $0x180] sm:$0xff]
        %v4308 = vsel %vm651, %v4060, %v4053
        %v4309 = vsel %vm653, %v4067, %v4308
        %v4310 = vsel %vm655, %v4074, %v4309
        %v4311 = vsel %vm657, %v4081, %v4310
        %v4312 = vsel %vm659, %v4088, %v4311
        %v4313 = vsel %vm661, %v4095, %v4312
        %v4314 = vsel %vm663, %v4102, %v4313
        %v4315 = vsel %vm651, %v4116, %v4109
        %v4316 = vsel %vm653, %v4123, %v4315
        %v4317 = vsel %vm655, %v4130, %v4316
        %v4318 = vsel %vm657, %v4137, %v4317
        %v4319 = vsel %vm659, %v4144, %v4318
        %v4320 = vsel %vm661, %v4151, %v4319
        %v4321 = vsel %vm663, %v4158, %v4320
        %v4322 = vsel %vm651, %v4172, %v4165
        %v4323 = vsel %vm653, %v4179, %v4322
        %v4324 = vsel %vm655, %v4186, %v4323
        %v4325 = vsel %vm657, %v4193, %v4324
        %v4326 = vsel %vm659, %v4200, %v4325
        %v4327 = vsel %vm661, %v4207, %v4326
        %v4328 = vsel %vm663, %v4214, %v4327
        %v4329 = vsel %vm651, %v4228, %v4221
        %v4330 = vsel %vm653, %v4235, %v4329
        %v4331 = vsel %vm655, %v4242, %v4330
        %v4332 = vsel %vm657, %v4249, %v4331
        %v4333 = vsel %vm659, %v4256, %v4332
        %v4334 = vsel %vm661, %v4263, %v4333
        %v4335 = vsel %vm663, %v4270, %v4334
        %v4340 = vmax.f32 %v4272, %v4314
        %v4341 = vmax.f32 %v4273, %v4321
        %v4342 = vmax.f32 %v4274, %v4328
        %v4343 = vmax.f32 %v4275, %v4335
        %4344 = vst.msk [vmem:[%s4271] sm:$0xff] %vm390, %v4340
        %4345 = vst.msk [vmem:[%s4271 + $0x80] sm:$0xff] %vm390, %v4341
        %4346 = vst.msk [vmem:[%s4271 + $0x100] sm:$0xff] %vm390, %v4342
        %4347 = vst.msk [vmem:[%s4271 + $0x180] sm:$0xff] %vm390, %v4343
        %v4348 = vstv 88
        %v4349 = vadd.s32 %v4348, 1
        %v4350 = vadd.s32 %v4348, 2
        %v4351 = vadd.s32 %v4348, 3
        %v4352 = vadd.s32 %v4348, 4
        %v4353 = vadd.s32 %v4348, 5
        %v4354 = vadd.s32 %v4348, 6
        %v4355 = vadd.s32 %v4348, 7
        %vm4356 = vcmp.eq.s32.totalorder %v325, %v4348
        %vm4357 = vcmp.eq.s32.totalorder %v325, %v4349
        %vm4358 = vcmp.eq.s32.totalorder %v325, %v4350
        %vm4359 = vcmp.eq.s32.totalorder %v325, %v4351
        %vm4360 = vcmp.eq.s32.totalorder %v325, %v4352
        %vm4361 = vcmp.eq.s32.totalorder %v325, %v4353
        %vm4362 = vcmp.eq.s32.totalorder %v325, %v4354
        %vm4363 = vcmp.eq.s32.totalorder %v325, %v4355
        %v4364 = vsel %vm4356, 1, 0
        %v4365 = vsel %vm4357, 1, 0
        %v4366 = vsel %vm4358, 1, 0
        %v4367 = vsel %vm4359, 1, 0
        %v4368 = vsel %vm4360, 1, 0
        %v4369 = vsel %vm4361, 1, 0
        %v4370 = vsel %vm4362, 1, 0
        %v4371 = vsel %vm4363, 1, 0
        %vm4372 = vcmp.eq.s32.totalorder %v4364, 1
        %vm4373 = vcmp.eq.s32.totalorder %v4365, 1
        %vm4374 = vcmp.eq.s32.totalorder %v4366, 1
        %vm4375 = vcmp.eq.s32.totalorder %v4367, 1
        %vm4376 = vcmp.eq.s32.totalorder %v4368, 1
        %vm4377 = vcmp.eq.s32.totalorder %v4369, 1
        %vm4378 = vcmp.eq.s32.totalorder %v4370, 1
        %vm4379 = vcmp.eq.s32.totalorder %v4371, 1
        %v4380 = vsel %vm4372, %v306, -inf
        %v4381 = vsel %vm4373, %v306, -inf
        %v4382 = vsel %vm4374, %v306, -inf
        %v4383 = vsel %vm4375, %v306, -inf
        %v4384 = vsel %vm4376, %v306, -inf
        %v4385 = vsel %vm4377, %v306, -inf
        %v4386 = vsel %vm4378, %v306, -inf
        %v4387 = vsel %vm4379, %v306, -inf
        %v4388 = vsel %vm4372, %v307, -inf
        %v4389 = vsel %vm4373, %v307, -inf
        %v4390 = vsel %vm4374, %v307, -inf
        %v4391 = vsel %vm4375, %v307, -inf
        %v4392 = vsel %vm4376, %v307, -inf
        %v4393 = vsel %vm4377, %v307, -inf
        %v4394 = vsel %vm4378, %v307, -inf
        %v4395 = vsel %vm4379, %v307, -inf
        %v4396 = vsel %vm4372, %v308, -inf
        %v4397 = vsel %vm4373, %v308, -inf
        %v4398 = vsel %vm4374, %v308, -inf
        %v4399 = vsel %vm4375, %v308, -inf
        %v4400 = vsel %vm4376, %v308, -inf
        %v4401 = vsel %vm4377, %v308, -inf
        %v4402 = vsel %vm4378, %v308, -inf
        %v4403 = vsel %vm4379, %v308, -inf
        %v4404 = vsel %vm4372, %v309, -inf
        %v4405 = vsel %vm4373, %v309, -inf
        %v4406 = vsel %vm4374, %v309, -inf
        %v4407 = vsel %vm4375, %v309, -inf
        %v4408 = vsel %vm4376, %v309, -inf
        %v4409 = vsel %vm4377, %v309, -inf
        %v4410 = vsel %vm4378, %v309, -inf
        %v4411 = vsel %vm4379, %v309, -inf
        %v4412 = vsel %vm390, %v4380, -inf
        %v4413 = vrot.slane %v4412, 4
        %v4414 = vmax.f32 %v4412, %v4413
        %v4415 = vrot.slane %v4414, 2
        %v4416 = vmax.f32 %v4414, %v4415
        %v4417 = vrot.slane %v4416, 1
        %v4418 = vmax.f32 %v4416, %v4417
        %v4419 = vsel %vm390, %v4381, -inf
        %v4420 = vrot.slane %v4419, 4
        %v4421 = vmax.f32 %v4419, %v4420
        %v4422 = vrot.slane %v4421, 2
        %v4423 = vmax.f32 %v4421, %v4422
        %v4424 = vrot.slane %v4423, 1
        %v4425 = vmax.f32 %v4423, %v4424
        %v4426 = vsel %vm390, %v4382, -inf
        %v4427 = vrot.slane %v4426, 4
        %v4428 = vmax.f32 %v4426, %v4427
        %v4429 = vrot.slane %v4428, 2
        %v4430 = vmax.f32 %v4428, %v4429
        %v4431 = vrot.slane %v4430, 1
        %v4432 = vmax.f32 %v4430, %v4431
        %v4433 = vsel %vm390, %v4383, -inf
        %v4434 = vrot.slane %v4433, 4
        %v4435 = vmax.f32 %v4433, %v4434
        %v4436 = vrot.slane %v4435, 2
        %v4437 = vmax.f32 %v4435, %v4436
        %v4438 = vrot.slane %v4437, 1
        %v4439 = vmax.f32 %v4437, %v4438
        %v4440 = vsel %vm390, %v4384, -inf
        %v4441 = vrot.slane %v4440, 4
        %v4442 = vmax.f32 %v4440, %v4441
        %v4443 = vrot.slane %v4442, 2
        %v4444 = vmax.f32 %v4442, %v4443
        %v4445 = vrot.slane %v4444, 1
        %v4446 = vmax.f32 %v4444, %v4445
        %v4447 = vsel %vm390, %v4385, -inf
        %v4448 = vrot.slane %v4447, 4
        %v4449 = vmax.f32 %v4447, %v4448
        %v4450 = vrot.slane %v4449, 2
        %v4451 = vmax.f32 %v4449, %v4450
        %v4452 = vrot.slane %v4451, 1
        %v4453 = vmax.f32 %v4451, %v4452
        %v4454 = vsel %vm390, %v4386, -inf
        %v4455 = vrot.slane %v4454, 4
        %v4456 = vmax.f32 %v4454, %v4455
        %v4457 = vrot.slane %v4456, 2
        %v4458 = vmax.f32 %v4456, %v4457
        %v4459 = vrot.slane %v4458, 1
        %v4460 = vmax.f32 %v4458, %v4459
        %v4461 = vsel %vm390, %v4387, -inf
        %v4462 = vrot.slane %v4461, 4
        %v4463 = vmax.f32 %v4461, %v4462
        %v4464 = vrot.slane %v4463, 2
        %v4465 = vmax.f32 %v4463, %v4464
        %v4466 = vrot.slane %v4465, 1
        %v4467 = vmax.f32 %v4465, %v4466
        %v4468 = vsel %vm390, %v4388, -inf
        %v4469 = vrot.slane %v4468, 4
        %v4470 = vmax.f32 %v4468, %v4469
        %v4471 = vrot.slane %v4470, 2
        %v4472 = vmax.f32 %v4470, %v4471
        %v4473 = vrot.slane %v4472, 1
        %v4474 = vmax.f32 %v4472, %v4473
        %v4475 = vsel %vm390, %v4389, -inf
        %v4476 = vrot.slane %v4475, 4
        %v4477 = vmax.f32 %v4475, %v4476
        %v4478 = vrot.slane %v4477, 2
        %v4479 = vmax.f32 %v4477, %v4478
        %v4480 = vrot.slane %v4479, 1
        %v4481 = vmax.f32 %v4479, %v4480
        %v4482 = vsel %vm390, %v4390, -inf
        %v4483 = vrot.slane %v4482, 4
        %v4484 = vmax.f32 %v4482, %v4483
        %v4485 = vrot.slane %v4484, 2
        %v4486 = vmax.f32 %v4484, %v4485
        %v4487 = vrot.slane %v4486, 1
        %v4488 = vmax.f32 %v4486, %v4487
        %v4489 = vsel %vm390, %v4391, -inf
        %v4490 = vrot.slane %v4489, 4
        %v4491 = vmax.f32 %v4489, %v4490
        %v4492 = vrot.slane %v4491, 2
        %v4493 = vmax.f32 %v4491, %v4492
        %v4494 = vrot.slane %v4493, 1
        %v4495 = vmax.f32 %v4493, %v4494
        %v4496 = vsel %vm390, %v4392, -inf
        %v4497 = vrot.slane %v4496, 4
        %v4498 = vmax.f32 %v4496, %v4497
        %v4499 = vrot.slane %v4498, 2
        %v4500 = vmax.f32 %v4498, %v4499
        %v4501 = vrot.slane %v4500, 1
        %v4502 = vmax.f32 %v4500, %v4501
        %v4503 = vsel %vm390, %v4393, -inf
        %v4504 = vrot.slane %v4503, 4
        %v4505 = vmax.f32 %v4503, %v4504
        %v4506 = vrot.slane %v4505, 2
        %v4507 = vmax.f32 %v4505, %v4506
        %v4508 = vrot.slane %v4507, 1
        %v4509 = vmax.f32 %v4507, %v4508
        %v4510 = vsel %vm390, %v4394, -inf
        %v4511 = vrot.slane %v4510, 4
        %v4512 = vmax.f32 %v4510, %v4511
        %v4513 = vrot.slane %v4512, 2
        %v4514 = vmax.f32 %v4512, %v4513
        %v4515 = vrot.slane %v4514, 1
        %v4516 = vmax.f32 %v4514, %v4515
        %v4517 = vsel %vm390, %v4395, -inf
        %v4518 = vrot.slane %v4517, 4
        %v4519 = vmax.f32 %v4517, %v4518
        %v4520 = vrot.slane %v4519, 2
        %v4521 = vmax.f32 %v4519, %v4520
        %v4522 = vrot.slane %v4521, 1
        %v4523 = vmax.f32 %v4521, %v4522
        %v4524 = vsel %vm390, %v4396, -inf
        %v4525 = vrot.slane %v4524, 4
        %v4526 = vmax.f32 %v4524, %v4525
        %v4527 = vrot.slane %v4526, 2
        %v4528 = vmax.f32 %v4526, %v4527
        %v4529 = vrot.slane %v4528, 1
        %v4530 = vmax.f32 %v4528, %v4529
        %v4531 = vsel %vm390, %v4397, -inf
        %v4532 = vrot.slane %v4531, 4
        %v4533 = vmax.f32 %v4531, %v4532
        %v4534 = vrot.slane %v4533, 2
        %v4535 = vmax.f32 %v4533, %v4534
        %v4536 = vrot.slane %v4535, 1
        %v4537 = vmax.f32 %v4535, %v4536
        %v4538 = vsel %vm390, %v4398, -inf
        %v4539 = vrot.slane %v4538, 4
        %v4540 = vmax.f32 %v4538, %v4539
        %v4541 = vrot.slane %v4540, 2
        %v4542 = vmax.f32 %v4540, %v4541
        %v4543 = vrot.slane %v4542, 1
        %v4544 = vmax.f32 %v4542, %v4543
        %v4545 = vsel %vm390, %v4399, -inf
        %v4546 = vrot.slane %v4545, 4
        %v4547 = vmax.f32 %v4545, %v4546
        %v4548 = vrot.slane %v4547, 2
        %v4549 = vmax.f32 %v4547, %v4548
        %v4550 = vrot.slane %v4549, 1
        %v4551 = vmax.f32 %v4549, %v4550
        %v4552 = vsel %vm390, %v4400, -inf
        %v4553 = vrot.slane %v4552, 4
        %v4554 = vmax.f32 %v4552, %v4553
        %v4555 = vrot.slane %v4554, 2
        %v4556 = vmax.f32 %v4554, %v4555
        %v4557 = vrot.slane %v4556, 1
        %v4558 = vmax.f32 %v4556, %v4557
        %v4559 = vsel %vm390, %v4401, -inf
        %v4560 = vrot.slane %v4559, 4
        %v4561 = vmax.f32 %v4559, %v4560
        %v4562 = vrot.slane %v4561, 2
        %v4563 = vmax.f32 %v4561, %v4562
        %v4564 = vrot.slane %v4563, 1
        %v4565 = vmax.f32 %v4563, %v4564
        %v4566 = vsel %vm390, %v4402, -inf
        %v4567 = vrot.slane %v4566, 4
        %v4568 = vmax.f32 %v4566, %v4567
        %v4569 = vrot.slane %v4568, 2
        %v4570 = vmax.f32 %v4568, %v4569
        %v4571 = vrot.slane %v4570, 1
        %v4572 = vmax.f32 %v4570, %v4571
        %v4573 = vsel %vm390, %v4403, -inf
        %v4574 = vrot.slane %v4573, 4
        %v4575 = vmax.f32 %v4573, %v4574
        %v4576 = vrot.slane %v4575, 2
        %v4577 = vmax.f32 %v4575, %v4576
        %v4578 = vrot.slane %v4577, 1
        %v4579 = vmax.f32 %v4577, %v4578
        %v4580 = vsel %vm390, %v4404, -inf
        %v4581 = vrot.slane %v4580, 4
        %v4582 = vmax.f32 %v4580, %v4581
        %v4583 = vrot.slane %v4582, 2
        %v4584 = vmax.f32 %v4582, %v4583
        %v4585 = vrot.slane %v4584, 1
        %v4586 = vmax.f32 %v4584, %v4585
        %v4587 = vsel %vm390, %v4405, -inf
        %v4588 = vrot.slane %v4587, 4
        %v4589 = vmax.f32 %v4587, %v4588
        %v4590 = vrot.slane %v4589, 2
        %v4591 = vmax.f32 %v4589, %v4590
        %v4592 = vrot.slane %v4591, 1
        %v4593 = vmax.f32 %v4591, %v4592
        %v4594 = vsel %vm390, %v4406, -inf
        %v4595 = vrot.slane %v4594, 4
        %v4596 = vmax.f32 %v4594, %v4595
        %v4597 = vrot.slane %v4596, 2
        %v4598 = vmax.f32 %v4596, %v4597
        %v4599 = vrot.slane %v4598, 1
        %v4600 = vmax.f32 %v4598, %v4599
        %v4601 = vsel %vm390, %v4407, -inf
        %v4602 = vrot.slane %v4601, 4
        %v4603 = vmax.f32 %v4601, %v4602
        %v4604 = vrot.slane %v4603, 2
        %v4605 = vmax.f32 %v4603, %v4604
        %v4606 = vrot.slane %v4605, 1
        %v4607 = vmax.f32 %v4605, %v4606
        %v4608 = vsel %vm390, %v4408, -inf
        %v4609 = vrot.slane %v4608, 4
        %v4610 = vmax.f32 %v4608, %v4609
        %v4611 = vrot.slane %v4610, 2
        %v4612 = vmax.f32 %v4610, %v4611
        %v4613 = vrot.slane %v4612, 1
        %v4614 = vmax.f32 %v4612, %v4613
        %v4615 = vsel %vm390, %v4409, -inf
        %v4616 = vrot.slane %v4615, 4
        %v4617 = vmax.f32 %v4615, %v4616
        %v4618 = vrot.slane %v4617, 2
        %v4619 = vmax.f32 %v4617, %v4618
        %v4620 = vrot.slane %v4619, 1
        %v4621 = vmax.f32 %v4619, %v4620
        %v4622 = vsel %vm390, %v4410, -inf
        %v4623 = vrot.slane %v4622, 4
        %v4624 = vmax.f32 %v4622, %v4623
        %v4625 = vrot.slane %v4624, 2
        %v4626 = vmax.f32 %v4624, %v4625
        %v4627 = vrot.slane %v4626, 1
        %v4628 = vmax.f32 %v4626, %v4627
        %v4629 = vsel %vm390, %v4411, -inf
        %v4630 = vrot.slane %v4629, 4
        %v4631 = vmax.f32 %v4629, %v4630
        %v4632 = vrot.slane %v4631, 2
        %v4633 = vmax.f32 %v4631, %v4632
        %v4634 = vrot.slane %v4633, 1
        %v4635 = vmax.f32 %v4633, %v4634
        %s4636 = scalar_lea.vmem [#allocation2], 88
        %v4637 = vld [vmem:[%s4636] sm:$0xff]
        %v4638 = vld [vmem:[%s4636 + $0x80] sm:$0xff]
        %v4639 = vld [vmem:[%s4636 + $0x100] sm:$0xff]
        %v4640 = vld [vmem:[%s4636 + $0x180] sm:$0xff]
        %v4673 = vsel %vm651, %v4425, %v4418
        %v4674 = vsel %vm653, %v4432, %v4673
        %v4675 = vsel %vm655, %v4439, %v4674
        %v4676 = vsel %vm657, %v4446, %v4675
        %v4677 = vsel %vm659, %v4453, %v4676
        %v4678 = vsel %vm661, %v4460, %v4677
        %v4679 = vsel %vm663, %v4467, %v4678
        %v4680 = vsel %vm651, %v4481, %v4474
        %v4681 = vsel %vm653, %v4488, %v4680
        %v4682 = vsel %vm655, %v4495, %v4681
        %v4683 = vsel %vm657, %v4502, %v4682
        %v4684 = vsel %vm659, %v4509, %v4683
        %v4685 = vsel %vm661, %v4516, %v4684
        %v4686 = vsel %vm663, %v4523, %v4685
        %v4687 = vsel %vm651, %v4537, %v4530
        %v4688 = vsel %vm653, %v4544, %v4687
        %v4689 = vsel %vm655, %v4551, %v4688
        %v4690 = vsel %vm657, %v4558, %v4689
        %v4691 = vsel %vm659, %v4565, %v4690
        %v4692 = vsel %vm661, %v4572, %v4691
        %v4693 = vsel %vm663, %v4579, %v4692
        %v4694 = vsel %vm651, %v4593, %v4586
        %v4695 = vsel %vm653, %v4600, %v4694
        %v4696 = vsel %vm655, %v4607, %v4695
        %v4697 = vsel %vm657, %v4614, %v4696
        %v4698 = vsel %vm659, %v4621, %v4697
        %v4699 = vsel %vm661, %v4628, %v4698
        %v4700 = vsel %vm663, %v4635, %v4699
        %v4705 = vmax.f32 %v4637, %v4679
        %v4706 = vmax.f32 %v4638, %v4686
        %v4707 = vmax.f32 %v4639, %v4693
        %v4708 = vmax.f32 %v4640, %v4700
        %4709 = vst.msk [vmem:[%s4636] sm:$0xff] %vm390, %v4705
        %4710 = vst.msk [vmem:[%s4636 + $0x80] sm:$0xff] %vm390, %v4706
        %4711 = vst.msk [vmem:[%s4636 + $0x100] sm:$0xff] %vm390, %v4707
        %4712 = vst.msk [vmem:[%s4636 + $0x180] sm:$0xff] %vm390, %v4708
        %v4713 = vstv 96
        %v4714 = vadd.s32 %v4713, 1
        %v4715 = vadd.s32 %v4713, 2
        %v4716 = vadd.s32 %v4713, 3
        %v4717 = vadd.s32 %v4713, 4
        %v4718 = vadd.s32 %v4713, 5
        %v4719 = vadd.s32 %v4713, 6
        %v4720 = vadd.s32 %v4713, 7
        %vm4721 = vcmp.eq.s32.totalorder %v325, %v4713
        %vm4722 = vcmp.eq.s32.totalorder %v325, %v4714
        %vm4723 = vcmp.eq.s32.totalorder %v325, %v4715
        %vm4724 = vcmp.eq.s32.totalorder %v325, %v4716
        %vm4725 = vcmp.eq.s32.totalorder %v325, %v4717
        %vm4726 = vcmp.eq.s32.totalorder %v325, %v4718
        %vm4727 = vcmp.eq.s32.totalorder %v325, %v4719
        %vm4728 = vcmp.eq.s32.totalorder %v325, %v4720
        %v4729 = vsel %vm4721, 1, 0
        %v4730 = vsel %vm4722, 1, 0
        %v4731 = vsel %vm4723, 1, 0
        %v4732 = vsel %vm4724, 1, 0
        %v4733 = vsel %vm4725, 1, 0
        %v4734 = vsel %vm4726, 1, 0
        %v4735 = vsel %vm4727, 1, 0
        %v4736 = vsel %vm4728, 1, 0
        %vm4737 = vcmp.eq.s32.totalorder %v4729, 1
        %vm4738 = vcmp.eq.s32.totalorder %v4730, 1
        %vm4739 = vcmp.eq.s32.totalorder %v4731, 1
        %vm4740 = vcmp.eq.s32.totalorder %v4732, 1
        %vm4741 = vcmp.eq.s32.totalorder %v4733, 1
        %vm4742 = vcmp.eq.s32.totalorder %v4734, 1
        %vm4743 = vcmp.eq.s32.totalorder %v4735, 1
        %vm4744 = vcmp.eq.s32.totalorder %v4736, 1
        %v4745 = vsel %vm4737, %v306, -inf
        %v4746 = vsel %vm4738, %v306, -inf
        %v4747 = vsel %vm4739, %v306, -inf
        %v4748 = vsel %vm4740, %v306, -inf
        %v4749 = vsel %vm4741, %v306, -inf
        %v4750 = vsel %vm4742, %v306, -inf
        %v4751 = vsel %vm4743, %v306, -inf
        %v4752 = vsel %vm4744, %v306, -inf
        %v4753 = vsel %vm4737, %v307, -inf
        %v4754 = vsel %vm4738, %v307, -inf
        %v4755 = vsel %vm4739, %v307, -inf
        %v4756 = vsel %vm4740, %v307, -inf
        %v4757 = vsel %vm4741, %v307, -inf
        %v4758 = vsel %vm4742, %v307, -inf
        %v4759 = vsel %vm4743, %v307, -inf
        %v4760 = vsel %vm4744, %v307, -inf
        %v4761 = vsel %vm4737, %v308, -inf
        %v4762 = vsel %vm4738, %v308, -inf
        %v4763 = vsel %vm4739, %v308, -inf
        %v4764 = vsel %vm4740, %v308, -inf
        %v4765 = vsel %vm4741, %v308, -inf
        %v4766 = vsel %vm4742, %v308, -inf
        %v4767 = vsel %vm4743, %v308, -inf
        %v4768 = vsel %vm4744, %v308, -inf
        %v4769 = vsel %vm4737, %v309, -inf
        %v4770 = vsel %vm4738, %v309, -inf
        %v4771 = vsel %vm4739, %v309, -inf
        %v4772 = vsel %vm4740, %v309, -inf
        %v4773 = vsel %vm4741, %v309, -inf
        %v4774 = vsel %vm4742, %v309, -inf
        %v4775 = vsel %vm4743, %v309, -inf
        %v4776 = vsel %vm4744, %v309, -inf
        %v4777 = vsel %vm390, %v4745, -inf
        %v4778 = vrot.slane %v4777, 4
        %v4779 = vmax.f32 %v4777, %v4778
        %v4780 = vrot.slane %v4779, 2
        %v4781 = vmax.f32 %v4779, %v4780
        %v4782 = vrot.slane %v4781, 1
        %v4783 = vmax.f32 %v4781, %v4782
        %v4784 = vsel %vm390, %v4746, -inf
        %v4785 = vrot.slane %v4784, 4
        %v4786 = vmax.f32 %v4784, %v4785
        %v4787 = vrot.slane %v4786, 2
        %v4788 = vmax.f32 %v4786, %v4787
        %v4789 = vrot.slane %v4788, 1
        %v4790 = vmax.f32 %v4788, %v4789
        %v4791 = vsel %vm390, %v4747, -inf
        %v4792 = vrot.slane %v4791, 4
        %v4793 = vmax.f32 %v4791, %v4792
        %v4794 = vrot.slane %v4793, 2
        %v4795 = vmax.f32 %v4793, %v4794
        %v4796 = vrot.slane %v4795, 1
        %v4797 = vmax.f32 %v4795, %v4796
        %v4798 = vsel %vm390, %v4748, -inf
        %v4799 = vrot.slane %v4798, 4
        %v4800 = vmax.f32 %v4798, %v4799
        %v4801 = vrot.slane %v4800, 2
        %v4802 = vmax.f32 %v4800, %v4801
        %v4803 = vrot.slane %v4802, 1
        %v4804 = vmax.f32 %v4802, %v4803
        %v4805 = vsel %vm390, %v4749, -inf
        %v4806 = vrot.slane %v4805, 4
        %v4807 = vmax.f32 %v4805, %v4806
        %v4808 = vrot.slane %v4807, 2
        %v4809 = vmax.f32 %v4807, %v4808
        %v4810 = vrot.slane %v4809, 1
        %v4811 = vmax.f32 %v4809, %v4810
        %v4812 = vsel %vm390, %v4750, -inf
        %v4813 = vrot.slane %v4812, 4
        %v4814 = vmax.f32 %v4812, %v4813
        %v4815 = vrot.slane %v4814, 2
        %v4816 = vmax.f32 %v4814, %v4815
        %v4817 = vrot.slane %v4816, 1
        %v4818 = vmax.f32 %v4816, %v4817
        %v4819 = vsel %vm390, %v4751, -inf
        %v4820 = vrot.slane %v4819, 4
        %v4821 = vmax.f32 %v4819, %v4820
        %v4822 = vrot.slane %v4821, 2
        %v4823 = vmax.f32 %v4821, %v4822
        %v4824 = vrot.slane %v4823, 1
        %v4825 = vmax.f32 %v4823, %v4824
        %v4826 = vsel %vm390, %v4752, -inf
        %v4827 = vrot.slane %v4826, 4
        %v4828 = vmax.f32 %v4826, %v4827
        %v4829 = vrot.slane %v4828, 2
        %v4830 = vmax.f32 %v4828, %v4829
        %v4831 = vrot.slane %v4830, 1
        %v4832 = vmax.f32 %v4830, %v4831
        %v4833 = vsel %vm390, %v4753, -inf
        %v4834 = vrot.slane %v4833, 4
        %v4835 = vmax.f32 %v4833, %v4834
        %v4836 = vrot.slane %v4835, 2
        %v4837 = vmax.f32 %v4835, %v4836
        %v4838 = vrot.slane %v4837, 1
        %v4839 = vmax.f32 %v4837, %v4838
        %v4840 = vsel %vm390, %v4754, -inf
        %v4841 = vrot.slane %v4840, 4
        %v4842 = vmax.f32 %v4840, %v4841
        %v4843 = vrot.slane %v4842, 2
        %v4844 = vmax.f32 %v4842, %v4843
        %v4845 = vrot.slane %v4844, 1
        %v4846 = vmax.f32 %v4844, %v4845
        %v4847 = vsel %vm390, %v4755, -inf
        %v4848 = vrot.slane %v4847, 4
        %v4849 = vmax.f32 %v4847, %v4848
        %v4850 = vrot.slane %v4849, 2
        %v4851 = vmax.f32 %v4849, %v4850
        %v4852 = vrot.slane %v4851, 1
        %v4853 = vmax.f32 %v4851, %v4852
        %v4854 = vsel %vm390, %v4756, -inf
        %v4855 = vrot.slane %v4854, 4
        %v4856 = vmax.f32 %v4854, %v4855
        %v4857 = vrot.slane %v4856, 2
        %v4858 = vmax.f32 %v4856, %v4857
        %v4859 = vrot.slane %v4858, 1
        %v4860 = vmax.f32 %v4858, %v4859
        %v4861 = vsel %vm390, %v4757, -inf
        %v4862 = vrot.slane %v4861, 4
        %v4863 = vmax.f32 %v4861, %v4862
        %v4864 = vrot.slane %v4863, 2
        %v4865 = vmax.f32 %v4863, %v4864
        %v4866 = vrot.slane %v4865, 1
        %v4867 = vmax.f32 %v4865, %v4866
        %v4868 = vsel %vm390, %v4758, -inf
        %v4869 = vrot.slane %v4868, 4
        %v4870 = vmax.f32 %v4868, %v4869
        %v4871 = vrot.slane %v4870, 2
        %v4872 = vmax.f32 %v4870, %v4871
        %v4873 = vrot.slane %v4872, 1
        %v4874 = vmax.f32 %v4872, %v4873
        %v4875 = vsel %vm390, %v4759, -inf
        %v4876 = vrot.slane %v4875, 4
        %v4877 = vmax.f32 %v4875, %v4876
        %v4878 = vrot.slane %v4877, 2
        %v4879 = vmax.f32 %v4877, %v4878
        %v4880 = vrot.slane %v4879, 1
        %v4881 = vmax.f32 %v4879, %v4880
        %v4882 = vsel %vm390, %v4760, -inf
        %v4883 = vrot.slane %v4882, 4
        %v4884 = vmax.f32 %v4882, %v4883
        %v4885 = vrot.slane %v4884, 2
        %v4886 = vmax.f32 %v4884, %v4885
        %v4887 = vrot.slane %v4886, 1
        %v4888 = vmax.f32 %v4886, %v4887
        %v4889 = vsel %vm390, %v4761, -inf
        %v4890 = vrot.slane %v4889, 4
        %v4891 = vmax.f32 %v4889, %v4890
        %v4892 = vrot.slane %v4891, 2
        %v4893 = vmax.f32 %v4891, %v4892
        %v4894 = vrot.slane %v4893, 1
        %v4895 = vmax.f32 %v4893, %v4894
        %v4896 = vsel %vm390, %v4762, -inf
        %v4897 = vrot.slane %v4896, 4
        %v4898 = vmax.f32 %v4896, %v4897
        %v4899 = vrot.slane %v4898, 2
        %v4900 = vmax.f32 %v4898, %v4899
        %v4901 = vrot.slane %v4900, 1
        %v4902 = vmax.f32 %v4900, %v4901
        %v4903 = vsel %vm390, %v4763, -inf
        %v4904 = vrot.slane %v4903, 4
        %v4905 = vmax.f32 %v4903, %v4904
        %v4906 = vrot.slane %v4905, 2
        %v4907 = vmax.f32 %v4905, %v4906
        %v4908 = vrot.slane %v4907, 1
        %v4909 = vmax.f32 %v4907, %v4908
        %v4910 = vsel %vm390, %v4764, -inf
        %v4911 = vrot.slane %v4910, 4
        %v4912 = vmax.f32 %v4910, %v4911
        %v4913 = vrot.slane %v4912, 2
        %v4914 = vmax.f32 %v4912, %v4913
        %v4915 = vrot.slane %v4914, 1
        %v4916 = vmax.f32 %v4914, %v4915
        %v4917 = vsel %vm390, %v4765, -inf
        %v4918 = vrot.slane %v4917, 4
        %v4919 = vmax.f32 %v4917, %v4918
        %v4920 = vrot.slane %v4919, 2
        %v4921 = vmax.f32 %v4919, %v4920
        %v4922 = vrot.slane %v4921, 1
        %v4923 = vmax.f32 %v4921, %v4922
        %v4924 = vsel %vm390, %v4766, -inf
        %v4925 = vrot.slane %v4924, 4
        %v4926 = vmax.f32 %v4924, %v4925
        %v4927 = vrot.slane %v4926, 2
        %v4928 = vmax.f32 %v4926, %v4927
        %v4929 = vrot.slane %v4928, 1
        %v4930 = vmax.f32 %v4928, %v4929
        %v4931 = vsel %vm390, %v4767, -inf
        %v4932 = vrot.slane %v4931, 4
        %v4933 = vmax.f32 %v4931, %v4932
        %v4934 = vrot.slane %v4933, 2
        %v4935 = vmax.f32 %v4933, %v4934
        %v4936 = vrot.slane %v4935, 1
        %v4937 = vmax.f32 %v4935, %v4936
        %v4938 = vsel %vm390, %v4768, -inf
        %v4939 = vrot.slane %v4938, 4
        %v4940 = vmax.f32 %v4938, %v4939
        %v4941 = vrot.slane %v4940, 2
        %v4942 = vmax.f32 %v4940, %v4941
        %v4943 = vrot.slane %v4942, 1
        %v4944 = vmax.f32 %v4942, %v4943
        %v4945 = vsel %vm390, %v4769, -inf
        %v4946 = vrot.slane %v4945, 4
        %v4947 = vmax.f32 %v4945, %v4946
        %v4948 = vrot.slane %v4947, 2
        %v4949 = vmax.f32 %v4947, %v4948
        %v4950 = vrot.slane %v4949, 1
        %v4951 = vmax.f32 %v4949, %v4950
        %v4952 = vsel %vm390, %v4770, -inf
        %v4953 = vrot.slane %v4952, 4
        %v4954 = vmax.f32 %v4952, %v4953
        %v4955 = vrot.slane %v4954, 2
        %v4956 = vmax.f32 %v4954, %v4955
        %v4957 = vrot.slane %v4956, 1
        %v4958 = vmax.f32 %v4956, %v4957
        %v4959 = vsel %vm390, %v4771, -inf
        %v4960 = vrot.slane %v4959, 4
        %v4961 = vmax.f32 %v4959, %v4960
        %v4962 = vrot.slane %v4961, 2
        %v4963 = vmax.f32 %v4961, %v4962
        %v4964 = vrot.slane %v4963, 1
        %v4965 = vmax.f32 %v4963, %v4964
        %v4966 = vsel %vm390, %v4772, -inf
        %v4967 = vrot.slane %v4966, 4
        %v4968 = vmax.f32 %v4966, %v4967
        %v4969 = vrot.slane %v4968, 2
        %v4970 = vmax.f32 %v4968, %v4969
        %v4971 = vrot.slane %v4970, 1
        %v4972 = vmax.f32 %v4970, %v4971
        %v4973 = vsel %vm390, %v4773, -inf
        %v4974 = vrot.slane %v4973, 4
        %v4975 = vmax.f32 %v4973, %v4974
        %v4976 = vrot.slane %v4975, 2
        %v4977 = vmax.f32 %v4975, %v4976
        %v4978 = vrot.slane %v4977, 1
        %v4979 = vmax.f32 %v4977, %v4978
        %v4980 = vsel %vm390, %v4774, -inf
        %v4981 = vrot.slane %v4980, 4
        %v4982 = vmax.f32 %v4980, %v4981
        %v4983 = vrot.slane %v4982, 2
        %v4984 = vmax.f32 %v4982, %v4983
        %v4985 = vrot.slane %v4984, 1
        %v4986 = vmax.f32 %v4984, %v4985
        %v4987 = vsel %vm390, %v4775, -inf
        %v4988 = vrot.slane %v4987, 4
        %v4989 = vmax.f32 %v4987, %v4988
        %v4990 = vrot.slane %v4989, 2
        %v4991 = vmax.f32 %v4989, %v4990
        %v4992 = vrot.slane %v4991, 1
        %v4993 = vmax.f32 %v4991, %v4992
        %v4994 = vsel %vm390, %v4776, -inf
        %v4995 = vrot.slane %v4994, 4
        %v4996 = vmax.f32 %v4994, %v4995
        %v4997 = vrot.slane %v4996, 2
        %v4998 = vmax.f32 %v4996, %v4997
        %v4999 = vrot.slane %v4998, 1
        %v5000 = vmax.f32 %v4998, %v4999
        %s5001 = scalar_lea.vmem [#allocation2], 96
        %v5002 = vld [vmem:[%s5001] sm:$0xff]
        %v5003 = vld [vmem:[%s5001 + $0x80] sm:$0xff]
        %v5004 = vld [vmem:[%s5001 + $0x100] sm:$0xff]
        %v5005 = vld [vmem:[%s5001 + $0x180] sm:$0xff]
        %v5038 = vsel %vm651, %v4790, %v4783
        %v5039 = vsel %vm653, %v4797, %v5038
        %v5040 = vsel %vm655, %v4804, %v5039
        %v5041 = vsel %vm657, %v4811, %v5040
        %v5042 = vsel %vm659, %v4818, %v5041
        %v5043 = vsel %vm661, %v4825, %v5042
        %v5044 = vsel %vm663, %v4832, %v5043
        %v5045 = vsel %vm651, %v4846, %v4839
        %v5046 = vsel %vm653, %v4853, %v5045
        %v5047 = vsel %vm655, %v4860, %v5046
        %v5048 = vsel %vm657, %v4867, %v5047
        %v5049 = vsel %vm659, %v4874, %v5048
        %v5050 = vsel %vm661, %v4881, %v5049
        %v5051 = vsel %vm663, %v4888, %v5050
        %v5052 = vsel %vm651, %v4902, %v4895
        %v5053 = vsel %vm653, %v4909, %v5052
        %v5054 = vsel %vm655, %v4916, %v5053
        %v5055 = vsel %vm657, %v4923, %v5054
        %v5056 = vsel %vm659, %v4930, %v5055
        %v5057 = vsel %vm661, %v4937, %v5056
        %v5058 = vsel %vm663, %v4944, %v5057
        %v5059 = vsel %vm651, %v4958, %v4951
        %v5060 = vsel %vm653, %v4965, %v5059
        %v5061 = vsel %vm655, %v4972, %v5060
        %v5062 = vsel %vm657, %v4979, %v5061
        %v5063 = vsel %vm659, %v4986, %v5062
        %v5064 = vsel %vm661, %v4993, %v5063
        %v5065 = vsel %vm663, %v5000, %v5064
        %v5070 = vmax.f32 %v5002, %v5044
        %v5071 = vmax.f32 %v5003, %v5051
        %v5072 = vmax.f32 %v5004, %v5058
        %v5073 = vmax.f32 %v5005, %v5065
        %5074 = vst.msk [vmem:[%s5001] sm:$0xff] %vm390, %v5070
        %5075 = vst.msk [vmem:[%s5001 + $0x80] sm:$0xff] %vm390, %v5071
        %5076 = vst.msk [vmem:[%s5001 + $0x100] sm:$0xff] %vm390, %v5072
        %5077 = vst.msk [vmem:[%s5001 + $0x180] sm:$0xff] %vm390, %v5073
        %v5078 = vstv 104
        %v5079 = vadd.s32 %v5078, 1
        %v5080 = vadd.s32 %v5078, 2
        %v5081 = vadd.s32 %v5078, 3
        %v5082 = vadd.s32 %v5078, 4
        %v5083 = vadd.s32 %v5078, 5
        %v5084 = vadd.s32 %v5078, 6
        %v5085 = vadd.s32 %v5078, 7
        %vm5086 = vcmp.eq.s32.totalorder %v325, %v5078
        %vm5087 = vcmp.eq.s32.totalorder %v325, %v5079
        %vm5088 = vcmp.eq.s32.totalorder %v325, %v5080
        %vm5089 = vcmp.eq.s32.totalorder %v325, %v5081
        %vm5090 = vcmp.eq.s32.totalorder %v325, %v5082
        %vm5091 = vcmp.eq.s32.totalorder %v325, %v5083
        %vm5092 = vcmp.eq.s32.totalorder %v325, %v5084
        %vm5093 = vcmp.eq.s32.totalorder %v325, %v5085
        %v5094 = vsel %vm5086, 1, 0
        %v5095 = vsel %vm5087, 1, 0
        %v5096 = vsel %vm5088, 1, 0
        %v5097 = vsel %vm5089, 1, 0
        %v5098 = vsel %vm5090, 1, 0
        %v5099 = vsel %vm5091, 1, 0
        %v5100 = vsel %vm5092, 1, 0
        %v5101 = vsel %vm5093, 1, 0
        %vm5102 = vcmp.eq.s32.totalorder %v5094, 1
        %vm5103 = vcmp.eq.s32.totalorder %v5095, 1
        %vm5104 = vcmp.eq.s32.totalorder %v5096, 1
        %vm5105 = vcmp.eq.s32.totalorder %v5097, 1
        %vm5106 = vcmp.eq.s32.totalorder %v5098, 1
        %vm5107 = vcmp.eq.s32.totalorder %v5099, 1
        %vm5108 = vcmp.eq.s32.totalorder %v5100, 1
        %vm5109 = vcmp.eq.s32.totalorder %v5101, 1
        %v5110 = vsel %vm5102, %v306, -inf
        %v5111 = vsel %vm5103, %v306, -inf
        %v5112 = vsel %vm5104, %v306, -inf
        %v5113 = vsel %vm5105, %v306, -inf
        %v5114 = vsel %vm5106, %v306, -inf
        %v5115 = vsel %vm5107, %v306, -inf
        %v5116 = vsel %vm5108, %v306, -inf
        %v5117 = vsel %vm5109, %v306, -inf
        %v5118 = vsel %vm5102, %v307, -inf
        %v5119 = vsel %vm5103, %v307, -inf
        %v5120 = vsel %vm5104, %v307, -inf
        %v5121 = vsel %vm5105, %v307, -inf
        %v5122 = vsel %vm5106, %v307, -inf
        %v5123 = vsel %vm5107, %v307, -inf
        %v5124 = vsel %vm5108, %v307, -inf
        %v5125 = vsel %vm5109, %v307, -inf
        %v5126 = vsel %vm5102, %v308, -inf
        %v5127 = vsel %vm5103, %v308, -inf
        %v5128 = vsel %vm5104, %v308, -inf
        %v5129 = vsel %vm5105, %v308, -inf
        %v5130 = vsel %vm5106, %v308, -inf
        %v5131 = vsel %vm5107, %v308, -inf
        %v5132 = vsel %vm5108, %v308, -inf
        %v5133 = vsel %vm5109, %v308, -inf
        %v5134 = vsel %vm5102, %v309, -inf
        %v5135 = vsel %vm5103, %v309, -inf
        %v5136 = vsel %vm5104, %v309, -inf
        %v5137 = vsel %vm5105, %v309, -inf
        %v5138 = vsel %vm5106, %v309, -inf
        %v5139 = vsel %vm5107, %v309, -inf
        %v5140 = vsel %vm5108, %v309, -inf
        %v5141 = vsel %vm5109, %v309, -inf
        %v5142 = vsel %vm390, %v5110, -inf
        %v5143 = vrot.slane %v5142, 4
        %v5144 = vmax.f32 %v5142, %v5143
        %v5145 = vrot.slane %v5144, 2
        %v5146 = vmax.f32 %v5144, %v5145
        %v5147 = vrot.slane %v5146, 1
        %v5148 = vmax.f32 %v5146, %v5147
        %v5149 = vsel %vm390, %v5111, -inf
        %v5150 = vrot.slane %v5149, 4
        %v5151 = vmax.f32 %v5149, %v5150
        %v5152 = vrot.slane %v5151, 2
        %v5153 = vmax.f32 %v5151, %v5152
        %v5154 = vrot.slane %v5153, 1
        %v5155 = vmax.f32 %v5153, %v5154
        %v5156 = vsel %vm390, %v5112, -inf
        %v5157 = vrot.slane %v5156, 4
        %v5158 = vmax.f32 %v5156, %v5157
        %v5159 = vrot.slane %v5158, 2
        %v5160 = vmax.f32 %v5158, %v5159
        %v5161 = vrot.slane %v5160, 1
        %v5162 = vmax.f32 %v5160, %v5161
        %v5163 = vsel %vm390, %v5113, -inf
        %v5164 = vrot.slane %v5163, 4
        %v5165 = vmax.f32 %v5163, %v5164
        %v5166 = vrot.slane %v5165, 2
        %v5167 = vmax.f32 %v5165, %v5166
        %v5168 = vrot.slane %v5167, 1
        %v5169 = vmax.f32 %v5167, %v5168
        %v5170 = vsel %vm390, %v5114, -inf
        %v5171 = vrot.slane %v5170, 4
        %v5172 = vmax.f32 %v5170, %v5171
        %v5173 = vrot.slane %v5172, 2
        %v5174 = vmax.f32 %v5172, %v5173
        %v5175 = vrot.slane %v5174, 1
        %v5176 = vmax.f32 %v5174, %v5175
        %v5177 = vsel %vm390, %v5115, -inf
        %v5178 = vrot.slane %v5177, 4
        %v5179 = vmax.f32 %v5177, %v5178
        %v5180 = vrot.slane %v5179, 2
        %v5181 = vmax.f32 %v5179, %v5180
        %v5182 = vrot.slane %v5181, 1
        %v5183 = vmax.f32 %v5181, %v5182
        %v5184 = vsel %vm390, %v5116, -inf
        %v5185 = vrot.slane %v5184, 4
        %v5186 = vmax.f32 %v5184, %v5185
        %v5187 = vrot.slane %v5186, 2
        %v5188 = vmax.f32 %v5186, %v5187
        %v5189 = vrot.slane %v5188, 1
        %v5190 = vmax.f32 %v5188, %v5189
        %v5191 = vsel %vm390, %v5117, -inf
        %v5192 = vrot.slane %v5191, 4
        %v5193 = vmax.f32 %v5191, %v5192
        %v5194 = vrot.slane %v5193, 2
        %v5195 = vmax.f32 %v5193, %v5194
        %v5196 = vrot.slane %v5195, 1
        %v5197 = vmax.f32 %v5195, %v5196
        %v5198 = vsel %vm390, %v5118, -inf
        %v5199 = vrot.slane %v5198, 4
        %v5200 = vmax.f32 %v5198, %v5199
        %v5201 = vrot.slane %v5200, 2
        %v5202 = vmax.f32 %v5200, %v5201
        %v5203 = vrot.slane %v5202, 1
        %v5204 = vmax.f32 %v5202, %v5203
        %v5205 = vsel %vm390, %v5119, -inf
        %v5206 = vrot.slane %v5205, 4
        %v5207 = vmax.f32 %v5205, %v5206
        %v5208 = vrot.slane %v5207, 2
        %v5209 = vmax.f32 %v5207, %v5208
        %v5210 = vrot.slane %v5209, 1
        %v5211 = vmax.f32 %v5209, %v5210
        %v5212 = vsel %vm390, %v5120, -inf
        %v5213 = vrot.slane %v5212, 4
        %v5214 = vmax.f32 %v5212, %v5213
        %v5215 = vrot.slane %v5214, 2
        %v5216 = vmax.f32 %v5214, %v5215
        %v5217 = vrot.slane %v5216, 1
        %v5218 = vmax.f32 %v5216, %v5217
        %v5219 = vsel %vm390, %v5121, -inf
        %v5220 = vrot.slane %v5219, 4
        %v5221 = vmax.f32 %v5219, %v5220
        %v5222 = vrot.slane %v5221, 2
        %v5223 = vmax.f32 %v5221, %v5222
        %v5224 = vrot.slane %v5223, 1
        %v5225 = vmax.f32 %v5223, %v5224
        %v5226 = vsel %vm390, %v5122, -inf
        %v5227 = vrot.slane %v5226, 4
        %v5228 = vmax.f32 %v5226, %v5227
        %v5229 = vrot.slane %v5228, 2
        %v5230 = vmax.f32 %v5228, %v5229
        %v5231 = vrot.slane %v5230, 1
        %v5232 = vmax.f32 %v5230, %v5231
        %v5233 = vsel %vm390, %v5123, -inf
        %v5234 = vrot.slane %v5233, 4
        %v5235 = vmax.f32 %v5233, %v5234
        %v5236 = vrot.slane %v5235, 2
        %v5237 = vmax.f32 %v5235, %v5236
        %v5238 = vrot.slane %v5237, 1
        %v5239 = vmax.f32 %v5237, %v5238
        %v5240 = vsel %vm390, %v5124, -inf
        %v5241 = vrot.slane %v5240, 4
        %v5242 = vmax.f32 %v5240, %v5241
        %v5243 = vrot.slane %v5242, 2
        %v5244 = vmax.f32 %v5242, %v5243
        %v5245 = vrot.slane %v5244, 1
        %v5246 = vmax.f32 %v5244, %v5245
        %v5247 = vsel %vm390, %v5125, -inf
        %v5248 = vrot.slane %v5247, 4
        %v5249 = vmax.f32 %v5247, %v5248
        %v5250 = vrot.slane %v5249, 2
        %v5251 = vmax.f32 %v5249, %v5250
        %v5252 = vrot.slane %v5251, 1
        %v5253 = vmax.f32 %v5251, %v5252
        %v5254 = vsel %vm390, %v5126, -inf
        %v5255 = vrot.slane %v5254, 4
        %v5256 = vmax.f32 %v5254, %v5255
        %v5257 = vrot.slane %v5256, 2
        %v5258 = vmax.f32 %v5256, %v5257
        %v5259 = vrot.slane %v5258, 1
        %v5260 = vmax.f32 %v5258, %v5259
        %v5261 = vsel %vm390, %v5127, -inf
        %v5262 = vrot.slane %v5261, 4
        %v5263 = vmax.f32 %v5261, %v5262
        %v5264 = vrot.slane %v5263, 2
        %v5265 = vmax.f32 %v5263, %v5264
        %v5266 = vrot.slane %v5265, 1
        %v5267 = vmax.f32 %v5265, %v5266
        %v5268 = vsel %vm390, %v5128, -inf
        %v5269 = vrot.slane %v5268, 4
        %v5270 = vmax.f32 %v5268, %v5269
        %v5271 = vrot.slane %v5270, 2
        %v5272 = vmax.f32 %v5270, %v5271
        %v5273 = vrot.slane %v5272, 1
        %v5274 = vmax.f32 %v5272, %v5273
        %v5275 = vsel %vm390, %v5129, -inf
        %v5276 = vrot.slane %v5275, 4
        %v5277 = vmax.f32 %v5275, %v5276
        %v5278 = vrot.slane %v5277, 2
        %v5279 = vmax.f32 %v5277, %v5278
        %v5280 = vrot.slane %v5279, 1
        %v5281 = vmax.f32 %v5279, %v5280
        %v5282 = vsel %vm390, %v5130, -inf
        %v5283 = vrot.slane %v5282, 4
        %v5284 = vmax.f32 %v5282, %v5283
        %v5285 = vrot.slane %v5284, 2
        %v5286 = vmax.f32 %v5284, %v5285
        %v5287 = vrot.slane %v5286, 1
        %v5288 = vmax.f32 %v5286, %v5287
        %v5289 = vsel %vm390, %v5131, -inf
        %v5290 = vrot.slane %v5289, 4
        %v5291 = vmax.f32 %v5289, %v5290
        %v5292 = vrot.slane %v5291, 2
        %v5293 = vmax.f32 %v5291, %v5292
        %v5294 = vrot.slane %v5293, 1
        %v5295 = vmax.f32 %v5293, %v5294
        %v5296 = vsel %vm390, %v5132, -inf
        %v5297 = vrot.slane %v5296, 4
        %v5298 = vmax.f32 %v5296, %v5297
        %v5299 = vrot.slane %v5298, 2
        %v5300 = vmax.f32 %v5298, %v5299
        %v5301 = vrot.slane %v5300, 1
        %v5302 = vmax.f32 %v5300, %v5301
        %v5303 = vsel %vm390, %v5133, -inf
        %v5304 = vrot.slane %v5303, 4
        %v5305 = vmax.f32 %v5303, %v5304
        %v5306 = vrot.slane %v5305, 2
        %v5307 = vmax.f32 %v5305, %v5306
        %v5308 = vrot.slane %v5307, 1
        %v5309 = vmax.f32 %v5307, %v5308
        %v5310 = vsel %vm390, %v5134, -inf
        %v5311 = vrot.slane %v5310, 4
        %v5312 = vmax.f32 %v5310, %v5311
        %v5313 = vrot.slane %v5312, 2
        %v5314 = vmax.f32 %v5312, %v5313
        %v5315 = vrot.slane %v5314, 1
        %v5316 = vmax.f32 %v5314, %v5315
        %v5317 = vsel %vm390, %v5135, -inf
        %v5318 = vrot.slane %v5317, 4
        %v5319 = vmax.f32 %v5317, %v5318
        %v5320 = vrot.slane %v5319, 2
        %v5321 = vmax.f32 %v5319, %v5320
        %v5322 = vrot.slane %v5321, 1
        %v5323 = vmax.f32 %v5321, %v5322
        %v5324 = vsel %vm390, %v5136, -inf
        %v5325 = vrot.slane %v5324, 4
        %v5326 = vmax.f32 %v5324, %v5325
        %v5327 = vrot.slane %v5326, 2
        %v5328 = vmax.f32 %v5326, %v5327
        %v5329 = vrot.slane %v5328, 1
        %v5330 = vmax.f32 %v5328, %v5329
        %v5331 = vsel %vm390, %v5137, -inf
        %v5332 = vrot.slane %v5331, 4
        %v5333 = vmax.f32 %v5331, %v5332
        %v5334 = vrot.slane %v5333, 2
        %v5335 = vmax.f32 %v5333, %v5334
        %v5336 = vrot.slane %v5335, 1
        %v5337 = vmax.f32 %v5335, %v5336
        %v5338 = vsel %vm390, %v5138, -inf
        %v5339 = vrot.slane %v5338, 4
        %v5340 = vmax.f32 %v5338, %v5339
        %v5341 = vrot.slane %v5340, 2
        %v5342 = vmax.f32 %v5340, %v5341
        %v5343 = vrot.slane %v5342, 1
        %v5344 = vmax.f32 %v5342, %v5343
        %v5345 = vsel %vm390, %v5139, -inf
        %v5346 = vrot.slane %v5345, 4
        %v5347 = vmax.f32 %v5345, %v5346
        %v5348 = vrot.slane %v5347, 2
        %v5349 = vmax.f32 %v5347, %v5348
        %v5350 = vrot.slane %v5349, 1
        %v5351 = vmax.f32 %v5349, %v5350
        %v5352 = vsel %vm390, %v5140, -inf
        %v5353 = vrot.slane %v5352, 4
        %v5354 = vmax.f32 %v5352, %v5353
        %v5355 = vrot.slane %v5354, 2
        %v5356 = vmax.f32 %v5354, %v5355
        %v5357 = vrot.slane %v5356, 1
        %v5358 = vmax.f32 %v5356, %v5357
        %v5359 = vsel %vm390, %v5141, -inf
        %v5360 = vrot.slane %v5359, 4
        %v5361 = vmax.f32 %v5359, %v5360
        %v5362 = vrot.slane %v5361, 2
        %v5363 = vmax.f32 %v5361, %v5362
        %v5364 = vrot.slane %v5363, 1
        %v5365 = vmax.f32 %v5363, %v5364
        %s5366 = scalar_lea.vmem [#allocation2], 104
        %v5367 = vld [vmem:[%s5366] sm:$0xff]
        %v5368 = vld [vmem:[%s5366 + $0x80] sm:$0xff]
        %v5369 = vld [vmem:[%s5366 + $0x100] sm:$0xff]
        %v5370 = vld [vmem:[%s5366 + $0x180] sm:$0xff]
        %v5403 = vsel %vm651, %v5155, %v5148
        %v5404 = vsel %vm653, %v5162, %v5403
        %v5405 = vsel %vm655, %v5169, %v5404
        %v5406 = vsel %vm657, %v5176, %v5405
        %v5407 = vsel %vm659, %v5183, %v5406
        %v5408 = vsel %vm661, %v5190, %v5407
        %v5409 = vsel %vm663, %v5197, %v5408
        %v5410 = vsel %vm651, %v5211, %v5204
        %v5411 = vsel %vm653, %v5218, %v5410
        %v5412 = vsel %vm655, %v5225, %v5411
        %v5413 = vsel %vm657, %v5232, %v5412
        %v5414 = vsel %vm659, %v5239, %v5413
        %v5415 = vsel %vm661, %v5246, %v5414
        %v5416 = vsel %vm663, %v5253, %v5415
        %v5417 = vsel %vm651, %v5267, %v5260
        %v5418 = vsel %vm653, %v5274, %v5417
        %v5419 = vsel %vm655, %v5281, %v5418
        %v5420 = vsel %vm657, %v5288, %v5419
        %v5421 = vsel %vm659, %v5295, %v5420
        %v5422 = vsel %vm661, %v5302, %v5421
        %v5423 = vsel %vm663, %v5309, %v5422
        %v5424 = vsel %vm651, %v5323, %v5316
        %v5425 = vsel %vm653, %v5330, %v5424
        %v5426 = vsel %vm655, %v5337, %v5425
        %v5427 = vsel %vm657, %v5344, %v5426
        %v5428 = vsel %vm659, %v5351, %v5427
        %v5429 = vsel %vm661, %v5358, %v5428
        %v5430 = vsel %vm663, %v5365, %v5429
        %v5435 = vmax.f32 %v5367, %v5409
        %v5436 = vmax.f32 %v5368, %v5416
        %v5437 = vmax.f32 %v5369, %v5423
        %v5438 = vmax.f32 %v5370, %v5430
        %5439 = vst.msk [vmem:[%s5366] sm:$0xff] %vm390, %v5435
        %5440 = vst.msk [vmem:[%s5366 + $0x80] sm:$0xff] %vm390, %v5436
        %5441 = vst.msk [vmem:[%s5366 + $0x100] sm:$0xff] %vm390, %v5437
        %5442 = vst.msk [vmem:[%s5366 + $0x180] sm:$0xff] %vm390, %v5438
        %v5443 = vstv 112
        %v5444 = vadd.s32 %v5443, 1
        %v5445 = vadd.s32 %v5443, 2
        %v5446 = vadd.s32 %v5443, 3
        %v5447 = vadd.s32 %v5443, 4
        %v5448 = vadd.s32 %v5443, 5
        %v5449 = vadd.s32 %v5443, 6
        %v5450 = vadd.s32 %v5443, 7
        %vm5451 = vcmp.eq.s32.totalorder %v325, %v5443
        %vm5452 = vcmp.eq.s32.totalorder %v325, %v5444
        %vm5453 = vcmp.eq.s32.totalorder %v325, %v5445
        %vm5454 = vcmp.eq.s32.totalorder %v325, %v5446
        %vm5455 = vcmp.eq.s32.totalorder %v325, %v5447
        %vm5456 = vcmp.eq.s32.totalorder %v325, %v5448
        %vm5457 = vcmp.eq.s32.totalorder %v325, %v5449
        %vm5458 = vcmp.eq.s32.totalorder %v325, %v5450
        %v5459 = vsel %vm5451, 1, 0
        %v5460 = vsel %vm5452, 1, 0
        %v5461 = vsel %vm5453, 1, 0
        %v5462 = vsel %vm5454, 1, 0
        %v5463 = vsel %vm5455, 1, 0
        %v5464 = vsel %vm5456, 1, 0
        %v5465 = vsel %vm5457, 1, 0
        %v5466 = vsel %vm5458, 1, 0
        %vm5467 = vcmp.eq.s32.totalorder %v5459, 1
        %vm5468 = vcmp.eq.s32.totalorder %v5460, 1
        %vm5469 = vcmp.eq.s32.totalorder %v5461, 1
        %vm5470 = vcmp.eq.s32.totalorder %v5462, 1
        %vm5471 = vcmp.eq.s32.totalorder %v5463, 1
        %vm5472 = vcmp.eq.s32.totalorder %v5464, 1
        %vm5473 = vcmp.eq.s32.totalorder %v5465, 1
        %vm5474 = vcmp.eq.s32.totalorder %v5466, 1
        %v5475 = vsel %vm5467, %v306, -inf
        %v5476 = vsel %vm5468, %v306, -inf
        %v5477 = vsel %vm5469, %v306, -inf
        %v5478 = vsel %vm5470, %v306, -inf
        %v5479 = vsel %vm5471, %v306, -inf
        %v5480 = vsel %vm5472, %v306, -inf
        %v5481 = vsel %vm5473, %v306, -inf
        %v5482 = vsel %vm5474, %v306, -inf
        %v5483 = vsel %vm5467, %v307, -inf
        %v5484 = vsel %vm5468, %v307, -inf
        %v5485 = vsel %vm5469, %v307, -inf
        %v5486 = vsel %vm5470, %v307, -inf
        %v5487 = vsel %vm5471, %v307, -inf
        %v5488 = vsel %vm5472, %v307, -inf
        %v5489 = vsel %vm5473, %v307, -inf
        %v5490 = vsel %vm5474, %v307, -inf
        %v5491 = vsel %vm5467, %v308, -inf
        %v5492 = vsel %vm5468, %v308, -inf
        %v5493 = vsel %vm5469, %v308, -inf
        %v5494 = vsel %vm5470, %v308, -inf
        %v5495 = vsel %vm5471, %v308, -inf
        %v5496 = vsel %vm5472, %v308, -inf
        %v5497 = vsel %vm5473, %v308, -inf
        %v5498 = vsel %vm5474, %v308, -inf
        %v5499 = vsel %vm5467, %v309, -inf
        %v5500 = vsel %vm5468, %v309, -inf
        %v5501 = vsel %vm5469, %v309, -inf
        %v5502 = vsel %vm5470, %v309, -inf
        %v5503 = vsel %vm5471, %v309, -inf
        %v5504 = vsel %vm5472, %v309, -inf
        %v5505 = vsel %vm5473, %v309, -inf
        %v5506 = vsel %vm5474, %v309, -inf
        %v5507 = vsel %vm390, %v5475, -inf
        %v5508 = vrot.slane %v5507, 4
        %v5509 = vmax.f32 %v5507, %v5508
        %v5510 = vrot.slane %v5509, 2
        %v5511 = vmax.f32 %v5509, %v5510
        %v5512 = vrot.slane %v5511, 1
        %v5513 = vmax.f32 %v5511, %v5512
        %v5514 = vsel %vm390, %v5476, -inf
        %v5515 = vrot.slane %v5514, 4
        %v5516 = vmax.f32 %v5514, %v5515
        %v5517 = vrot.slane %v5516, 2
        %v5518 = vmax.f32 %v5516, %v5517
        %v5519 = vrot.slane %v5518, 1
        %v5520 = vmax.f32 %v5518, %v5519
        %v5521 = vsel %vm390, %v5477, -inf
        %v5522 = vrot.slane %v5521, 4
        %v5523 = vmax.f32 %v5521, %v5522
        %v5524 = vrot.slane %v5523, 2
        %v5525 = vmax.f32 %v5523, %v5524
        %v5526 = vrot.slane %v5525, 1
        %v5527 = vmax.f32 %v5525, %v5526
        %v5528 = vsel %vm390, %v5478, -inf
        %v5529 = vrot.slane %v5528, 4
        %v5530 = vmax.f32 %v5528, %v5529
        %v5531 = vrot.slane %v5530, 2
        %v5532 = vmax.f32 %v5530, %v5531
        %v5533 = vrot.slane %v5532, 1
        %v5534 = vmax.f32 %v5532, %v5533
        %v5535 = vsel %vm390, %v5479, -inf
        %v5536 = vrot.slane %v5535, 4
        %v5537 = vmax.f32 %v5535, %v5536
        %v5538 = vrot.slane %v5537, 2
        %v5539 = vmax.f32 %v5537, %v5538
        %v5540 = vrot.slane %v5539, 1
        %v5541 = vmax.f32 %v5539, %v5540
        %v5542 = vsel %vm390, %v5480, -inf
        %v5543 = vrot.slane %v5542, 4
        %v5544 = vmax.f32 %v5542, %v5543
        %v5545 = vrot.slane %v5544, 2
        %v5546 = vmax.f32 %v5544, %v5545
        %v5547 = vrot.slane %v5546, 1
        %v5548 = vmax.f32 %v5546, %v5547
        %v5549 = vsel %vm390, %v5481, -inf
        %v5550 = vrot.slane %v5549, 4
        %v5551 = vmax.f32 %v5549, %v5550
        %v5552 = vrot.slane %v5551, 2
        %v5553 = vmax.f32 %v5551, %v5552
        %v5554 = vrot.slane %v5553, 1
        %v5555 = vmax.f32 %v5553, %v5554
        %v5556 = vsel %vm390, %v5482, -inf
        %v5557 = vrot.slane %v5556, 4
        %v5558 = vmax.f32 %v5556, %v5557
        %v5559 = vrot.slane %v5558, 2
        %v5560 = vmax.f32 %v5558, %v5559
        %v5561 = vrot.slane %v5560, 1
        %v5562 = vmax.f32 %v5560, %v5561
        %v5563 = vsel %vm390, %v5483, -inf
        %v5564 = vrot.slane %v5563, 4
        %v5565 = vmax.f32 %v5563, %v5564
        %v5566 = vrot.slane %v5565, 2
        %v5567 = vmax.f32 %v5565, %v5566
        %v5568 = vrot.slane %v5567, 1
        %v5569 = vmax.f32 %v5567, %v5568
        %v5570 = vsel %vm390, %v5484, -inf
        %v5571 = vrot.slane %v5570, 4
        %v5572 = vmax.f32 %v5570, %v5571
        %v5573 = vrot.slane %v5572, 2
        %v5574 = vmax.f32 %v5572, %v5573
        %v5575 = vrot.slane %v5574, 1
        %v5576 = vmax.f32 %v5574, %v5575
        %v5577 = vsel %vm390, %v5485, -inf
        %v5578 = vrot.slane %v5577, 4
        %v5579 = vmax.f32 %v5577, %v5578
        %v5580 = vrot.slane %v5579, 2
        %v5581 = vmax.f32 %v5579, %v5580
        %v5582 = vrot.slane %v5581, 1
        %v5583 = vmax.f32 %v5581, %v5582
        %v5584 = vsel %vm390, %v5486, -inf
        %v5585 = vrot.slane %v5584, 4
        %v5586 = vmax.f32 %v5584, %v5585
        %v5587 = vrot.slane %v5586, 2
        %v5588 = vmax.f32 %v5586, %v5587
        %v5589 = vrot.slane %v5588, 1
        %v5590 = vmax.f32 %v5588, %v5589
        %v5591 = vsel %vm390, %v5487, -inf
        %v5592 = vrot.slane %v5591, 4
        %v5593 = vmax.f32 %v5591, %v5592
        %v5594 = vrot.slane %v5593, 2
        %v5595 = vmax.f32 %v5593, %v5594
        %v5596 = vrot.slane %v5595, 1
        %v5597 = vmax.f32 %v5595, %v5596
        %v5598 = vsel %vm390, %v5488, -inf
        %v5599 = vrot.slane %v5598, 4
        %v5600 = vmax.f32 %v5598, %v5599
        %v5601 = vrot.slane %v5600, 2
        %v5602 = vmax.f32 %v5600, %v5601
        %v5603 = vrot.slane %v5602, 1
        %v5604 = vmax.f32 %v5602, %v5603
        %v5605 = vsel %vm390, %v5489, -inf
        %v5606 = vrot.slane %v5605, 4
        %v5607 = vmax.f32 %v5605, %v5606
        %v5608 = vrot.slane %v5607, 2
        %v5609 = vmax.f32 %v5607, %v5608
        %v5610 = vrot.slane %v5609, 1
        %v5611 = vmax.f32 %v5609, %v5610
        %v5612 = vsel %vm390, %v5490, -inf
        %v5613 = vrot.slane %v5612, 4
        %v5614 = vmax.f32 %v5612, %v5613
        %v5615 = vrot.slane %v5614, 2
        %v5616 = vmax.f32 %v5614, %v5615
        %v5617 = vrot.slane %v5616, 1
        %v5618 = vmax.f32 %v5616, %v5617
        %v5619 = vsel %vm390, %v5491, -inf
        %v5620 = vrot.slane %v5619, 4
        %v5621 = vmax.f32 %v5619, %v5620
        %v5622 = vrot.slane %v5621, 2
        %v5623 = vmax.f32 %v5621, %v5622
        %v5624 = vrot.slane %v5623, 1
        %v5625 = vmax.f32 %v5623, %v5624
        %v5626 = vsel %vm390, %v5492, -inf
        %v5627 = vrot.slane %v5626, 4
        %v5628 = vmax.f32 %v5626, %v5627
        %v5629 = vrot.slane %v5628, 2
        %v5630 = vmax.f32 %v5628, %v5629
        %v5631 = vrot.slane %v5630, 1
        %v5632 = vmax.f32 %v5630, %v5631
        %v5633 = vsel %vm390, %v5493, -inf
        %v5634 = vrot.slane %v5633, 4
        %v5635 = vmax.f32 %v5633, %v5634
        %v5636 = vrot.slane %v5635, 2
        %v5637 = vmax.f32 %v5635, %v5636
        %v5638 = vrot.slane %v5637, 1
        %v5639 = vmax.f32 %v5637, %v5638
        %v5640 = vsel %vm390, %v5494, -inf
        %v5641 = vrot.slane %v5640, 4
        %v5642 = vmax.f32 %v5640, %v5641
        %v5643 = vrot.slane %v5642, 2
        %v5644 = vmax.f32 %v5642, %v5643
        %v5645 = vrot.slane %v5644, 1
        %v5646 = vmax.f32 %v5644, %v5645
        %v5647 = vsel %vm390, %v5495, -inf
        %v5648 = vrot.slane %v5647, 4
        %v5649 = vmax.f32 %v5647, %v5648
        %v5650 = vrot.slane %v5649, 2
        %v5651 = vmax.f32 %v5649, %v5650
        %v5652 = vrot.slane %v5651, 1
        %v5653 = vmax.f32 %v5651, %v5652
        %v5654 = vsel %vm390, %v5496, -inf
        %v5655 = vrot.slane %v5654, 4
        %v5656 = vmax.f32 %v5654, %v5655
        %v5657 = vrot.slane %v5656, 2
        %v5658 = vmax.f32 %v5656, %v5657
        %v5659 = vrot.slane %v5658, 1
        %v5660 = vmax.f32 %v5658, %v5659
        %v5661 = vsel %vm390, %v5497, -inf
        %v5662 = vrot.slane %v5661, 4
        %v5663 = vmax.f32 %v5661, %v5662
        %v5664 = vrot.slane %v5663, 2
        %v5665 = vmax.f32 %v5663, %v5664
        %v5666 = vrot.slane %v5665, 1
        %v5667 = vmax.f32 %v5665, %v5666
        %v5668 = vsel %vm390, %v5498, -inf
        %v5669 = vrot.slane %v5668, 4
        %v5670 = vmax.f32 %v5668, %v5669
        %v5671 = vrot.slane %v5670, 2
        %v5672 = vmax.f32 %v5670, %v5671
        %v5673 = vrot.slane %v5672, 1
        %v5674 = vmax.f32 %v5672, %v5673
        %v5675 = vsel %vm390, %v5499, -inf
        %v5676 = vrot.slane %v5675, 4
        %v5677 = vmax.f32 %v5675, %v5676
        %v5678 = vrot.slane %v5677, 2
        %v5679 = vmax.f32 %v5677, %v5678
        %v5680 = vrot.slane %v5679, 1
        %v5681 = vmax.f32 %v5679, %v5680
        %v5682 = vsel %vm390, %v5500, -inf
        %v5683 = vrot.slane %v5682, 4
        %v5684 = vmax.f32 %v5682, %v5683
        %v5685 = vrot.slane %v5684, 2
        %v5686 = vmax.f32 %v5684, %v5685
        %v5687 = vrot.slane %v5686, 1
        %v5688 = vmax.f32 %v5686, %v5687
        %v5689 = vsel %vm390, %v5501, -inf
        %v5690 = vrot.slane %v5689, 4
        %v5691 = vmax.f32 %v5689, %v5690
        %v5692 = vrot.slane %v5691, 2
        %v5693 = vmax.f32 %v5691, %v5692
        %v5694 = vrot.slane %v5693, 1
        %v5695 = vmax.f32 %v5693, %v5694
        %v5696 = vsel %vm390, %v5502, -inf
        %v5697 = vrot.slane %v5696, 4
        %v5698 = vmax.f32 %v5696, %v5697
        %v5699 = vrot.slane %v5698, 2
        %v5700 = vmax.f32 %v5698, %v5699
        %v5701 = vrot.slane %v5700, 1
        %v5702 = vmax.f32 %v5700, %v5701
        %v5703 = vsel %vm390, %v5503, -inf
        %v5704 = vrot.slane %v5703, 4
        %v5705 = vmax.f32 %v5703, %v5704
        %v5706 = vrot.slane %v5705, 2
        %v5707 = vmax.f32 %v5705, %v5706
        %v5708 = vrot.slane %v5707, 1
        %v5709 = vmax.f32 %v5707, %v5708
        %v5710 = vsel %vm390, %v5504, -inf
        %v5711 = vrot.slane %v5710, 4
        %v5712 = vmax.f32 %v5710, %v5711
        %v5713 = vrot.slane %v5712, 2
        %v5714 = vmax.f32 %v5712, %v5713
        %v5715 = vrot.slane %v5714, 1
        %v5716 = vmax.f32 %v5714, %v5715
        %v5717 = vsel %vm390, %v5505, -inf
        %v5718 = vrot.slane %v5717, 4
        %v5719 = vmax.f32 %v5717, %v5718
        %v5720 = vrot.slane %v5719, 2
        %v5721 = vmax.f32 %v5719, %v5720
        %v5722 = vrot.slane %v5721, 1
        %v5723 = vmax.f32 %v5721, %v5722
        %v5724 = vsel %vm390, %v5506, -inf
        %v5725 = vrot.slane %v5724, 4
        %v5726 = vmax.f32 %v5724, %v5725
        %v5727 = vrot.slane %v5726, 2
        %v5728 = vmax.f32 %v5726, %v5727
        %v5729 = vrot.slane %v5728, 1
        %v5730 = vmax.f32 %v5728, %v5729
        %s5731 = scalar_lea.vmem [#allocation2], 112
        %v5732 = vld [vmem:[%s5731] sm:$0xff]
        %v5733 = vld [vmem:[%s5731 + $0x80] sm:$0xff]
        %v5734 = vld [vmem:[%s5731 + $0x100] sm:$0xff]
        %v5735 = vld [vmem:[%s5731 + $0x180] sm:$0xff]
        %v5768 = vsel %vm651, %v5520, %v5513
        %v5769 = vsel %vm653, %v5527, %v5768
        %v5770 = vsel %vm655, %v5534, %v5769
        %v5771 = vsel %vm657, %v5541, %v5770
        %v5772 = vsel %vm659, %v5548, %v5771
        %v5773 = vsel %vm661, %v5555, %v5772
        %v5774 = vsel %vm663, %v5562, %v5773
        %v5775 = vsel %vm651, %v5576, %v5569
        %v5776 = vsel %vm653, %v5583, %v5775
        %v5777 = vsel %vm655, %v5590, %v5776
        %v5778 = vsel %vm657, %v5597, %v5777
        %v5779 = vsel %vm659, %v5604, %v5778
        %v5780 = vsel %vm661, %v5611, %v5779
        %v5781 = vsel %vm663, %v5618, %v5780
        %v5782 = vsel %vm651, %v5632, %v5625
        %v5783 = vsel %vm653, %v5639, %v5782
        %v5784 = vsel %vm655, %v5646, %v5783
        %v5785 = vsel %vm657, %v5653, %v5784
        %v5786 = vsel %vm659, %v5660, %v5785
        %v5787 = vsel %vm661, %v5667, %v5786
        %v5788 = vsel %vm663, %v5674, %v5787
        %v5789 = vsel %vm651, %v5688, %v5681
        %v5790 = vsel %vm653, %v5695, %v5789
        %v5791 = vsel %vm655, %v5702, %v5790
        %v5792 = vsel %vm657, %v5709, %v5791
        %v5793 = vsel %vm659, %v5716, %v5792
        %v5794 = vsel %vm661, %v5723, %v5793
        %v5795 = vsel %vm663, %v5730, %v5794
        %v5800 = vmax.f32 %v5732, %v5774
        %v5801 = vmax.f32 %v5733, %v5781
        %v5802 = vmax.f32 %v5734, %v5788
        %v5803 = vmax.f32 %v5735, %v5795
        %5804 = vst.msk [vmem:[%s5731] sm:$0xff] %vm390, %v5800
        %5805 = vst.msk [vmem:[%s5731 + $0x80] sm:$0xff] %vm390, %v5801
        %5806 = vst.msk [vmem:[%s5731 + $0x100] sm:$0xff] %vm390, %v5802
        %5807 = vst.msk [vmem:[%s5731 + $0x180] sm:$0xff] %vm390, %v5803
        %v5808 = vstv 120
        %v5809 = vadd.s32 %v5808, 1
        %v5810 = vadd.s32 %v5808, 2
        %v5811 = vadd.s32 %v5808, 3
        %v5812 = vadd.s32 %v5808, 4
        %v5813 = vadd.s32 %v5808, 5
        %v5814 = vadd.s32 %v5808, 6
        %v5815 = vadd.s32 %v5808, 7
        %vm5816 = vcmp.eq.s32.totalorder %v325, %v5808
        %vm5817 = vcmp.eq.s32.totalorder %v325, %v5809
        %vm5818 = vcmp.eq.s32.totalorder %v325, %v5810
        %vm5819 = vcmp.eq.s32.totalorder %v325, %v5811
        %vm5820 = vcmp.eq.s32.totalorder %v325, %v5812
        %vm5821 = vcmp.eq.s32.totalorder %v325, %v5813
        %vm5822 = vcmp.eq.s32.totalorder %v325, %v5814
        %vm5823 = vcmp.eq.s32.totalorder %v325, %v5815
        %v5824 = vsel %vm5816, 1, 0
        %v5825 = vsel %vm5817, 1, 0
        %v5826 = vsel %vm5818, 1, 0
        %v5827 = vsel %vm5819, 1, 0
        %v5828 = vsel %vm5820, 1, 0
        %v5829 = vsel %vm5821, 1, 0
        %v5830 = vsel %vm5822, 1, 0
        %v5831 = vsel %vm5823, 1, 0
        %vm5832 = vcmp.eq.s32.totalorder %v5824, 1
        %vm5833 = vcmp.eq.s32.totalorder %v5825, 1
        %vm5834 = vcmp.eq.s32.totalorder %v5826, 1
        %vm5835 = vcmp.eq.s32.totalorder %v5827, 1
        %vm5836 = vcmp.eq.s32.totalorder %v5828, 1
        %vm5837 = vcmp.eq.s32.totalorder %v5829, 1
        %vm5838 = vcmp.eq.s32.totalorder %v5830, 1
        %vm5839 = vcmp.eq.s32.totalorder %v5831, 1
        %v5840 = vsel %vm5832, %v306, -inf
        %v5841 = vsel %vm5833, %v306, -inf
        %v5842 = vsel %vm5834, %v306, -inf
        %v5843 = vsel %vm5835, %v306, -inf
        %v5844 = vsel %vm5836, %v306, -inf
        %v5845 = vsel %vm5837, %v306, -inf
        %v5846 = vsel %vm5838, %v306, -inf
        %v5847 = vsel %vm5839, %v306, -inf
        %v5848 = vsel %vm5832, %v307, -inf
        %v5849 = vsel %vm5833, %v307, -inf
        %v5850 = vsel %vm5834, %v307, -inf
        %v5851 = vsel %vm5835, %v307, -inf
        %v5852 = vsel %vm5836, %v307, -inf
        %v5853 = vsel %vm5837, %v307, -inf
        %v5854 = vsel %vm5838, %v307, -inf
        %v5855 = vsel %vm5839, %v307, -inf
        %v5856 = vsel %vm5832, %v308, -inf
        %v5857 = vsel %vm5833, %v308, -inf
        %v5858 = vsel %vm5834, %v308, -inf
        %v5859 = vsel %vm5835, %v308, -inf
        %v5860 = vsel %vm5836, %v308, -inf
        %v5861 = vsel %vm5837, %v308, -inf
        %v5862 = vsel %vm5838, %v308, -inf
        %v5863 = vsel %vm5839, %v308, -inf
        %v5864 = vsel %vm5832, %v309, -inf
        %v5865 = vsel %vm5833, %v309, -inf
        %v5866 = vsel %vm5834, %v309, -inf
        %v5867 = vsel %vm5835, %v309, -inf
        %v5868 = vsel %vm5836, %v309, -inf
        %v5869 = vsel %vm5837, %v309, -inf
        %v5870 = vsel %vm5838, %v309, -inf
        %v5871 = vsel %vm5839, %v309, -inf
        %v5872 = vsel %vm390, %v5840, -inf
        %v5873 = vrot.slane %v5872, 4
        %v5874 = vmax.f32 %v5872, %v5873
        %v5875 = vrot.slane %v5874, 2
        %v5876 = vmax.f32 %v5874, %v5875
        %v5877 = vrot.slane %v5876, 1
        %v5878 = vmax.f32 %v5876, %v5877
        %v5879 = vsel %vm390, %v5841, -inf
        %v5880 = vrot.slane %v5879, 4
        %v5881 = vmax.f32 %v5879, %v5880
        %v5882 = vrot.slane %v5881, 2
        %v5883 = vmax.f32 %v5881, %v5882
        %v5884 = vrot.slane %v5883, 1
        %v5885 = vmax.f32 %v5883, %v5884
        %v5886 = vsel %vm390, %v5842, -inf
        %v5887 = vrot.slane %v5886, 4
        %v5888 = vmax.f32 %v5886, %v5887
        %v5889 = vrot.slane %v5888, 2
        %v5890 = vmax.f32 %v5888, %v5889
        %v5891 = vrot.slane %v5890, 1
        %v5892 = vmax.f32 %v5890, %v5891
        %v5893 = vsel %vm390, %v5843, -inf
        %v5894 = vrot.slane %v5893, 4
        %v5895 = vmax.f32 %v5893, %v5894
        %v5896 = vrot.slane %v5895, 2
        %v5897 = vmax.f32 %v5895, %v5896
        %v5898 = vrot.slane %v5897, 1
        %v5899 = vmax.f32 %v5897, %v5898
        %v5900 = vsel %vm390, %v5844, -inf
        %v5901 = vrot.slane %v5900, 4
        %v5902 = vmax.f32 %v5900, %v5901
        %v5903 = vrot.slane %v5902, 2
        %v5904 = vmax.f32 %v5902, %v5903
        %v5905 = vrot.slane %v5904, 1
        %v5906 = vmax.f32 %v5904, %v5905
        %v5907 = vsel %vm390, %v5845, -inf
        %v5908 = vrot.slane %v5907, 4
        %v5909 = vmax.f32 %v5907, %v5908
        %v5910 = vrot.slane %v5909, 2
        %v5911 = vmax.f32 %v5909, %v5910
        %v5912 = vrot.slane %v5911, 1
        %v5913 = vmax.f32 %v5911, %v5912
        %v5914 = vsel %vm390, %v5846, -inf
        %v5915 = vrot.slane %v5914, 4
        %v5916 = vmax.f32 %v5914, %v5915
        %v5917 = vrot.slane %v5916, 2
        %v5918 = vmax.f32 %v5916, %v5917
        %v5919 = vrot.slane %v5918, 1
        %v5920 = vmax.f32 %v5918, %v5919
        %v5921 = vsel %vm390, %v5847, -inf
        %v5922 = vrot.slane %v5921, 4
        %v5923 = vmax.f32 %v5921, %v5922
        %v5924 = vrot.slane %v5923, 2
        %v5925 = vmax.f32 %v5923, %v5924
        %v5926 = vrot.slane %v5925, 1
        %v5927 = vmax.f32 %v5925, %v5926
        %v5928 = vsel %vm390, %v5848, -inf
        %v5929 = vrot.slane %v5928, 4
        %v5930 = vmax.f32 %v5928, %v5929
        %v5931 = vrot.slane %v5930, 2
        %v5932 = vmax.f32 %v5930, %v5931
        %v5933 = vrot.slane %v5932, 1
        %v5934 = vmax.f32 %v5932, %v5933
        %v5935 = vsel %vm390, %v5849, -inf
        %v5936 = vrot.slane %v5935, 4
        %v5937 = vmax.f32 %v5935, %v5936
        %v5938 = vrot.slane %v5937, 2
        %v5939 = vmax.f32 %v5937, %v5938
        %v5940 = vrot.slane %v5939, 1
        %v5941 = vmax.f32 %v5939, %v5940
        %v5942 = vsel %vm390, %v5850, -inf
        %v5943 = vrot.slane %v5942, 4
        %v5944 = vmax.f32 %v5942, %v5943
        %v5945 = vrot.slane %v5944, 2
        %v5946 = vmax.f32 %v5944, %v5945
        %v5947 = vrot.slane %v5946, 1
        %v5948 = vmax.f32 %v5946, %v5947
        %v5949 = vsel %vm390, %v5851, -inf
        %v5950 = vrot.slane %v5949, 4
        %v5951 = vmax.f32 %v5949, %v5950
        %v5952 = vrot.slane %v5951, 2
        %v5953 = vmax.f32 %v5951, %v5952
        %v5954 = vrot.slane %v5953, 1
        %v5955 = vmax.f32 %v5953, %v5954
        %v5956 = vsel %vm390, %v5852, -inf
        %v5957 = vrot.slane %v5956, 4
        %v5958 = vmax.f32 %v5956, %v5957
        %v5959 = vrot.slane %v5958, 2
        %v5960 = vmax.f32 %v5958, %v5959
        %v5961 = vrot.slane %v5960, 1
        %v5962 = vmax.f32 %v5960, %v5961
        %v5963 = vsel %vm390, %v5853, -inf
        %v5964 = vrot.slane %v5963, 4
        %v5965 = vmax.f32 %v5963, %v5964
        %v5966 = vrot.slane %v5965, 2
        %v5967 = vmax.f32 %v5965, %v5966
        %v5968 = vrot.slane %v5967, 1
        %v5969 = vmax.f32 %v5967, %v5968
        %v5970 = vsel %vm390, %v5854, -inf
        %v5971 = vrot.slane %v5970, 4
        %v5972 = vmax.f32 %v5970, %v5971
        %v5973 = vrot.slane %v5972, 2
        %v5974 = vmax.f32 %v5972, %v5973
        %v5975 = vrot.slane %v5974, 1
        %v5976 = vmax.f32 %v5974, %v5975
        %v5977 = vsel %vm390, %v5855, -inf
        %v5978 = vrot.slane %v5977, 4
        %v5979 = vmax.f32 %v5977, %v5978
        %v5980 = vrot.slane %v5979, 2
        %v5981 = vmax.f32 %v5979, %v5980
        %v5982 = vrot.slane %v5981, 1
        %v5983 = vmax.f32 %v5981, %v5982
        %v5984 = vsel %vm390, %v5856, -inf
        %v5985 = vrot.slane %v5984, 4
        %v5986 = vmax.f32 %v5984, %v5985
        %v5987 = vrot.slane %v5986, 2
        %v5988 = vmax.f32 %v5986, %v5987
        %v5989 = vrot.slane %v5988, 1
        %v5990 = vmax.f32 %v5988, %v5989
        %v5991 = vsel %vm390, %v5857, -inf
        %v5992 = vrot.slane %v5991, 4
        %v5993 = vmax.f32 %v5991, %v5992
        %v5994 = vrot.slane %v5993, 2
        %v5995 = vmax.f32 %v5993, %v5994
        %v5996 = vrot.slane %v5995, 1
        %v5997 = vmax.f32 %v5995, %v5996
        %v5998 = vsel %vm390, %v5858, -inf
        %v5999 = vrot.slane %v5998, 4
        %v6000 = vmax.f32 %v5998, %v5999
        %v6001 = vrot.slane %v6000, 2
        %v6002 = vmax.f32 %v6000, %v6001
        %v6003 = vrot.slane %v6002, 1
        %v6004 = vmax.f32 %v6002, %v6003
        %v6005 = vsel %vm390, %v5859, -inf
        %v6006 = vrot.slane %v6005, 4
        %v6007 = vmax.f32 %v6005, %v6006
        %v6008 = vrot.slane %v6007, 2
        %v6009 = vmax.f32 %v6007, %v6008
        %v6010 = vrot.slane %v6009, 1
        %v6011 = vmax.f32 %v6009, %v6010
        %v6012 = vsel %vm390, %v5860, -inf
        %v6013 = vrot.slane %v6012, 4
        %v6014 = vmax.f32 %v6012, %v6013
        %v6015 = vrot.slane %v6014, 2
        %v6016 = vmax.f32 %v6014, %v6015
        %v6017 = vrot.slane %v6016, 1
        %v6018 = vmax.f32 %v6016, %v6017
        %v6019 = vsel %vm390, %v5861, -inf
        %v6020 = vrot.slane %v6019, 4
        %v6021 = vmax.f32 %v6019, %v6020
        %v6022 = vrot.slane %v6021, 2
        %v6023 = vmax.f32 %v6021, %v6022
        %v6024 = vrot.slane %v6023, 1
        %v6025 = vmax.f32 %v6023, %v6024
        %v6026 = vsel %vm390, %v5862, -inf
        %v6027 = vrot.slane %v6026, 4
        %v6028 = vmax.f32 %v6026, %v6027
        %v6029 = vrot.slane %v6028, 2
        %v6030 = vmax.f32 %v6028, %v6029
        %v6031 = vrot.slane %v6030, 1
        %v6032 = vmax.f32 %v6030, %v6031
        %v6033 = vsel %vm390, %v5863, -inf
        %v6034 = vrot.slane %v6033, 4
        %v6035 = vmax.f32 %v6033, %v6034
        %v6036 = vrot.slane %v6035, 2
        %v6037 = vmax.f32 %v6035, %v6036
        %v6038 = vrot.slane %v6037, 1
        %v6039 = vmax.f32 %v6037, %v6038
        %v6040 = vsel %vm390, %v5864, -inf
        %v6041 = vrot.slane %v6040, 4
        %v6042 = vmax.f32 %v6040, %v6041
        %v6043 = vrot.slane %v6042, 2
        %v6044 = vmax.f32 %v6042, %v6043
        %v6045 = vrot.slane %v6044, 1
        %v6046 = vmax.f32 %v6044, %v6045
        %v6047 = vsel %vm390, %v5865, -inf
        %v6048 = vrot.slane %v6047, 4
        %v6049 = vmax.f32 %v6047, %v6048
        %v6050 = vrot.slane %v6049, 2
        %v6051 = vmax.f32 %v6049, %v6050
        %v6052 = vrot.slane %v6051, 1
        %v6053 = vmax.f32 %v6051, %v6052
        %v6054 = vsel %vm390, %v5866, -inf
        %v6055 = vrot.slane %v6054, 4
        %v6056 = vmax.f32 %v6054, %v6055
        %v6057 = vrot.slane %v6056, 2
        %v6058 = vmax.f32 %v6056, %v6057
        %v6059 = vrot.slane %v6058, 1
        %v6060 = vmax.f32 %v6058, %v6059
        %v6061 = vsel %vm390, %v5867, -inf
        %v6062 = vrot.slane %v6061, 4
        %v6063 = vmax.f32 %v6061, %v6062
        %v6064 = vrot.slane %v6063, 2
        %v6065 = vmax.f32 %v6063, %v6064
        %v6066 = vrot.slane %v6065, 1
        %v6067 = vmax.f32 %v6065, %v6066
        %v6068 = vsel %vm390, %v5868, -inf
        %v6069 = vrot.slane %v6068, 4
        %v6070 = vmax.f32 %v6068, %v6069
        %v6071 = vrot.slane %v6070, 2
        %v6072 = vmax.f32 %v6070, %v6071
        %v6073 = vrot.slane %v6072, 1
        %v6074 = vmax.f32 %v6072, %v6073
        %v6075 = vsel %vm390, %v5869, -inf
        %v6076 = vrot.slane %v6075, 4
        %v6077 = vmax.f32 %v6075, %v6076
        %v6078 = vrot.slane %v6077, 2
        %v6079 = vmax.f32 %v6077, %v6078
        %v6080 = vrot.slane %v6079, 1
        %v6081 = vmax.f32 %v6079, %v6080
        %v6082 = vsel %vm390, %v5870, -inf
        %v6083 = vrot.slane %v6082, 4
        %v6084 = vmax.f32 %v6082, %v6083
        %v6085 = vrot.slane %v6084, 2
        %v6086 = vmax.f32 %v6084, %v6085
        %v6087 = vrot.slane %v6086, 1
        %v6088 = vmax.f32 %v6086, %v6087
        %v6089 = vsel %vm390, %v5871, -inf
        %v6090 = vrot.slane %v6089, 4
        %v6091 = vmax.f32 %v6089, %v6090
        %v6092 = vrot.slane %v6091, 2
        %v6093 = vmax.f32 %v6091, %v6092
        %v6094 = vrot.slane %v6093, 1
        %v6095 = vmax.f32 %v6093, %v6094
        %s6096 = scalar_lea.vmem [#allocation2], 120
        %v6097 = vld [vmem:[%s6096] sm:$0xff]
        %v6098 = vld [vmem:[%s6096 + $0x80] sm:$0xff]
        %v6099 = vld [vmem:[%s6096 + $0x100] sm:$0xff]
        %v6100 = vld [vmem:[%s6096 + $0x180] sm:$0xff]
        %v6133 = vsel %vm651, %v5885, %v5878
        %v6134 = vsel %vm653, %v5892, %v6133
        %v6135 = vsel %vm655, %v5899, %v6134
        %v6136 = vsel %vm657, %v5906, %v6135
        %v6137 = vsel %vm659, %v5913, %v6136
        %v6138 = vsel %vm661, %v5920, %v6137
        %v6139 = vsel %vm663, %v5927, %v6138
        %v6140 = vsel %vm651, %v5941, %v5934
        %v6141 = vsel %vm653, %v5948, %v6140
        %v6142 = vsel %vm655, %v5955, %v6141
        %v6143 = vsel %vm657, %v5962, %v6142
        %v6144 = vsel %vm659, %v5969, %v6143
        %v6145 = vsel %vm661, %v5976, %v6144
        %v6146 = vsel %vm663, %v5983, %v6145
        %v6147 = vsel %vm651, %v5997, %v5990
        %v6148 = vsel %vm653, %v6004, %v6147
        %v6149 = vsel %vm655, %v6011, %v6148
        %v6150 = vsel %vm657, %v6018, %v6149
        %v6151 = vsel %vm659, %v6025, %v6150
        %v6152 = vsel %vm661, %v6032, %v6151
        %v6153 = vsel %vm663, %v6039, %v6152
        %v6154 = vsel %vm651, %v6053, %v6046
        %v6155 = vsel %vm653, %v6060, %v6154
        %v6156 = vsel %vm655, %v6067, %v6155
        %v6157 = vsel %vm657, %v6074, %v6156
        %v6158 = vsel %vm659, %v6081, %v6157
        %v6159 = vsel %vm661, %v6088, %v6158
        %v6160 = vsel %vm663, %v6095, %v6159
        %v6165 = vmax.f32 %v6097, %v6139
        %v6166 = vmax.f32 %v6098, %v6146
        %v6167 = vmax.f32 %v6099, %v6153
        %v6168 = vmax.f32 %v6100, %v6160
        %6169 = vst.msk [vmem:[%s6096] sm:$0xff] %vm390, %v6165
        %6170 = vst.msk [vmem:[%s6096 + $0x80] sm:$0xff] %vm390, %v6166
        %6171 = vst.msk [vmem:[%s6096 + $0x100] sm:$0xff] %vm390, %v6167
        %6172 = vst.msk [vmem:[%s6096 + $0x180] sm:$0xff] %vm390, %v6168
        %p6173 = scmp.eq.s32.totalorder %s29, 1
        // Predicated region
        $region41: #{superfeatures.1} parent=27 // pred_check
          %p6174 = pneg %p6173
        $region42: #{superfeatures.1} parent=27 // pred_check_branch
          %6176 = sbr.rel (%p6174) target = $region44
        $region43: #{superfeatures.1} parent=27 // pred_region
          %v6177 = vld [vmem:[#allocation2] sm:$0xff]
          %v6178 = vld [vmem:[#allocation2 + $0x8] sm:$0xff]
          %v6179 = vld [vmem:[#allocation2 + $0x10] sm:$0xff]
          %v6180 = vld [vmem:[#allocation2 + $0x18] sm:$0xff]
          %v6181 = vld [vmem:[#allocation2 + $0x20] sm:$0xff]
          %v6182 = vld [vmem:[#allocation2 + $0x28] sm:$0xff]
          %v6183 = vld [vmem:[#allocation2 + $0x30] sm:$0xff]
          %v6184 = vld [vmem:[#allocation2 + $0x38] sm:$0xff]
          %v6185 = vld [vmem:[#allocation2 + $0x40] sm:$0xff]
          %v6186 = vld [vmem:[#allocation2 + $0x48] sm:$0xff]
          %v6187 = vld [vmem:[#allocation2 + $0x50] sm:$0xff]
          %v6188 = vld [vmem:[#allocation2 + $0x58] sm:$0xff]
          %v6189 = vld [vmem:[#allocation2 + $0x60] sm:$0xff]
          %v6190 = vld [vmem:[#allocation2 + $0x68] sm:$0xff]
          %v6191 = vld [vmem:[#allocation2 + $0x70] sm:$0xff]
          %v6192 = vld [vmem:[#allocation2 + $0x78] sm:$0xff]
          %v6193 = vld [vmem:[#allocation2 + $0x80] sm:$0xff]
          %v6194 = vld [vmem:[#allocation2 + $0x88] sm:$0xff]
          %v6195 = vld [vmem:[#allocation2 + $0x90] sm:$0xff]
          %v6196 = vld [vmem:[#allocation2 + $0x98] sm:$0xff]
          %v6197 = vld [vmem:[#allocation2 + $0xa0] sm:$0xff]
          %v6198 = vld [vmem:[#allocation2 + $0xa8] sm:$0xff]
          %v6199 = vld [vmem:[#allocation2 + $0xb0] sm:$0xff]
          %v6200 = vld [vmem:[#allocation2 + $0xb8] sm:$0xff]
          %v6201 = vld [vmem:[#allocation2 + $0xc0] sm:$0xff]
          %v6202 = vld [vmem:[#allocation2 + $0xc8] sm:$0xff]
          %v6203 = vld [vmem:[#allocation2 + $0xd0] sm:$0xff]
          %v6204 = vld [vmem:[#allocation2 + $0xd8] sm:$0xff]
          %v6205 = vld [vmem:[#allocation2 + $0xe0] sm:$0xff]
          %v6206 = vld [vmem:[#allocation2 + $0xe8] sm:$0xff]
          %v6207 = vld [vmem:[#allocation2 + $0xf0] sm:$0xff]
          %v6208 = vld [vmem:[#allocation2 + $0xf8] sm:$0xff]
          %v6209 = vld [vmem:[#allocation2 + $0x100] sm:$0xff]
          %v6210 = vld [vmem:[#allocation2 + $0x108] sm:$0xff]
          %v6211 = vld [vmem:[#allocation2 + $0x110] sm:$0xff]
          %v6212 = vld [vmem:[#allocation2 + $0x118] sm:$0xff]
          %v6213 = vld [vmem:[#allocation2 + $0x120] sm:$0xff]
          %v6214 = vld [vmem:[#allocation2 + $0x128] sm:$0xff]
          %v6215 = vld [vmem:[#allocation2 + $0x130] sm:$0xff]
          %v6216 = vld [vmem:[#allocation2 + $0x138] sm:$0xff]
          %v6217 = vld [vmem:[#allocation2 + $0x140] sm:$0xff]
          %v6218 = vld [vmem:[#allocation2 + $0x148] sm:$0xff]
          %v6219 = vld [vmem:[#allocation2 + $0x150] sm:$0xff]
          %v6220 = vld [vmem:[#allocation2 + $0x158] sm:$0xff]
          %v6221 = vld [vmem:[#allocation2 + $0x160] sm:$0xff]
          %v6222 = vld [vmem:[#allocation2 + $0x168] sm:$0xff]
          %v6223 = vld [vmem:[#allocation2 + $0x170] sm:$0xff]
          %v6224 = vld [vmem:[#allocation2 + $0x178] sm:$0xff]
          %v6225 = vld [vmem:[#allocation2 + $0x180] sm:$0xff]
          %v6226 = vld [vmem:[#allocation2 + $0x188] sm:$0xff]
          %v6227 = vld [vmem:[#allocation2 + $0x190] sm:$0xff]
          %v6228 = vld [vmem:[#allocation2 + $0x198] sm:$0xff]
          %v6229 = vld [vmem:[#allocation2 + $0x1a0] sm:$0xff]
          %v6230 = vld [vmem:[#allocation2 + $0x1a8] sm:$0xff]
          %v6231 = vld [vmem:[#allocation2 + $0x1b0] sm:$0xff]
          %v6232 = vld [vmem:[#allocation2 + $0x1b8] sm:$0xff]
          %v6233 = vld [vmem:[#allocation2 + $0x1c0] sm:$0xff]
          %v6234 = vld [vmem:[#allocation2 + $0x1c8] sm:$0xff]
          %v6235 = vld [vmem:[#allocation2 + $0x1d0] sm:$0xff]
          %v6236 = vld [vmem:[#allocation2 + $0x1d8] sm:$0xff]
          %v6237 = vld [vmem:[#allocation2 + $0x1e0] sm:$0xff]
          %v6238 = vld [vmem:[#allocation2 + $0x1e8] sm:$0xff]
          %v6239 = vld [vmem:[#allocation2 + $0x1f0] sm:$0xff]
          %v6240 = vld [vmem:[#allocation2 + $0x1f8] sm:$0xff]
          %v6241 = vsel %vm390, %v6177, -inf
          %6242 = vmax.xlane.f32.xlu0 %v6241
          %v6243 = vpop.xlane.xlu0 %6242
          %v6244 = vsel %vm390, %v6178, -inf
          %6245 = vmax.xlane.f32.xlu0 %v6244
          %v6246 = vpop.xlane.xlu0 %6245
          %v6247 = vsel %vm390, %v6179, -inf
          %6248 = vmax.xlane.f32.xlu0 %v6247
          %v6249 = vpop.xlane.xlu0 %6248
          %v6250 = vsel %vm390, %v6180, -inf
          %6251 = vmax.xlane.f32.xlu0 %v6250
          %v6252 = vpop.xlane.xlu0 %6251
          %v6253 = vsel %vm390, %v6181, -inf
          %6254 = vmax.xlane.f32.xlu0 %v6253
          %v6255 = vpop.xlane.xlu0 %6254
          %v6256 = vsel %vm390, %v6182, -inf
          %6257 = vmax.xlane.f32.xlu0 %v6256
          %v6258 = vpop.xlane.xlu0 %6257
          %v6259 = vsel %vm390, %v6183, -inf
          %6260 = vmax.xlane.f32.xlu0 %v6259
          %v6261 = vpop.xlane.xlu0 %6260
          %v6262 = vsel %vm390, %v6184, -inf
          %6263 = vmax.xlane.f32.xlu0 %v6262
          %v6264 = vpop.xlane.xlu0 %6263
          %v6265 = vsel %vm390, %v6185, -inf
          %6266 = vmax.xlane.f32.xlu0 %v6265
          %v6267 = vpop.xlane.xlu0 %6266
          %v6268 = vsel %vm390, %v6186, -inf
          %6269 = vmax.xlane.f32.xlu0 %v6268
          %v6270 = vpop.xlane.xlu0 %6269
          %v6271 = vsel %vm390, %v6187, -inf
          %6272 = vmax.xlane.f32.xlu0 %v6271
          %v6273 = vpop.xlane.xlu0 %6272
          %v6274 = vsel %vm390, %v6188, -inf
          %6275 = vmax.xlane.f32.xlu0 %v6274
          %v6276 = vpop.xlane.xlu0 %6275
          %v6277 = vsel %vm390, %v6189, -inf
          %6278 = vmax.xlane.f32.xlu0 %v6277
          %v6279 = vpop.xlane.xlu0 %6278
          %v6280 = vsel %vm390, %v6190, -inf
          %6281 = vmax.xlane.f32.xlu0 %v6280
          %v6282 = vpop.xlane.xlu0 %6281
          %v6283 = vsel %vm390, %v6191, -inf
          %6284 = vmax.xlane.f32.xlu0 %v6283
          %v6285 = vpop.xlane.xlu0 %6284
          %v6286 = vsel %vm390, %v6192, -inf
          %6287 = vmax.xlane.f32.xlu0 %v6286
          %v6288 = vpop.xlane.xlu0 %6287
          %v6289 = vsel %vm390, %v6193, -inf
          %6290 = vmax.xlane.f32.xlu0 %v6289
          %v6291 = vpop.xlane.xlu0 %6290
          %v6292 = vsel %vm390, %v6194, -inf
          %6293 = vmax.xlane.f32.xlu0 %v6292
          %v6294 = vpop.xlane.xlu0 %6293
          %v6295 = vsel %vm390, %v6195, -inf
          %6296 = vmax.xlane.f32.xlu0 %v6295
          %v6297 = vpop.xlane.xlu0 %6296
          %v6298 = vsel %vm390, %v6196, -inf
          %6299 = vmax.xlane.f32.xlu0 %v6298
          %v6300 = vpop.xlane.xlu0 %6299
          %v6301 = vsel %vm390, %v6197, -inf
          %6302 = vmax.xlane.f32.xlu0 %v6301
          %v6303 = vpop.xlane.xlu0 %6302
          %v6304 = vsel %vm390, %v6198, -inf
          %6305 = vmax.xlane.f32.xlu0 %v6304
          %v6306 = vpop.xlane.xlu0 %6305
          %v6307 = vsel %vm390, %v6199, -inf
          %6308 = vmax.xlane.f32.xlu0 %v6307
          %v6309 = vpop.xlane.xlu0 %6308
          %v6310 = vsel %vm390, %v6200, -inf
          %6311 = vmax.xlane.f32.xlu0 %v6310
          %v6312 = vpop.xlane.xlu0 %6311
          %v6313 = vsel %vm390, %v6201, -inf
          %6314 = vmax.xlane.f32.xlu0 %v6313
          %v6315 = vpop.xlane.xlu0 %6314
          %v6316 = vsel %vm390, %v6202, -inf
          %6317 = vmax.xlane.f32.xlu0 %v6316
          %v6318 = vpop.xlane.xlu0 %6317
          %v6319 = vsel %vm390, %v6203, -inf
          %6320 = vmax.xlane.f32.xlu0 %v6319
          %v6321 = vpop.xlane.xlu0 %6320
          %v6322 = vsel %vm390, %v6204, -inf
          %6323 = vmax.xlane.f32.xlu0 %v6322
          %v6324 = vpop.xlane.xlu0 %6323
          %v6325 = vsel %vm390, %v6205, -inf
          %6326 = vmax.xlane.f32.xlu0 %v6325
          %v6327 = vpop.xlane.xlu0 %6326
          %v6328 = vsel %vm390, %v6206, -inf
          %6329 = vmax.xlane.f32.xlu0 %v6328
          %v6330 = vpop.xlane.xlu0 %6329
          %v6331 = vsel %vm390, %v6207, -inf
          %6332 = vmax.xlane.f32.xlu0 %v6331
          %v6333 = vpop.xlane.xlu0 %6332
          %v6334 = vsel %vm390, %v6208, -inf
          %6335 = vmax.xlane.f32.xlu0 %v6334
          %v6336 = vpop.xlane.xlu0 %6335
          %v6337 = vsel %vm390, %v6209, -inf
          %6338 = vmax.xlane.f32.xlu0 %v6337
          %v6339 = vpop.xlane.xlu0 %6338
          %v6340 = vsel %vm390, %v6210, -inf
          %6341 = vmax.xlane.f32.xlu0 %v6340
          %v6342 = vpop.xlane.xlu0 %6341
          %v6343 = vsel %vm390, %v6211, -inf
          %6344 = vmax.xlane.f32.xlu0 %v6343
          %v6345 = vpop.xlane.xlu0 %6344
          %v6346 = vsel %vm390, %v6212, -inf
          %6347 = vmax.xlane.f32.xlu0 %v6346
          %v6348 = vpop.xlane.xlu0 %6347
          %v6349 = vsel %vm390, %v6213, -inf
          %6350 = vmax.xlane.f32.xlu0 %v6349
          %v6351 = vpop.xlane.xlu0 %6350
          %v6352 = vsel %vm390, %v6214, -inf
          %6353 = vmax.xlane.f32.xlu0 %v6352
          %v6354 = vpop.xlane.xlu0 %6353
          %v6355 = vsel %vm390, %v6215, -inf
          %6356 = vmax.xlane.f32.xlu0 %v6355
          %v6357 = vpop.xlane.xlu0 %6356
          %v6358 = vsel %vm390, %v6216, -inf
          %6359 = vmax.xlane.f32.xlu0 %v6358
          %v6360 = vpop.xlane.xlu0 %6359
          %v6361 = vsel %vm390, %v6217, -inf
          %6362 = vmax.xlane.f32.xlu0 %v6361
          %v6363 = vpop.xlane.xlu0 %6362
          %v6364 = vsel %vm390, %v6218, -inf
          %6365 = vmax.xlane.f32.xlu0 %v6364
          %v6366 = vpop.xlane.xlu0 %6365
          %v6367 = vsel %vm390, %v6219, -inf
          %6368 = vmax.xlane.f32.xlu0 %v6367
          %v6369 = vpop.xlane.xlu0 %6368
          %v6370 = vsel %vm390, %v6220, -inf
          %6371 = vmax.xlane.f32.xlu0 %v6370
          %v6372 = vpop.xlane.xlu0 %6371
          %v6373 = vsel %vm390, %v6221, -inf
          %6374 = vmax.xlane.f32.xlu0 %v6373
          %v6375 = vpop.xlane.xlu0 %6374
          %v6376 = vsel %vm390, %v6222, -inf
          %6377 = vmax.xlane.f32.xlu0 %v6376
          %v6378 = vpop.xlane.xlu0 %6377
          %v6379 = vsel %vm390, %v6223, -inf
          %6380 = vmax.xlane.f32.xlu0 %v6379
          %v6381 = vpop.xlane.xlu0 %6380
          %v6382 = vsel %vm390, %v6224, -inf
          %6383 = vmax.xlane.f32.xlu0 %v6382
          %v6384 = vpop.xlane.xlu0 %6383
          %v6385 = vsel %vm390, %v6225, -inf
          %6386 = vmax.xlane.f32.xlu0 %v6385
          %v6387 = vpop.xlane.xlu0 %6386
          %v6388 = vsel %vm390, %v6226, -inf
          %6389 = vmax.xlane.f32.xlu0 %v6388
          %v6390 = vpop.xlane.xlu0 %6389
          %v6391 = vsel %vm390, %v6227, -inf
          %6392 = vmax.xlane.f32.xlu0 %v6391
          %v6393 = vpop.xlane.xlu0 %6392
          %v6394 = vsel %vm390, %v6228, -inf
          %6395 = vmax.xlane.f32.xlu0 %v6394
          %v6396 = vpop.xlane.xlu0 %6395
          %v6397 = vsel %vm390, %v6229, -inf
          %6398 = vmax.xlane.f32.xlu0 %v6397
          %v6399 = vpop.xlane.xlu0 %6398
          %v6400 = vsel %vm390, %v6230, -inf
          %6401 = vmax.xlane.f32.xlu0 %v6400
          %v6402 = vpop.xlane.xlu0 %6401
          %v6403 = vsel %vm390, %v6231, -inf
          %6404 = vmax.xlane.f32.xlu0 %v6403
          %v6405 = vpop.xlane.xlu0 %6404
          %v6406 = vsel %vm390, %v6232, -inf
          %6407 = vmax.xlane.f32.xlu0 %v6406
          %v6408 = vpop.xlane.xlu0 %6407
          %v6409 = vsel %vm390, %v6233, -inf
          %6410 = vmax.xlane.f32.xlu0 %v6409
          %v6411 = vpop.xlane.xlu0 %6410
          %v6412 = vsel %vm390, %v6234, -inf
          %6413 = vmax.xlane.f32.xlu0 %v6412
          %v6414 = vpop.xlane.xlu0 %6413
          %v6415 = vsel %vm390, %v6235, -inf
          %6416 = vmax.xlane.f32.xlu0 %v6415
          %v6417 = vpop.xlane.xlu0 %6416
          %v6418 = vsel %vm390, %v6236, -inf
          %6419 = vmax.xlane.f32.xlu0 %v6418
          %v6420 = vpop.xlane.xlu0 %6419
          %v6421 = vsel %vm390, %v6237, -inf
          %6422 = vmax.xlane.f32.xlu0 %v6421
          %v6423 = vpop.xlane.xlu0 %6422
          %v6424 = vsel %vm390, %v6238, -inf
          %6425 = vmax.xlane.f32.xlu0 %v6424
          %v6426 = vpop.xlane.xlu0 %6425
          %v6427 = vsel %vm390, %v6239, -inf
          %6428 = vmax.xlane.f32.xlu0 %v6427
          %v6429 = vpop.xlane.xlu0 %6428
          %v6430 = vsel %vm390, %v6240, -inf
          %6431 = vmax.xlane.f32.xlu0 %v6430
          %v6432 = vpop.xlane.xlu0 %6431
          %vm6433 = vcmp.eq.f32.partialorder %v6243, -inf
          %vm6434 = vcmp.eq.f32.partialorder %v6246, -inf
          %vm6435 = vcmp.eq.f32.partialorder %v6249, -inf
          %vm6436 = vcmp.eq.f32.partialorder %v6252, -inf
          %vm6437 = vcmp.eq.f32.partialorder %v6255, -inf
          %vm6438 = vcmp.eq.f32.partialorder %v6258, -inf
          %vm6439 = vcmp.eq.f32.partialorder %v6261, -inf
          %vm6440 = vcmp.eq.f32.partialorder %v6264, -inf
          %vm6441 = vcmp.eq.f32.partialorder %v6267, -inf
          %vm6442 = vcmp.eq.f32.partialorder %v6270, -inf
          %vm6443 = vcmp.eq.f32.partialorder %v6273, -inf
          %vm6444 = vcmp.eq.f32.partialorder %v6276, -inf
          %vm6445 = vcmp.eq.f32.partialorder %v6279, -inf
          %vm6446 = vcmp.eq.f32.partialorder %v6282, -inf
          %vm6447 = vcmp.eq.f32.partialorder %v6285, -inf
          %vm6448 = vcmp.eq.f32.partialorder %v6288, -inf
          %vm6449 = vcmp.eq.f32.partialorder %v6291, -inf
          %vm6450 = vcmp.eq.f32.partialorder %v6294, -inf
          %vm6451 = vcmp.eq.f32.partialorder %v6297, -inf
          %vm6452 = vcmp.eq.f32.partialorder %v6300, -inf
          %vm6453 = vcmp.eq.f32.partialorder %v6303, -inf
          %vm6454 = vcmp.eq.f32.partialorder %v6306, -inf
          %vm6455 = vcmp.eq.f32.partialorder %v6309, -inf
          %vm6456 = vcmp.eq.f32.partialorder %v6312, -inf
          %vm6457 = vcmp.eq.f32.partialorder %v6315, -inf
          %vm6458 = vcmp.eq.f32.partialorder %v6318, -inf
          %vm6459 = vcmp.eq.f32.partialorder %v6321, -inf
          %vm6460 = vcmp.eq.f32.partialorder %v6324, -inf
          %vm6461 = vcmp.eq.f32.partialorder %v6327, -inf
          %vm6462 = vcmp.eq.f32.partialorder %v6330, -inf
          %vm6463 = vcmp.eq.f32.partialorder %v6333, -inf
          %vm6464 = vcmp.eq.f32.partialorder %v6336, -inf
          %vm6465 = vcmp.eq.f32.partialorder %v6339, -inf
          %vm6466 = vcmp.eq.f32.partialorder %v6342, -inf
          %vm6467 = vcmp.eq.f32.partialorder %v6345, -inf
          %vm6468 = vcmp.eq.f32.partialorder %v6348, -inf
          %vm6469 = vcmp.eq.f32.partialorder %v6351, -inf
          %vm6470 = vcmp.eq.f32.partialorder %v6354, -inf
          %vm6471 = vcmp.eq.f32.partialorder %v6357, -inf
          %vm6472 = vcmp.eq.f32.partialorder %v6360, -inf
          %vm6473 = vcmp.eq.f32.partialorder %v6363, -inf
          %vm6474 = vcmp.eq.f32.partialorder %v6366, -inf
          %vm6475 = vcmp.eq.f32.partialorder %v6369, -inf
          %vm6476 = vcmp.eq.f32.partialorder %v6372, -inf
          %vm6477 = vcmp.eq.f32.partialorder %v6375, -inf
          %vm6478 = vcmp.eq.f32.partialorder %v6378, -inf
          %vm6479 = vcmp.eq.f32.partialorder %v6381, -inf
          %vm6480 = vcmp.eq.f32.partialorder %v6384, -inf
          %vm6481 = vcmp.eq.f32.partialorder %v6387, -inf
          %vm6482 = vcmp.eq.f32.partialorder %v6390, -inf
          %vm6483 = vcmp.eq.f32.partialorder %v6393, -inf
          %vm6484 = vcmp.eq.f32.partialorder %v6396, -inf
          %vm6485 = vcmp.eq.f32.partialorder %v6399, -inf
          %vm6486 = vcmp.eq.f32.partialorder %v6402, -inf
          %vm6487 = vcmp.eq.f32.partialorder %v6405, -inf
          %vm6488 = vcmp.eq.f32.partialorder %v6408, -inf
          %vm6489 = vcmp.eq.f32.partialorder %v6411, -inf
          %vm6490 = vcmp.eq.f32.partialorder %v6414, -inf
          %vm6491 = vcmp.eq.f32.partialorder %v6417, -inf
          %vm6492 = vcmp.eq.f32.partialorder %v6420, -inf
          %vm6493 = vcmp.eq.f32.partialorder %v6423, -inf
          %vm6494 = vcmp.eq.f32.partialorder %v6426, -inf
          %vm6495 = vcmp.eq.f32.partialorder %v6429, -inf
          %vm6496 = vcmp.eq.f32.partialorder %v6432, -inf
          %v6497 = vsel %vm6433, 0.0, %v6243
          %v6498 = vsel %vm6434, 0.0, %v6246
          %v6499 = vsel %vm6435, 0.0, %v6249
          %v6500 = vsel %vm6436, 0.0, %v6252
          %v6501 = vsel %vm6437, 0.0, %v6255
          %v6502 = vsel %vm6438, 0.0, %v6258
          %v6503 = vsel %vm6439, 0.0, %v6261
          %v6504 = vsel %vm6440, 0.0, %v6264
          %v6505 = vsel %vm6441, 0.0, %v6267
          %v6506 = vsel %vm6442, 0.0, %v6270
          %v6507 = vsel %vm6443, 0.0, %v6273
          %v6508 = vsel %vm6444, 0.0, %v6276
          %v6509 = vsel %vm6445, 0.0, %v6279
          %v6510 = vsel %vm6446, 0.0, %v6282
          %v6511 = vsel %vm6447, 0.0, %v6285
          %v6512 = vsel %vm6448, 0.0, %v6288
          %v6513 = vsel %vm6449, 0.0, %v6291
          %v6514 = vsel %vm6450, 0.0, %v6294
          %v6515 = vsel %vm6451, 0.0, %v6297
          %v6516 = vsel %vm6452, 0.0, %v6300
          %v6517 = vsel %vm6453, 0.0, %v6303
          %v6518 = vsel %vm6454, 0.0, %v6306
          %v6519 = vsel %vm6455, 0.0, %v6309
          %v6520 = vsel %vm6456, 0.0, %v6312
          %v6521 = vsel %vm6457, 0.0, %v6315
          %v6522 = vsel %vm6458, 0.0, %v6318
          %v6523 = vsel %vm6459, 0.0, %v6321
          %v6524 = vsel %vm6460, 0.0, %v6324
          %v6525 = vsel %vm6461, 0.0, %v6327
          %v6526 = vsel %vm6462, 0.0, %v6330
          %v6527 = vsel %vm6463, 0.0, %v6333
          %v6528 = vsel %vm6464, 0.0, %v6336
          %v6529 = vsel %vm6465, 0.0, %v6339
          %v6530 = vsel %vm6466, 0.0, %v6342
          %v6531 = vsel %vm6467, 0.0, %v6345
          %v6532 = vsel %vm6468, 0.0, %v6348
          %v6533 = vsel %vm6469, 0.0, %v6351
          %v6534 = vsel %vm6470, 0.0, %v6354
          %v6535 = vsel %vm6471, 0.0, %v6357
          %v6536 = vsel %vm6472, 0.0, %v6360
          %v6537 = vsel %vm6473, 0.0, %v6363
          %v6538 = vsel %vm6474, 0.0, %v6366
          %v6539 = vsel %vm6475, 0.0, %v6369
          %v6540 = vsel %vm6476, 0.0, %v6372
          %v6541 = vsel %vm6477, 0.0, %v6375
          %v6542 = vsel %vm6478, 0.0, %v6378
          %v6543 = vsel %vm6479, 0.0, %v6381
          %v6544 = vsel %vm6480, 0.0, %v6384
          %v6545 = vsel %vm6481, 0.0, %v6387
          %v6546 = vsel %vm6482, 0.0, %v6390
          %v6547 = vsel %vm6483, 0.0, %v6393
          %v6548 = vsel %vm6484, 0.0, %v6396
          %v6549 = vsel %vm6485, 0.0, %v6399
          %v6550 = vsel %vm6486, 0.0, %v6402
          %v6551 = vsel %vm6487, 0.0, %v6405
          %v6552 = vsel %vm6488, 0.0, %v6408
          %v6553 = vsel %vm6489, 0.0, %v6411
          %v6554 = vsel %vm6490, 0.0, %v6414
          %v6555 = vsel %vm6491, 0.0, %v6417
          %v6556 = vsel %vm6492, 0.0, %v6420
          %v6557 = vsel %vm6493, 0.0, %v6423
          %v6558 = vsel %vm6494, 0.0, %v6426
          %v6559 = vsel %vm6495, 0.0, %v6429
          %v6560 = vsel %vm6496, 0.0, %v6432
          %v6625 = vperm.slane %v6497, %v317
          %v6626 = vadd.s32 %v317, 4294967288
          %v6627 = vperm.slane %v6498, %v6626
          %vm6628 = vcmask 130112
          %v6629 = vsel %vm6628, %v6627, %v6625
          %v6630 = vadd.s32 %v317, 4294967280
          %v6631 = vperm.slane %v6499, %v6630
          %vm6632 = vcmask 195712
          %v6633 = vsel %vm6632, %v6631, %v6629
          %v6634 = vadd.s32 %v317, 4294967272
          %v6635 = vperm.slane %v6500, %v6634
          %vm6636 = vcmask 261312
          %v6637 = vsel %vm6636, %v6635, %v6633
          %v6638 = vadd.s32 %v317, 4294967264
          %v6639 = vperm.slane %v6501, %v6638
          %vm6640 = vcmask 326912
          %v6641 = vsel %vm6640, %v6639, %v6637
          %v6642 = vadd.s32 %v317, 4294967256
          %v6643 = vperm.slane %v6502, %v6642
          %vm6644 = vcmask 392512
          %v6645 = vsel %vm6644, %v6643, %v6641
          %v6646 = vadd.s32 %v317, 4294967248
          %v6647 = vperm.slane %v6503, %v6646
          %vm6648 = vcmask 458112
          %v6649 = vsel %vm6648, %v6647, %v6645
          %v6650 = vadd.s32 %v317, 4294967240
          %v6651 = vperm.slane %v6504, %v6650
          %vm6652 = vcmask 523712
          %v6653 = vsel %vm6652, %v6651, %v6649
          %v6654 = vadd.s32 %v317, 4294967232
          %v6655 = vperm.slane %v6505, %v6654
          %vm6656 = vcmask 589312
          %v6657 = vsel %vm6656, %v6655, %v6653
          %v6658 = vadd.s32 %v317, 4294967224
          %v6659 = vperm.slane %v6506, %v6658
          %vm6660 = vcmask 654912
          %v6661 = vsel %vm6660, %v6659, %v6657
          %v6662 = vadd.s32 %v317, 4294967216
          %v6663 = vperm.slane %v6507, %v6662
          %vm6664 = vcmask 720512
          %v6665 = vsel %vm6664, %v6663, %v6661
          %v6666 = vadd.s32 %v317, 4294967208
          %v6667 = vperm.slane %v6508, %v6666
          %vm6668 = vcmask 786112
          %v6669 = vsel %vm6668, %v6667, %v6665
          %v6670 = vadd.s32 %v317, 4294967200
          %v6671 = vperm.slane %v6509, %v6670
          %vm6672 = vcmask 851712
          %v6673 = vsel %vm6672, %v6671, %v6669
          %v6674 = vadd.s32 %v317, 4294967192
          %v6675 = vperm.slane %v6510, %v6674
          %vm6676 = vcmask 917312
          %v6677 = vsel %vm6676, %v6675, %v6673
          %v6678 = vadd.s32 %v317, 4294967184
          %v6679 = vperm.slane %v6511, %v6678
          %vm6680 = vcmask 982912
          %v6681 = vsel %vm6680, %v6679, %v6677
          %v6682 = vadd.s32 %v317, 4294967176
          %v6683 = vperm.slane %v6512, %v6682
          %vm6684 = vcmask 1048512
          %v6685 = vsel %vm6684, %v6683, %v6681
          %v6686 = vperm.slane %v6513, %v317
          %v6687 = vperm.slane %v6514, %v6626
          %v6688 = vsel %vm6628, %v6687, %v6686
          %v6689 = vperm.slane %v6515, %v6630
          %v6690 = vsel %vm6632, %v6689, %v6688
          %v6691 = vperm.slane %v6516, %v6634
          %v6692 = vsel %vm6636, %v6691, %v6690
          %v6693 = vperm.slane %v6517, %v6638
          %v6694 = vsel %vm6640, %v6693, %v6692
          %v6695 = vperm.slane %v6518, %v6642
          %v6696 = vsel %vm6644, %v6695, %v6694
          %v6697 = vperm.slane %v6519, %v6646
          %v6698 = vsel %vm6648, %v6697, %v6696
          %v6699 = vperm.slane %v6520, %v6650
          %v6700 = vsel %vm6652, %v6699, %v6698
          %v6701 = vperm.slane %v6521, %v6654
          %v6702 = vsel %vm6656, %v6701, %v6700
          %v6703 = vperm.slane %v6522, %v6658
          %v6704 = vsel %vm6660, %v6703, %v6702
          %v6705 = vperm.slane %v6523, %v6662
          %v6706 = vsel %vm6664, %v6705, %v6704
          %v6707 = vperm.slane %v6524, %v6666
          %v6708 = vsel %vm6668, %v6707, %v6706
          %v6709 = vperm.slane %v6525, %v6670
          %v6710 = vsel %vm6672, %v6709, %v6708
          %v6711 = vperm.slane %v6526, %v6674
          %v6712 = vsel %vm6676, %v6711, %v6710
          %v6713 = vperm.slane %v6527, %v6678
          %v6714 = vsel %vm6680, %v6713, %v6712
          %v6715 = vperm.slane %v6528, %v6682
          %v6716 = vsel %vm6684, %v6715, %v6714
          %v6717 = vperm.slane %v6529, %v317
          %v6718 = vperm.slane %v6530, %v6626
          %v6719 = vsel %vm6628, %v6718, %v6717
          %v6720 = vperm.slane %v6531, %v6630
          %v6721 = vsel %vm6632, %v6720, %v6719
          %v6722 = vperm.slane %v6532, %v6634
          %v6723 = vsel %vm6636, %v6722, %v6721
          %v6724 = vperm.slane %v6533, %v6638
          %v6725 = vsel %vm6640, %v6724, %v6723
          %v6726 = vperm.slane %v6534, %v6642
          %v6727 = vsel %vm6644, %v6726, %v6725
          %v6728 = vperm.slane %v6535, %v6646
          %v6729 = vsel %vm6648, %v6728, %v6727
          %v6730 = vperm.slane %v6536, %v6650
          %v6731 = vsel %vm6652, %v6730, %v6729
          %v6732 = vperm.slane %v6537, %v6654
          %v6733 = vsel %vm6656, %v6732, %v6731
          %v6734 = vperm.slane %v6538, %v6658
          %v6735 = vsel %vm6660, %v6734, %v6733
          %v6736 = vperm.slane %v6539, %v6662
          %v6737 = vsel %vm6664, %v6736, %v6735
          %v6738 = vperm.slane %v6540, %v6666
          %v6739 = vsel %vm6668, %v6738, %v6737
          %v6740 = vperm.slane %v6541, %v6670
          %v6741 = vsel %vm6672, %v6740, %v6739
          %v6742 = vperm.slane %v6542, %v6674
          %v6743 = vsel %vm6676, %v6742, %v6741
          %v6744 = vperm.slane %v6543, %v6678
          %v6745 = vsel %vm6680, %v6744, %v6743
          %v6746 = vperm.slane %v6544, %v6682
          %v6747 = vsel %vm6684, %v6746, %v6745
          %v6748 = vperm.slane %v6545, %v317
          %v6749 = vperm.slane %v6546, %v6626
          %v6750 = vsel %vm6628, %v6749, %v6748
          %v6751 = vperm.slane %v6547, %v6630
          %v6752 = vsel %vm6632, %v6751, %v6750
          %v6753 = vperm.slane %v6548, %v6634
          %v6754 = vsel %vm6636, %v6753, %v6752
          %v6755 = vperm.slane %v6549, %v6638
          %v6756 = vsel %vm6640, %v6755, %v6754
          %v6757 = vperm.slane %v6550, %v6642
          %v6758 = vsel %vm6644, %v6757, %v6756
          %v6759 = vperm.slane %v6551, %v6646
          %v6760 = vsel %vm6648, %v6759, %v6758
          %v6761 = vperm.slane %v6552, %v6650
          %v6762 = vsel %vm6652, %v6761, %v6760
          %v6763 = vperm.slane %v6553, %v6654
          %v6764 = vsel %vm6656, %v6763, %v6762
          %v6765 = vperm.slane %v6554, %v6658
          %v6766 = vsel %vm6660, %v6765, %v6764
          %v6767 = vperm.slane %v6555, %v6662
          %v6768 = vsel %vm6664, %v6767, %v6766
          %v6769 = vperm.slane %v6556, %v6666
          %v6770 = vsel %vm6668, %v6769, %v6768
          %v6771 = vperm.slane %v6557, %v6670
          %v6772 = vsel %vm6672, %v6771, %v6770
          %v6773 = vperm.slane %v6558, %v6674
          %v6774 = vsel %vm6676, %v6773, %v6772
          %v6775 = vperm.slane %v6559, %v6678
          %v6776 = vsel %vm6680, %v6775, %v6774
          %v6777 = vperm.slane %v6560, %v6682
          %v6778 = vsel %vm6684, %v6777, %v6776
          %v6779 = vsel %vm651, %v6716, %v6685
          %v6780 = vsel %vm653, %v6747, %v6779
          %v6781 = vsel %vm655, %v6778, %v6780
          %6783 = vst [vmem:[%s235] sm:$0xf] %v6781
        $region44: #{superfeatures.1} parent=27 // pred_fallthru
          _
        %s6784 = sand.u32 %s109, 1
        %s6785 = scalar_lea.sflag [#allocation5], %s6784
        %s6786 = sand.u32 %s109, 1
        %s6787 = smul.addr %s6786, 4
        %s6788 = scalar_lea.vmem [#allocation8], %s6787
        // Predicated region
        $region45: #{superfeatures.1} parent=27 // pred_check
          %p6789 = pneg %p119
        $region46: #{superfeatures.1} parent=27 // pred_check_branch
          %6791 = sbr.rel (%p6789) target = $region48
        $region47: #{superfeatures.1} parent=27 // pred_region
          %6793 = vsyncadd %s6785, 0
          %s6794 = sadd.s32 %s28, %s27
          %s6795 = smul.addr %s6794, 4
          %s6796 = scalar_lea.hbm %s2, %s6795
          %s6798 = sshll.u32 %s6788, 4
          %s6799 = int_to_ptr.vmem [resolvable:$true] %s6798
          %s6800 = sshll.u32 %s6796, 4
          %s6801 = int_to_ptr.hbm [resolvable:$true] %s6800
          %6803 = dma.vmem_to_hbm [thread:$0]  %s6799, 64, %s6801, %s6785
        $region48: #{superfeatures.1} parent=27 // pred_fallthru
          _
      $region28: #{superfeatures.1} parent=5 // pred_fallthru
        _
      %p6804 = scmp.le.s32.totalorder 2, %s17
      // Predicated region
      $region49: #{superfeatures.1} parent=5 // pred_check
        %p6805 = pneg %p6804
      $region50: #{superfeatures.1} parent=5 // pred_check_branch
        %6807 = sbr.rel (%p6805) target = $region52
      $region51: #{superfeatures.1} parent=5 // pred_region
        %s6808 = ssub.s32 %s17, 2
        // Predicated region
        $region53: #{superfeatures.1} parent=51 // pred_check
          %p6809 = pneg %p125
        $region54: #{superfeatures.1} parent=51 // pred_check_branch
          %6811 = sbr.rel (%p6809) target = $region56
        $region55: #{superfeatures.1} parent=51 // pred_region
          %s6812 = sand.u32 %s110, 1
          %s6813 = scalar_lea.sflag [#allocation5], %s6812
          %s6814 = sand.u32 %s110, 1
          %s6815 = smul.addr %s6814, 4
          %s6816 = scalar_lea.vmem [#allocation8], %s6815
          %6818 = dma.done %s6813, 64
        $region56: #{superfeatures.1} parent=51 // pred_fallthru
          _
      $region52: #{superfeatures.1} parent=5 // pred_fallthru
        _
    $region6: #{superfeatures.1} parent=1 // loop_footer
      %s21 = sadd.s32 1, %s17
    $region7: #{superfeatures.1} parent=1 // loop_footer_branch
      %16 = sbr.rel target = $region3
    $region8: #{superfeatures.1} parent=1 // loop_exit
      _
    %6819 = vsyncpa [#allocation4], 1
    %s6820 = scalar_lea.sflag [#allocation4], 1
    %6821 = vsyncpa %s6820, 1
    %6822 = vsyncpa [#allocation7], 1
    %s6823 = scalar_lea.sflag [#allocation7], 1
    %6824 = vsyncpa %s6823, 1
    %6825 = vsyncpa [#allocation5], 1
    %s6826 = scalar_lea.sflag [#allocation5], 1
    %6827 = vsyncpa %s6826, 1

</llo_original>
